<compile_context>
chip_gen: v7x
topology: tpu7x:2x2x1
jax: 0.10.0
libtpu: 0.0.40
codegen_flags: <defaults>
</compile_context>

<pallas_src>
import functools
import math

import jax
import jax.numpy as jnp
from jax.experimental import pallas as pl
from jax.experimental.pallas import tpu as pltpu

NUM_HEADS = 12
HEAD_SIZE = 7
ALL_HEAD = NUM_HEADS * HEAD_SIZE      # 84
HIDDEN = 512
SEQ = HEAD_SIZE                       # must equal head_size (see note above)
QKV_WIDTH = 3 * ALL_HEAD              # 252
QKV_PAD = 256                         # lane-aligned / MXU-friendly proj width
OUT_PAD = 128                         # lane-dense output width (slice :84 outside)


# ---------------------------------------------------------------------------
# Single fused kernel: QKV projection + batched per-head attention + merge.
#   x_ref: (B*S, 512)  w_ref: (512, 256)  b_ref: (1, 256)  o_ref: (B*S, 128)
# ---------------------------------------------------------------------------
def fused_attention_kernel(x_ref, w_ref, b_ref, o_ref, *, batch, seq):
    rows = batch * seq

    # One lane-dense (B*S, 512) @ (512, 256) matmul yields Q|K|V for every
    # row and head at once.  Columns 252:255 are zero padding, never read.
    # The 1/sqrt(head_size) attention scale is pre-folded into the Q columns.
    qkv = jnp.dot(x_ref[...], w_ref[...],
                  preferred_element_type=jnp.float32) + b_ref[...]

    q = qkv[:, 0:ALL_HEAD]
    k = qkv[:, ALL_HEAD:2 * ALL_HEAD]
    v = qkv[:, 2 * ALL_HEAD:3 * ALL_HEAD]

    def to_heads(t):  # (B*S, 84) -> (B*H, S, D): one relayout per operand
        return (t.reshape(batch, seq, NUM_HEADS, HEAD_SIZE)
                 .transpose(0, 2, 1, 3)
                 .reshape(batch * NUM_HEADS, seq, HEAD_SIZE))

    qh = to_heads(q)
    kh = to_heads(k)
    vh = to_heads(v)

    # scores = Q @ K  (NO transpose on K — faithful to the module; only valid
    # because seq == head_size == 7), batched over all batch*head pairs.
    s = jnp.einsum("bik,bkj->bij", qh, kh,
                   preferred_element_type=jnp.float32)

    # Numerically-stable softmax over the last axis, one block-wide set of
    # reductions for all batch*head score tiles.  Exact normalization:
    # the approx-reciprocal variant exceeded the 1e-3 tolerance check.
    s = s - jnp.max(s, axis=-1, keepdims=True)
    e = jnp.exp(s)
    p = e / jnp.sum(e, axis=-1, keepdims=True)
    # TODO(synk): nn.Dropout(0.5) on attention_probs is identity in eval mode;
    # training-mode stochastic dropout is not implemented.

    ctx = jnp.einsum("bij,bjd->bid", p, vh,
                     preferred_element_type=jnp.float32)   # (B*H, S, D)

    # (B*H, S, D) -> (B*S, 84) head merge, then pad to 128 lanes so the store
    # is a full-width unmasked vst (lane-dense output).
    merged = (ctx.reshape(batch, NUM_HEADS, seq, HEAD_SIZE)
                 .transpose(0, 2, 1, 3)
                 .reshape(rows, ALL_HEAD))
    pad = jnp.zeros((rows, OUT_PAD - ALL_HEAD), dtype=merged.dtype)
    o_ref[...] = jnp.concatenate([merged, pad], axis=-1)


# ---------------------------------------------------------------------------
# Wrappers
# ---------------------------------------------------------------------------
def fuse_qkv_params(params):
    """One-time weight prep.

    Concat wq|wk|wv -> (512, 252), zero-pad to 256, and fold the
    1/sqrt(head_size) attention scale into the Q columns (weight AND bias) so
    the kernel never multiplies the scores by the scale.
    """
    scale = 1.0 / math.sqrt(HEAD_SIZE)
    w = jnp.concatenate(
        [params["wq"] * scale, params["wk"], params["wv"]], axis=1)
    w = jnp.pad(w, ((0, 0), (0, QKV_PAD - QKV_WIDTH)))
    b = jnp.concatenate([params["bq"] * scale, params["bk"], params["bv"]])
    b = jnp.pad(b, (0, QKV_PAD - QKV_WIDTH)).reshape(1, QKV_PAD)
    return w, b


@jax.jit
def self_attention_forward(hidden_states, w_qkv, b_qkv):
    bsz, seq, hidden = hidden_states.shape
    assert seq == SEQ and hidden == HIDDEN
    rows = bsz * seq
    # Free row-major reshape: (B, S, 512) -> (B*S, 512) so the projection is
    # one matmul with full sublane occupancy.
    x2d = hidden_states.reshape(rows, hidden)

    vmem = pl.BlockSpec(memory_space=pltpu.MemorySpace.VMEM)
    out2d = pl.pallas_call(
        functools.partial(fused_attention_kernel, batch=bsz, seq=seq),
        out_shape=jax.ShapeDtypeStruct((rows, OUT_PAD), jnp.float32),
        in_specs=[vmem, vmem, vmem],
        out_specs=vmem,
    )(x2d, w_qkv, b_qkv)

    # Strip the lane padding and restore (B, S, 84).
    return out2d[:, :ALL_HEAD].reshape(bsz, seq, ALL_HEAD)


# ---------------------------------------------------------------------------
# Pure-JAX reference (mirrors the PyTorch forward exactly, eval mode)
# ---------------------------------------------------------------------------
def reference(hidden_states, params):
    b, s, _ = hidden_states.shape
    q = hidden_states @ params["wq"] + params["bq"]
    k = hidden_states @ params["wk"] + params["bk"]
    v = hidden_states @ params["wv"] + params["bv"]

    def split_heads(t):
        return t.reshape(b, s, NUM_HEADS, HEAD_SIZE).transpose(0, 2, 1, 3)

    q, k, v = split_heads(q), split_heads(k), split_heads(v)
    scores = jnp.einsum("bhik,bhkj->bhij", q, k) / math.sqrt(HEAD_SIZE)
    probs = jax.nn.softmax(scores, axis=-1)
    ctx = jnp.einsum("bhij,bhjd->bhid", probs, v)
    return ctx.transpose(0, 2, 1, 3).reshape(b, s, ALL_HEAD)


if __name__ == "__main__":
    key = jax.random.PRNGKey(0)
    ks = jax.random.split(key, 7)
    bound = 1.0 / math.sqrt(HIDDEN)   # PyTorch nn.Linear default init range
    params = {
        "wq": jax.random.uniform(ks[0], (HIDDEN, ALL_HEAD), jnp.float32, -bound, bound),
        "wk": jax.random.uniform(ks[1], (HIDDEN, ALL_HEAD), jnp.float32, -bound, bound),
        "wv": jax.random.uniform(ks[2], (HIDDEN, ALL_HEAD), jnp.float32, -bound, bound),
        "bq": jax.random.uniform(ks[3], (ALL_HEAD,), jnp.float32, -bound, bound),
        "bk": jax.random.uniform(ks[4], (ALL_HEAD,), jnp.float32, -bound, bound),
        "bv": jax.random.uniform(ks[5], (ALL_HEAD,), jnp.float32, -bound, bound),
    }
    x = jax.random.normal(ks[6], (2, SEQ, HIDDEN), jnp.float32)

    w_qkv, b_qkv = fuse_qkv_params(params)
    out = self_attention_forward(x, w_qkv, b_qkv)
    out = jax.block_until_ready(out)

    ref = reference(x, params)
    assert out.shape == (2, SEQ, ALL_HEAD), out.shape
    err = float(jnp.max(jnp.abs(out - ref)))
    assert err < 1e-3, err
    print("KERNEL_OK")
</pallas_src>

<mosaic_0001>
module attributes {stable_mosaic.version = 11 : i64} {
  func.func @fused_attention_kernel(%arg0: memref<14x512xf32, #tpu.memory_space<vmem>>, %arg1: memref<512x256xf32, #tpu.memory_space<vmem>>, %arg2: memref<1x256xf32, #tpu.memory_space<vmem>>, %arg3: memref<14x128xf32, #tpu.memory_space<vmem>>) attributes {dimension_semantics = [], scalar_prefetch = 0 : i64, scratch_operands = 0 : i64, tpu.core_type = #tpu.core_type<tc>} {
    %c0 = arith.constant 0 : index
    %c0_0 = arith.constant 0 : index
    %0 = vector.load %arg0[%c0, %c0_0] : memref<14x512xf32, #tpu.memory_space<vmem>>, vector<14x512xf32>
    %c0_1 = arith.constant 0 : index
    %c0_2 = arith.constant 0 : index
    %1 = vector.load %arg1[%c0_1, %c0_2] : memref<512x256xf32, #tpu.memory_space<vmem>>, vector<512x256xf32>
    %cst = arith.constant dense<0.000000e+00> : vector<14x256xf32>
    %2 = tpu.matmul %0, %1, %cst {dimension_numbers = #tpu.dot_dimension_numbers<[1], [0], [0], [1], [0, 0, 1, 1], [], []>} : vector<14x512xf32>, vector<512x256xf32>, vector<14x256xf32> -> vector<14x256xf32>
    %c0_3 = arith.constant 0 : index
    %c0_4 = arith.constant 0 : index
    %3 = vector.load %arg2[%c0_3, %c0_4] : memref<1x256xf32, #tpu.memory_space<vmem>>, vector<1x256xf32>
    %4 = vector.broadcast %3 : vector<1x256xf32> to vector<14x256xf32>
    %5 = arith.addf %2, %4 : vector<14x256xf32>
    %6 = vector.extract_strided_slice %5 {offsets = [0, 0], sizes = [14, 84], strides = [1, 1]} : vector<14x256xf32> to vector<14x84xf32>
    %7 = vector.extract_strided_slice %5 {offsets = [0, 84], sizes = [14, 84], strides = [1, 1]} : vector<14x256xf32> to vector<14x84xf32>
    %8 = vector.extract_strided_slice %5 {offsets = [0, 168], sizes = [14, 84], strides = [1, 1]} : vector<14x256xf32> to vector<14x84xf32>
    %9 = vector.shape_cast %6 : vector<14x84xf32> to vector<2x7x12x7xf32>
    %10 = tpu.transpose %9, [0, 2, 1, 3] : vector<2x7x12x7xf32> -> vector<2x12x7x7xf32>
    %11 = vector.shape_cast %10 : vector<2x12x7x7xf32> to vector<24x7x7xf32>
    %12 = vector.shape_cast %7 : vector<14x84xf32> to vector<2x7x12x7xf32>
    %13 = tpu.transpose %12, [0, 2, 1, 3] : vector<2x7x12x7xf32> -> vector<2x12x7x7xf32>
    %14 = vector.shape_cast %13 : vector<2x12x7x7xf32> to vector<24x7x7xf32>
    %15 = vector.shape_cast %8 : vector<14x84xf32> to vector<2x7x12x7xf32>
    %16 = tpu.transpose %15, [0, 2, 1, 3] : vector<2x7x12x7xf32> -> vector<2x12x7x7xf32>
    %17 = vector.shape_cast %16 : vector<2x12x7x7xf32> to vector<24x7x7xf32>
    "tpu.trace_start"() <{level = 10 : i32, message = "bik,bkj->bij"}> : () -> ()
    %cst_5 = arith.constant dense<0.000000e+00> : vector<24x7x7xf32>
    %18 = tpu.matmul %11, %14, %cst_5 {dimension_numbers = #tpu.dot_dimension_numbers<[2], [1], [1], [2], [0, 0, 0, 1, 1, 2], [0], [0]>} : vector<24x7x7xf32>, vector<24x7x7xf32>, vector<24x7x7xf32> -> vector<24x7x7xf32>
    "tpu.trace_stop"() : () -> ()
    %cst_6 = arith.constant dense<0xFF800000> : vector<24x7xf32>
    %19 = vector.multi_reduction <maximumf>, %18, %cst_6 [2] : vector<24x7x7xf32> to vector<24x7xf32>
    %20 = vector.shape_cast %19 : vector<24x7xf32> to vector<24x7x1xf32>
    %21 = vector.broadcast %20 : vector<24x7x1xf32> to vector<24x7x7xf32>
    %22 = arith.subf %18, %21 : vector<24x7x7xf32>
    %23 = math.exp %22 : vector<24x7x7xf32>
    %cst_7 = arith.constant dense<0.000000e+00> : vector<24x7xf32>
    %24 = vector.multi_reduction <add>, %23, %cst_7 [2] : vector<24x7x7xf32> to vector<24x7xf32>
    %25 = vector.shape_cast %24 : vector<24x7xf32> to vector<24x7x1xf32>
    %26 = vector.broadcast %25 : vector<24x7x1xf32> to vector<24x7x7xf32>
    %27 = arith.divf %23, %26 : vector<24x7x7xf32>
    "tpu.trace_start"() <{level = 10 : i32, message = "bij,bjd->bid"}> : () -> ()
    %cst_8 = arith.constant dense<0.000000e+00> : vector<24x7x7xf32>
    %28 = tpu.matmul %27, %17, %cst_8 {dimension_numbers = #tpu.dot_dimension_numbers<[2], [1], [1], [2], [0, 0, 0, 1, 1, 2], [0], [0]>} : vector<24x7x7xf32>, vector<24x7x7xf32>, vector<24x7x7xf32> -> vector<24x7x7xf32>
    "tpu.trace_stop"() : () -> ()
    %29 = vector.shape_cast %28 : vector<24x7x7xf32> to vector<2x12x7x7xf32>
    %30 = tpu.transpose %29, [0, 2, 1, 3] : vector<2x12x7x7xf32> -> vector<2x7x12x7xf32>
    %31 = vector.shape_cast %30 : vector<2x7x12x7xf32> to vector<14x84xf32>
    %cst_9 = arith.constant 0.000000e+00 : f32
    %32 = vector.broadcast %cst_9 : f32 to vector<14x44xf32>
    %33 = tpu.concatenate %31, %32 in 1 : vector<14x84xf32>, vector<14x44xf32> -> vector<14x128xf32>
    %c0_10 = arith.constant 0 : index
    %c0_11 = arith.constant 0 : index
    %34 = vector.load %arg3[%c0_10, %c0_11] : memref<14x128xf32, #tpu.memory_space<vmem>>, vector<14x128xf32>
    tpu.vector_store %arg3[%c0_10, %c0_11], %33 {strides = array<i32>} : memref<14x128xf32, #tpu.memory_space<vmem>>, vector<14x128xf32>,
    return
  }
}

</mosaic_0001>

<llo_original>
// kernel: self_attention_forward.1
$region0: #{self_attention_forward.1}
  #allocation0 [shape = 'u32[]', space=smem, size = 0x4, offset = 0x4, fixed_abs, tag = 'smem constant byte address 0x4 - core index']
  #allocation1 [shape = 'u32[144,128]{1,0:T(1,128)}', space=vmem, size = 0x12000, scoped, tag = 'internal scratch']
  %s0 = inlined_call_operand.vmem [shape: f32[14,512], index: 0, kind: input, shape index: {}]
  %s1 = inlined_call_operand.hbm [shape: f32[512,256], index: 1, kind: input, shape index: {}]
  %s2 = inlined_call_operand.vmem [shape: f32[1,256], index: 2, kind: input, shape index: {}]
  %s3 = inlined_call_operand.vmem [shape: f32[14,128], index: 3, kind: output, shape index: {}]
  %s4 = sld [smem:[#allocation0]]
  $region26: #{self_attention_forward.1} parent=0
    _
  %s6 = ssub.s32 1, %s4
  %s7 = scalar_select 0, %s6, %s4
  $region1: #{self_attention_forward.1} parent=0
    #allocation2 [shape = 'u8[524288]{0}', space=vmem, size = 0x80000, scoped, tag = 'input window, operand 1, single buffered']
    #allocation3 [shape = 's32[1]{0}', space=sflag, size = 0x4, scoped, tag = 'scoped memory for self_attention_forward.1']
    %8 = vsyncpa [#allocation3], 0
    // Predicated region
    $region2: #{self_attention_forward.1} parent=1 // pred_check
      _
    $region3: #{self_attention_forward.1} parent=1 // pred_check_branch
      %10 = sbr.rel (0) target = $region5
    $region4: #{self_attention_forward.1} parent=1 // pred_region
      _
    $region5: #{self_attention_forward.1} parent=1 // pred_fallthru
      _
    // Predicated region
    $region6: #{self_attention_forward.1} parent=1 // pred_check
      _
    $region7: #{self_attention_forward.1} parent=1 // pred_check_branch
      %12 = sbr.rel (0) target = $region9
    $region8: #{self_attention_forward.1} parent=1 // pred_region
      %s14 = ssub.s32 16384, 16384
      %15 = vsyncadd [#allocation3], %s14
      %s16 = sshll.u32 [#allocation2], 4
      %s17 = int_to_ptr.vmem [resolvable:$true] %s16
      %22 = dma.hbm_to_vmem [thread:$0]  %s1, 16384, %s17, [#allocation3], 256, 256, 16
    $region9: #{self_attention_forward.1} parent=1 // pred_fallthru
      _
    // Predicated region
    $region10: #{self_attention_forward.1} parent=1 // pred_check
      _
    $region11: #{self_attention_forward.1} parent=1 // pred_check_branch
      %24 = sbr.rel (0) target = $region13
    $region12: #{self_attention_forward.1} parent=1 // pred_region
      _
    $region13: #{self_attention_forward.1} parent=1 // pred_fallthru
      _
    // Predicated region
    $region14: #{self_attention_forward.1} parent=1 // pred_check
      _
    $region15: #{self_attention_forward.1} parent=1 // pred_check_branch
      %26 = sbr.rel (0) target = $region17
    $region16: #{self_attention_forward.1} parent=1 // pred_region
      %27 = dma.done [#allocation3], 16384
    $region17: #{self_attention_forward.1} parent=1 // pred_fallthru
      _
    %v28 = vld [vmem:[%s0] sm:$0xff]
    %v29 = vld [vmem:[%s0 + $0x8] sm:$0xff]
    %v30 = vld [vmem:[%s0 + $0x10] sm:$0xff]
    %v31 = vld [vmem:[%s0 + $0x18] sm:$0xff]
    %v32 = vld [vmem:[%s0 + $0x20] sm:$0x3f]
    %v33 = vld [vmem:[%s0 + $0x28] sm:$0x3f]
    %v34 = vld [vmem:[%s0 + $0x30] sm:$0x3f]
    %v35 = vld [vmem:[%s0 + $0x38] sm:$0x3f]
    %v36 = vld [vmem:[#allocation2] sm:$0xff]
    %v37 = vld [vmem:[#allocation2 + $0x8] sm:$0xff]
    %v38 = vld [vmem:[#allocation2 + $0x10] sm:$0xff]
    %v39 = vld [vmem:[#allocation2 + $0x18] sm:$0xff]
    %v40 = vld [vmem:[#allocation2 + $0x20] sm:$0xff]
    %v41 = vld [vmem:[#allocation2 + $0x28] sm:$0xff]
    %v42 = vld [vmem:[#allocation2 + $0x30] sm:$0xff]
    %v43 = vld [vmem:[#allocation2 + $0x38] sm:$0xff]
    %v44 = vld [vmem:[#allocation2 + $0x40] sm:$0xff]
    %v45 = vld [vmem:[#allocation2 + $0x48] sm:$0xff]
    %v46 = vld [vmem:[#allocation2 + $0x50] sm:$0xff]
    %v47 = vld [vmem:[#allocation2 + $0x58] sm:$0xff]
    %v48 = vld [vmem:[#allocation2 + $0x60] sm:$0xff]
    %v49 = vld [vmem:[#allocation2 + $0x68] sm:$0xff]
    %v50 = vld [vmem:[#allocation2 + $0x70] sm:$0xff]
    %v51 = vld [vmem:[#allocation2 + $0x78] sm:$0xff]
    %v52 = vld [vmem:[#allocation2 + $0x80] sm:$0xff]
    %v53 = vld [vmem:[#allocation2 + $0x88] sm:$0xff]
    %v54 = vld [vmem:[#allocation2 + $0x90] sm:$0xff]
    %v55 = vld [vmem:[#allocation2 + $0x98] sm:$0xff]
    %v56 = vld [vmem:[#allocation2 + $0xa0] sm:$0xff]
    %v57 = vld [vmem:[#allocation2 + $0xa8] sm:$0xff]
    %v58 = vld [vmem:[#allocation2 + $0xb0] sm:$0xff]
    %v59 = vld [vmem:[#allocation2 + $0xb8] sm:$0xff]
    %v60 = vld [vmem:[#allocation2 + $0xc0] sm:$0xff]
    %v61 = vld [vmem:[#allocation2 + $0xc8] sm:$0xff]
    %v62 = vld [vmem:[#allocation2 + $0xd0] sm:$0xff]
    %v63 = vld [vmem:[#allocation2 + $0xd8] sm:$0xff]
    %v64 = vld [vmem:[#allocation2 + $0xe0] sm:$0xff]
    %v65 = vld [vmem:[#allocation2 + $0xe8] sm:$0xff]
    %v66 = vld [vmem:[#allocation2 + $0xf0] sm:$0xff]
    %v67 = vld [vmem:[#allocation2 + $0xf8] sm:$0xff]
    %v68 = vld [vmem:[#allocation2 + $0x100] sm:$0xff]
    %v69 = vld [vmem:[#allocation2 + $0x108] sm:$0xff]
    %v70 = vld [vmem:[#allocation2 + $0x110] sm:$0xff]
    %v71 = vld [vmem:[#allocation2 + $0x118] sm:$0xff]
    %v72 = vld [vmem:[#allocation2 + $0x120] sm:$0xff]
    %v73 = vld [vmem:[#allocation2 + $0x128] sm:$0xff]
    %v74 = vld [vmem:[#allocation2 + $0x130] sm:$0xff]
    %v75 = vld [vmem:[#allocation2 + $0x138] sm:$0xff]
    %v76 = vld [vmem:[#allocation2 + $0x140] sm:$0xff]
    %v77 = vld [vmem:[#allocation2 + $0x148] sm:$0xff]
    %v78 = vld [vmem:[#allocation2 + $0x150] sm:$0xff]
    %v79 = vld [vmem:[#allocation2 + $0x158] sm:$0xff]
    %v80 = vld [vmem:[#allocation2 + $0x160] sm:$0xff]
    %v81 = vld [vmem:[#allocation2 + $0x168] sm:$0xff]
    %v82 = vld [vmem:[#allocation2 + $0x170] sm:$0xff]
    %v83 = vld [vmem:[#allocation2 + $0x178] sm:$0xff]
    %v84 = vld [vmem:[#allocation2 + $0x180] sm:$0xff]
    %v85 = vld [vmem:[#allocation2 + $0x188] sm:$0xff]
    %v86 = vld [vmem:[#allocation2 + $0x190] sm:$0xff]
    %v87 = vld [vmem:[#allocation2 + $0x198] sm:$0xff]
    %v88 = vld [vmem:[#allocation2 + $0x1a0] sm:$0xff]
    %v89 = vld [vmem:[#allocation2 + $0x1a8] sm:$0xff]
    %v90 = vld [vmem:[#allocation2 + $0x1b0] sm:$0xff]
    %v91 = vld [vmem:[#allocation2 + $0x1b8] sm:$0xff]
    %v92 = vld [vmem:[#allocation2 + $0x1c0] sm:$0xff]
    %v93 = vld [vmem:[#allocation2 + $0x1c8] sm:$0xff]
    %v94 = vld [vmem:[#allocation2 + $0x1d0] sm:$0xff]
    %v95 = vld [vmem:[#allocation2 + $0x1d8] sm:$0xff]
    %v96 = vld [vmem:[#allocation2 + $0x1e0] sm:$0xff]
    %v97 = vld [vmem:[#allocation2 + $0x1e8] sm:$0xff]
    %v98 = vld [vmem:[#allocation2 + $0x1f0] sm:$0xff]
    %v99 = vld [vmem:[#allocation2 + $0x1f8] sm:$0xff]
    %v100 = vld [vmem:[#allocation2 + $0x200] sm:$0xff]
    %v101 = vld [vmem:[#allocation2 + $0x208] sm:$0xff]
    %v102 = vld [vmem:[#allocation2 + $0x210] sm:$0xff]
    %v103 = vld [vmem:[#allocation2 + $0x218] sm:$0xff]
    %v104 = vld [vmem:[#allocation2 + $0x220] sm:$0xff]
    %v105 = vld [vmem:[#allocation2 + $0x228] sm:$0xff]
    %v106 = vld [vmem:[#allocation2 + $0x230] sm:$0xff]
    %v107 = vld [vmem:[#allocation2 + $0x238] sm:$0xff]
    %v108 = vld [vmem:[#allocation2 + $0x240] sm:$0xff]
    %v109 = vld [vmem:[#allocation2 + $0x248] sm:$0xff]
    %v110 = vld [vmem:[#allocation2 + $0x250] sm:$0xff]
    %v111 = vld [vmem:[#allocation2 + $0x258] sm:$0xff]
    %v112 = vld [vmem:[#allocation2 + $0x260] sm:$0xff]
    %v113 = vld [vmem:[#allocation2 + $0x268] sm:$0xff]
    %v114 = vld [vmem:[#allocation2 + $0x270] sm:$0xff]
    %v115 = vld [vmem:[#allocation2 + $0x278] sm:$0xff]
    %v116 = vld [vmem:[#allocation2 + $0x280] sm:$0xff]
    %v117 = vld [vmem:[#allocation2 + $0x288] sm:$0xff]
    %v118 = vld [vmem:[#allocation2 + $0x290] sm:$0xff]
    %v119 = vld [vmem:[#allocation2 + $0x298] sm:$0xff]
    %v120 = vld [vmem:[#allocation2 + $0x2a0] sm:$0xff]
    %v121 = vld [vmem:[#allocation2 + $0x2a8] sm:$0xff]
    %v122 = vld [vmem:[#allocation2 + $0x2b0] sm:$0xff]
    %v123 = vld [vmem:[#allocation2 + $0x2b8] sm:$0xff]
    %v124 = vld [vmem:[#allocation2 + $0x2c0] sm:$0xff]
    %v125 = vld [vmem:[#allocation2 + $0x2c8] sm:$0xff]
    %v126 = vld [vmem:[#allocation2 + $0x2d0] sm:$0xff]
    %v127 = vld [vmem:[#allocation2 + $0x2d8] sm:$0xff]
    %v128 = vld [vmem:[#allocation2 + $0x2e0] sm:$0xff]
    %v129 = vld [vmem:[#allocation2 + $0x2e8] sm:$0xff]
    %v130 = vld [vmem:[#allocation2 + $0x2f0] sm:$0xff]
    %v131 = vld [vmem:[#allocation2 + $0x2f8] sm:$0xff]
    %v132 = vld [vmem:[#allocation2 + $0x300] sm:$0xff]
    %v133 = vld [vmem:[#allocation2 + $0x308] sm:$0xff]
    %v134 = vld [vmem:[#allocation2 + $0x310] sm:$0xff]
    %v135 = vld [vmem:[#allocation2 + $0x318] sm:$0xff]
    %v136 = vld [vmem:[#allocation2 + $0x320] sm:$0xff]
    %v137 = vld [vmem:[#allocation2 + $0x328] sm:$0xff]
    %v138 = vld [vmem:[#allocation2 + $0x330] sm:$0xff]
    %v139 = vld [vmem:[#allocation2 + $0x338] sm:$0xff]
    %v140 = vld [vmem:[#allocation2 + $0x340] sm:$0xff]
    %v141 = vld [vmem:[#allocation2 + $0x348] sm:$0xff]
    %v142 = vld [vmem:[#allocation2 + $0x350] sm:$0xff]
    %v143 = vld [vmem:[#allocation2 + $0x358] sm:$0xff]
    %v144 = vld [vmem:[#allocation2 + $0x360] sm:$0xff]
    %v145 = vld [vmem:[#allocation2 + $0x368] sm:$0xff]
    %v146 = vld [vmem:[#allocation2 + $0x370] sm:$0xff]
    %v147 = vld [vmem:[#allocation2 + $0x378] sm:$0xff]
    %v148 = vld [vmem:[#allocation2 + $0x380] sm:$0xff]
    %v149 = vld [vmem:[#allocation2 + $0x388] sm:$0xff]
    %v150 = vld [vmem:[#allocation2 + $0x390] sm:$0xff]
    %v151 = vld [vmem:[#allocation2 + $0x398] sm:$0xff]
    %v152 = vld [vmem:[#allocation2 + $0x3a0] sm:$0xff]
    %v153 = vld [vmem:[#allocation2 + $0x3a8] sm:$0xff]
    %v154 = vld [vmem:[#allocation2 + $0x3b0] sm:$0xff]
    %v155 = vld [vmem:[#allocation2 + $0x3b8] sm:$0xff]
    %v156 = vld [vmem:[#allocation2 + $0x3c0] sm:$0xff]
    %v157 = vld [vmem:[#allocation2 + $0x3c8] sm:$0xff]
    %v158 = vld [vmem:[#allocation2 + $0x3d0] sm:$0xff]
    %v159 = vld [vmem:[#allocation2 + $0x3d8] sm:$0xff]
    %v160 = vld [vmem:[#allocation2 + $0x3e0] sm:$0xff]
    %v161 = vld [vmem:[#allocation2 + $0x3e8] sm:$0xff]
    %v162 = vld [vmem:[#allocation2 + $0x3f0] sm:$0xff]
    %v163 = vld [vmem:[#allocation2 + $0x3f8] sm:$0xff]
    %v164 = vld [vmem:[%s2] sm:$0x3]
    %v166 = vlaneseq
    %v167 = vshrl.u32 %v166, 7
    %v168 = vsub.s32 0, %v167
    %v169 = vrot.slane %v164, %v168
    %v170 = vlaneseq
    %v171 = vshrl.u32 %v170, 7
    %v172 = vsub.s32 1, %v171
    %v173 = vrot.slane %v164, %v172
    %176 = vmatprep.subr.mxu0 %v37
    %177 = vmatpush1.msra.mxu0 %v36
    %178 = vmatprep.subr.mxu0 %v39
    %179 = vmatpush1.msra.mxu0 %v38
    %180 = vmatprep.subr.mxu0 %v41
    %181 = vmatpush1.msra.mxu0 %v40
    %182 = vmatprep.subr.mxu0 %v43
    %183 = vmatpush1.msra.mxu0 %v42
    %184 = vmatprep.subr.mxu0 %v45
    %185 = vmatpush1.msra.mxu0 %v44
    %186 = vmatprep.subr.mxu0 %v47
    %187 = vmatpush1.msra.mxu0 %v46
    %188 = vmatprep.subr.mxu0 %v49
    %189 = vmatpush1.msra.mxu0 %v48
    %190 = vmatprep.subr.mxu0 %v51
    %191 = vmatpush1.msra.mxu0 %v50
    %192 = vmatprep.subr.mxu0 %v53
    %193 = vmatpush1.msra.mxu0 %v52
    %194 = vmatprep.subr.mxu0 %v55
    %195 = vmatpush1.msra.mxu0 %v54
    %196 = vmatprep.subr.mxu0 %v57
    %197 = vmatpush1.msra.mxu0 %v56
    %198 = vmatprep.subr.mxu0 %v59
    %199 = vmatpush1.msra.mxu0 %v58
    %200 = vmatprep.subr.mxu0 %v61
    %201 = vmatpush1.msra.mxu0 %v60
    %202 = vmatprep.subr.mxu0 %v63
    %203 = vmatpush1.msra.mxu0 %v62
    %204 = vmatprep.subr.mxu0 %v65
    %205 = vmatpush1.msra.mxu0 %v64
    %206 = vmatprep.subr.mxu0 %v67
    %207 = vmatpush1.msra.mxu0 %v66
    %208 = vmatprep.subr.mxu0 %v69
    %209 = vmatpush1.msra.mxu0 %v68
    %210 = vmatprep.subr.mxu0 %v71
    %211 = vmatpush1.msra.mxu0 %v70
    %212 = vmatprep.subr.mxu0 %v73
    %213 = vmatpush1.msra.mxu0 %v72
    %214 = vmatprep.subr.mxu0 %v75
    %215 = vmatpush1.msra.mxu0 %v74
    %216 = vmatprep.subr.mxu0 %v77
    %217 = vmatpush1.msra.mxu0 %v76
    %218 = vmatprep.subr.mxu0 %v79
    %219 = vmatpush1.msra.mxu0 %v78
    %220 = vmatprep.subr.mxu0 %v81
    %221 = vmatpush1.msra.mxu0 %v80
    %222 = vmatprep.subr.mxu0 %v83
    %223 = vmatpush1.msra.mxu0 %v82
    %224 = vmatprep.subr.mxu0 %v85
    %225 = vmatpush1.msra.mxu0 %v84
    %226 = vmatprep.subr.mxu0 %v87
    %227 = vmatpush1.msra.mxu0 %v86
    %228 = vmatprep.subr.mxu0 %v89
    %229 = vmatpush1.msra.mxu0 %v88
    %230 = vmatprep.subr.mxu0 %v91
    %231 = vmatpush1.msra.mxu0 %v90
    %232 = vmatprep.subr.mxu0 %v93
    %233 = vmatpush1.msra.mxu0 %v92
    %234 = vmatprep.subr.mxu0 %v95
    %235 = vmatpush1.msra.mxu0 %v94
    %236 = vmatprep.subr.mxu0 %v97
    %237 = vmatpush1.msra.mxu0 %v96
    %238 = vmatprep.subr.mxu0 %v99
    %239 = vmatpush1.msra.mxu0 %v98
    %240 = vmatprep.mubr.f32.mxu0 %v29
    %241 = vmatmul.mubr.f32.gmra.mrb[0].mxu0 %v28
    %v242 = vpop.f32.mrb[0].mxu0
    %v243 = vadd.f32 %v169, %v242
    %v244 = vpop.f32.mrb[0].mxu0
    %v245 = vadd.f32 %v173, %v244
    %246 = vmatprep.mubr.f32.mxu0 %v33
    %247 = vmatmul.mubr.f32.gmra.mrb[0].mxu0 %v32
    %v248 = vpop.f32.mrb[0].mxu0
    %v249 = vadd.f32 %v169, %v248
    %v250 = vpop.f32.mrb[0].mxu0
    %v251 = vadd.f32 %v173, %v250
    %252 = vdwg.mxu0
    %253 = vmatprep.subr.mxu0 %v101
    %254 = vmatpush1.msra.mxu0 %v100
    %255 = vmatprep.subr.mxu0 %v103
    %256 = vmatpush1.msra.mxu0 %v102
    %257 = vmatprep.subr.mxu0 %v105
    %258 = vmatpush1.msra.mxu0 %v104
    %259 = vmatprep.subr.mxu0 %v107
    %260 = vmatpush1.msra.mxu0 %v106
    %261 = vmatprep.subr.mxu0 %v109
    %262 = vmatpush1.msra.mxu0 %v108
    %263 = vmatprep.subr.mxu0 %v111
    %264 = vmatpush1.msra.mxu0 %v110
    %265 = vmatprep.subr.mxu0 %v113
    %266 = vmatpush1.msra.mxu0 %v112
    %267 = vmatprep.subr.mxu0 %v115
    %268 = vmatpush1.msra.mxu0 %v114
    %269 = vmatprep.subr.mxu0 %v117
    %270 = vmatpush1.msra.mxu0 %v116
    %271 = vmatprep.subr.mxu0 %v119
    %272 = vmatpush1.msra.mxu0 %v118
    %273 = vmatprep.subr.mxu0 %v121
    %274 = vmatpush1.msra.mxu0 %v120
    %275 = vmatprep.subr.mxu0 %v123
    %276 = vmatpush1.msra.mxu0 %v122
    %277 = vmatprep.subr.mxu0 %v125
    %278 = vmatpush1.msra.mxu0 %v124
    %279 = vmatprep.subr.mxu0 %v127
    %280 = vmatpush1.msra.mxu0 %v126
    %281 = vmatprep.subr.mxu0 %v129
    %282 = vmatpush1.msra.mxu0 %v128
    %283 = vmatprep.subr.mxu0 %v131
    %284 = vmatpush1.msra.mxu0 %v130
    %285 = vmatprep.subr.mxu0 %v133
    %286 = vmatpush1.msra.mxu0 %v132
    %287 = vmatprep.subr.mxu0 %v135
    %288 = vmatpush1.msra.mxu0 %v134
    %289 = vmatprep.subr.mxu0 %v137
    %290 = vmatpush1.msra.mxu0 %v136
    %291 = vmatprep.subr.mxu0 %v139
    %292 = vmatpush1.msra.mxu0 %v138
    %293 = vmatprep.subr.mxu0 %v141
    %294 = vmatpush1.msra.mxu0 %v140
    %295 = vmatprep.subr.mxu0 %v143
    %296 = vmatpush1.msra.mxu0 %v142
    %297 = vmatprep.subr.mxu0 %v145
    %298 = vmatpush1.msra.mxu0 %v144
    %299 = vmatprep.subr.mxu0 %v147
    %300 = vmatpush1.msra.mxu0 %v146
    %301 = vmatprep.subr.mxu0 %v149
    %302 = vmatpush1.msra.mxu0 %v148
    %303 = vmatprep.subr.mxu0 %v151
    %304 = vmatpush1.msra.mxu0 %v150
    %305 = vmatprep.subr.mxu0 %v153
    %306 = vmatpush1.msra.mxu0 %v152
    %307 = vmatprep.subr.mxu0 %v155
    %308 = vmatpush1.msra.mxu0 %v154
    %309 = vmatprep.subr.mxu0 %v157
    %310 = vmatpush1.msra.mxu0 %v156
    %311 = vmatprep.subr.mxu0 %v159
    %312 = vmatpush1.msra.mxu0 %v158
    %313 = vmatprep.subr.mxu0 %v161
    %314 = vmatpush1.msra.mxu0 %v160
    %315 = vmatprep.subr.mxu0 %v163
    %316 = vmatpush1.msra.mxu0 %v162
    %317 = vmatprep.mubr.f32.mxu0 %v31
    %318 = vmatmul.mubr.f32.gmra.mrb[0].mxu0 %v30
    %v319 = vpop.f32.mrb[0].mxu0
    %v320 = vadd.f32 %v243, %v319
    %v321 = vpop.f32.mrb[0].mxu0
    %v322 = vadd.f32 %v245, %v321
    %323 = vmatprep.mubr.f32.mxu0 %v35
    %324 = vmatmul.mubr.f32.gmra.mrb[0].mxu0 %v34
    %v325 = vpop.f32.mrb[0].mxu0
    %v326 = vadd.f32 %v249, %v325
    %v327 = vpop.f32.mrb[0].mxu0
    %v328 = vadd.f32 %v251, %v327
    %329 = vdwg.mxu0
    %332 = vrot.lane.b32.xlu0 %v320, 121
    %v333 = vpop.permute.xlu0 %332
    %334 = vrot.lane.b32.xlu0 %v326, 121
    %v335 = vpop.permute.xlu0 %334
    %338 = vrot.lane.b32.xlu0 %v320, 114
    %v339 = vpop.permute.xlu0 %338
    %340 = vrot.lane.b32.xlu0 %v326, 114
    %v341 = vpop.permute.xlu0 %340
    %344 = vrot.lane.b32.xlu0 %v320, 107
    %v345 = vpop.permute.xlu0 %344
    %346 = vrot.lane.b32.xlu0 %v326, 107
    %v347 = vpop.permute.xlu0 %346
    %350 = vrot.lane.b32.xlu0 %v320, 100
    %v351 = vpop.permute.xlu0 %350
    %352 = vrot.lane.b32.xlu0 %v326, 100
    %v353 = vpop.permute.xlu0 %352
    %356 = vrot.lane.b32.xlu0 %v320, 93
    %v357 = vpop.permute.xlu0 %356
    %358 = vrot.lane.b32.xlu0 %v326, 93
    %v359 = vpop.permute.xlu0 %358
    %362 = vrot.lane.b32.xlu0 %v320, 86
    %v363 = vpop.permute.xlu0 %362
    %364 = vrot.lane.b32.xlu0 %v326, 86
    %v365 = vpop.permute.xlu0 %364
    %368 = vrot.lane.b32.xlu0 %v320, 79
    %v369 = vpop.permute.xlu0 %368
    %370 = vrot.lane.b32.xlu0 %v326, 79
    %v371 = vpop.permute.xlu0 %370
    %374 = vrot.lane.b32.xlu0 %v320, 72
    %v375 = vpop.permute.xlu0 %374
    %376 = vrot.lane.b32.xlu0 %v326, 72
    %v377 = vpop.permute.xlu0 %376
    %380 = vrot.lane.b32.xlu0 %v320, 65
    %v381 = vpop.permute.xlu0 %380
    %382 = vrot.lane.b32.xlu0 %v326, 65
    %v383 = vpop.permute.xlu0 %382
    %386 = vrot.lane.b32.xlu0 %v320, 58
    %v387 = vpop.permute.xlu0 %386
    %388 = vrot.lane.b32.xlu0 %v326, 58
    %v389 = vpop.permute.xlu0 %388
    %392 = vrot.lane.b32.xlu0 %v320, 51
    %v393 = vpop.permute.xlu0 %392
    %394 = vrot.lane.b32.xlu0 %v326, 51
    %v395 = vpop.permute.xlu0 %394
    %v398 = vcombine.low %v320, %v339
    %v399 = vcombine.high %v320, %v339
    %v401 = vunpack.c.l.s4 1983009808
    %v402 = vunpack.c.0.s8 %v401
    %v403 = vlaneseq
    %v404 = vshrl.u32 %v403, 7
    %v405 = vsub.s32 %v402, %v404
    %v406 = vrot.slane %v398, %v405
    %v408 = vunpack.c.l.s4 1983009808
    %v409 = vunpack.c.0.s8 %v408
    %v410 = vlaneseq
    %v411 = vshrl.u32 %v410, 7
    %v412 = vsub.s32 %v409, %v411
    %v413 = vrot.slane %v399, %v412
    %v414 = vcombine.low %v333, %v345
    %v415 = vcombine.high %v333, %v345
    %v417 = vunpack.c.l.s4 1983009808
    %v418 = vunpack.c.0.s8 %v417
    %v419 = vlaneseq
    %v420 = vshrl.u32 %v419, 7
    %v421 = vsub.s32 %v418, %v420
    %v422 = vrot.slane %v414, %v421
    %v424 = vunpack.c.l.s4 1983009808
    %v425 = vunpack.c.0.s8 %v424
    %v426 = vlaneseq
    %v427 = vshrl.u32 %v426, 7
    %v428 = vsub.s32 %v425, %v427
    %v429 = vrot.slane %v415, %v428
    %v430 = vcombine.low %v351, %v363
    %v431 = vcombine.high %v351, %v363
    %v433 = vunpack.c.l.s4 1983009808
    %v434 = vunpack.c.0.s8 %v433
    %v435 = vlaneseq
    %v436 = vshrl.u32 %v435, 7
    %v437 = vsub.s32 %v434, %v436
    %v438 = vrot.slane %v430, %v437
    %v440 = vunpack.c.l.s4 1983009808
    %v441 = vunpack.c.0.s8 %v440
    %v442 = vlaneseq
    %v443 = vshrl.u32 %v442, 7
    %v444 = vsub.s32 %v441, %v443
    %v445 = vrot.slane %v431, %v444
    %v446 = vcombine.low %v357, %v369
    %v447 = vcombine.high %v357, %v369
    %v449 = vunpack.c.l.s4 1983009808
    %v450 = vunpack.c.0.s8 %v449
    %v451 = vlaneseq
    %v452 = vshrl.u32 %v451, 7
    %v453 = vsub.s32 %v450, %v452
    %v454 = vrot.slane %v446, %v453
    %v456 = vunpack.c.l.s4 1983009808
    %v457 = vunpack.c.0.s8 %v456
    %v458 = vlaneseq
    %v459 = vshrl.u32 %v458, 7
    %v460 = vsub.s32 %v457, %v459
    %v461 = vrot.slane %v447, %v460
    %v462 = vcombine.low %v406, %v422
    %v463 = vcombine.high %v406, %v422
    %v465 = vunpack.c.l.s4 1934713408
    %v466 = vunpack.c.0.s8 %v465
    %v467 = vlaneseq
    %v468 = vshrl.u32 %v467, 7
    %v469 = vsub.s32 %v466, %v468
    %v470 = vrot.slane %v462, %v469
    %v472 = vunpack.c.l.s4 1934713408
    %v473 = vunpack.c.0.s8 %v472
    %v474 = vlaneseq
    %v475 = vshrl.u32 %v474, 7
    %v476 = vsub.s32 %v473, %v475
    %v477 = vrot.slane %v463, %v476
    %v478 = vcombine.low %v413, %v429
    %v479 = vcombine.high %v413, %v429
    %v481 = vunpack.c.l.s4 1934713408
    %v482 = vunpack.c.0.s8 %v481
    %v483 = vlaneseq
    %v484 = vshrl.u32 %v483, 7
    %v485 = vsub.s32 %v482, %v484
    %v486 = vrot.slane %v478, %v485
    %v488 = vunpack.c.l.s4 1934713408
    %v489 = vunpack.c.0.s8 %v488
    %v490 = vlaneseq
    %v491 = vshrl.u32 %v490, 7
    %v492 = vsub.s32 %v489, %v491
    %v493 = vrot.slane %v479, %v492
    %v494 = vcombine.low %v438, %v454
    %v495 = vcombine.high %v438, %v454
    %v497 = vunpack.c.l.s4 1934713408
    %v498 = vunpack.c.0.s8 %v497
    %v499 = vlaneseq
    %v500 = vshrl.u32 %v499, 7
    %v501 = vsub.s32 %v498, %v500
    %v502 = vrot.slane %v494, %v501
    %v504 = vunpack.c.l.s4 1934713408
    %v505 = vunpack.c.0.s8 %v504
    %v506 = vlaneseq
    %v507 = vshrl.u32 %v506, 7
    %v508 = vsub.s32 %v505, %v507
    %v509 = vrot.slane %v495, %v508
    %v510 = vcombine.low %v445, %v461
    %v511 = vcombine.high %v445, %v461
    %v513 = vunpack.c.l.s4 1934713408
    %v514 = vunpack.c.0.s8 %v513
    %v515 = vlaneseq
    %v516 = vshrl.u32 %v515, 7
    %v517 = vsub.s32 %v514, %v516
    %v518 = vrot.slane %v510, %v517
    %v520 = vunpack.c.l.s4 1934713408
    %v521 = vunpack.c.0.s8 %v520
    %v522 = vlaneseq
    %v523 = vshrl.u32 %v522, 7
    %v524 = vsub.s32 %v521, %v523
    %v525 = vrot.slane %v511, %v524
    %v526 = vcombine.low %v470, %v502
    %v527 = vcombine.high %v470, %v502
    %v528 = vcombine.low %v477, %v509
    %v529 = vcombine.high %v477, %v509
    %v530 = vcombine.low %v486, %v518
    %v531 = vcombine.high %v486, %v518
    %v532 = vcombine.low %v493, %v525
    %v533 = vcombine.high %v493, %v525
    %v534 = vcombine.low %v375, %v387
    %v535 = vcombine.high %v375, %v387
    %v537 = vunpack.c.l.s4 1983009808
    %v538 = vunpack.c.0.s8 %v537
    %v539 = vlaneseq
    %v540 = vshrl.u32 %v539, 7
    %v541 = vsub.s32 %v538, %v540
    %v542 = vrot.slane %v534, %v541
    %v544 = vunpack.c.l.s4 1983009808
    %v545 = vunpack.c.0.s8 %v544
    %v546 = vlaneseq
    %v547 = vshrl.u32 %v546, 7
    %v548 = vsub.s32 %v545, %v547
    %v549 = vrot.slane %v535, %v548
    %v550 = vcombine.low %v381, %v393
    %v551 = vcombine.high %v381, %v393
    %v553 = vunpack.c.l.s4 1983009808
    %v554 = vunpack.c.0.s8 %v553
    %v555 = vlaneseq
    %v556 = vshrl.u32 %v555, 7
    %v557 = vsub.s32 %v554, %v556
    %v558 = vrot.slane %v550, %v557
    %v560 = vunpack.c.l.s4 1983009808
    %v561 = vunpack.c.0.s8 %v560
    %v562 = vlaneseq
    %v563 = vshrl.u32 %v562, 7
    %v564 = vsub.s32 %v561, %v563
    %v565 = vrot.slane %v551, %v564
    %v566 = vcombine.low %v542, %v558
    %v567 = vcombine.high %v542, %v558
    %v569 = vunpack.c.l.s4 1934713408
    %v570 = vunpack.c.0.s8 %v569
    %v571 = vlaneseq
    %v572 = vshrl.u32 %v571, 7
    %v573 = vsub.s32 %v570, %v572
    %v574 = vrot.slane %v566, %v573
    %v576 = vunpack.c.l.s4 1934713408
    %v577 = vunpack.c.0.s8 %v576
    %v578 = vlaneseq
    %v579 = vshrl.u32 %v578, 7
    %v580 = vsub.s32 %v577, %v579
    %v581 = vrot.slane %v567, %v580
    %v582 = vcombine.low %v549, %v565
    %v583 = vcombine.high %v549, %v565
    %v585 = vunpack.c.l.s4 1934713408
    %v586 = vunpack.c.0.s8 %v585
    %v587 = vlaneseq
    %v588 = vshrl.u32 %v587, 7
    %v589 = vsub.s32 %v586, %v588
    %v590 = vrot.slane %v582, %v589
    %v592 = vunpack.c.l.s4 1934713408
    %v593 = vunpack.c.0.s8 %v592
    %v594 = vlaneseq
    %v595 = vshrl.u32 %v594, 7
    %v596 = vsub.s32 %v593, %v595
    %v597 = vrot.slane %v583, %v596
    %v598 = vcombine.high %v574, 0.0
    %v599 = vcombine.high %v581, 0.0
    %v600 = vcombine.high %v597, 0.0
    %v601 = vcombine.low %v326, %v341
    %v602 = vcombine.high %v326, %v341
    %v604 = vunpack.c.l.s4 1983009808
    %v605 = vunpack.c.0.s8 %v604
    %v606 = vlaneseq
    %v607 = vshrl.u32 %v606, 7
    %v608 = vsub.s32 %v605, %v607
    %v609 = vrot.slane %v601, %v608
    %v611 = vunpack.c.l.s4 1983009808
    %v612 = vunpack.c.0.s8 %v611
    %v613 = vlaneseq
    %v614 = vshrl.u32 %v613, 7
    %v615 = vsub.s32 %v612, %v614
    %v616 = vrot.slane %v602, %v615
    %v617 = vcombine.low %v335, %v347
    %v618 = vcombine.high %v335, %v347
    %v620 = vunpack.c.l.s4 1983009808
    %v621 = vunpack.c.0.s8 %v620
    %v622 = vlaneseq
    %v623 = vshrl.u32 %v622, 7
    %v624 = vsub.s32 %v621, %v623
    %v625 = vrot.slane %v617, %v624
    %v627 = vunpack.c.l.s4 1983009808
    %v628 = vunpack.c.0.s8 %v627
    %v629 = vlaneseq
    %v630 = vshrl.u32 %v629, 7
    %v631 = vsub.s32 %v628, %v630
    %v632 = vrot.slane %v618, %v631
    %v633 = vcombine.low %v353, %v365
    %v634 = vcombine.high %v353, %v365
    %v636 = vunpack.c.l.s4 1983009808
    %v637 = vunpack.c.0.s8 %v636
    %v638 = vlaneseq
    %v639 = vshrl.u32 %v638, 7
    %v640 = vsub.s32 %v637, %v639
    %v641 = vrot.slane %v633, %v640
    %v643 = vunpack.c.l.s4 1983009808
    %v644 = vunpack.c.0.s8 %v643
    %v645 = vlaneseq
    %v646 = vshrl.u32 %v645, 7
    %v647 = vsub.s32 %v644, %v646
    %v648 = vrot.slane %v634, %v647
    %v649 = vcombine.low %v359, %v371
    %v650 = vcombine.high %v359, %v371
    %v652 = vunpack.c.l.s4 1983009808
    %v653 = vunpack.c.0.s8 %v652
    %v654 = vlaneseq
    %v655 = vshrl.u32 %v654, 7
    %v656 = vsub.s32 %v653, %v655
    %v657 = vrot.slane %v649, %v656
    %v659 = vunpack.c.l.s4 1983009808
    %v660 = vunpack.c.0.s8 %v659
    %v661 = vlaneseq
    %v662 = vshrl.u32 %v661, 7
    %v663 = vsub.s32 %v660, %v662
    %v664 = vrot.slane %v650, %v663
    %v665 = vcombine.low %v609, %v625
    %v666 = vcombine.high %v609, %v625
    %v668 = vunpack.c.l.s4 1934713408
    %v669 = vunpack.c.0.s8 %v668
    %v670 = vlaneseq
    %v671 = vshrl.u32 %v670, 7
    %v672 = vsub.s32 %v669, %v671
    %v673 = vrot.slane %v665, %v672
    %v675 = vunpack.c.l.s4 1934713408
    %v676 = vunpack.c.0.s8 %v675
    %v677 = vlaneseq
    %v678 = vshrl.u32 %v677, 7
    %v679 = vsub.s32 %v676, %v678
    %v680 = vrot.slane %v666, %v679
    %v681 = vcombine.low %v616, %v632
    %v683 = vunpack.c.l.s4 1934713408
    %v684 = vunpack.c.0.s8 %v683
    %v685 = vlaneseq
    %v686 = vshrl.u32 %v685, 7
    %v687 = vsub.s32 %v684, %v686
    %v688 = vrot.slane %v681, %v687
    %v689 = vcombine.low %v641, %v657
    %v690 = vcombine.high %v641, %v657
    %v692 = vunpack.c.l.s4 1934713408
    %v693 = vunpack.c.0.s8 %v692
    %v694 = vlaneseq
    %v695 = vshrl.u32 %v694, 7
    %v696 = vsub.s32 %v693, %v695
    %v697 = vrot.slane %v689, %v696
    %v699 = vunpack.c.l.s4 1934713408
    %v700 = vunpack.c.0.s8 %v699
    %v701 = vlaneseq
    %v702 = vshrl.u32 %v701, 7
    %v703 = vsub.s32 %v700, %v702
    %v704 = vrot.slane %v690, %v703
    %v705 = vcombine.low %v648, %v664
    %v707 = vunpack.c.l.s4 1934713408
    %v708 = vunpack.c.0.s8 %v707
    %v709 = vlaneseq
    %v710 = vshrl.u32 %v709, 7
    %v711 = vsub.s32 %v708, %v710
    %v712 = vrot.slane %v705, %v711
    %v713 = vcombine.low %v673, %v697
    %v714 = vcombine.high %v673, %v697
    %v715 = vcombine.low %v680, %v704
    %v716 = vcombine.high %v680, %v704
    %v717 = vcombine.low %v688, %v712
    %v718 = vcombine.high %v688, %v712
    %v719 = vcombine.low %v377, %v389
    %v720 = vcombine.high %v377, %v389
    %v722 = vunpack.c.l.s4 1983009808
    %v723 = vunpack.c.0.s8 %v722
    %v724 = vlaneseq
    %v725 = vshrl.u32 %v724, 7
    %v726 = vsub.s32 %v723, %v725
    %v727 = vrot.slane %v719, %v726
    %v729 = vunpack.c.l.s4 1983009808
    %v730 = vunpack.c.0.s8 %v729
    %v731 = vlaneseq
    %v732 = vshrl.u32 %v731, 7
    %v733 = vsub.s32 %v730, %v732
    %v734 = vrot.slane %v720, %v733
    %v735 = vcombine.low %v383, %v395
    %v736 = vcombine.high %v383, %v395
    %v738 = vunpack.c.l.s4 1983009808
    %v739 = vunpack.c.0.s8 %v738
    %v740 = vlaneseq
    %v741 = vshrl.u32 %v740, 7
    %v742 = vsub.s32 %v739, %v741
    %v743 = vrot.slane %v735, %v742
    %v745 = vunpack.c.l.s4 1983009808
    %v746 = vunpack.c.0.s8 %v745
    %v747 = vlaneseq
    %v748 = vshrl.u32 %v747, 7
    %v749 = vsub.s32 %v746, %v748
    %v750 = vrot.slane %v736, %v749
    %v751 = vcombine.low %v727, %v743
    %v752 = vcombine.high %v727, %v743
    %v754 = vunpack.c.l.s4 1934713408
    %v755 = vunpack.c.0.s8 %v754
    %v756 = vlaneseq
    %v757 = vshrl.u32 %v756, 7
    %v758 = vsub.s32 %v755, %v757
    %v759 = vrot.slane %v751, %v758
    %v761 = vunpack.c.l.s4 1934713408
    %v762 = vunpack.c.0.s8 %v761
    %v763 = vlaneseq
    %v764 = vshrl.u32 %v763, 7
    %v765 = vsub.s32 %v762, %v764
    %v766 = vrot.slane %v752, %v765
    %v767 = vcombine.low %v734, %v750
    %v769 = vunpack.c.l.s4 1934713408
    %v770 = vunpack.c.0.s8 %v769
    %v771 = vlaneseq
    %v772 = vshrl.u32 %v771, 7
    %v773 = vsub.s32 %v770, %v772
    %v774 = vrot.slane %v767, %v773
    %v775 = vcombine.high %v759, 0.0
    %v776 = vcombine.high %v766, 0.0
    %v777 = vcombine.high %v774, 0.0
    %v778 = vcombine.low %v526, %v528
    %v779 = vcombine.high %v526, %v528
    %v781 = vunpack.c.l.s4 1983009808
    %v782 = vunpack.c.0.s8 %v781
    %v783 = vlaneseq
    %v784 = vshrl.u32 %v783, 7
    %v785 = vsub.s32 %v782, %v784
    %v786 = vrot.slane %v778, %v785
    %v788 = vunpack.c.l.s4 1983009808
    %v789 = vunpack.c.0.s8 %v788
    %v790 = vlaneseq
    %v791 = vshrl.u32 %v790, 7
    %v792 = vsub.s32 %v789, %v791
    %v793 = vrot.slane %v779, %v792
    %v794 = vcombine.low %v527, %v529
    %v795 = vcombine.high %v527, %v529
    %v797 = vunpack.c.l.s4 1983009808
    %v798 = vunpack.c.0.s8 %v797
    %v799 = vlaneseq
    %v800 = vshrl.u32 %v799, 7
    %v801 = vsub.s32 %v798, %v800
    %v802 = vrot.slane %v794, %v801
    %v804 = vunpack.c.l.s4 1983009808
    %v805 = vunpack.c.0.s8 %v804
    %v806 = vlaneseq
    %v807 = vshrl.u32 %v806, 7
    %v808 = vsub.s32 %v805, %v807
    %v809 = vrot.slane %v795, %v808
    %v810 = vcombine.low %v530, %v532
    %v811 = vcombine.high %v530, %v532
    %v813 = vunpack.c.l.s4 1983009808
    %v814 = vunpack.c.0.s8 %v813
    %v815 = vlaneseq
    %v816 = vshrl.u32 %v815, 7
    %v817 = vsub.s32 %v814, %v816
    %v818 = vrot.slane %v810, %v817
    %v820 = vunpack.c.l.s4 1983009808
    %v821 = vunpack.c.0.s8 %v820
    %v822 = vlaneseq
    %v823 = vshrl.u32 %v822, 7
    %v824 = vsub.s32 %v821, %v823
    %v825 = vrot.slane %v811, %v824
    %v826 = vcombine.high %v531, 0.0
    %v828 = vunpack.c.l.s4 1983009808
    %v829 = vunpack.c.0.s8 %v828
    %v830 = vlaneseq
    %v831 = vshrl.u32 %v830, 7
    %v832 = vsub.s32 %v829, %v831
    %v833 = vrot.slane %v531, %v832
    %v835 = vunpack.c.l.s4 1983009808
    %v836 = vunpack.c.0.s8 %v835
    %v837 = vlaneseq
    %v838 = vshrl.u32 %v837, 7
    %v839 = vsub.s32 %v836, %v838
    %v840 = vrot.slane %v826, %v839
    %v841 = vcombine.low %v786, %v802
    %v842 = vcombine.high %v786, %v802
    %v844 = vunpack.c.l.s4 1934713408
    %v845 = vunpack.c.0.s8 %v844
    %v846 = vlaneseq
    %v847 = vshrl.u32 %v846, 7
    %v848 = vsub.s32 %v845, %v847
    %v849 = vrot.slane %v841, %v848
    %v851 = vunpack.c.l.s4 1934713408
    %v852 = vunpack.c.0.s8 %v851
    %v853 = vlaneseq
    %v854 = vshrl.u32 %v853, 7
    %v855 = vsub.s32 %v852, %v854
    %v856 = vrot.slane %v842, %v855
    %v857 = vcombine.low %v793, %v809
    %v858 = vcombine.high %v793, %v809
    %v860 = vunpack.c.l.s4 1934713408
    %v861 = vunpack.c.0.s8 %v860
    %v862 = vlaneseq
    %v863 = vshrl.u32 %v862, 7
    %v864 = vsub.s32 %v861, %v863
    %v865 = vrot.slane %v857, %v864
    %v867 = vunpack.c.l.s4 1934713408
    %v868 = vunpack.c.0.s8 %v867
    %v869 = vlaneseq
    %v870 = vshrl.u32 %v869, 7
    %v871 = vsub.s32 %v868, %v870
    %v872 = vrot.slane %v858, %v871
    %v873 = vcombine.low %v818, %v833
    %v874 = vcombine.high %v818, %v833
    %v876 = vunpack.c.l.s4 1934713408
    %v877 = vunpack.c.0.s8 %v876
    %v878 = vlaneseq
    %v879 = vshrl.u32 %v878, 7
    %v880 = vsub.s32 %v877, %v879
    %v881 = vrot.slane %v873, %v880
    %v883 = vunpack.c.l.s4 1934713408
    %v884 = vunpack.c.0.s8 %v883
    %v885 = vlaneseq
    %v886 = vshrl.u32 %v885, 7
    %v887 = vsub.s32 %v884, %v886
    %v888 = vrot.slane %v874, %v887
    %v889 = vcombine.low %v825, %v840
    %v890 = vcombine.high %v825, %v840
    %v892 = vunpack.c.l.s4 1934713408
    %v893 = vunpack.c.0.s8 %v892
    %v894 = vlaneseq
    %v895 = vshrl.u32 %v894, 7
    %v896 = vsub.s32 %v893, %v895
    %v897 = vrot.slane %v889, %v896
    %v899 = vunpack.c.l.s4 1934713408
    %v900 = vunpack.c.0.s8 %v899
    %v901 = vlaneseq
    %v902 = vshrl.u32 %v901, 7
    %v903 = vsub.s32 %v900, %v902
    %v904 = vrot.slane %v890, %v903
    %v905 = vcombine.low %v849, %v881
    %v906 = vcombine.high %v849, %v881
    %v907 = vcombine.low %v856, %v888
    %v908 = vcombine.high %v856, %v888
    %v909 = vcombine.low %v865, %v897
    %v910 = vcombine.high %v865, %v897
    %v911 = vcombine.low %v872, %v904
    %v912 = vcombine.high %v872, %v904
    %v913 = vcombine.low %v574, %v581
    %v915 = vunpack.c.l.s4 1983009808
    %v916 = vunpack.c.0.s8 %v915
    %v917 = vlaneseq
    %v918 = vshrl.u32 %v917, 7
    %v919 = vsub.s32 %v916, %v918
    %v920 = vrot.slane %v913, %v919
    %v921 = vcombine.low %v598, %v599
    %v923 = vunpack.c.l.s4 1983009808
    %v924 = vunpack.c.0.s8 %v923
    %v925 = vlaneseq
    %v926 = vshrl.u32 %v925, 7
    %v927 = vsub.s32 %v924, %v926
    %v928 = vrot.slane %v921, %v927
    %v929 = vcombine.low %v590, %v597
    %v931 = vunpack.c.l.s4 1983009808
    %v932 = vunpack.c.0.s8 %v931
    %v933 = vlaneseq
    %v934 = vshrl.u32 %v933, 7
    %v935 = vsub.s32 %v932, %v934
    %v936 = vrot.slane %v929, %v935
    %v937 = vcombine.high %v590, 0.0
    %v939 = vunpack.c.l.s4 1983009808
    %v940 = vunpack.c.0.s8 %v939
    %v941 = vlaneseq
    %v942 = vshrl.u32 %v941, 7
    %v943 = vsub.s32 %v940, %v942
    %v944 = vrot.slane %v937, %v943
    %v945 = vcombine.low %v920, %v928
    %v946 = vcombine.high %v920, %v928
    %v948 = vunpack.c.l.s4 1934713408
    %v949 = vunpack.c.0.s8 %v948
    %v950 = vlaneseq
    %v951 = vshrl.u32 %v950, 7
    %v952 = vsub.s32 %v949, %v951
    %v953 = vrot.slane %v945, %v952
    %v955 = vunpack.c.l.s4 1934713408
    %v956 = vunpack.c.0.s8 %v955
    %v957 = vlaneseq
    %v958 = vshrl.u32 %v957, 7
    %v959 = vsub.s32 %v956, %v958
    %v960 = vrot.slane %v946, %v959
    %v961 = vcombine.low %v936, %v944
    %v962 = vcombine.high %v936, %v944
    %v964 = vunpack.c.l.s4 1934713408
    %v965 = vunpack.c.0.s8 %v964
    %v966 = vlaneseq
    %v967 = vshrl.u32 %v966, 7
    %v968 = vsub.s32 %v965, %v967
    %v969 = vrot.slane %v961, %v968
    %v971 = vunpack.c.l.s4 1934713408
    %v972 = vunpack.c.0.s8 %v971
    %v973 = vlaneseq
    %v974 = vshrl.u32 %v973, 7
    %v975 = vsub.s32 %v972, %v974
    %v976 = vrot.slane %v962, %v975
    %v977 = vcombine.low %v953, %v969
    %v978 = vcombine.high %v953, %v969
    %v979 = vcombine.low %v960, %v976
    %v980 = vcombine.high %v960, %v976
    %v981 = vcombine.low %v533, %v714
    %v982 = vcombine.high %v533, %v714
    %v984 = vunpack.c.l.s4 1983009808
    %v985 = vunpack.c.0.s8 %v984
    %v986 = vlaneseq
    %v987 = vshrl.u32 %v986, 7
    %v988 = vsub.s32 %v985, %v987
    %v989 = vrot.slane %v981, %v988
    %v991 = vunpack.c.l.s4 1983009808
    %v992 = vunpack.c.0.s8 %v991
    %v993 = vlaneseq
    %v994 = vshrl.u32 %v993, 7
    %v995 = vsub.s32 %v992, %v994
    %v996 = vrot.slane %v982, %v995
    %v997 = vcombine.low %v713, %v715
    %v998 = vcombine.high %v713, %v715
    %v1000 = vunpack.c.l.s4 1983009808
    %v1001 = vunpack.c.0.s8 %v1000
    %v1002 = vlaneseq
    %v1003 = vshrl.u32 %v1002, 7
    %v1004 = vsub.s32 %v1001, %v1003
    %v1005 = vrot.slane %v997, %v1004
    %v1007 = vunpack.c.l.s4 1983009808
    %v1008 = vunpack.c.0.s8 %v1007
    %v1009 = vlaneseq
    %v1010 = vshrl.u32 %v1009, 7
    %v1011 = vsub.s32 %v1008, %v1010
    %v1012 = vrot.slane %v998, %v1011
    %v1013 = vcombine.low %v716, %v718
    %v1014 = vcombine.high %v716, %v718
    %v1016 = vunpack.c.l.s4 1983009808
    %v1017 = vunpack.c.0.s8 %v1016
    %v1018 = vlaneseq
    %v1019 = vshrl.u32 %v1018, 7
    %v1020 = vsub.s32 %v1017, %v1019
    %v1021 = vrot.slane %v1013, %v1020
    %v1023 = vunpack.c.l.s4 1983009808
    %v1024 = vunpack.c.0.s8 %v1023
    %v1025 = vlaneseq
    %v1026 = vshrl.u32 %v1025, 7
    %v1027 = vsub.s32 %v1024, %v1026
    %v1028 = vrot.slane %v1014, %v1027
    %v1029 = vcombine.high %v717, 0.0
    %v1031 = vunpack.c.l.s4 1983009808
    %v1032 = vunpack.c.0.s8 %v1031
    %v1033 = vlaneseq
    %v1034 = vshrl.u32 %v1033, 7
    %v1035 = vsub.s32 %v1032, %v1034
    %v1036 = vrot.slane %v717, %v1035
    %v1038 = vunpack.c.l.s4 1983009808
    %v1039 = vunpack.c.0.s8 %v1038
    %v1040 = vlaneseq
    %v1041 = vshrl.u32 %v1040, 7
    %v1042 = vsub.s32 %v1039, %v1041
    %v1043 = vrot.slane %v1029, %v1042
    %v1044 = vcombine.low %v989, %v1005
    %v1045 = vcombine.high %v989, %v1005
    %v1047 = vunpack.c.l.s4 1934713408
    %v1048 = vunpack.c.0.s8 %v1047
    %v1049 = vlaneseq
    %v1050 = vshrl.u32 %v1049, 7
    %v1051 = vsub.s32 %v1048, %v1050
    %v1052 = vrot.slane %v1044, %v1051
    %v1054 = vunpack.c.l.s4 1934713408
    %v1055 = vunpack.c.0.s8 %v1054
    %v1056 = vlaneseq
    %v1057 = vshrl.u32 %v1056, 7
    %v1058 = vsub.s32 %v1055, %v1057
    %v1059 = vrot.slane %v1045, %v1058
    %v1060 = vcombine.low %v996, %v1012
    %v1061 = vcombine.high %v996, %v1012
    %v1063 = vunpack.c.l.s4 1934713408
    %v1064 = vunpack.c.0.s8 %v1063
    %v1065 = vlaneseq
    %v1066 = vshrl.u32 %v1065, 7
    %v1067 = vsub.s32 %v1064, %v1066
    %v1068 = vrot.slane %v1060, %v1067
    %v1070 = vunpack.c.l.s4 1934713408
    %v1071 = vunpack.c.0.s8 %v1070
    %v1072 = vlaneseq
    %v1073 = vshrl.u32 %v1072, 7
    %v1074 = vsub.s32 %v1071, %v1073
    %v1075 = vrot.slane %v1061, %v1074
    %v1076 = vcombine.low %v1021, %v1036
    %v1077 = vcombine.high %v1021, %v1036
    %v1079 = vunpack.c.l.s4 1934713408
    %v1080 = vunpack.c.0.s8 %v1079
    %v1081 = vlaneseq
    %v1082 = vshrl.u32 %v1081, 7
    %v1083 = vsub.s32 %v1080, %v1082
    %v1084 = vrot.slane %v1076, %v1083
    %v1086 = vunpack.c.l.s4 1934713408
    %v1087 = vunpack.c.0.s8 %v1086
    %v1088 = vlaneseq
    %v1089 = vshrl.u32 %v1088, 7
    %v1090 = vsub.s32 %v1087, %v1089
    %v1091 = vrot.slane %v1077, %v1090
    %v1092 = vcombine.low %v1028, %v1043
    %v1093 = vcombine.high %v1028, %v1043
    %v1095 = vunpack.c.l.s4 1934713408
    %v1096 = vunpack.c.0.s8 %v1095
    %v1097 = vlaneseq
    %v1098 = vshrl.u32 %v1097, 7
    %v1099 = vsub.s32 %v1096, %v1098
    %v1100 = vrot.slane %v1092, %v1099
    %v1102 = vunpack.c.l.s4 1934713408
    %v1103 = vunpack.c.0.s8 %v1102
    %v1104 = vlaneseq
    %v1105 = vshrl.u32 %v1104, 7
    %v1106 = vsub.s32 %v1103, %v1105
    %v1107 = vrot.slane %v1093, %v1106
    %v1108 = vcombine.low %v1052, %v1084
    %v1109 = vcombine.high %v1052, %v1084
    %v1110 = vcombine.low %v1059, %v1091
    %v1111 = vcombine.high %v1059, %v1091
    %v1112 = vcombine.low %v1068, %v1100
    %v1113 = vcombine.high %v1068, %v1100
    %v1114 = vcombine.low %v1075, %v1107
    %v1115 = vcombine.high %v1075, %v1107
    %v1116 = vcombine.low %v600, %v775
    %v1118 = vunpack.c.l.s4 1983009808
    %v1119 = vunpack.c.0.s8 %v1118
    %v1120 = vlaneseq
    %v1121 = vshrl.u32 %v1120, 7
    %v1122 = vsub.s32 %v1119, %v1121
    %v1123 = vrot.slane %v1116, %v1122
    %v1124 = vcombine.low %v759, %v766
    %v1126 = vunpack.c.l.s4 1983009808
    %v1127 = vunpack.c.0.s8 %v1126
    %v1128 = vlaneseq
    %v1129 = vshrl.u32 %v1128, 7
    %v1130 = vsub.s32 %v1127, %v1129
    %v1131 = vrot.slane %v1124, %v1130
    %v1132 = vcombine.low %v776, %v777
    %v1134 = vunpack.c.l.s4 1983009808
    %v1135 = vunpack.c.0.s8 %v1134
    %v1136 = vlaneseq
    %v1137 = vshrl.u32 %v1136, 7
    %v1138 = vsub.s32 %v1135, %v1137
    %v1139 = vrot.slane %v1132, %v1138
    %v1141 = vunpack.c.l.s4 1983009808
    %v1142 = vunpack.c.0.s8 %v1141
    %v1143 = vlaneseq
    %v1144 = vshrl.u32 %v1143, 7
    %v1145 = vsub.s32 %v1142, %v1144
    %v1146 = vrot.slane %v774, %v1145
    %v1147 = vcombine.low %v1123, %v1131
    %v1148 = vcombine.high %v1123, %v1131
    %v1150 = vunpack.c.l.s4 1934713408
    %v1151 = vunpack.c.0.s8 %v1150
    %v1152 = vlaneseq
    %v1153 = vshrl.u32 %v1152, 7
    %v1154 = vsub.s32 %v1151, %v1153
    %v1155 = vrot.slane %v1147, %v1154
    %v1157 = vunpack.c.l.s4 1934713408
    %v1158 = vunpack.c.0.s8 %v1157
    %v1159 = vlaneseq
    %v1160 = vshrl.u32 %v1159, 7
    %v1161 = vsub.s32 %v1158, %v1160
    %v1162 = vrot.slane %v1148, %v1161
    %v1163 = vcombine.low %v1139, %v1146
    %v1164 = vcombine.high %v1139, %v1146
    %v1166 = vunpack.c.l.s4 1934713408
    %v1167 = vunpack.c.0.s8 %v1166
    %v1168 = vlaneseq
    %v1169 = vshrl.u32 %v1168, 7
    %v1170 = vsub.s32 %v1167, %v1169
    %v1171 = vrot.slane %v1163, %v1170
    %v1173 = vunpack.c.l.s4 1934713408
    %v1174 = vunpack.c.0.s8 %v1173
    %v1175 = vlaneseq
    %v1176 = vshrl.u32 %v1175, 7
    %v1177 = vsub.s32 %v1174, %v1176
    %v1178 = vrot.slane %v1164, %v1177
    %v1179 = vcombine.low %v1155, %v1171
    %v1180 = vcombine.high %v1155, %v1171
    %v1181 = vcombine.low %v1162, %v1178
    %v1182 = vcombine.high %v1162, %v1178
    %1185 = vrot.lane.b32.xlu0 %v322, 86
    %v1186 = vpop.permute.xlu0 %1185
    %1187 = vrot.lane.b32.xlu0 %v328, 86
    %v1188 = vpop.permute.xlu0 %1187
    %vm1189 = vcmask 703488
    %v1190 = vsel %vm1189, %v363, %v1186
    %v1191 = vsel %vm1189, %v365, %v1188
    %1192 = vrot.lane.b32.xlu0 %v322, 79
    %v1193 = vpop.permute.xlu0 %1192
    %1194 = vrot.lane.b32.xlu0 %v328, 79
    %v1195 = vpop.permute.xlu0 %1194
    %1196 = vrot.lane.b32.xlu0 %v322, 72
    %v1197 = vpop.permute.xlu0 %1196
    %1198 = vrot.lane.b32.xlu0 %v328, 72
    %v1199 = vpop.permute.xlu0 %1198
    %1200 = vrot.lane.b32.xlu0 %v322, 65
    %v1201 = vpop.permute.xlu0 %1200
    %1202 = vrot.lane.b32.xlu0 %v328, 65
    %v1203 = vpop.permute.xlu0 %1202
    %1204 = vrot.lane.b32.xlu0 %v322, 58
    %v1205 = vpop.permute.xlu0 %1204
    %1206 = vrot.lane.b32.xlu0 %v328, 58
    %v1207 = vpop.permute.xlu0 %1206
    %1208 = vrot.lane.b32.xlu0 %v322, 51
    %v1209 = vpop.permute.xlu0 %1208
    %1210 = vrot.lane.b32.xlu0 %v328, 51
    %v1211 = vpop.permute.xlu0 %1210
    %1212 = vrot.lane.b32.xlu0 %v320, 44
    %v1213 = vpop.permute.xlu0 %1212
    %1214 = vrot.lane.b32.xlu0 %v326, 44
    %v1215 = vpop.permute.xlu0 %1214
    %1216 = vrot.lane.b32.xlu0 %v333, 44
    %v1217 = vpop.permute.xlu0 %1216
    %1218 = vrot.lane.b32.xlu0 %v335, 44
    %v1219 = vpop.permute.xlu0 %1218
    %1220 = vrot.lane.b32.xlu0 %v339, 44
    %v1221 = vpop.permute.xlu0 %1220
    %1222 = vrot.lane.b32.xlu0 %v341, 44
    %v1223 = vpop.permute.xlu0 %1222
    %1224 = vrot.lane.b32.xlu0 %v345, 44
    %v1225 = vpop.permute.xlu0 %1224
    %1226 = vrot.lane.b32.xlu0 %v347, 44
    %v1227 = vpop.permute.xlu0 %1226
    %1228 = vrot.lane.b32.xlu0 %v351, 44
    %v1229 = vpop.permute.xlu0 %1228
    %1230 = vrot.lane.b32.xlu0 %v353, 44
    %v1231 = vpop.permute.xlu0 %1230
    %1232 = vrot.lane.b32.xlu0 %v357, 44
    %v1233 = vpop.permute.xlu0 %1232
    %1234 = vrot.lane.b32.xlu0 %v359, 44
    %v1235 = vpop.permute.xlu0 %1234
    %1236 = vrot.lane.b32.xlu0 %v1190, 44
    %v1237 = vpop.permute.xlu0 %1236
    %1238 = vrot.lane.b32.xlu0 %v1191, 44
    %v1239 = vpop.permute.xlu0 %1238
    %1240 = vrot.lane.b32.xlu0 %v1193, 44
    %v1241 = vpop.permute.xlu0 %1240
    %1242 = vrot.lane.b32.xlu0 %v1195, 44
    %v1243 = vpop.permute.xlu0 %1242
    %1244 = vrot.lane.b32.xlu0 %v1197, 44
    %v1245 = vpop.permute.xlu0 %1244
    %1246 = vrot.lane.b32.xlu0 %v1199, 44
    %v1247 = vpop.permute.xlu0 %1246
    %1248 = vrot.lane.b32.xlu0 %v1201, 44
    %v1249 = vpop.permute.xlu0 %1248
    %1250 = vrot.lane.b32.xlu0 %v1203, 44
    %v1251 = vpop.permute.xlu0 %1250
    %1252 = vrot.lane.b32.xlu0 %v1205, 44
    %v1253 = vpop.permute.xlu0 %1252
    %1254 = vrot.lane.b32.xlu0 %v1207, 44
    %v1255 = vpop.permute.xlu0 %1254
    %1256 = vrot.lane.b32.xlu0 %v1209, 44
    %v1257 = vpop.permute.xlu0 %1256
    %1258 = vrot.lane.b32.xlu0 %v1211, 44
    %v1259 = vpop.permute.xlu0 %1258
    %v1284 = vcombine.low %v1213, %v1221
    %v1285 = vcombine.high %v1213, %v1221
    %v1287 = vunpack.c.l.s4 1983009808
    %v1288 = vunpack.c.0.s8 %v1287
    %v1289 = vlaneseq
    %v1290 = vshrl.u32 %v1289, 7
    %v1291 = vsub.s32 %v1288, %v1290
    %v1292 = vrot.slane %v1284, %v1291
    %v1294 = vunpack.c.l.s4 1983009808
    %v1295 = vunpack.c.0.s8 %v1294
    %v1296 = vlaneseq
    %v1297 = vshrl.u32 %v1296, 7
    %v1298 = vsub.s32 %v1295, %v1297
    %v1299 = vrot.slane %v1285, %v1298
    %v1300 = vcombine.low %v1217, %v1225
    %v1301 = vcombine.high %v1217, %v1225
    %v1303 = vunpack.c.l.s4 1983009808
    %v1304 = vunpack.c.0.s8 %v1303
    %v1305 = vlaneseq
    %v1306 = vshrl.u32 %v1305, 7
    %v1307 = vsub.s32 %v1304, %v1306
    %v1308 = vrot.slane %v1300, %v1307
    %v1310 = vunpack.c.l.s4 1983009808
    %v1311 = vunpack.c.0.s8 %v1310
    %v1312 = vlaneseq
    %v1313 = vshrl.u32 %v1312, 7
    %v1314 = vsub.s32 %v1311, %v1313
    %v1315 = vrot.slane %v1301, %v1314
    %v1316 = vcombine.low %v1229, %v1237
    %v1317 = vcombine.high %v1229, %v1237
    %v1319 = vunpack.c.l.s4 1983009808
    %v1320 = vunpack.c.0.s8 %v1319
    %v1321 = vlaneseq
    %v1322 = vshrl.u32 %v1321, 7
    %v1323 = vsub.s32 %v1320, %v1322
    %v1324 = vrot.slane %v1316, %v1323
    %v1326 = vunpack.c.l.s4 1983009808
    %v1327 = vunpack.c.0.s8 %v1326
    %v1328 = vlaneseq
    %v1329 = vshrl.u32 %v1328, 7
    %v1330 = vsub.s32 %v1327, %v1329
    %v1331 = vrot.slane %v1317, %v1330
    %v1332 = vcombine.low %v1233, %v1241
    %v1333 = vcombine.high %v1233, %v1241
    %v1335 = vunpack.c.l.s4 1983009808
    %v1336 = vunpack.c.0.s8 %v1335
    %v1337 = vlaneseq
    %v1338 = vshrl.u32 %v1337, 7
    %v1339 = vsub.s32 %v1336, %v1338
    %v1340 = vrot.slane %v1332, %v1339
    %v1342 = vunpack.c.l.s4 1983009808
    %v1343 = vunpack.c.0.s8 %v1342
    %v1344 = vlaneseq
    %v1345 = vshrl.u32 %v1344, 7
    %v1346 = vsub.s32 %v1343, %v1345
    %v1347 = vrot.slane %v1333, %v1346
    %v1348 = vcombine.low %v1292, %v1308
    %v1349 = vcombine.high %v1292, %v1308
    %v1351 = vunpack.c.l.s4 1934713408
    %v1352 = vunpack.c.0.s8 %v1351
    %v1353 = vlaneseq
    %v1354 = vshrl.u32 %v1353, 7
    %v1355 = vsub.s32 %v1352, %v1354
    %v1356 = vrot.slane %v1348, %v1355
    %v1358 = vunpack.c.l.s4 1934713408
    %v1359 = vunpack.c.0.s8 %v1358
    %v1360 = vlaneseq
    %v1361 = vshrl.u32 %v1360, 7
    %v1362 = vsub.s32 %v1359, %v1361
    %v1363 = vrot.slane %v1349, %v1362
    %v1364 = vcombine.low %v1299, %v1315
    %v1365 = vcombine.high %v1299, %v1315
    %v1367 = vunpack.c.l.s4 1934713408
    %v1368 = vunpack.c.0.s8 %v1367
    %v1369 = vlaneseq
    %v1370 = vshrl.u32 %v1369, 7
    %v1371 = vsub.s32 %v1368, %v1370
    %v1372 = vrot.slane %v1364, %v1371
    %v1374 = vunpack.c.l.s4 1934713408
    %v1375 = vunpack.c.0.s8 %v1374
    %v1376 = vlaneseq
    %v1377 = vshrl.u32 %v1376, 7
    %v1378 = vsub.s32 %v1375, %v1377
    %v1379 = vrot.slane %v1365, %v1378
    %v1380 = vcombine.low %v1324, %v1340
    %v1381 = vcombine.high %v1324, %v1340
    %v1383 = vunpack.c.l.s4 1934713408
    %v1384 = vunpack.c.0.s8 %v1383
    %v1385 = vlaneseq
    %v1386 = vshrl.u32 %v1385, 7
    %v1387 = vsub.s32 %v1384, %v1386
    %v1388 = vrot.slane %v1380, %v1387
    %v1390 = vunpack.c.l.s4 1934713408
    %v1391 = vunpack.c.0.s8 %v1390
    %v1392 = vlaneseq
    %v1393 = vshrl.u32 %v1392, 7
    %v1394 = vsub.s32 %v1391, %v1393
    %v1395 = vrot.slane %v1381, %v1394
    %v1396 = vcombine.low %v1331, %v1347
    %v1397 = vcombine.high %v1331, %v1347
    %v1399 = vunpack.c.l.s4 1934713408
    %v1400 = vunpack.c.0.s8 %v1399
    %v1401 = vlaneseq
    %v1402 = vshrl.u32 %v1401, 7
    %v1403 = vsub.s32 %v1400, %v1402
    %v1404 = vrot.slane %v1396, %v1403
    %v1406 = vunpack.c.l.s4 1934713408
    %v1407 = vunpack.c.0.s8 %v1406
    %v1408 = vlaneseq
    %v1409 = vshrl.u32 %v1408, 7
    %v1410 = vsub.s32 %v1407, %v1409
    %v1411 = vrot.slane %v1397, %v1410
    %v1412 = vcombine.low %v1356, %v1388
    %v1413 = vcombine.high %v1356, %v1388
    %v1414 = vcombine.low %v1363, %v1395
    %v1415 = vcombine.high %v1363, %v1395
    %v1416 = vcombine.low %v1372, %v1404
    %v1417 = vcombine.high %v1372, %v1404
    %v1418 = vcombine.low %v1379, %v1411
    %v1419 = vcombine.high %v1379, %v1411
    %v1420 = vcombine.low %v1245, %v1253
    %v1421 = vcombine.high %v1245, %v1253
    %v1423 = vunpack.c.l.s4 1983009808
    %v1424 = vunpack.c.0.s8 %v1423
    %v1425 = vlaneseq
    %v1426 = vshrl.u32 %v1425, 7
    %v1427 = vsub.s32 %v1424, %v1426
    %v1428 = vrot.slane %v1420, %v1427
    %v1430 = vunpack.c.l.s4 1983009808
    %v1431 = vunpack.c.0.s8 %v1430
    %v1432 = vlaneseq
    %v1433 = vshrl.u32 %v1432, 7
    %v1434 = vsub.s32 %v1431, %v1433
    %v1435 = vrot.slane %v1421, %v1434
    %v1436 = vcombine.low %v1249, %v1257
    %v1437 = vcombine.high %v1249, %v1257
    %v1439 = vunpack.c.l.s4 1983009808
    %v1440 = vunpack.c.0.s8 %v1439
    %v1441 = vlaneseq
    %v1442 = vshrl.u32 %v1441, 7
    %v1443 = vsub.s32 %v1440, %v1442
    %v1444 = vrot.slane %v1436, %v1443
    %v1446 = vunpack.c.l.s4 1983009808
    %v1447 = vunpack.c.0.s8 %v1446
    %v1448 = vlaneseq
    %v1449 = vshrl.u32 %v1448, 7
    %v1450 = vsub.s32 %v1447, %v1449
    %v1451 = vrot.slane %v1437, %v1450
    %v1452 = vcombine.low %v1428, %v1444
    %v1453 = vcombine.high %v1428, %v1444
    %v1455 = vunpack.c.l.s4 1934713408
    %v1456 = vunpack.c.0.s8 %v1455
    %v1457 = vlaneseq
    %v1458 = vshrl.u32 %v1457, 7
    %v1459 = vsub.s32 %v1456, %v1458
    %v1460 = vrot.slane %v1452, %v1459
    %v1462 = vunpack.c.l.s4 1934713408
    %v1463 = vunpack.c.0.s8 %v1462
    %v1464 = vlaneseq
    %v1465 = vshrl.u32 %v1464, 7
    %v1466 = vsub.s32 %v1463, %v1465
    %v1467 = vrot.slane %v1453, %v1466
    %v1468 = vcombine.low %v1435, %v1451
    %v1469 = vcombine.high %v1435, %v1451
    %v1471 = vunpack.c.l.s4 1934713408
    %v1472 = vunpack.c.0.s8 %v1471
    %v1473 = vlaneseq
    %v1474 = vshrl.u32 %v1473, 7
    %v1475 = vsub.s32 %v1472, %v1474
    %v1476 = vrot.slane %v1468, %v1475
    %v1478 = vunpack.c.l.s4 1934713408
    %v1479 = vunpack.c.0.s8 %v1478
    %v1480 = vlaneseq
    %v1481 = vshrl.u32 %v1480, 7
    %v1482 = vsub.s32 %v1479, %v1481
    %v1483 = vrot.slane %v1469, %v1482
    %v1484 = vcombine.high %v1460, 0.0
    %v1485 = vcombine.high %v1467, 0.0
    %v1486 = vcombine.high %v1483, 0.0
    %v1487 = vcombine.low %v1215, %v1223
    %v1488 = vcombine.high %v1215, %v1223
    %v1490 = vunpack.c.l.s4 1983009808
    %v1491 = vunpack.c.0.s8 %v1490
    %v1492 = vlaneseq
    %v1493 = vshrl.u32 %v1492, 7
    %v1494 = vsub.s32 %v1491, %v1493
    %v1495 = vrot.slane %v1487, %v1494
    %v1497 = vunpack.c.l.s4 1983009808
    %v1498 = vunpack.c.0.s8 %v1497
    %v1499 = vlaneseq
    %v1500 = vshrl.u32 %v1499, 7
    %v1501 = vsub.s32 %v1498, %v1500
    %v1502 = vrot.slane %v1488, %v1501
    %v1503 = vcombine.low %v1219, %v1227
    %v1504 = vcombine.high %v1219, %v1227
    %v1506 = vunpack.c.l.s4 1983009808
    %v1507 = vunpack.c.0.s8 %v1506
    %v1508 = vlaneseq
    %v1509 = vshrl.u32 %v1508, 7
    %v1510 = vsub.s32 %v1507, %v1509
    %v1511 = vrot.slane %v1503, %v1510
    %v1513 = vunpack.c.l.s4 1983009808
    %v1514 = vunpack.c.0.s8 %v1513
    %v1515 = vlaneseq
    %v1516 = vshrl.u32 %v1515, 7
    %v1517 = vsub.s32 %v1514, %v1516
    %v1518 = vrot.slane %v1504, %v1517
    %v1519 = vcombine.low %v1231, %v1239
    %v1520 = vcombine.high %v1231, %v1239
    %v1522 = vunpack.c.l.s4 1983009808
    %v1523 = vunpack.c.0.s8 %v1522
    %v1524 = vlaneseq
    %v1525 = vshrl.u32 %v1524, 7
    %v1526 = vsub.s32 %v1523, %v1525
    %v1527 = vrot.slane %v1519, %v1526
    %v1529 = vunpack.c.l.s4 1983009808
    %v1530 = vunpack.c.0.s8 %v1529
    %v1531 = vlaneseq
    %v1532 = vshrl.u32 %v1531, 7
    %v1533 = vsub.s32 %v1530, %v1532
    %v1534 = vrot.slane %v1520, %v1533
    %v1535 = vcombine.low %v1235, %v1243
    %v1536 = vcombine.high %v1235, %v1243
    %v1538 = vunpack.c.l.s4 1983009808
    %v1539 = vunpack.c.0.s8 %v1538
    %v1540 = vlaneseq
    %v1541 = vshrl.u32 %v1540, 7
    %v1542 = vsub.s32 %v1539, %v1541
    %v1543 = vrot.slane %v1535, %v1542
    %v1545 = vunpack.c.l.s4 1983009808
    %v1546 = vunpack.c.0.s8 %v1545
    %v1547 = vlaneseq
    %v1548 = vshrl.u32 %v1547, 7
    %v1549 = vsub.s32 %v1546, %v1548
    %v1550 = vrot.slane %v1536, %v1549
    %v1551 = vcombine.low %v1495, %v1511
    %v1552 = vcombine.high %v1495, %v1511
    %v1554 = vunpack.c.l.s4 1934713408
    %v1555 = vunpack.c.0.s8 %v1554
    %v1556 = vlaneseq
    %v1557 = vshrl.u32 %v1556, 7
    %v1558 = vsub.s32 %v1555, %v1557
    %v1559 = vrot.slane %v1551, %v1558
    %v1561 = vunpack.c.l.s4 1934713408
    %v1562 = vunpack.c.0.s8 %v1561
    %v1563 = vlaneseq
    %v1564 = vshrl.u32 %v1563, 7
    %v1565 = vsub.s32 %v1562, %v1564
    %v1566 = vrot.slane %v1552, %v1565
    %v1567 = vcombine.low %v1502, %v1518
    %v1569 = vunpack.c.l.s4 1934713408
    %v1570 = vunpack.c.0.s8 %v1569
    %v1571 = vlaneseq
    %v1572 = vshrl.u32 %v1571, 7
    %v1573 = vsub.s32 %v1570, %v1572
    %v1574 = vrot.slane %v1567, %v1573
    %v1575 = vcombine.low %v1527, %v1543
    %v1576 = vcombine.high %v1527, %v1543
    %v1578 = vunpack.c.l.s4 1934713408
    %v1579 = vunpack.c.0.s8 %v1578
    %v1580 = vlaneseq
    %v1581 = vshrl.u32 %v1580, 7
    %v1582 = vsub.s32 %v1579, %v1581
    %v1583 = vrot.slane %v1575, %v1582
    %v1585 = vunpack.c.l.s4 1934713408
    %v1586 = vunpack.c.0.s8 %v1585
    %v1587 = vlaneseq
    %v1588 = vshrl.u32 %v1587, 7
    %v1589 = vsub.s32 %v1586, %v1588
    %v1590 = vrot.slane %v1576, %v1589
    %v1591 = vcombine.low %v1534, %v1550
    %v1593 = vunpack.c.l.s4 1934713408
    %v1594 = vunpack.c.0.s8 %v1593
    %v1595 = vlaneseq
    %v1596 = vshrl.u32 %v1595, 7
    %v1597 = vsub.s32 %v1594, %v1596
    %v1598 = vrot.slane %v1591, %v1597
    %v1599 = vcombine.low %v1559, %v1583
    %v1600 = vcombine.high %v1559, %v1583
    %v1601 = vcombine.low %v1566, %v1590
    %v1602 = vcombine.high %v1566, %v1590
    %v1603 = vcombine.low %v1574, %v1598
    %v1604 = vcombine.high %v1574, %v1598
    %v1605 = vcombine.low %v1247, %v1255
    %v1606 = vcombine.high %v1247, %v1255
    %v1608 = vunpack.c.l.s4 1983009808
    %v1609 = vunpack.c.0.s8 %v1608
    %v1610 = vlaneseq
    %v1611 = vshrl.u32 %v1610, 7
    %v1612 = vsub.s32 %v1609, %v1611
    %v1613 = vrot.slane %v1605, %v1612
    %v1615 = vunpack.c.l.s4 1983009808
    %v1616 = vunpack.c.0.s8 %v1615
    %v1617 = vlaneseq
    %v1618 = vshrl.u32 %v1617, 7
    %v1619 = vsub.s32 %v1616, %v1618
    %v1620 = vrot.slane %v1606, %v1619
    %v1621 = vcombine.low %v1251, %v1259
    %v1622 = vcombine.high %v1251, %v1259
    %v1624 = vunpack.c.l.s4 1983009808
    %v1625 = vunpack.c.0.s8 %v1624
    %v1626 = vlaneseq
    %v1627 = vshrl.u32 %v1626, 7
    %v1628 = vsub.s32 %v1625, %v1627
    %v1629 = vrot.slane %v1621, %v1628
    %v1631 = vunpack.c.l.s4 1983009808
    %v1632 = vunpack.c.0.s8 %v1631
    %v1633 = vlaneseq
    %v1634 = vshrl.u32 %v1633, 7
    %v1635 = vsub.s32 %v1632, %v1634
    %v1636 = vrot.slane %v1622, %v1635
    %v1637 = vcombine.low %v1613, %v1629
    %v1638 = vcombine.high %v1613, %v1629
    %v1640 = vunpack.c.l.s4 1934713408
    %v1641 = vunpack.c.0.s8 %v1640
    %v1642 = vlaneseq
    %v1643 = vshrl.u32 %v1642, 7
    %v1644 = vsub.s32 %v1641, %v1643
    %v1645 = vrot.slane %v1637, %v1644
    %v1647 = vunpack.c.l.s4 1934713408
    %v1648 = vunpack.c.0.s8 %v1647
    %v1649 = vlaneseq
    %v1650 = vshrl.u32 %v1649, 7
    %v1651 = vsub.s32 %v1648, %v1650
    %v1652 = vrot.slane %v1638, %v1651
    %v1653 = vcombine.low %v1620, %v1636
    %v1655 = vunpack.c.l.s4 1934713408
    %v1656 = vunpack.c.0.s8 %v1655
    %v1657 = vlaneseq
    %v1658 = vshrl.u32 %v1657, 7
    %v1659 = vsub.s32 %v1656, %v1658
    %v1660 = vrot.slane %v1653, %v1659
    %v1661 = vcombine.high %v1645, 0.0
    %v1662 = vcombine.high %v1652, 0.0
    %v1663 = vcombine.high %v1660, 0.0
    %v1664 = vcombine.low %v1412, %v1414
    %v1665 = vcombine.high %v1412, %v1414
    %v1667 = vunpack.c.l.s4 1983009808
    %v1668 = vunpack.c.0.s8 %v1667
    %v1669 = vlaneseq
    %v1670 = vshrl.u32 %v1669, 7
    %v1671 = vsub.s32 %v1668, %v1670
    %v1672 = vrot.slane %v1664, %v1671
    %v1674 = vunpack.c.l.s4 1983009808
    %v1675 = vunpack.c.0.s8 %v1674
    %v1676 = vlaneseq
    %v1677 = vshrl.u32 %v1676, 7
    %v1678 = vsub.s32 %v1675, %v1677
    %v1679 = vrot.slane %v1665, %v1678
    %v1680 = vcombine.low %v1413, %v1415
    %v1681 = vcombine.high %v1413, %v1415
    %v1683 = vunpack.c.l.s4 1983009808
    %v1684 = vunpack.c.0.s8 %v1683
    %v1685 = vlaneseq
    %v1686 = vshrl.u32 %v1685, 7
    %v1687 = vsub.s32 %v1684, %v1686
    %v1688 = vrot.slane %v1680, %v1687
    %v1690 = vunpack.c.l.s4 1983009808
    %v1691 = vunpack.c.0.s8 %v1690
    %v1692 = vlaneseq
    %v1693 = vshrl.u32 %v1692, 7
    %v1694 = vsub.s32 %v1691, %v1693
    %v1695 = vrot.slane %v1681, %v1694
    %v1696 = vcombine.low %v1416, %v1418
    %v1697 = vcombine.high %v1416, %v1418
    %v1699 = vunpack.c.l.s4 1983009808
    %v1700 = vunpack.c.0.s8 %v1699
    %v1701 = vlaneseq
    %v1702 = vshrl.u32 %v1701, 7
    %v1703 = vsub.s32 %v1700, %v1702
    %v1704 = vrot.slane %v1696, %v1703
    %v1706 = vunpack.c.l.s4 1983009808
    %v1707 = vunpack.c.0.s8 %v1706
    %v1708 = vlaneseq
    %v1709 = vshrl.u32 %v1708, 7
    %v1710 = vsub.s32 %v1707, %v1709
    %v1711 = vrot.slane %v1697, %v1710
    %v1712 = vcombine.high %v1417, 0.0
    %v1714 = vunpack.c.l.s4 1983009808
    %v1715 = vunpack.c.0.s8 %v1714
    %v1716 = vlaneseq
    %v1717 = vshrl.u32 %v1716, 7
    %v1718 = vsub.s32 %v1715, %v1717
    %v1719 = vrot.slane %v1417, %v1718
    %v1721 = vunpack.c.l.s4 1983009808
    %v1722 = vunpack.c.0.s8 %v1721
    %v1723 = vlaneseq
    %v1724 = vshrl.u32 %v1723, 7
    %v1725 = vsub.s32 %v1722, %v1724
    %v1726 = vrot.slane %v1712, %v1725
    %v1727 = vcombine.low %v1672, %v1688
    %v1728 = vcombine.high %v1672, %v1688
    %v1730 = vunpack.c.l.s4 1934713408
    %v1731 = vunpack.c.0.s8 %v1730
    %v1732 = vlaneseq
    %v1733 = vshrl.u32 %v1732, 7
    %v1734 = vsub.s32 %v1731, %v1733
    %v1735 = vrot.slane %v1727, %v1734
    %v1737 = vunpack.c.l.s4 1934713408
    %v1738 = vunpack.c.0.s8 %v1737
    %v1739 = vlaneseq
    %v1740 = vshrl.u32 %v1739, 7
    %v1741 = vsub.s32 %v1738, %v1740
    %v1742 = vrot.slane %v1728, %v1741
    %v1743 = vcombine.low %v1679, %v1695
    %v1744 = vcombine.high %v1679, %v1695
    %v1746 = vunpack.c.l.s4 1934713408
    %v1747 = vunpack.c.0.s8 %v1746
    %v1748 = vlaneseq
    %v1749 = vshrl.u32 %v1748, 7
    %v1750 = vsub.s32 %v1747, %v1749
    %v1751 = vrot.slane %v1743, %v1750
    %v1753 = vunpack.c.l.s4 1934713408
    %v1754 = vunpack.c.0.s8 %v1753
    %v1755 = vlaneseq
    %v1756 = vshrl.u32 %v1755, 7
    %v1757 = vsub.s32 %v1754, %v1756
    %v1758 = vrot.slane %v1744, %v1757
    %v1759 = vcombine.low %v1704, %v1719
    %v1760 = vcombine.high %v1704, %v1719
    %v1762 = vunpack.c.l.s4 1934713408
    %v1763 = vunpack.c.0.s8 %v1762
    %v1764 = vlaneseq
    %v1765 = vshrl.u32 %v1764, 7
    %v1766 = vsub.s32 %v1763, %v1765
    %v1767 = vrot.slane %v1759, %v1766
    %v1769 = vunpack.c.l.s4 1934713408
    %v1770 = vunpack.c.0.s8 %v1769
    %v1771 = vlaneseq
    %v1772 = vshrl.u32 %v1771, 7
    %v1773 = vsub.s32 %v1770, %v1772
    %v1774 = vrot.slane %v1760, %v1773
    %v1775 = vcombine.low %v1711, %v1726
    %v1776 = vcombine.high %v1711, %v1726
    %v1778 = vunpack.c.l.s4 1934713408
    %v1779 = vunpack.c.0.s8 %v1778
    %v1780 = vlaneseq
    %v1781 = vshrl.u32 %v1780, 7
    %v1782 = vsub.s32 %v1779, %v1781
    %v1783 = vrot.slane %v1775, %v1782
    %v1785 = vunpack.c.l.s4 1934713408
    %v1786 = vunpack.c.0.s8 %v1785
    %v1787 = vlaneseq
    %v1788 = vshrl.u32 %v1787, 7
    %v1789 = vsub.s32 %v1786, %v1788
    %v1790 = vrot.slane %v1776, %v1789
    %v1791 = vcombine.low %v1735, %v1767
    %v1792 = vcombine.high %v1735, %v1767
    %v1793 = vcombine.low %v1742, %v1774
    %v1794 = vcombine.high %v1742, %v1774
    %v1795 = vcombine.low %v1751, %v1783
    %v1796 = vcombine.high %v1751, %v1783
    %v1797 = vcombine.low %v1758, %v1790
    %v1798 = vcombine.high %v1758, %v1790
    %v1799 = vcombine.low %v1460, %v1467
    %v1801 = vunpack.c.l.s4 1983009808
    %v1802 = vunpack.c.0.s8 %v1801
    %v1803 = vlaneseq
    %v1804 = vshrl.u32 %v1803, 7
    %v1805 = vsub.s32 %v1802, %v1804
    %v1806 = vrot.slane %v1799, %v1805
    %v1807 = vcombine.low %v1484, %v1485
    %v1809 = vunpack.c.l.s4 1983009808
    %v1810 = vunpack.c.0.s8 %v1809
    %v1811 = vlaneseq
    %v1812 = vshrl.u32 %v1811, 7
    %v1813 = vsub.s32 %v1810, %v1812
    %v1814 = vrot.slane %v1807, %v1813
    %v1815 = vcombine.low %v1476, %v1483
    %v1817 = vunpack.c.l.s4 1983009808
    %v1818 = vunpack.c.0.s8 %v1817
    %v1819 = vlaneseq
    %v1820 = vshrl.u32 %v1819, 7
    %v1821 = vsub.s32 %v1818, %v1820
    %v1822 = vrot.slane %v1815, %v1821
    %v1823 = vcombine.high %v1476, 0.0
    %v1825 = vunpack.c.l.s4 1983009808
    %v1826 = vunpack.c.0.s8 %v1825
    %v1827 = vlaneseq
    %v1828 = vshrl.u32 %v1827, 7
    %v1829 = vsub.s32 %v1826, %v1828
    %v1830 = vrot.slane %v1823, %v1829
    %v1831 = vcombine.low %v1806, %v1814
    %v1832 = vcombine.high %v1806, %v1814
    %v1834 = vunpack.c.l.s4 1934713408
    %v1835 = vunpack.c.0.s8 %v1834
    %v1836 = vlaneseq
    %v1837 = vshrl.u32 %v1836, 7
    %v1838 = vsub.s32 %v1835, %v1837
    %v1839 = vrot.slane %v1831, %v1838
    %v1841 = vunpack.c.l.s4 1934713408
    %v1842 = vunpack.c.0.s8 %v1841
    %v1843 = vlaneseq
    %v1844 = vshrl.u32 %v1843, 7
    %v1845 = vsub.s32 %v1842, %v1844
    %v1846 = vrot.slane %v1832, %v1845
    %v1847 = vcombine.low %v1822, %v1830
    %v1848 = vcombine.high %v1822, %v1830
    %v1850 = vunpack.c.l.s4 1934713408
    %v1851 = vunpack.c.0.s8 %v1850
    %v1852 = vlaneseq
    %v1853 = vshrl.u32 %v1852, 7
    %v1854 = vsub.s32 %v1851, %v1853
    %v1855 = vrot.slane %v1847, %v1854
    %v1857 = vunpack.c.l.s4 1934713408
    %v1858 = vunpack.c.0.s8 %v1857
    %v1859 = vlaneseq
    %v1860 = vshrl.u32 %v1859, 7
    %v1861 = vsub.s32 %v1858, %v1860
    %v1862 = vrot.slane %v1848, %v1861
    %v1863 = vcombine.low %v1839, %v1855
    %v1864 = vcombine.high %v1839, %v1855
    %v1865 = vcombine.low %v1846, %v1862
    %v1866 = vcombine.high %v1846, %v1862
    %v1867 = vcombine.low %v1419, %v1600
    %v1868 = vcombine.high %v1419, %v1600
    %v1870 = vunpack.c.l.s4 1983009808
    %v1871 = vunpack.c.0.s8 %v1870
    %v1872 = vlaneseq
    %v1873 = vshrl.u32 %v1872, 7
    %v1874 = vsub.s32 %v1871, %v1873
    %v1875 = vrot.slane %v1867, %v1874
    %v1877 = vunpack.c.l.s4 1983009808
    %v1878 = vunpack.c.0.s8 %v1877
    %v1879 = vlaneseq
    %v1880 = vshrl.u32 %v1879, 7
    %v1881 = vsub.s32 %v1878, %v1880
    %v1882 = vrot.slane %v1868, %v1881
    %v1883 = vcombine.low %v1599, %v1601
    %v1884 = vcombine.high %v1599, %v1601
    %v1886 = vunpack.c.l.s4 1983009808
    %v1887 = vunpack.c.0.s8 %v1886
    %v1888 = vlaneseq
    %v1889 = vshrl.u32 %v1888, 7
    %v1890 = vsub.s32 %v1887, %v1889
    %v1891 = vrot.slane %v1883, %v1890
    %v1893 = vunpack.c.l.s4 1983009808
    %v1894 = vunpack.c.0.s8 %v1893
    %v1895 = vlaneseq
    %v1896 = vshrl.u32 %v1895, 7
    %v1897 = vsub.s32 %v1894, %v1896
    %v1898 = vrot.slane %v1884, %v1897
    %v1899 = vcombine.low %v1602, %v1604
    %v1900 = vcombine.high %v1602, %v1604
    %v1902 = vunpack.c.l.s4 1983009808
    %v1903 = vunpack.c.0.s8 %v1902
    %v1904 = vlaneseq
    %v1905 = vshrl.u32 %v1904, 7
    %v1906 = vsub.s32 %v1903, %v1905
    %v1907 = vrot.slane %v1899, %v1906
    %v1909 = vunpack.c.l.s4 1983009808
    %v1910 = vunpack.c.0.s8 %v1909
    %v1911 = vlaneseq
    %v1912 = vshrl.u32 %v1911, 7
    %v1913 = vsub.s32 %v1910, %v1912
    %v1914 = vrot.slane %v1900, %v1913
    %v1915 = vcombine.high %v1603, 0.0
    %v1917 = vunpack.c.l.s4 1983009808
    %v1918 = vunpack.c.0.s8 %v1917
    %v1919 = vlaneseq
    %v1920 = vshrl.u32 %v1919, 7
    %v1921 = vsub.s32 %v1918, %v1920
    %v1922 = vrot.slane %v1603, %v1921
    %v1924 = vunpack.c.l.s4 1983009808
    %v1925 = vunpack.c.0.s8 %v1924
    %v1926 = vlaneseq
    %v1927 = vshrl.u32 %v1926, 7
    %v1928 = vsub.s32 %v1925, %v1927
    %v1929 = vrot.slane %v1915, %v1928
    %v1930 = vcombine.low %v1875, %v1891
    %v1931 = vcombine.high %v1875, %v1891
    %v1933 = vunpack.c.l.s4 1934713408
    %v1934 = vunpack.c.0.s8 %v1933
    %v1935 = vlaneseq
    %v1936 = vshrl.u32 %v1935, 7
    %v1937 = vsub.s32 %v1934, %v1936
    %v1938 = vrot.slane %v1930, %v1937
    %v1940 = vunpack.c.l.s4 1934713408
    %v1941 = vunpack.c.0.s8 %v1940
    %v1942 = vlaneseq
    %v1943 = vshrl.u32 %v1942, 7
    %v1944 = vsub.s32 %v1941, %v1943
    %v1945 = vrot.slane %v1931, %v1944
    %v1946 = vcombine.low %v1882, %v1898
    %v1947 = vcombine.high %v1882, %v1898
    %v1949 = vunpack.c.l.s4 1934713408
    %v1950 = vunpack.c.0.s8 %v1949
    %v1951 = vlaneseq
    %v1952 = vshrl.u32 %v1951, 7
    %v1953 = vsub.s32 %v1950, %v1952
    %v1954 = vrot.slane %v1946, %v1953
    %v1956 = vunpack.c.l.s4 1934713408
    %v1957 = vunpack.c.0.s8 %v1956
    %v1958 = vlaneseq
    %v1959 = vshrl.u32 %v1958, 7
    %v1960 = vsub.s32 %v1957, %v1959
    %v1961 = vrot.slane %v1947, %v1960
    %v1962 = vcombine.low %v1907, %v1922
    %v1963 = vcombine.high %v1907, %v1922
    %v1965 = vunpack.c.l.s4 1934713408
    %v1966 = vunpack.c.0.s8 %v1965
    %v1967 = vlaneseq
    %v1968 = vshrl.u32 %v1967, 7
    %v1969 = vsub.s32 %v1966, %v1968
    %v1970 = vrot.slane %v1962, %v1969
    %v1972 = vunpack.c.l.s4 1934713408
    %v1973 = vunpack.c.0.s8 %v1972
    %v1974 = vlaneseq
    %v1975 = vshrl.u32 %v1974, 7
    %v1976 = vsub.s32 %v1973, %v1975
    %v1977 = vrot.slane %v1963, %v1976
    %v1978 = vcombine.low %v1914, %v1929
    %v1979 = vcombine.high %v1914, %v1929
    %v1981 = vunpack.c.l.s4 1934713408
    %v1982 = vunpack.c.0.s8 %v1981
    %v1983 = vlaneseq
    %v1984 = vshrl.u32 %v1983, 7
    %v1985 = vsub.s32 %v1982, %v1984
    %v1986 = vrot.slane %v1978, %v1985
    %v1988 = vunpack.c.l.s4 1934713408
    %v1989 = vunpack.c.0.s8 %v1988
    %v1990 = vlaneseq
    %v1991 = vshrl.u32 %v1990, 7
    %v1992 = vsub.s32 %v1989, %v1991
    %v1993 = vrot.slane %v1979, %v1992
    %v1994 = vcombine.low %v1938, %v1970
    %v1995 = vcombine.high %v1938, %v1970
    %v1996 = vcombine.low %v1945, %v1977
    %v1997 = vcombine.high %v1945, %v1977
    %v1998 = vcombine.low %v1954, %v1986
    %v1999 = vcombine.high %v1954, %v1986
    %v2000 = vcombine.low %v1961, %v1993
    %v2001 = vcombine.high %v1961, %v1993
    %v2002 = vcombine.low %v1486, %v1661
    %v2004 = vunpack.c.l.s4 1983009808
    %v2005 = vunpack.c.0.s8 %v2004
    %v2006 = vlaneseq
    %v2007 = vshrl.u32 %v2006, 7
    %v2008 = vsub.s32 %v2005, %v2007
    %v2009 = vrot.slane %v2002, %v2008
    %v2010 = vcombine.low %v1645, %v1652
    %v2012 = vunpack.c.l.s4 1983009808
    %v2013 = vunpack.c.0.s8 %v2012
    %v2014 = vlaneseq
    %v2015 = vshrl.u32 %v2014, 7
    %v2016 = vsub.s32 %v2013, %v2015
    %v2017 = vrot.slane %v2010, %v2016
    %v2018 = vcombine.low %v1662, %v1663
    %v2020 = vunpack.c.l.s4 1983009808
    %v2021 = vunpack.c.0.s8 %v2020
    %v2022 = vlaneseq
    %v2023 = vshrl.u32 %v2022, 7
    %v2024 = vsub.s32 %v2021, %v2023
    %v2025 = vrot.slane %v2018, %v2024
    %v2027 = vunpack.c.l.s4 1983009808
    %v2028 = vunpack.c.0.s8 %v2027
    %v2029 = vlaneseq
    %v2030 = vshrl.u32 %v2029, 7
    %v2031 = vsub.s32 %v2028, %v2030
    %v2032 = vrot.slane %v1660, %v2031
    %v2033 = vcombine.low %v2009, %v2017
    %v2034 = vcombine.high %v2009, %v2017
    %v2036 = vunpack.c.l.s4 1934713408
    %v2037 = vunpack.c.0.s8 %v2036
    %v2038 = vlaneseq
    %v2039 = vshrl.u32 %v2038, 7
    %v2040 = vsub.s32 %v2037, %v2039
    %v2041 = vrot.slane %v2033, %v2040
    %v2043 = vunpack.c.l.s4 1934713408
    %v2044 = vunpack.c.0.s8 %v2043
    %v2045 = vlaneseq
    %v2046 = vshrl.u32 %v2045, 7
    %v2047 = vsub.s32 %v2044, %v2046
    %v2048 = vrot.slane %v2034, %v2047
    %v2049 = vcombine.low %v2025, %v2032
    %v2050 = vcombine.high %v2025, %v2032
    %v2052 = vunpack.c.l.s4 1934713408
    %v2053 = vunpack.c.0.s8 %v2052
    %v2054 = vlaneseq
    %v2055 = vshrl.u32 %v2054, 7
    %v2056 = vsub.s32 %v2053, %v2055
    %v2057 = vrot.slane %v2049, %v2056
    %v2059 = vunpack.c.l.s4 1934713408
    %v2060 = vunpack.c.0.s8 %v2059
    %v2061 = vlaneseq
    %v2062 = vshrl.u32 %v2061, 7
    %v2063 = vsub.s32 %v2060, %v2062
    %v2064 = vrot.slane %v2050, %v2063
    %v2065 = vcombine.low %v2041, %v2057
    %v2066 = vcombine.high %v2041, %v2057
    %v2067 = vcombine.low %v2048, %v2064
    %v2068 = vcombine.high %v2048, %v2064
    %2069 = vrot.lane.b32.xlu0 %v322, 121
    %v2070 = vpop.permute.xlu0 %2069
    %2071 = vrot.lane.b32.xlu0 %v328, 121
    %v2072 = vpop.permute.xlu0 %2071
    %2073 = vrot.lane.b32.xlu0 %v322, 114
    %v2074 = vpop.permute.xlu0 %2073
    %2075 = vrot.lane.b32.xlu0 %v328, 114
    %v2076 = vpop.permute.xlu0 %2075
    %2077 = vrot.lane.b32.xlu0 %v322, 107
    %v2078 = vpop.permute.xlu0 %2077
    %2079 = vrot.lane.b32.xlu0 %v328, 107
    %v2080 = vpop.permute.xlu0 %2079
    %2081 = vrot.lane.b32.xlu0 %v322, 100
    %v2082 = vpop.permute.xlu0 %2081
    %2083 = vrot.lane.b32.xlu0 %v328, 100
    %v2084 = vpop.permute.xlu0 %2083
    %2085 = vrot.lane.b32.xlu0 %v322, 93
    %v2086 = vpop.permute.xlu0 %2085
    %2087 = vrot.lane.b32.xlu0 %v328, 93
    %v2088 = vpop.permute.xlu0 %2087
    %2089 = vrot.lane.b32.xlu0 %v322, 88
    %v2090 = vpop.permute.xlu0 %2089
    %2091 = vrot.lane.b32.xlu0 %v328, 88
    %v2092 = vpop.permute.xlu0 %2091
    %2093 = vrot.lane.b32.xlu0 %v2070, 88
    %v2094 = vpop.permute.xlu0 %2093
    %2095 = vrot.lane.b32.xlu0 %v2072, 88
    %v2096 = vpop.permute.xlu0 %2095
    %2097 = vrot.lane.b32.xlu0 %v2074, 88
    %v2098 = vpop.permute.xlu0 %2097
    %2099 = vrot.lane.b32.xlu0 %v2076, 88
    %v2100 = vpop.permute.xlu0 %2099
    %2101 = vrot.lane.b32.xlu0 %v2078, 88
    %v2102 = vpop.permute.xlu0 %2101
    %2103 = vrot.lane.b32.xlu0 %v2080, 88
    %v2104 = vpop.permute.xlu0 %2103
    %2105 = vrot.lane.b32.xlu0 %v2082, 88
    %v2106 = vpop.permute.xlu0 %2105
    %2107 = vrot.lane.b32.xlu0 %v2084, 88
    %v2108 = vpop.permute.xlu0 %2107
    %2109 = vrot.lane.b32.xlu0 %v2086, 88
    %v2110 = vpop.permute.xlu0 %2109
    %2111 = vrot.lane.b32.xlu0 %v2088, 88
    %v2112 = vpop.permute.xlu0 %2111
    %2113 = vrot.lane.b32.xlu0 %v1186, 88
    %v2114 = vpop.permute.xlu0 %2113
    %2115 = vrot.lane.b32.xlu0 %v1188, 88
    %v2116 = vpop.permute.xlu0 %2115
    %2117 = vrot.lane.b32.xlu0 %v1193, 88
    %v2118 = vpop.permute.xlu0 %2117
    %2119 = vrot.lane.b32.xlu0 %v1195, 88
    %v2120 = vpop.permute.xlu0 %2119
    %2121 = vrot.lane.b32.xlu0 %v1197, 88
    %v2122 = vpop.permute.xlu0 %2121
    %2123 = vrot.lane.b32.xlu0 %v1199, 88
    %v2124 = vpop.permute.xlu0 %2123
    %2125 = vrot.lane.b32.xlu0 %v1201, 88
    %v2126 = vpop.permute.xlu0 %2125
    %2127 = vrot.lane.b32.xlu0 %v1203, 88
    %v2128 = vpop.permute.xlu0 %2127
    %2129 = vrot.lane.b32.xlu0 %v1205, 88
    %v2130 = vpop.permute.xlu0 %2129
    %2131 = vrot.lane.b32.xlu0 %v1207, 88
    %v2132 = vpop.permute.xlu0 %2131
    %2133 = vrot.lane.b32.xlu0 %v1209, 88
    %v2134 = vpop.permute.xlu0 %2133
    %2135 = vrot.lane.b32.xlu0 %v1211, 88
    %v2136 = vpop.permute.xlu0 %2135
    %v2161 = vcombine.low %v2090, %v2098
    %v2162 = vcombine.high %v2090, %v2098
    %v2164 = vunpack.c.l.s4 1983009808
    %v2165 = vunpack.c.0.s8 %v2164
    %v2166 = vlaneseq
    %v2167 = vshrl.u32 %v2166, 7
    %v2168 = vsub.s32 %v2165, %v2167
    %v2169 = vrot.slane %v2161, %v2168
    %v2171 = vunpack.c.l.s4 1983009808
    %v2172 = vunpack.c.0.s8 %v2171
    %v2173 = vlaneseq
    %v2174 = vshrl.u32 %v2173, 7
    %v2175 = vsub.s32 %v2172, %v2174
    %v2176 = vrot.slane %v2162, %v2175
    %v2177 = vcombine.low %v2094, %v2102
    %v2178 = vcombine.high %v2094, %v2102
    %v2180 = vunpack.c.l.s4 1983009808
    %v2181 = vunpack.c.0.s8 %v2180
    %v2182 = vlaneseq
    %v2183 = vshrl.u32 %v2182, 7
    %v2184 = vsub.s32 %v2181, %v2183
    %v2185 = vrot.slane %v2177, %v2184
    %v2187 = vunpack.c.l.s4 1983009808
    %v2188 = vunpack.c.0.s8 %v2187
    %v2189 = vlaneseq
    %v2190 = vshrl.u32 %v2189, 7
    %v2191 = vsub.s32 %v2188, %v2190
    %v2192 = vrot.slane %v2178, %v2191
    %v2193 = vcombine.low %v2106, %v2114
    %v2194 = vcombine.high %v2106, %v2114
    %v2196 = vunpack.c.l.s4 1983009808
    %v2197 = vunpack.c.0.s8 %v2196
    %v2198 = vlaneseq
    %v2199 = vshrl.u32 %v2198, 7
    %v2200 = vsub.s32 %v2197, %v2199
    %v2201 = vrot.slane %v2193, %v2200
    %v2203 = vunpack.c.l.s4 1983009808
    %v2204 = vunpack.c.0.s8 %v2203
    %v2205 = vlaneseq
    %v2206 = vshrl.u32 %v2205, 7
    %v2207 = vsub.s32 %v2204, %v2206
    %v2208 = vrot.slane %v2194, %v2207
    %v2209 = vcombine.low %v2110, %v2118
    %v2210 = vcombine.high %v2110, %v2118
    %v2212 = vunpack.c.l.s4 1983009808
    %v2213 = vunpack.c.0.s8 %v2212
    %v2214 = vlaneseq
    %v2215 = vshrl.u32 %v2214, 7
    %v2216 = vsub.s32 %v2213, %v2215
    %v2217 = vrot.slane %v2209, %v2216
    %v2219 = vunpack.c.l.s4 1983009808
    %v2220 = vunpack.c.0.s8 %v2219
    %v2221 = vlaneseq
    %v2222 = vshrl.u32 %v2221, 7
    %v2223 = vsub.s32 %v2220, %v2222
    %v2224 = vrot.slane %v2210, %v2223
    %v2225 = vcombine.low %v2169, %v2185
    %v2226 = vcombine.high %v2169, %v2185
    %v2228 = vunpack.c.l.s4 1934713408
    %v2229 = vunpack.c.0.s8 %v2228
    %v2230 = vlaneseq
    %v2231 = vshrl.u32 %v2230, 7
    %v2232 = vsub.s32 %v2229, %v2231
    %v2233 = vrot.slane %v2225, %v2232
    %v2235 = vunpack.c.l.s4 1934713408
    %v2236 = vunpack.c.0.s8 %v2235
    %v2237 = vlaneseq
    %v2238 = vshrl.u32 %v2237, 7
    %v2239 = vsub.s32 %v2236, %v2238
    %v2240 = vrot.slane %v2226, %v2239
    %v2241 = vcombine.low %v2176, %v2192
    %v2242 = vcombine.high %v2176, %v2192
    %v2244 = vunpack.c.l.s4 1934713408
    %v2245 = vunpack.c.0.s8 %v2244
    %v2246 = vlaneseq
    %v2247 = vshrl.u32 %v2246, 7
    %v2248 = vsub.s32 %v2245, %v2247
    %v2249 = vrot.slane %v2241, %v2248
    %v2251 = vunpack.c.l.s4 1934713408
    %v2252 = vunpack.c.0.s8 %v2251
    %v2253 = vlaneseq
    %v2254 = vshrl.u32 %v2253, 7
    %v2255 = vsub.s32 %v2252, %v2254
    %v2256 = vrot.slane %v2242, %v2255
    %v2257 = vcombine.low %v2201, %v2217
    %v2258 = vcombine.high %v2201, %v2217
    %v2260 = vunpack.c.l.s4 1934713408
    %v2261 = vunpack.c.0.s8 %v2260
    %v2262 = vlaneseq
    %v2263 = vshrl.u32 %v2262, 7
    %v2264 = vsub.s32 %v2261, %v2263
    %v2265 = vrot.slane %v2257, %v2264
    %v2267 = vunpack.c.l.s4 1934713408
    %v2268 = vunpack.c.0.s8 %v2267
    %v2269 = vlaneseq
    %v2270 = vshrl.u32 %v2269, 7
    %v2271 = vsub.s32 %v2268, %v2270
    %v2272 = vrot.slane %v2258, %v2271
    %v2273 = vcombine.low %v2208, %v2224
    %v2274 = vcombine.high %v2208, %v2224
    %v2276 = vunpack.c.l.s4 1934713408
    %v2277 = vunpack.c.0.s8 %v2276
    %v2278 = vlaneseq
    %v2279 = vshrl.u32 %v2278, 7
    %v2280 = vsub.s32 %v2277, %v2279
    %v2281 = vrot.slane %v2273, %v2280
    %v2283 = vunpack.c.l.s4 1934713408
    %v2284 = vunpack.c.0.s8 %v2283
    %v2285 = vlaneseq
    %v2286 = vshrl.u32 %v2285, 7
    %v2287 = vsub.s32 %v2284, %v2286
    %v2288 = vrot.slane %v2274, %v2287
    %v2289 = vcombine.low %v2233, %v2265
    %v2290 = vcombine.high %v2233, %v2265
    %v2291 = vcombine.low %v2240, %v2272
    %v2292 = vcombine.high %v2240, %v2272
    %v2293 = vcombine.low %v2249, %v2281
    %v2294 = vcombine.high %v2249, %v2281
    %v2295 = vcombine.low %v2256, %v2288
    %v2296 = vcombine.high %v2256, %v2288
    %v2297 = vcombine.low %v2122, %v2130
    %v2298 = vcombine.high %v2122, %v2130
    %v2300 = vunpack.c.l.s4 1983009808
    %v2301 = vunpack.c.0.s8 %v2300
    %v2302 = vlaneseq
    %v2303 = vshrl.u32 %v2302, 7
    %v2304 = vsub.s32 %v2301, %v2303
    %v2305 = vrot.slane %v2297, %v2304
    %v2307 = vunpack.c.l.s4 1983009808
    %v2308 = vunpack.c.0.s8 %v2307
    %v2309 = vlaneseq
    %v2310 = vshrl.u32 %v2309, 7
    %v2311 = vsub.s32 %v2308, %v2310
    %v2312 = vrot.slane %v2298, %v2311
    %v2313 = vcombine.low %v2126, %v2134
    %v2314 = vcombine.high %v2126, %v2134
    %v2316 = vunpack.c.l.s4 1983009808
    %v2317 = vunpack.c.0.s8 %v2316
    %v2318 = vlaneseq
    %v2319 = vshrl.u32 %v2318, 7
    %v2320 = vsub.s32 %v2317, %v2319
    %v2321 = vrot.slane %v2313, %v2320
    %v2323 = vunpack.c.l.s4 1983009808
    %v2324 = vunpack.c.0.s8 %v2323
    %v2325 = vlaneseq
    %v2326 = vshrl.u32 %v2325, 7
    %v2327 = vsub.s32 %v2324, %v2326
    %v2328 = vrot.slane %v2314, %v2327
    %v2329 = vcombine.low %v2305, %v2321
    %v2330 = vcombine.high %v2305, %v2321
    %v2332 = vunpack.c.l.s4 1934713408
    %v2333 = vunpack.c.0.s8 %v2332
    %v2334 = vlaneseq
    %v2335 = vshrl.u32 %v2334, 7
    %v2336 = vsub.s32 %v2333, %v2335
    %v2337 = vrot.slane %v2329, %v2336
    %v2339 = vunpack.c.l.s4 1934713408
    %v2340 = vunpack.c.0.s8 %v2339
    %v2341 = vlaneseq
    %v2342 = vshrl.u32 %v2341, 7
    %v2343 = vsub.s32 %v2340, %v2342
    %v2344 = vrot.slane %v2330, %v2343
    %v2345 = vcombine.low %v2312, %v2328
    %v2346 = vcombine.high %v2312, %v2328
    %v2348 = vunpack.c.l.s4 1934713408
    %v2349 = vunpack.c.0.s8 %v2348
    %v2350 = vlaneseq
    %v2351 = vshrl.u32 %v2350, 7
    %v2352 = vsub.s32 %v2349, %v2351
    %v2353 = vrot.slane %v2345, %v2352
    %v2355 = vunpack.c.l.s4 1934713408
    %v2356 = vunpack.c.0.s8 %v2355
    %v2357 = vlaneseq
    %v2358 = vshrl.u32 %v2357, 7
    %v2359 = vsub.s32 %v2356, %v2358
    %v2360 = vrot.slane %v2346, %v2359
    %v2361 = vcombine.high %v2337, 0.0
    %v2362 = vcombine.high %v2344, 0.0
    %v2363 = vcombine.high %v2360, 0.0
    %v2364 = vcombine.low %v2092, %v2100
    %v2365 = vcombine.high %v2092, %v2100
    %v2367 = vunpack.c.l.s4 1983009808
    %v2368 = vunpack.c.0.s8 %v2367
    %v2369 = vlaneseq
    %v2370 = vshrl.u32 %v2369, 7
    %v2371 = vsub.s32 %v2368, %v2370
    %v2372 = vrot.slane %v2364, %v2371
    %v2374 = vunpack.c.l.s4 1983009808
    %v2375 = vunpack.c.0.s8 %v2374
    %v2376 = vlaneseq
    %v2377 = vshrl.u32 %v2376, 7
    %v2378 = vsub.s32 %v2375, %v2377
    %v2379 = vrot.slane %v2365, %v2378
    %v2380 = vcombine.low %v2096, %v2104
    %v2381 = vcombine.high %v2096, %v2104
    %v2383 = vunpack.c.l.s4 1983009808
    %v2384 = vunpack.c.0.s8 %v2383
    %v2385 = vlaneseq
    %v2386 = vshrl.u32 %v2385, 7
    %v2387 = vsub.s32 %v2384, %v2386
    %v2388 = vrot.slane %v2380, %v2387
    %v2390 = vunpack.c.l.s4 1983009808
    %v2391 = vunpack.c.0.s8 %v2390
    %v2392 = vlaneseq
    %v2393 = vshrl.u32 %v2392, 7
    %v2394 = vsub.s32 %v2391, %v2393
    %v2395 = vrot.slane %v2381, %v2394
    %v2396 = vcombine.low %v2108, %v2116
    %v2397 = vcombine.high %v2108, %v2116
    %v2399 = vunpack.c.l.s4 1983009808
    %v2400 = vunpack.c.0.s8 %v2399
    %v2401 = vlaneseq
    %v2402 = vshrl.u32 %v2401, 7
    %v2403 = vsub.s32 %v2400, %v2402
    %v2404 = vrot.slane %v2396, %v2403
    %v2406 = vunpack.c.l.s4 1983009808
    %v2407 = vunpack.c.0.s8 %v2406
    %v2408 = vlaneseq
    %v2409 = vshrl.u32 %v2408, 7
    %v2410 = vsub.s32 %v2407, %v2409
    %v2411 = vrot.slane %v2397, %v2410
    %v2412 = vcombine.low %v2112, %v2120
    %v2413 = vcombine.high %v2112, %v2120
    %v2415 = vunpack.c.l.s4 1983009808
    %v2416 = vunpack.c.0.s8 %v2415
    %v2417 = vlaneseq
    %v2418 = vshrl.u32 %v2417, 7
    %v2419 = vsub.s32 %v2416, %v2418
    %v2420 = vrot.slane %v2412, %v2419
    %v2422 = vunpack.c.l.s4 1983009808
    %v2423 = vunpack.c.0.s8 %v2422
    %v2424 = vlaneseq
    %v2425 = vshrl.u32 %v2424, 7
    %v2426 = vsub.s32 %v2423, %v2425
    %v2427 = vrot.slane %v2413, %v2426
    %v2428 = vcombine.low %v2372, %v2388
    %v2429 = vcombine.high %v2372, %v2388
    %v2431 = vunpack.c.l.s4 1934713408
    %v2432 = vunpack.c.0.s8 %v2431
    %v2433 = vlaneseq
    %v2434 = vshrl.u32 %v2433, 7
    %v2435 = vsub.s32 %v2432, %v2434
    %v2436 = vrot.slane %v2428, %v2435
    %v2438 = vunpack.c.l.s4 1934713408
    %v2439 = vunpack.c.0.s8 %v2438
    %v2440 = vlaneseq
    %v2441 = vshrl.u32 %v2440, 7
    %v2442 = vsub.s32 %v2439, %v2441
    %v2443 = vrot.slane %v2429, %v2442
    %v2444 = vcombine.low %v2379, %v2395
    %v2446 = vunpack.c.l.s4 1934713408
    %v2447 = vunpack.c.0.s8 %v2446
    %v2448 = vlaneseq
    %v2449 = vshrl.u32 %v2448, 7
    %v2450 = vsub.s32 %v2447, %v2449
    %v2451 = vrot.slane %v2444, %v2450
    %v2452 = vcombine.low %v2404, %v2420
    %v2453 = vcombine.high %v2404, %v2420
    %v2455 = vunpack.c.l.s4 1934713408
    %v2456 = vunpack.c.0.s8 %v2455
    %v2457 = vlaneseq
    %v2458 = vshrl.u32 %v2457, 7
    %v2459 = vsub.s32 %v2456, %v2458
    %v2460 = vrot.slane %v2452, %v2459
    %v2462 = vunpack.c.l.s4 1934713408
    %v2463 = vunpack.c.0.s8 %v2462
    %v2464 = vlaneseq
    %v2465 = vshrl.u32 %v2464, 7
    %v2466 = vsub.s32 %v2463, %v2465
    %v2467 = vrot.slane %v2453, %v2466
    %v2468 = vcombine.low %v2411, %v2427
    %v2470 = vunpack.c.l.s4 1934713408
    %v2471 = vunpack.c.0.s8 %v2470
    %v2472 = vlaneseq
    %v2473 = vshrl.u32 %v2472, 7
    %v2474 = vsub.s32 %v2471, %v2473
    %v2475 = vrot.slane %v2468, %v2474
    %v2476 = vcombine.low %v2436, %v2460
    %v2477 = vcombine.high %v2436, %v2460
    %v2478 = vcombine.low %v2443, %v2467
    %v2479 = vcombine.high %v2443, %v2467
    %v2480 = vcombine.low %v2451, %v2475
    %v2481 = vcombine.high %v2451, %v2475
    %v2482 = vcombine.low %v2124, %v2132
    %v2483 = vcombine.high %v2124, %v2132
    %v2485 = vunpack.c.l.s4 1983009808
    %v2486 = vunpack.c.0.s8 %v2485
    %v2487 = vlaneseq
    %v2488 = vshrl.u32 %v2487, 7
    %v2489 = vsub.s32 %v2486, %v2488
    %v2490 = vrot.slane %v2482, %v2489
    %v2492 = vunpack.c.l.s4 1983009808
    %v2493 = vunpack.c.0.s8 %v2492
    %v2494 = vlaneseq
    %v2495 = vshrl.u32 %v2494, 7
    %v2496 = vsub.s32 %v2493, %v2495
    %v2497 = vrot.slane %v2483, %v2496
    %v2498 = vcombine.low %v2128, %v2136
    %v2499 = vcombine.high %v2128, %v2136
    %v2501 = vunpack.c.l.s4 1983009808
    %v2502 = vunpack.c.0.s8 %v2501
    %v2503 = vlaneseq
    %v2504 = vshrl.u32 %v2503, 7
    %v2505 = vsub.s32 %v2502, %v2504
    %v2506 = vrot.slane %v2498, %v2505
    %v2508 = vunpack.c.l.s4 1983009808
    %v2509 = vunpack.c.0.s8 %v2508
    %v2510 = vlaneseq
    %v2511 = vshrl.u32 %v2510, 7
    %v2512 = vsub.s32 %v2509, %v2511
    %v2513 = vrot.slane %v2499, %v2512
    %v2514 = vcombine.low %v2490, %v2506
    %v2515 = vcombine.high %v2490, %v2506
    %v2517 = vunpack.c.l.s4 1934713408
    %v2518 = vunpack.c.0.s8 %v2517
    %v2519 = vlaneseq
    %v2520 = vshrl.u32 %v2519, 7
    %v2521 = vsub.s32 %v2518, %v2520
    %v2522 = vrot.slane %v2514, %v2521
    %v2524 = vunpack.c.l.s4 1934713408
    %v2525 = vunpack.c.0.s8 %v2524
    %v2526 = vlaneseq
    %v2527 = vshrl.u32 %v2526, 7
    %v2528 = vsub.s32 %v2525, %v2527
    %v2529 = vrot.slane %v2515, %v2528
    %v2530 = vcombine.low %v2497, %v2513
    %v2532 = vunpack.c.l.s4 1934713408
    %v2533 = vunpack.c.0.s8 %v2532
    %v2534 = vlaneseq
    %v2535 = vshrl.u32 %v2534, 7
    %v2536 = vsub.s32 %v2533, %v2535
    %v2537 = vrot.slane %v2530, %v2536
    %v2538 = vcombine.high %v2522, 0.0
    %v2539 = vcombine.high %v2529, 0.0
    %v2540 = vcombine.high %v2537, 0.0
    %v2541 = vcombine.low %v2289, %v2291
    %v2542 = vcombine.high %v2289, %v2291
    %v2544 = vunpack.c.l.s4 1983009808
    %v2545 = vunpack.c.0.s8 %v2544
    %v2546 = vlaneseq
    %v2547 = vshrl.u32 %v2546, 7
    %v2548 = vsub.s32 %v2545, %v2547
    %v2549 = vrot.slane %v2541, %v2548
    %v2551 = vunpack.c.l.s4 1983009808
    %v2552 = vunpack.c.0.s8 %v2551
    %v2553 = vlaneseq
    %v2554 = vshrl.u32 %v2553, 7
    %v2555 = vsub.s32 %v2552, %v2554
    %v2556 = vrot.slane %v2542, %v2555
    %v2557 = vcombine.low %v2290, %v2292
    %v2558 = vcombine.high %v2290, %v2292
    %v2560 = vunpack.c.l.s4 1983009808
    %v2561 = vunpack.c.0.s8 %v2560
    %v2562 = vlaneseq
    %v2563 = vshrl.u32 %v2562, 7
    %v2564 = vsub.s32 %v2561, %v2563
    %v2565 = vrot.slane %v2557, %v2564
    %v2567 = vunpack.c.l.s4 1983009808
    %v2568 = vunpack.c.0.s8 %v2567
    %v2569 = vlaneseq
    %v2570 = vshrl.u32 %v2569, 7
    %v2571 = vsub.s32 %v2568, %v2570
    %v2572 = vrot.slane %v2558, %v2571
    %v2573 = vcombine.low %v2293, %v2295
    %v2574 = vcombine.high %v2293, %v2295
    %v2576 = vunpack.c.l.s4 1983009808
    %v2577 = vunpack.c.0.s8 %v2576
    %v2578 = vlaneseq
    %v2579 = vshrl.u32 %v2578, 7
    %v2580 = vsub.s32 %v2577, %v2579
    %v2581 = vrot.slane %v2573, %v2580
    %v2583 = vunpack.c.l.s4 1983009808
    %v2584 = vunpack.c.0.s8 %v2583
    %v2585 = vlaneseq
    %v2586 = vshrl.u32 %v2585, 7
    %v2587 = vsub.s32 %v2584, %v2586
    %v2588 = vrot.slane %v2574, %v2587
    %v2589 = vcombine.high %v2294, 0.0
    %v2591 = vunpack.c.l.s4 1983009808
    %v2592 = vunpack.c.0.s8 %v2591
    %v2593 = vlaneseq
    %v2594 = vshrl.u32 %v2593, 7
    %v2595 = vsub.s32 %v2592, %v2594
    %v2596 = vrot.slane %v2294, %v2595
    %v2598 = vunpack.c.l.s4 1983009808
    %v2599 = vunpack.c.0.s8 %v2598
    %v2600 = vlaneseq
    %v2601 = vshrl.u32 %v2600, 7
    %v2602 = vsub.s32 %v2599, %v2601
    %v2603 = vrot.slane %v2589, %v2602
    %v2604 = vcombine.low %v2549, %v2565
    %v2605 = vcombine.high %v2549, %v2565
    %v2607 = vunpack.c.l.s4 1934713408
    %v2608 = vunpack.c.0.s8 %v2607
    %v2609 = vlaneseq
    %v2610 = vshrl.u32 %v2609, 7
    %v2611 = vsub.s32 %v2608, %v2610
    %v2612 = vrot.slane %v2604, %v2611
    %v2614 = vunpack.c.l.s4 1934713408
    %v2615 = vunpack.c.0.s8 %v2614
    %v2616 = vlaneseq
    %v2617 = vshrl.u32 %v2616, 7
    %v2618 = vsub.s32 %v2615, %v2617
    %v2619 = vrot.slane %v2605, %v2618
    %v2620 = vcombine.low %v2556, %v2572
    %v2621 = vcombine.high %v2556, %v2572
    %v2623 = vunpack.c.l.s4 1934713408
    %v2624 = vunpack.c.0.s8 %v2623
    %v2625 = vlaneseq
    %v2626 = vshrl.u32 %v2625, 7
    %v2627 = vsub.s32 %v2624, %v2626
    %v2628 = vrot.slane %v2620, %v2627
    %v2630 = vunpack.c.l.s4 1934713408
    %v2631 = vunpack.c.0.s8 %v2630
    %v2632 = vlaneseq
    %v2633 = vshrl.u32 %v2632, 7
    %v2634 = vsub.s32 %v2631, %v2633
    %v2635 = vrot.slane %v2621, %v2634
    %v2636 = vcombine.low %v2581, %v2596
    %v2637 = vcombine.high %v2581, %v2596
    %v2639 = vunpack.c.l.s4 1934713408
    %v2640 = vunpack.c.0.s8 %v2639
    %v2641 = vlaneseq
    %v2642 = vshrl.u32 %v2641, 7
    %v2643 = vsub.s32 %v2640, %v2642
    %v2644 = vrot.slane %v2636, %v2643
    %v2646 = vunpack.c.l.s4 1934713408
    %v2647 = vunpack.c.0.s8 %v2646
    %v2648 = vlaneseq
    %v2649 = vshrl.u32 %v2648, 7
    %v2650 = vsub.s32 %v2647, %v2649
    %v2651 = vrot.slane %v2637, %v2650
    %v2652 = vcombine.low %v2588, %v2603
    %v2653 = vcombine.high %v2588, %v2603
    %v2655 = vunpack.c.l.s4 1934713408
    %v2656 = vunpack.c.0.s8 %v2655
    %v2657 = vlaneseq
    %v2658 = vshrl.u32 %v2657, 7
    %v2659 = vsub.s32 %v2656, %v2658
    %v2660 = vrot.slane %v2652, %v2659
    %v2662 = vunpack.c.l.s4 1934713408
    %v2663 = vunpack.c.0.s8 %v2662
    %v2664 = vlaneseq
    %v2665 = vshrl.u32 %v2664, 7
    %v2666 = vsub.s32 %v2663, %v2665
    %v2667 = vrot.slane %v2653, %v2666
    %v2668 = vcombine.low %v2612, %v2644
    %v2669 = vcombine.high %v2612, %v2644
    %v2670 = vcombine.low %v2619, %v2651
    %v2671 = vcombine.high %v2619, %v2651
    %v2672 = vcombine.low %v2628, %v2660
    %v2673 = vcombine.high %v2628, %v2660
    %v2674 = vcombine.low %v2635, %v2667
    %v2675 = vcombine.high %v2635, %v2667
    %v2676 = vcombine.low %v2337, %v2344
    %v2678 = vunpack.c.l.s4 1983009808
    %v2679 = vunpack.c.0.s8 %v2678
    %v2680 = vlaneseq
    %v2681 = vshrl.u32 %v2680, 7
    %v2682 = vsub.s32 %v2679, %v2681
    %v2683 = vrot.slane %v2676, %v2682
    %v2684 = vcombine.low %v2361, %v2362
    %v2686 = vunpack.c.l.s4 1983009808
    %v2687 = vunpack.c.0.s8 %v2686
    %v2688 = vlaneseq
    %v2689 = vshrl.u32 %v2688, 7
    %v2690 = vsub.s32 %v2687, %v2689
    %v2691 = vrot.slane %v2684, %v2690
    %v2692 = vcombine.low %v2353, %v2360
    %v2694 = vunpack.c.l.s4 1983009808
    %v2695 = vunpack.c.0.s8 %v2694
    %v2696 = vlaneseq
    %v2697 = vshrl.u32 %v2696, 7
    %v2698 = vsub.s32 %v2695, %v2697
    %v2699 = vrot.slane %v2692, %v2698
    %v2700 = vcombine.high %v2353, 0.0
    %v2702 = vunpack.c.l.s4 1983009808
    %v2703 = vunpack.c.0.s8 %v2702
    %v2704 = vlaneseq
    %v2705 = vshrl.u32 %v2704, 7
    %v2706 = vsub.s32 %v2703, %v2705
    %v2707 = vrot.slane %v2700, %v2706
    %v2708 = vcombine.low %v2683, %v2691
    %v2709 = vcombine.high %v2683, %v2691
    %v2711 = vunpack.c.l.s4 1934713408
    %v2712 = vunpack.c.0.s8 %v2711
    %v2713 = vlaneseq
    %v2714 = vshrl.u32 %v2713, 7
    %v2715 = vsub.s32 %v2712, %v2714
    %v2716 = vrot.slane %v2708, %v2715
    %v2718 = vunpack.c.l.s4 1934713408
    %v2719 = vunpack.c.0.s8 %v2718
    %v2720 = vlaneseq
    %v2721 = vshrl.u32 %v2720, 7
    %v2722 = vsub.s32 %v2719, %v2721
    %v2723 = vrot.slane %v2709, %v2722
    %v2724 = vcombine.low %v2699, %v2707
    %v2725 = vcombine.high %v2699, %v2707
    %v2727 = vunpack.c.l.s4 1934713408
    %v2728 = vunpack.c.0.s8 %v2727
    %v2729 = vlaneseq
    %v2730 = vshrl.u32 %v2729, 7
    %v2731 = vsub.s32 %v2728, %v2730
    %v2732 = vrot.slane %v2724, %v2731
    %v2734 = vunpack.c.l.s4 1934713408
    %v2735 = vunpack.c.0.s8 %v2734
    %v2736 = vlaneseq
    %v2737 = vshrl.u32 %v2736, 7
    %v2738 = vsub.s32 %v2735, %v2737
    %v2739 = vrot.slane %v2725, %v2738
    %v2740 = vcombine.low %v2716, %v2732
    %v2741 = vcombine.high %v2716, %v2732
    %v2742 = vcombine.low %v2723, %v2739
    %v2743 = vcombine.high %v2723, %v2739
    %v2744 = vcombine.low %v2296, %v2477
    %v2745 = vcombine.high %v2296, %v2477
    %v2747 = vunpack.c.l.s4 1983009808
    %v2748 = vunpack.c.0.s8 %v2747
    %v2749 = vlaneseq
    %v2750 = vshrl.u32 %v2749, 7
    %v2751 = vsub.s32 %v2748, %v2750
    %v2752 = vrot.slane %v2744, %v2751
    %v2754 = vunpack.c.l.s4 1983009808
    %v2755 = vunpack.c.0.s8 %v2754
    %v2756 = vlaneseq
    %v2757 = vshrl.u32 %v2756, 7
    %v2758 = vsub.s32 %v2755, %v2757
    %v2759 = vrot.slane %v2745, %v2758
    %v2760 = vcombine.low %v2476, %v2478
    %v2761 = vcombine.high %v2476, %v2478
    %v2763 = vunpack.c.l.s4 1983009808
    %v2764 = vunpack.c.0.s8 %v2763
    %v2765 = vlaneseq
    %v2766 = vshrl.u32 %v2765, 7
    %v2767 = vsub.s32 %v2764, %v2766
    %v2768 = vrot.slane %v2760, %v2767
    %v2770 = vunpack.c.l.s4 1983009808
    %v2771 = vunpack.c.0.s8 %v2770
    %v2772 = vlaneseq
    %v2773 = vshrl.u32 %v2772, 7
    %v2774 = vsub.s32 %v2771, %v2773
    %v2775 = vrot.slane %v2761, %v2774
    %v2776 = vcombine.low %v2479, %v2481
    %v2777 = vcombine.high %v2479, %v2481
    %v2779 = vunpack.c.l.s4 1983009808
    %v2780 = vunpack.c.0.s8 %v2779
    %v2781 = vlaneseq
    %v2782 = vshrl.u32 %v2781, 7
    %v2783 = vsub.s32 %v2780, %v2782
    %v2784 = vrot.slane %v2776, %v2783
    %v2786 = vunpack.c.l.s4 1983009808
    %v2787 = vunpack.c.0.s8 %v2786
    %v2788 = vlaneseq
    %v2789 = vshrl.u32 %v2788, 7
    %v2790 = vsub.s32 %v2787, %v2789
    %v2791 = vrot.slane %v2777, %v2790
    %v2792 = vcombine.high %v2480, 0.0
    %v2794 = vunpack.c.l.s4 1983009808
    %v2795 = vunpack.c.0.s8 %v2794
    %v2796 = vlaneseq
    %v2797 = vshrl.u32 %v2796, 7
    %v2798 = vsub.s32 %v2795, %v2797
    %v2799 = vrot.slane %v2480, %v2798
    %v2801 = vunpack.c.l.s4 1983009808
    %v2802 = vunpack.c.0.s8 %v2801
    %v2803 = vlaneseq
    %v2804 = vshrl.u32 %v2803, 7
    %v2805 = vsub.s32 %v2802, %v2804
    %v2806 = vrot.slane %v2792, %v2805
    %v2807 = vcombine.low %v2752, %v2768
    %v2808 = vcombine.high %v2752, %v2768
    %v2810 = vunpack.c.l.s4 1934713408
    %v2811 = vunpack.c.0.s8 %v2810
    %v2812 = vlaneseq
    %v2813 = vshrl.u32 %v2812, 7
    %v2814 = vsub.s32 %v2811, %v2813
    %v2815 = vrot.slane %v2807, %v2814
    %v2817 = vunpack.c.l.s4 1934713408
    %v2818 = vunpack.c.0.s8 %v2817
    %v2819 = vlaneseq
    %v2820 = vshrl.u32 %v2819, 7
    %v2821 = vsub.s32 %v2818, %v2820
    %v2822 = vrot.slane %v2808, %v2821
    %v2823 = vcombine.low %v2759, %v2775
    %v2824 = vcombine.high %v2759, %v2775
    %v2826 = vunpack.c.l.s4 1934713408
    %v2827 = vunpack.c.0.s8 %v2826
    %v2828 = vlaneseq
    %v2829 = vshrl.u32 %v2828, 7
    %v2830 = vsub.s32 %v2827, %v2829
    %v2831 = vrot.slane %v2823, %v2830
    %v2833 = vunpack.c.l.s4 1934713408
    %v2834 = vunpack.c.0.s8 %v2833
    %v2835 = vlaneseq
    %v2836 = vshrl.u32 %v2835, 7
    %v2837 = vsub.s32 %v2834, %v2836
    %v2838 = vrot.slane %v2824, %v2837
    %v2839 = vcombine.low %v2784, %v2799
    %v2840 = vcombine.high %v2784, %v2799
    %v2842 = vunpack.c.l.s4 1934713408
    %v2843 = vunpack.c.0.s8 %v2842
    %v2844 = vlaneseq
    %v2845 = vshrl.u32 %v2844, 7
    %v2846 = vsub.s32 %v2843, %v2845
    %v2847 = vrot.slane %v2839, %v2846
    %v2849 = vunpack.c.l.s4 1934713408
    %v2850 = vunpack.c.0.s8 %v2849
    %v2851 = vlaneseq
    %v2852 = vshrl.u32 %v2851, 7
    %v2853 = vsub.s32 %v2850, %v2852
    %v2854 = vrot.slane %v2840, %v2853
    %v2855 = vcombine.low %v2791, %v2806
    %v2856 = vcombine.high %v2791, %v2806
    %v2858 = vunpack.c.l.s4 1934713408
    %v2859 = vunpack.c.0.s8 %v2858
    %v2860 = vlaneseq
    %v2861 = vshrl.u32 %v2860, 7
    %v2862 = vsub.s32 %v2859, %v2861
    %v2863 = vrot.slane %v2855, %v2862
    %v2865 = vunpack.c.l.s4 1934713408
    %v2866 = vunpack.c.0.s8 %v2865
    %v2867 = vlaneseq
    %v2868 = vshrl.u32 %v2867, 7
    %v2869 = vsub.s32 %v2866, %v2868
    %v2870 = vrot.slane %v2856, %v2869
    %v2871 = vcombine.low %v2815, %v2847
    %v2872 = vcombine.high %v2815, %v2847
    %v2873 = vcombine.low %v2822, %v2854
    %v2874 = vcombine.high %v2822, %v2854
    %v2875 = vcombine.low %v2831, %v2863
    %v2876 = vcombine.high %v2831, %v2863
    %v2877 = vcombine.low %v2838, %v2870
    %v2878 = vcombine.high %v2838, %v2870
    %v2879 = vcombine.low %v2363, %v2538
    %v2881 = vunpack.c.l.s4 1983009808
    %v2882 = vunpack.c.0.s8 %v2881
    %v2883 = vlaneseq
    %v2884 = vshrl.u32 %v2883, 7
    %v2885 = vsub.s32 %v2882, %v2884
    %v2886 = vrot.slane %v2879, %v2885
    %v2887 = vcombine.low %v2522, %v2529
    %v2889 = vunpack.c.l.s4 1983009808
    %v2890 = vunpack.c.0.s8 %v2889
    %v2891 = vlaneseq
    %v2892 = vshrl.u32 %v2891, 7
    %v2893 = vsub.s32 %v2890, %v2892
    %v2894 = vrot.slane %v2887, %v2893
    %v2895 = vcombine.low %v2539, %v2540
    %v2897 = vunpack.c.l.s4 1983009808
    %v2898 = vunpack.c.0.s8 %v2897
    %v2899 = vlaneseq
    %v2900 = vshrl.u32 %v2899, 7
    %v2901 = vsub.s32 %v2898, %v2900
    %v2902 = vrot.slane %v2895, %v2901
    %v2904 = vunpack.c.l.s4 1983009808
    %v2905 = vunpack.c.0.s8 %v2904
    %v2906 = vlaneseq
    %v2907 = vshrl.u32 %v2906, 7
    %v2908 = vsub.s32 %v2905, %v2907
    %v2909 = vrot.slane %v2537, %v2908
    %v2910 = vcombine.low %v2886, %v2894
    %v2911 = vcombine.high %v2886, %v2894
    %v2913 = vunpack.c.l.s4 1934713408
    %v2914 = vunpack.c.0.s8 %v2913
    %v2915 = vlaneseq
    %v2916 = vshrl.u32 %v2915, 7
    %v2917 = vsub.s32 %v2914, %v2916
    %v2918 = vrot.slane %v2910, %v2917
    %v2920 = vunpack.c.l.s4 1934713408
    %v2921 = vunpack.c.0.s8 %v2920
    %v2922 = vlaneseq
    %v2923 = vshrl.u32 %v2922, 7
    %v2924 = vsub.s32 %v2921, %v2923
    %v2925 = vrot.slane %v2911, %v2924
    %v2926 = vcombine.low %v2902, %v2909
    %v2927 = vcombine.high %v2902, %v2909
    %v2929 = vunpack.c.l.s4 1934713408
    %v2930 = vunpack.c.0.s8 %v2929
    %v2931 = vlaneseq
    %v2932 = vshrl.u32 %v2931, 7
    %v2933 = vsub.s32 %v2930, %v2932
    %v2934 = vrot.slane %v2926, %v2933
    %v2936 = vunpack.c.l.s4 1934713408
    %v2937 = vunpack.c.0.s8 %v2936
    %v2938 = vlaneseq
    %v2939 = vshrl.u32 %v2938, 7
    %v2940 = vsub.s32 %v2937, %v2939
    %v2941 = vrot.slane %v2927, %v2940
    %v2942 = vcombine.low %v2918, %v2934
    %v2943 = vcombine.high %v2918, %v2934
    %v2944 = vcombine.low %v2925, %v2941
    %v2945 = vcombine.high %v2925, %v2941
    %vm2946 = vcmask 56320
    %v2948 = vsel %vm2946, %v905, 0
    %vm2950 = vcmask 1046528
    %v2952 = vsel %vm2950, %v1791, 0
    %2954 = vmatprep.subr.mxu0 0.0
    %2955 = vmatpush1.msra.mxu0 %v2952
    %2956 = vmatprep.subr.mxu0 0.0
    %2957 = vmatpush1.msra.mxu0 0.0
    %2958 = vmatprep.subr.mxu0 0.0
    %2959 = vmatpush1.msra.mxu0 0.0
    %2960 = vmatprep.subr.mxu0 0.0
    %2961 = vmatpush1.msra.mxu0 0.0
    %2962 = vmatprep.subr.mxu0 0.0
    %2963 = vmatpush1.msra.mxu0 0.0
    %2964 = vmatprep.subr.mxu0 0.0
    %2965 = vmatpush1.msra.mxu0 0.0
    %2966 = vmatprep.subr.mxu0 0.0
    %2967 = vmatpush1.msra.mxu0 0.0
    %2968 = vmatprep.subr.mxu0 0.0
    %2969 = vmatpush1.msra.mxu0 0.0
    %2970 = vmatprep.subr.mxu0 0.0
    %2971 = vmatpush1.msra.mxu0 0.0
    %2972 = vmatprep.subr.mxu0 0.0
    %2973 = vmatpush1.msra.mxu0 0.0
    %2974 = vmatprep.subr.mxu0 0.0
    %2975 = vmatpush1.msra.mxu0 0.0
    %2976 = vmatprep.subr.mxu0 0.0
    %2977 = vmatpush1.msra.mxu0 0.0
    %2978 = vmatprep.subr.mxu0 0.0
    %2979 = vmatpush1.msra.mxu0 0.0
    %2980 = vmatprep.subr.mxu0 0.0
    %2981 = vmatpush1.msra.mxu0 0.0
    %2982 = vmatprep.subr.mxu0 0.0
    %2983 = vmatpush1.msra.mxu0 0.0
    %2984 = vmatprep.subr.mxu0 0.0
    %2985 = vmatpush1.msra.mxu0 0.0
    %2986 = vmatprep.subr.mxu0 0.0
    %2987 = vmatpush1.msra.mxu0 0.0
    %2988 = vmatprep.subr.mxu0 0.0
    %2989 = vmatpush1.msra.mxu0 0.0
    %2990 = vmatprep.subr.mxu0 0.0
    %2991 = vmatpush1.msra.mxu0 0.0
    %2992 = vmatprep.subr.mxu0 0.0
    %2993 = vmatpush1.msra.mxu0 0.0
    %2994 = vmatprep.subr.mxu0 0.0
    %2995 = vmatpush1.msra.mxu0 0.0
    %2996 = vmatprep.subr.mxu0 0.0
    %2997 = vmatpush1.msra.mxu0 0.0
    %2998 = vmatprep.subr.mxu0 0.0
    %2999 = vmatpush1.msra.mxu0 0.0
    %3000 = vmatprep.subr.mxu0 0.0
    %3001 = vmatpush1.msra.mxu0 0.0
    %3002 = vmatprep.subr.mxu0 0.0
    %3003 = vmatpush1.msra.mxu0 0.0
    %3004 = vmatprep.subr.mxu0 0.0
    %3005 = vmatpush1.msra.mxu0 0.0
    %3006 = vmatprep.subr.mxu0 0.0
    %3007 = vmatpush1.msra.mxu0 0.0
    %3008 = vmatprep.subr.mxu0 0.0
    %3009 = vmatpush1.msra.mxu0 0.0
    %3010 = vmatprep.subr.mxu0 0.0
    %3011 = vmatpush1.msra.mxu0 0.0
    %3012 = vmatprep.subr.mxu0 0.0
    %3013 = vmatpush1.msra.mxu0 0.0
    %3014 = vmatprep.subr.mxu0 0.0
    %3015 = vmatpush1.msra.mxu0 0.0
    %3016 = vmatprep.subr.mxu0 0.0
    %3017 = vmatpush1.msra.mxu0 0.0
    %3018 = vmatprep.mubr.f32.mxu0 0.0
    %3019 = vmatmul.mubr.f32.gmra.mrb[0].mxu0 %v2948
    %v3020 = vpop.f32.mrb[0].mxu0
    %v3021 = vadd.f32 0.0, %v3020
    %v3022 = vpop.f32.mrb[0].mxu0
    %3023 = vdwg.mxu0
    %v3025 = vsel %vm2946, %v906, 0
    %v3028 = vsel %vm2950, %v1792, 0
    %3030 = vmatprep.subr.mxu0 0.0
    %3031 = vmatpush1.msra.mxu0 %v3028
    %3032 = vmatprep.subr.mxu0 0.0
    %3033 = vmatpush1.msra.mxu0 0.0
    %3034 = vmatprep.subr.mxu0 0.0
    %3035 = vmatpush1.msra.mxu0 0.0
    %3036 = vmatprep.subr.mxu0 0.0
    %3037 = vmatpush1.msra.mxu0 0.0
    %3038 = vmatprep.subr.mxu0 0.0
    %3039 = vmatpush1.msra.mxu0 0.0
    %3040 = vmatprep.subr.mxu0 0.0
    %3041 = vmatpush1.msra.mxu0 0.0
    %3042 = vmatprep.subr.mxu0 0.0
    %3043 = vmatpush1.msra.mxu0 0.0
    %3044 = vmatprep.subr.mxu0 0.0
    %3045 = vmatpush1.msra.mxu0 0.0
    %3046 = vmatprep.subr.mxu0 0.0
    %3047 = vmatpush1.msra.mxu0 0.0
    %3048 = vmatprep.subr.mxu0 0.0
    %3049 = vmatpush1.msra.mxu0 0.0
    %3050 = vmatprep.subr.mxu0 0.0
    %3051 = vmatpush1.msra.mxu0 0.0
    %3052 = vmatprep.subr.mxu0 0.0
    %3053 = vmatpush1.msra.mxu0 0.0
    %3054 = vmatprep.subr.mxu0 0.0
    %3055 = vmatpush1.msra.mxu0 0.0
    %3056 = vmatprep.subr.mxu0 0.0
    %3057 = vmatpush1.msra.mxu0 0.0
    %3058 = vmatprep.subr.mxu0 0.0
    %3059 = vmatpush1.msra.mxu0 0.0
    %3060 = vmatprep.subr.mxu0 0.0
    %3061 = vmatpush1.msra.mxu0 0.0
    %3062 = vmatprep.subr.mxu0 0.0
    %3063 = vmatpush1.msra.mxu0 0.0
    %3064 = vmatprep.subr.mxu0 0.0
    %3065 = vmatpush1.msra.mxu0 0.0
    %3066 = vmatprep.subr.mxu0 0.0
    %3067 = vmatpush1.msra.mxu0 0.0
    %3068 = vmatprep.subr.mxu0 0.0
    %3069 = vmatpush1.msra.mxu0 0.0
    %3070 = vmatprep.subr.mxu0 0.0
    %3071 = vmatpush1.msra.mxu0 0.0
    %3072 = vmatprep.subr.mxu0 0.0
    %3073 = vmatpush1.msra.mxu0 0.0
    %3074 = vmatprep.subr.mxu0 0.0
    %3075 = vmatpush1.msra.mxu0 0.0
    %3076 = vmatprep.subr.mxu0 0.0
    %3077 = vmatpush1.msra.mxu0 0.0
    %3078 = vmatprep.subr.mxu0 0.0
    %3079 = vmatpush1.msra.mxu0 0.0
    %3080 = vmatprep.subr.mxu0 0.0
    %3081 = vmatpush1.msra.mxu0 0.0
    %3082 = vmatprep.subr.mxu0 0.0
    %3083 = vmatpush1.msra.mxu0 0.0
    %3084 = vmatprep.subr.mxu0 0.0
    %3085 = vmatpush1.msra.mxu0 0.0
    %3086 = vmatprep.subr.mxu0 0.0
    %3087 = vmatpush1.msra.mxu0 0.0
    %3088 = vmatprep.subr.mxu0 0.0
    %3089 = vmatpush1.msra.mxu0 0.0
    %3090 = vmatprep.subr.mxu0 0.0
    %3091 = vmatpush1.msra.mxu0 0.0
    %3092 = vmatprep.subr.mxu0 0.0
    %3093 = vmatpush1.msra.mxu0 0.0
    %3094 = vmatprep.mubr.f32.mxu0 0.0
    %3095 = vmatmul.mubr.f32.gmra.mrb[0].mxu0 %v3025
    %v3096 = vpop.f32.mrb[0].mxu0
    %v3097 = vadd.f32 0.0, %v3096
    %v3098 = vpop.f32.mrb[0].mxu0
    %3099 = vdwg.mxu0
    %v3101 = vsel %vm2946, %v907, 0
    %v3104 = vsel %vm2950, %v1793, 0
    %3106 = vmatprep.subr.mxu0 0.0
    %3107 = vmatpush1.msra.mxu0 %v3104
    %3108 = vmatprep.subr.mxu0 0.0
    %3109 = vmatpush1.msra.mxu0 0.0
    %3110 = vmatprep.subr.mxu0 0.0
    %3111 = vmatpush1.msra.mxu0 0.0
    %3112 = vmatprep.subr.mxu0 0.0
    %3113 = vmatpush1.msra.mxu0 0.0
    %3114 = vmatprep.subr.mxu0 0.0
    %3115 = vmatpush1.msra.mxu0 0.0
    %3116 = vmatprep.subr.mxu0 0.0
    %3117 = vmatpush1.msra.mxu0 0.0
    %3118 = vmatprep.subr.mxu0 0.0
    %3119 = vmatpush1.msra.mxu0 0.0
    %3120 = vmatprep.subr.mxu0 0.0
    %3121 = vmatpush1.msra.mxu0 0.0
    %3122 = vmatprep.subr.mxu0 0.0
    %3123 = vmatpush1.msra.mxu0 0.0
    %3124 = vmatprep.subr.mxu0 0.0
    %3125 = vmatpush1.msra.mxu0 0.0
    %3126 = vmatprep.subr.mxu0 0.0
    %3127 = vmatpush1.msra.mxu0 0.0
    %3128 = vmatprep.subr.mxu0 0.0
    %3129 = vmatpush1.msra.mxu0 0.0
    %3130 = vmatprep.subr.mxu0 0.0
    %3131 = vmatpush1.msra.mxu0 0.0
    %3132 = vmatprep.subr.mxu0 0.0
    %3133 = vmatpush1.msra.mxu0 0.0
    %3134 = vmatprep.subr.mxu0 0.0
    %3135 = vmatpush1.msra.mxu0 0.0
    %3136 = vmatprep.subr.mxu0 0.0
    %3137 = vmatpush1.msra.mxu0 0.0
    %3138 = vmatprep.subr.mxu0 0.0
    %3139 = vmatpush1.msra.mxu0 0.0
    %3140 = vmatprep.subr.mxu0 0.0
    %3141 = vmatpush1.msra.mxu0 0.0
    %3142 = vmatprep.subr.mxu0 0.0
    %3143 = vmatpush1.msra.mxu0 0.0
    %3144 = vmatprep.subr.mxu0 0.0
    %3145 = vmatpush1.msra.mxu0 0.0
    %3146 = vmatprep.subr.mxu0 0.0
    %3147 = vmatpush1.msra.mxu0 0.0
    %3148 = vmatprep.subr.mxu0 0.0
    %3149 = vmatpush1.msra.mxu0 0.0
    %3150 = vmatprep.subr.mxu0 0.0
    %3151 = vmatpush1.msra.mxu0 0.0
    %3152 = vmatprep.subr.mxu0 0.0
    %3153 = vmatpush1.msra.mxu0 0.0
    %3154 = vmatprep.subr.mxu0 0.0
    %3155 = vmatpush1.msra.mxu0 0.0
    %3156 = vmatprep.subr.mxu0 0.0
    %3157 = vmatpush1.msra.mxu0 0.0
    %3158 = vmatprep.subr.mxu0 0.0
    %3159 = vmatpush1.msra.mxu0 0.0
    %3160 = vmatprep.subr.mxu0 0.0
    %3161 = vmatpush1.msra.mxu0 0.0
    %3162 = vmatprep.subr.mxu0 0.0
    %3163 = vmatpush1.msra.mxu0 0.0
    %3164 = vmatprep.subr.mxu0 0.0
    %3165 = vmatpush1.msra.mxu0 0.0
    %3166 = vmatprep.subr.mxu0 0.0
    %3167 = vmatpush1.msra.mxu0 0.0
    %3168 = vmatprep.subr.mxu0 0.0
    %3169 = vmatpush1.msra.mxu0 0.0
    %3170 = vmatprep.mubr.f32.mxu0 0.0
    %3171 = vmatmul.mubr.f32.gmra.mrb[0].mxu0 %v3101
    %v3172 = vpop.f32.mrb[0].mxu0
    %v3173 = vadd.f32 0.0, %v3172
    %v3174 = vpop.f32.mrb[0].mxu0
    %3175 = vdwg.mxu0
    %v3177 = vsel %vm2946, %v908, 0
    %v3180 = vsel %vm2950, %v1794, 0
    %3182 = vmatprep.subr.mxu0 0.0
    %3183 = vmatpush1.msra.mxu0 %v3180
    %3184 = vmatprep.subr.mxu0 0.0
    %3185 = vmatpush1.msra.mxu0 0.0
    %3186 = vmatprep.subr.mxu0 0.0
    %3187 = vmatpush1.msra.mxu0 0.0
    %3188 = vmatprep.subr.mxu0 0.0
    %3189 = vmatpush1.msra.mxu0 0.0
    %3190 = vmatprep.subr.mxu0 0.0
    %3191 = vmatpush1.msra.mxu0 0.0
    %3192 = vmatprep.subr.mxu0 0.0
    %3193 = vmatpush1.msra.mxu0 0.0
    %3194 = vmatprep.subr.mxu0 0.0
    %3195 = vmatpush1.msra.mxu0 0.0
    %3196 = vmatprep.subr.mxu0 0.0
    %3197 = vmatpush1.msra.mxu0 0.0
    %3198 = vmatprep.subr.mxu0 0.0
    %3199 = vmatpush1.msra.mxu0 0.0
    %3200 = vmatprep.subr.mxu0 0.0
    %3201 = vmatpush1.msra.mxu0 0.0
    %3202 = vmatprep.subr.mxu0 0.0
    %3203 = vmatpush1.msra.mxu0 0.0
    %3204 = vmatprep.subr.mxu0 0.0
    %3205 = vmatpush1.msra.mxu0 0.0
    %3206 = vmatprep.subr.mxu0 0.0
    %3207 = vmatpush1.msra.mxu0 0.0
    %3208 = vmatprep.subr.mxu0 0.0
    %3209 = vmatpush1.msra.mxu0 0.0
    %3210 = vmatprep.subr.mxu0 0.0
    %3211 = vmatpush1.msra.mxu0 0.0
    %3212 = vmatprep.subr.mxu0 0.0
    %3213 = vmatpush1.msra.mxu0 0.0
    %3214 = vmatprep.subr.mxu0 0.0
    %3215 = vmatpush1.msra.mxu0 0.0
    %3216 = vmatprep.subr.mxu0 0.0
    %3217 = vmatpush1.msra.mxu0 0.0
    %3218 = vmatprep.subr.mxu0 0.0
    %3219 = vmatpush1.msra.mxu0 0.0
    %3220 = vmatprep.subr.mxu0 0.0
    %3221 = vmatpush1.msra.mxu0 0.0
    %3222 = vmatprep.subr.mxu0 0.0
    %3223 = vmatpush1.msra.mxu0 0.0
    %3224 = vmatprep.subr.mxu0 0.0
    %3225 = vmatpush1.msra.mxu0 0.0
    %3226 = vmatprep.subr.mxu0 0.0
    %3227 = vmatpush1.msra.mxu0 0.0
    %3228 = vmatprep.subr.mxu0 0.0
    %3229 = vmatpush1.msra.mxu0 0.0
    %3230 = vmatprep.subr.mxu0 0.0
    %3231 = vmatpush1.msra.mxu0 0.0
    %3232 = vmatprep.subr.mxu0 0.0
    %3233 = vmatpush1.msra.mxu0 0.0
    %3234 = vmatprep.subr.mxu0 0.0
    %3235 = vmatpush1.msra.mxu0 0.0
    %3236 = vmatprep.subr.mxu0 0.0
    %3237 = vmatpush1.msra.mxu0 0.0
    %3238 = vmatprep.subr.mxu0 0.0
    %3239 = vmatpush1.msra.mxu0 0.0
    %3240 = vmatprep.subr.mxu0 0.0
    %3241 = vmatpush1.msra.mxu0 0.0
    %3242 = vmatprep.subr.mxu0 0.0
    %3243 = vmatpush1.msra.mxu0 0.0
    %3244 = vmatprep.subr.mxu0 0.0
    %3245 = vmatpush1.msra.mxu0 0.0
    %3246 = vmatprep.mubr.f32.mxu0 0.0
    %3247 = vmatmul.mubr.f32.gmra.mrb[0].mxu0 %v3177
    %v3248 = vpop.f32.mrb[0].mxu0
    %v3249 = vadd.f32 0.0, %v3248
    %v3250 = vpop.f32.mrb[0].mxu0
    %3251 = vdwg.mxu0
    %v3253 = vsel %vm2946, %v909, 0
    %v3256 = vsel %vm2950, %v1795, 0
    %3258 = vmatprep.subr.mxu0 0.0
    %3259 = vmatpush1.msra.mxu0 %v3256
    %3260 = vmatprep.subr.mxu0 0.0
    %3261 = vmatpush1.msra.mxu0 0.0
    %3262 = vmatprep.subr.mxu0 0.0
    %3263 = vmatpush1.msra.mxu0 0.0
    %3264 = vmatprep.subr.mxu0 0.0
    %3265 = vmatpush1.msra.mxu0 0.0
    %3266 = vmatprep.subr.mxu0 0.0
    %3267 = vmatpush1.msra.mxu0 0.0
    %3268 = vmatprep.subr.mxu0 0.0
    %3269 = vmatpush1.msra.mxu0 0.0
    %3270 = vmatprep.subr.mxu0 0.0
    %3271 = vmatpush1.msra.mxu0 0.0
    %3272 = vmatprep.subr.mxu0 0.0
    %3273 = vmatpush1.msra.mxu0 0.0
    %3274 = vmatprep.subr.mxu0 0.0
    %3275 = vmatpush1.msra.mxu0 0.0
    %3276 = vmatprep.subr.mxu0 0.0
    %3277 = vmatpush1.msra.mxu0 0.0
    %3278 = vmatprep.subr.mxu0 0.0
    %3279 = vmatpush1.msra.mxu0 0.0
    %3280 = vmatprep.subr.mxu0 0.0
    %3281 = vmatpush1.msra.mxu0 0.0
    %3282 = vmatprep.subr.mxu0 0.0
    %3283 = vmatpush1.msra.mxu0 0.0
    %3284 = vmatprep.subr.mxu0 0.0
    %3285 = vmatpush1.msra.mxu0 0.0
    %3286 = vmatprep.subr.mxu0 0.0
    %3287 = vmatpush1.msra.mxu0 0.0
    %3288 = vmatprep.subr.mxu0 0.0
    %3289 = vmatpush1.msra.mxu0 0.0
    %3290 = vmatprep.subr.mxu0 0.0
    %3291 = vmatpush1.msra.mxu0 0.0
    %3292 = vmatprep.subr.mxu0 0.0
    %3293 = vmatpush1.msra.mxu0 0.0
    %3294 = vmatprep.subr.mxu0 0.0
    %3295 = vmatpush1.msra.mxu0 0.0
    %3296 = vmatprep.subr.mxu0 0.0
    %3297 = vmatpush1.msra.mxu0 0.0
    %3298 = vmatprep.subr.mxu0 0.0
    %3299 = vmatpush1.msra.mxu0 0.0
    %3300 = vmatprep.subr.mxu0 0.0
    %3301 = vmatpush1.msra.mxu0 0.0
    %3302 = vmatprep.subr.mxu0 0.0
    %3303 = vmatpush1.msra.mxu0 0.0
    %3304 = vmatprep.subr.mxu0 0.0
    %3305 = vmatpush1.msra.mxu0 0.0
    %3306 = vmatprep.subr.mxu0 0.0
    %3307 = vmatpush1.msra.mxu0 0.0
    %3308 = vmatprep.subr.mxu0 0.0
    %3309 = vmatpush1.msra.mxu0 0.0
    %3310 = vmatprep.subr.mxu0 0.0
    %3311 = vmatpush1.msra.mxu0 0.0
    %3312 = vmatprep.subr.mxu0 0.0
    %3313 = vmatpush1.msra.mxu0 0.0
    %3314 = vmatprep.subr.mxu0 0.0
    %3315 = vmatpush1.msra.mxu0 0.0
    %3316 = vmatprep.subr.mxu0 0.0
    %3317 = vmatpush1.msra.mxu0 0.0
    %3318 = vmatprep.subr.mxu0 0.0
    %3319 = vmatpush1.msra.mxu0 0.0
    %3320 = vmatprep.subr.mxu0 0.0
    %3321 = vmatpush1.msra.mxu0 0.0
    %3322 = vmatprep.mubr.f32.mxu0 0.0
    %3323 = vmatmul.mubr.f32.gmra.mrb[0].mxu0 %v3253
    %v3324 = vpop.f32.mrb[0].mxu0
    %v3325 = vadd.f32 0.0, %v3324
    %v3326 = vpop.f32.mrb[0].mxu0
    %3327 = vdwg.mxu0
    %v3329 = vsel %vm2946, %v910, 0
    %v3332 = vsel %vm2950, %v1796, 0
    %3334 = vmatprep.subr.mxu0 0.0
    %3335 = vmatpush1.msra.mxu0 %v3332
    %3336 = vmatprep.subr.mxu0 0.0
    %3337 = vmatpush1.msra.mxu0 0.0
    %3338 = vmatprep.subr.mxu0 0.0
    %3339 = vmatpush1.msra.mxu0 0.0
    %3340 = vmatprep.subr.mxu0 0.0
    %3341 = vmatpush1.msra.mxu0 0.0
    %3342 = vmatprep.subr.mxu0 0.0
    %3343 = vmatpush1.msra.mxu0 0.0
    %3344 = vmatprep.subr.mxu0 0.0
    %3345 = vmatpush1.msra.mxu0 0.0
    %3346 = vmatprep.subr.mxu0 0.0
    %3347 = vmatpush1.msra.mxu0 0.0
    %3348 = vmatprep.subr.mxu0 0.0
    %3349 = vmatpush1.msra.mxu0 0.0
    %3350 = vmatprep.subr.mxu0 0.0
    %3351 = vmatpush1.msra.mxu0 0.0
    %3352 = vmatprep.subr.mxu0 0.0
    %3353 = vmatpush1.msra.mxu0 0.0
    %3354 = vmatprep.subr.mxu0 0.0
    %3355 = vmatpush1.msra.mxu0 0.0
    %3356 = vmatprep.subr.mxu0 0.0
    %3357 = vmatpush1.msra.mxu0 0.0
    %3358 = vmatprep.subr.mxu0 0.0
    %3359 = vmatpush1.msra.mxu0 0.0
    %3360 = vmatprep.subr.mxu0 0.0
    %3361 = vmatpush1.msra.mxu0 0.0
    %3362 = vmatprep.subr.mxu0 0.0
    %3363 = vmatpush1.msra.mxu0 0.0
    %3364 = vmatprep.subr.mxu0 0.0
    %3365 = vmatpush1.msra.mxu0 0.0
    %3366 = vmatprep.subr.mxu0 0.0
    %3367 = vmatpush1.msra.mxu0 0.0
    %3368 = vmatprep.subr.mxu0 0.0
    %3369 = vmatpush1.msra.mxu0 0.0
    %3370 = vmatprep.subr.mxu0 0.0
    %3371 = vmatpush1.msra.mxu0 0.0
    %3372 = vmatprep.subr.mxu0 0.0
    %3373 = vmatpush1.msra.mxu0 0.0
    %3374 = vmatprep.subr.mxu0 0.0
    %3375 = vmatpush1.msra.mxu0 0.0
    %3376 = vmatprep.subr.mxu0 0.0
    %3377 = vmatpush1.msra.mxu0 0.0
    %3378 = vmatprep.subr.mxu0 0.0
    %3379 = vmatpush1.msra.mxu0 0.0
    %3380 = vmatprep.subr.mxu0 0.0
    %3381 = vmatpush1.msra.mxu0 0.0
    %3382 = vmatprep.subr.mxu0 0.0
    %3383 = vmatpush1.msra.mxu0 0.0
    %3384 = vmatprep.subr.mxu0 0.0
    %3385 = vmatpush1.msra.mxu0 0.0
    %3386 = vmatprep.subr.mxu0 0.0
    %3387 = vmatpush1.msra.mxu0 0.0
    %3388 = vmatprep.subr.mxu0 0.0
    %3389 = vmatpush1.msra.mxu0 0.0
    %3390 = vmatprep.subr.mxu0 0.0
    %3391 = vmatpush1.msra.mxu0 0.0
    %3392 = vmatprep.subr.mxu0 0.0
    %3393 = vmatpush1.msra.mxu0 0.0
    %3394 = vmatprep.subr.mxu0 0.0
    %3395 = vmatpush1.msra.mxu0 0.0
    %3396 = vmatprep.subr.mxu0 0.0
    %3397 = vmatpush1.msra.mxu0 0.0
    %3398 = vmatprep.mubr.f32.mxu0 0.0
    %3399 = vmatmul.mubr.f32.gmra.mrb[0].mxu0 %v3329
    %v3400 = vpop.f32.mrb[0].mxu0
    %v3401 = vadd.f32 0.0, %v3400
    %v3402 = vpop.f32.mrb[0].mxu0
    %3403 = vdwg.mxu0
    %v3405 = vsel %vm2946, %v911, 0
    %v3408 = vsel %vm2950, %v1797, 0
    %3410 = vmatprep.subr.mxu0 0.0
    %3411 = vmatpush1.msra.mxu0 %v3408
    %3412 = vmatprep.subr.mxu0 0.0
    %3413 = vmatpush1.msra.mxu0 0.0
    %3414 = vmatprep.subr.mxu0 0.0
    %3415 = vmatpush1.msra.mxu0 0.0
    %3416 = vmatprep.subr.mxu0 0.0
    %3417 = vmatpush1.msra.mxu0 0.0
    %3418 = vmatprep.subr.mxu0 0.0
    %3419 = vmatpush1.msra.mxu0 0.0
    %3420 = vmatprep.subr.mxu0 0.0
    %3421 = vmatpush1.msra.mxu0 0.0
    %3422 = vmatprep.subr.mxu0 0.0
    %3423 = vmatpush1.msra.mxu0 0.0
    %3424 = vmatprep.subr.mxu0 0.0
    %3425 = vmatpush1.msra.mxu0 0.0
    %3426 = vmatprep.subr.mxu0 0.0
    %3427 = vmatpush1.msra.mxu0 0.0
    %3428 = vmatprep.subr.mxu0 0.0
    %3429 = vmatpush1.msra.mxu0 0.0
    %3430 = vmatprep.subr.mxu0 0.0
    %3431 = vmatpush1.msra.mxu0 0.0
    %3432 = vmatprep.subr.mxu0 0.0
    %3433 = vmatpush1.msra.mxu0 0.0
    %3434 = vmatprep.subr.mxu0 0.0
    %3435 = vmatpush1.msra.mxu0 0.0
    %3436 = vmatprep.subr.mxu0 0.0
    %3437 = vmatpush1.msra.mxu0 0.0
    %3438 = vmatprep.subr.mxu0 0.0
    %3439 = vmatpush1.msra.mxu0 0.0
    %3440 = vmatprep.subr.mxu0 0.0
    %3441 = vmatpush1.msra.mxu0 0.0
    %3442 = vmatprep.subr.mxu0 0.0
    %3443 = vmatpush1.msra.mxu0 0.0
    %3444 = vmatprep.subr.mxu0 0.0
    %3445 = vmatpush1.msra.mxu0 0.0
    %3446 = vmatprep.subr.mxu0 0.0
    %3447 = vmatpush1.msra.mxu0 0.0
    %3448 = vmatprep.subr.mxu0 0.0
    %3449 = vmatpush1.msra.mxu0 0.0
    %3450 = vmatprep.subr.mxu0 0.0
    %3451 = vmatpush1.msra.mxu0 0.0
    %3452 = vmatprep.subr.mxu0 0.0
    %3453 = vmatpush1.msra.mxu0 0.0
    %3454 = vmatprep.subr.mxu0 0.0
    %3455 = vmatpush1.msra.mxu0 0.0
    %3456 = vmatprep.subr.mxu0 0.0
    %3457 = vmatpush1.msra.mxu0 0.0
    %3458 = vmatprep.subr.mxu0 0.0
    %3459 = vmatpush1.msra.mxu0 0.0
    %3460 = vmatprep.subr.mxu0 0.0
    %3461 = vmatpush1.msra.mxu0 0.0
    %3462 = vmatprep.subr.mxu0 0.0
    %3463 = vmatpush1.msra.mxu0 0.0
    %3464 = vmatprep.subr.mxu0 0.0
    %3465 = vmatpush1.msra.mxu0 0.0
    %3466 = vmatprep.subr.mxu0 0.0
    %3467 = vmatpush1.msra.mxu0 0.0
    %3468 = vmatprep.subr.mxu0 0.0
    %3469 = vmatpush1.msra.mxu0 0.0
    %3470 = vmatprep.subr.mxu0 0.0
    %3471 = vmatpush1.msra.mxu0 0.0
    %3472 = vmatprep.subr.mxu0 0.0
    %3473 = vmatpush1.msra.mxu0 0.0
    %3474 = vmatprep.mubr.f32.mxu0 0.0
    %3475 = vmatmul.mubr.f32.gmra.mrb[0].mxu0 %v3405
    %v3476 = vpop.f32.mrb[0].mxu0
    %v3477 = vadd.f32 0.0, %v3476
    %v3478 = vpop.f32.mrb[0].mxu0
    %3479 = vdwg.mxu0
    %v3481 = vsel %vm2946, %v912, 0
    %v3484 = vsel %vm2950, %v1798, 0
    %3486 = vmatprep.subr.mxu0 0.0
    %3487 = vmatpush1.msra.mxu0 %v3484
    %3488 = vmatprep.subr.mxu0 0.0
    %3489 = vmatpush1.msra.mxu0 0.0
    %3490 = vmatprep.subr.mxu0 0.0
    %3491 = vmatpush1.msra.mxu0 0.0
    %3492 = vmatprep.subr.mxu0 0.0
    %3493 = vmatpush1.msra.mxu0 0.0
    %3494 = vmatprep.subr.mxu0 0.0
    %3495 = vmatpush1.msra.mxu0 0.0
    %3496 = vmatprep.subr.mxu0 0.0
    %3497 = vmatpush1.msra.mxu0 0.0
    %3498 = vmatprep.subr.mxu0 0.0
    %3499 = vmatpush1.msra.mxu0 0.0
    %3500 = vmatprep.subr.mxu0 0.0
    %3501 = vmatpush1.msra.mxu0 0.0
    %3502 = vmatprep.subr.mxu0 0.0
    %3503 = vmatpush1.msra.mxu0 0.0
    %3504 = vmatprep.subr.mxu0 0.0
    %3505 = vmatpush1.msra.mxu0 0.0
    %3506 = vmatprep.subr.mxu0 0.0
    %3507 = vmatpush1.msra.mxu0 0.0
    %3508 = vmatprep.subr.mxu0 0.0
    %3509 = vmatpush1.msra.mxu0 0.0
    %3510 = vmatprep.subr.mxu0 0.0
    %3511 = vmatpush1.msra.mxu0 0.0
    %3512 = vmatprep.subr.mxu0 0.0
    %3513 = vmatpush1.msra.mxu0 0.0
    %3514 = vmatprep.subr.mxu0 0.0
    %3515 = vmatpush1.msra.mxu0 0.0
    %3516 = vmatprep.subr.mxu0 0.0
    %3517 = vmatpush1.msra.mxu0 0.0
    %3518 = vmatprep.subr.mxu0 0.0
    %3519 = vmatpush1.msra.mxu0 0.0
    %3520 = vmatprep.subr.mxu0 0.0
    %3521 = vmatpush1.msra.mxu0 0.0
    %3522 = vmatprep.subr.mxu0 0.0
    %3523 = vmatpush1.msra.mxu0 0.0
    %3524 = vmatprep.subr.mxu0 0.0
    %3525 = vmatpush1.msra.mxu0 0.0
    %3526 = vmatprep.subr.mxu0 0.0
    %3527 = vmatpush1.msra.mxu0 0.0
    %3528 = vmatprep.subr.mxu0 0.0
    %3529 = vmatpush1.msra.mxu0 0.0
    %3530 = vmatprep.subr.mxu0 0.0
    %3531 = vmatpush1.msra.mxu0 0.0
    %3532 = vmatprep.subr.mxu0 0.0
    %3533 = vmatpush1.msra.mxu0 0.0
    %3534 = vmatprep.subr.mxu0 0.0
    %3535 = vmatpush1.msra.mxu0 0.0
    %3536 = vmatprep.subr.mxu0 0.0
    %3537 = vmatpush1.msra.mxu0 0.0
    %3538 = vmatprep.subr.mxu0 0.0
    %3539 = vmatpush1.msra.mxu0 0.0
    %3540 = vmatprep.subr.mxu0 0.0
    %3541 = vmatpush1.msra.mxu0 0.0
    %3542 = vmatprep.subr.mxu0 0.0
    %3543 = vmatpush1.msra.mxu0 0.0
    %3544 = vmatprep.subr.mxu0 0.0
    %3545 = vmatpush1.msra.mxu0 0.0
    %3546 = vmatprep.subr.mxu0 0.0
    %3547 = vmatpush1.msra.mxu0 0.0
    %3548 = vmatprep.subr.mxu0 0.0
    %3549 = vmatpush1.msra.mxu0 0.0
    %3550 = vmatprep.mubr.f32.mxu0 0.0
    %3551 = vmatmul.mubr.f32.gmra.mrb[0].mxu0 %v3481
    %v3552 = vpop.f32.mrb[0].mxu0
    %v3553 = vadd.f32 0.0, %v3552
    %v3554 = vpop.f32.mrb[0].mxu0
    %3555 = vdwg.mxu0
    %v3557 = vsel %vm2946, %v977, 0
    %v3560 = vsel %vm2950, %v1863, 0
    %3562 = vmatprep.subr.mxu0 0.0
    %3563 = vmatpush1.msra.mxu0 %v3560
    %3564 = vmatprep.subr.mxu0 0.0
    %3565 = vmatpush1.msra.mxu0 0.0
    %3566 = vmatprep.subr.mxu0 0.0
    %3567 = vmatpush1.msra.mxu0 0.0
    %3568 = vmatprep.subr.mxu0 0.0
    %3569 = vmatpush1.msra.mxu0 0.0
    %3570 = vmatprep.subr.mxu0 0.0
    %3571 = vmatpush1.msra.mxu0 0.0
    %3572 = vmatprep.subr.mxu0 0.0
    %3573 = vmatpush1.msra.mxu0 0.0
    %3574 = vmatprep.subr.mxu0 0.0
    %3575 = vmatpush1.msra.mxu0 0.0
    %3576 = vmatprep.subr.mxu0 0.0
    %3577 = vmatpush1.msra.mxu0 0.0
    %3578 = vmatprep.subr.mxu0 0.0
    %3579 = vmatpush1.msra.mxu0 0.0
    %3580 = vmatprep.subr.mxu0 0.0
    %3581 = vmatpush1.msra.mxu0 0.0
    %3582 = vmatprep.subr.mxu0 0.0
    %3583 = vmatpush1.msra.mxu0 0.0
    %3584 = vmatprep.subr.mxu0 0.0
    %3585 = vmatpush1.msra.mxu0 0.0
    %3586 = vmatprep.subr.mxu0 0.0
    %3587 = vmatpush1.msra.mxu0 0.0
    %3588 = vmatprep.subr.mxu0 0.0
    %3589 = vmatpush1.msra.mxu0 0.0
    %3590 = vmatprep.subr.mxu0 0.0
    %3591 = vmatpush1.msra.mxu0 0.0
    %3592 = vmatprep.subr.mxu0 0.0
    %3593 = vmatpush1.msra.mxu0 0.0
    %3594 = vmatprep.subr.mxu0 0.0
    %3595 = vmatpush1.msra.mxu0 0.0
    %3596 = vmatprep.subr.mxu0 0.0
    %3597 = vmatpush1.msra.mxu0 0.0
    %3598 = vmatprep.subr.mxu0 0.0
    %3599 = vmatpush1.msra.mxu0 0.0
    %3600 = vmatprep.subr.mxu0 0.0
    %3601 = vmatpush1.msra.mxu0 0.0
    %3602 = vmatprep.subr.mxu0 0.0
    %3603 = vmatpush1.msra.mxu0 0.0
    %3604 = vmatprep.subr.mxu0 0.0
    %3605 = vmatpush1.msra.mxu0 0.0
    %3606 = vmatprep.subr.mxu0 0.0
    %3607 = vmatpush1.msra.mxu0 0.0
    %3608 = vmatprep.subr.mxu0 0.0
    %3609 = vmatpush1.msra.mxu0 0.0
    %3610 = vmatprep.subr.mxu0 0.0
    %3611 = vmatpush1.msra.mxu0 0.0
    %3612 = vmatprep.subr.mxu0 0.0
    %3613 = vmatpush1.msra.mxu0 0.0
    %3614 = vmatprep.subr.mxu0 0.0
    %3615 = vmatpush1.msra.mxu0 0.0
    %3616 = vmatprep.subr.mxu0 0.0
    %3617 = vmatpush1.msra.mxu0 0.0
    %3618 = vmatprep.subr.mxu0 0.0
    %3619 = vmatpush1.msra.mxu0 0.0
    %3620 = vmatprep.subr.mxu0 0.0
    %3621 = vmatpush1.msra.mxu0 0.0
    %3622 = vmatprep.subr.mxu0 0.0
    %3623 = vmatpush1.msra.mxu0 0.0
    %3624 = vmatprep.subr.mxu0 0.0
    %3625 = vmatpush1.msra.mxu0 0.0
    %3626 = vmatprep.mubr.f32.mxu0 0.0
    %3627 = vmatmul.mubr.f32.gmra.mrb[0].mxu0 %v3557
    %v3628 = vpop.f32.mrb[0].mxu0
    %v3629 = vadd.f32 0.0, %v3628
    %v3630 = vpop.f32.mrb[0].mxu0
    %3631 = vdwg.mxu0
    %v3633 = vsel %vm2946, %v978, 0
    %v3636 = vsel %vm2950, %v1864, 0
    %3638 = vmatprep.subr.mxu0 0.0
    %3639 = vmatpush1.msra.mxu0 %v3636
    %3640 = vmatprep.subr.mxu0 0.0
    %3641 = vmatpush1.msra.mxu0 0.0
    %3642 = vmatprep.subr.mxu0 0.0
    %3643 = vmatpush1.msra.mxu0 0.0
    %3644 = vmatprep.subr.mxu0 0.0
    %3645 = vmatpush1.msra.mxu0 0.0
    %3646 = vmatprep.subr.mxu0 0.0
    %3647 = vmatpush1.msra.mxu0 0.0
    %3648 = vmatprep.subr.mxu0 0.0
    %3649 = vmatpush1.msra.mxu0 0.0
    %3650 = vmatprep.subr.mxu0 0.0
    %3651 = vmatpush1.msra.mxu0 0.0
    %3652 = vmatprep.subr.mxu0 0.0
    %3653 = vmatpush1.msra.mxu0 0.0
    %3654 = vmatprep.subr.mxu0 0.0
    %3655 = vmatpush1.msra.mxu0 0.0
    %3656 = vmatprep.subr.mxu0 0.0
    %3657 = vmatpush1.msra.mxu0 0.0
    %3658 = vmatprep.subr.mxu0 0.0
    %3659 = vmatpush1.msra.mxu0 0.0
    %3660 = vmatprep.subr.mxu0 0.0
    %3661 = vmatpush1.msra.mxu0 0.0
    %3662 = vmatprep.subr.mxu0 0.0
    %3663 = vmatpush1.msra.mxu0 0.0
    %3664 = vmatprep.subr.mxu0 0.0
    %3665 = vmatpush1.msra.mxu0 0.0
    %3666 = vmatprep.subr.mxu0 0.0
    %3667 = vmatpush1.msra.mxu0 0.0
    %3668 = vmatprep.subr.mxu0 0.0
    %3669 = vmatpush1.msra.mxu0 0.0
    %3670 = vmatprep.subr.mxu0 0.0
    %3671 = vmatpush1.msra.mxu0 0.0
    %3672 = vmatprep.subr.mxu0 0.0
    %3673 = vmatpush1.msra.mxu0 0.0
    %3674 = vmatprep.subr.mxu0 0.0
    %3675 = vmatpush1.msra.mxu0 0.0
    %3676 = vmatprep.subr.mxu0 0.0
    %3677 = vmatpush1.msra.mxu0 0.0
    %3678 = vmatprep.subr.mxu0 0.0
    %3679 = vmatpush1.msra.mxu0 0.0
    %3680 = vmatprep.subr.mxu0 0.0
    %3681 = vmatpush1.msra.mxu0 0.0
    %3682 = vmatprep.subr.mxu0 0.0
    %3683 = vmatpush1.msra.mxu0 0.0
    %3684 = vmatprep.subr.mxu0 0.0
    %3685 = vmatpush1.msra.mxu0 0.0
    %3686 = vmatprep.subr.mxu0 0.0
    %3687 = vmatpush1.msra.mxu0 0.0
    %3688 = vmatprep.subr.mxu0 0.0
    %3689 = vmatpush1.msra.mxu0 0.0
    %3690 = vmatprep.subr.mxu0 0.0
    %3691 = vmatpush1.msra.mxu0 0.0
    %3692 = vmatprep.subr.mxu0 0.0
    %3693 = vmatpush1.msra.mxu0 0.0
    %3694 = vmatprep.subr.mxu0 0.0
    %3695 = vmatpush1.msra.mxu0 0.0
    %3696 = vmatprep.subr.mxu0 0.0
    %3697 = vmatpush1.msra.mxu0 0.0
    %3698 = vmatprep.subr.mxu0 0.0
    %3699 = vmatpush1.msra.mxu0 0.0
    %3700 = vmatprep.subr.mxu0 0.0
    %3701 = vmatpush1.msra.mxu0 0.0
    %3702 = vmatprep.mubr.f32.mxu0 0.0
    %3703 = vmatmul.mubr.f32.gmra.mrb[0].mxu0 %v3633
    %v3704 = vpop.f32.mrb[0].mxu0
    %v3705 = vadd.f32 0.0, %v3704
    %v3706 = vpop.f32.mrb[0].mxu0
    %3707 = vdwg.mxu0
    %v3709 = vsel %vm2946, %v979, 0
    %v3712 = vsel %vm2950, %v1865, 0
    %3714 = vmatprep.subr.mxu0 0.0
    %3715 = vmatpush1.msra.mxu0 %v3712
    %3716 = vmatprep.subr.mxu0 0.0
    %3717 = vmatpush1.msra.mxu0 0.0
    %3718 = vmatprep.subr.mxu0 0.0
    %3719 = vmatpush1.msra.mxu0 0.0
    %3720 = vmatprep.subr.mxu0 0.0
    %3721 = vmatpush1.msra.mxu0 0.0
    %3722 = vmatprep.subr.mxu0 0.0
    %3723 = vmatpush1.msra.mxu0 0.0
    %3724 = vmatprep.subr.mxu0 0.0
    %3725 = vmatpush1.msra.mxu0 0.0
    %3726 = vmatprep.subr.mxu0 0.0
    %3727 = vmatpush1.msra.mxu0 0.0
    %3728 = vmatprep.subr.mxu0 0.0
    %3729 = vmatpush1.msra.mxu0 0.0
    %3730 = vmatprep.subr.mxu0 0.0
    %3731 = vmatpush1.msra.mxu0 0.0
    %3732 = vmatprep.subr.mxu0 0.0
    %3733 = vmatpush1.msra.mxu0 0.0
    %3734 = vmatprep.subr.mxu0 0.0
    %3735 = vmatpush1.msra.mxu0 0.0
    %3736 = vmatprep.subr.mxu0 0.0
    %3737 = vmatpush1.msra.mxu0 0.0
    %3738 = vmatprep.subr.mxu0 0.0
    %3739 = vmatpush1.msra.mxu0 0.0
    %3740 = vmatprep.subr.mxu0 0.0
    %3741 = vmatpush1.msra.mxu0 0.0
    %3742 = vmatprep.subr.mxu0 0.0
    %3743 = vmatpush1.msra.mxu0 0.0
    %3744 = vmatprep.subr.mxu0 0.0
    %3745 = vmatpush1.msra.mxu0 0.0
    %3746 = vmatprep.subr.mxu0 0.0
    %3747 = vmatpush1.msra.mxu0 0.0
    %3748 = vmatprep.subr.mxu0 0.0
    %3749 = vmatpush1.msra.mxu0 0.0
    %3750 = vmatprep.subr.mxu0 0.0
    %3751 = vmatpush1.msra.mxu0 0.0
    %3752 = vmatprep.subr.mxu0 0.0
    %3753 = vmatpush1.msra.mxu0 0.0
    %3754 = vmatprep.subr.mxu0 0.0
    %3755 = vmatpush1.msra.mxu0 0.0
    %3756 = vmatprep.subr.mxu0 0.0
    %3757 = vmatpush1.msra.mxu0 0.0
    %3758 = vmatprep.subr.mxu0 0.0
    %3759 = vmatpush1.msra.mxu0 0.0
    %3760 = vmatprep.subr.mxu0 0.0
    %3761 = vmatpush1.msra.mxu0 0.0
    %3762 = vmatprep.subr.mxu0 0.0
    %3763 = vmatpush1.msra.mxu0 0.0
    %3764 = vmatprep.subr.mxu0 0.0
    %3765 = vmatpush1.msra.mxu0 0.0
    %3766 = vmatprep.subr.mxu0 0.0
    %3767 = vmatpush1.msra.mxu0 0.0
    %3768 = vmatprep.subr.mxu0 0.0
    %3769 = vmatpush1.msra.mxu0 0.0
    %3770 = vmatprep.subr.mxu0 0.0
    %3771 = vmatpush1.msra.mxu0 0.0
    %3772 = vmatprep.subr.mxu0 0.0
    %3773 = vmatpush1.msra.mxu0 0.0
    %3774 = vmatprep.subr.mxu0 0.0
    %3775 = vmatpush1.msra.mxu0 0.0
    %3776 = vmatprep.subr.mxu0 0.0
    %3777 = vmatpush1.msra.mxu0 0.0
    %3778 = vmatprep.mubr.f32.mxu0 0.0
    %3779 = vmatmul.mubr.f32.gmra.mrb[0].mxu0 %v3709
    %v3780 = vpop.f32.mrb[0].mxu0
    %v3781 = vadd.f32 0.0, %v3780
    %v3782 = vpop.f32.mrb[0].mxu0
    %3783 = vdwg.mxu0
    %v3785 = vsel %vm2946, %v980, 0
    %v3788 = vsel %vm2950, %v1866, 0
    %3790 = vmatprep.subr.mxu0 0.0
    %3791 = vmatpush1.msra.mxu0 %v3788
    %3792 = vmatprep.subr.mxu0 0.0
    %3793 = vmatpush1.msra.mxu0 0.0
    %3794 = vmatprep.subr.mxu0 0.0
    %3795 = vmatpush1.msra.mxu0 0.0
    %3796 = vmatprep.subr.mxu0 0.0
    %3797 = vmatpush1.msra.mxu0 0.0
    %3798 = vmatprep.subr.mxu0 0.0
    %3799 = vmatpush1.msra.mxu0 0.0
    %3800 = vmatprep.subr.mxu0 0.0
    %3801 = vmatpush1.msra.mxu0 0.0
    %3802 = vmatprep.subr.mxu0 0.0
    %3803 = vmatpush1.msra.mxu0 0.0
    %3804 = vmatprep.subr.mxu0 0.0
    %3805 = vmatpush1.msra.mxu0 0.0
    %3806 = vmatprep.subr.mxu0 0.0
    %3807 = vmatpush1.msra.mxu0 0.0
    %3808 = vmatprep.subr.mxu0 0.0
    %3809 = vmatpush1.msra.mxu0 0.0
    %3810 = vmatprep.subr.mxu0 0.0
    %3811 = vmatpush1.msra.mxu0 0.0
    %3812 = vmatprep.subr.mxu0 0.0
    %3813 = vmatpush1.msra.mxu0 0.0
    %3814 = vmatprep.subr.mxu0 0.0
    %3815 = vmatpush1.msra.mxu0 0.0
    %3816 = vmatprep.subr.mxu0 0.0
    %3817 = vmatpush1.msra.mxu0 0.0
    %3818 = vmatprep.subr.mxu0 0.0
    %3819 = vmatpush1.msra.mxu0 0.0
    %3820 = vmatprep.subr.mxu0 0.0
    %3821 = vmatpush1.msra.mxu0 0.0
    %3822 = vmatprep.subr.mxu0 0.0
    %3823 = vmatpush1.msra.mxu0 0.0
    %3824 = vmatprep.subr.mxu0 0.0
    %3825 = vmatpush1.msra.mxu0 0.0
    %3826 = vmatprep.subr.mxu0 0.0
    %3827 = vmatpush1.msra.mxu0 0.0
    %3828 = vmatprep.subr.mxu0 0.0
    %3829 = vmatpush1.msra.mxu0 0.0
    %3830 = vmatprep.subr.mxu0 0.0
    %3831 = vmatpush1.msra.mxu0 0.0
    %3832 = vmatprep.subr.mxu0 0.0
    %3833 = vmatpush1.msra.mxu0 0.0
    %3834 = vmatprep.subr.mxu0 0.0
    %3835 = vmatpush1.msra.mxu0 0.0
    %3836 = vmatprep.subr.mxu0 0.0
    %3837 = vmatpush1.msra.mxu0 0.0
    %3838 = vmatprep.subr.mxu0 0.0
    %3839 = vmatpush1.msra.mxu0 0.0
    %3840 = vmatprep.subr.mxu0 0.0
    %3841 = vmatpush1.msra.mxu0 0.0
    %3842 = vmatprep.subr.mxu0 0.0
    %3843 = vmatpush1.msra.mxu0 0.0
    %3844 = vmatprep.subr.mxu0 0.0
    %3845 = vmatpush1.msra.mxu0 0.0
    %3846 = vmatprep.subr.mxu0 0.0
    %3847 = vmatpush1.msra.mxu0 0.0
    %3848 = vmatprep.subr.mxu0 0.0
    %3849 = vmatpush1.msra.mxu0 0.0
    %3850 = vmatprep.subr.mxu0 0.0
    %3851 = vmatpush1.msra.mxu0 0.0
    %3852 = vmatprep.subr.mxu0 0.0
    %3853 = vmatpush1.msra.mxu0 0.0
    %3854 = vmatprep.mubr.f32.mxu0 0.0
    %3855 = vmatmul.mubr.f32.gmra.mrb[0].mxu0 %v3785
    %v3856 = vpop.f32.mrb[0].mxu0
    %v3857 = vadd.f32 0.0, %v3856
    %v3858 = vpop.f32.mrb[0].mxu0
    %3859 = vdwg.mxu0
    %v3861 = vsel %vm2946, %v1108, 0
    %v3864 = vsel %vm2950, %v1994, 0
    %3866 = vmatprep.subr.mxu0 0.0
    %3867 = vmatpush1.msra.mxu0 %v3864
    %3868 = vmatprep.subr.mxu0 0.0
    %3869 = vmatpush1.msra.mxu0 0.0
    %3870 = vmatprep.subr.mxu0 0.0
    %3871 = vmatpush1.msra.mxu0 0.0
    %3872 = vmatprep.subr.mxu0 0.0
    %3873 = vmatpush1.msra.mxu0 0.0
    %3874 = vmatprep.subr.mxu0 0.0
    %3875 = vmatpush1.msra.mxu0 0.0
    %3876 = vmatprep.subr.mxu0 0.0
    %3877 = vmatpush1.msra.mxu0 0.0
    %3878 = vmatprep.subr.mxu0 0.0
    %3879 = vmatpush1.msra.mxu0 0.0
    %3880 = vmatprep.subr.mxu0 0.0
    %3881 = vmatpush1.msra.mxu0 0.0
    %3882 = vmatprep.subr.mxu0 0.0
    %3883 = vmatpush1.msra.mxu0 0.0
    %3884 = vmatprep.subr.mxu0 0.0
    %3885 = vmatpush1.msra.mxu0 0.0
    %3886 = vmatprep.subr.mxu0 0.0
    %3887 = vmatpush1.msra.mxu0 0.0
    %3888 = vmatprep.subr.mxu0 0.0
    %3889 = vmatpush1.msra.mxu0 0.0
    %3890 = vmatprep.subr.mxu0 0.0
    %3891 = vmatpush1.msra.mxu0 0.0
    %3892 = vmatprep.subr.mxu0 0.0
    %3893 = vmatpush1.msra.mxu0 0.0
    %3894 = vmatprep.subr.mxu0 0.0
    %3895 = vmatpush1.msra.mxu0 0.0
    %3896 = vmatprep.subr.mxu0 0.0
    %3897 = vmatpush1.msra.mxu0 0.0
    %3898 = vmatprep.subr.mxu0 0.0
    %3899 = vmatpush1.msra.mxu0 0.0
    %3900 = vmatprep.subr.mxu0 0.0
    %3901 = vmatpush1.msra.mxu0 0.0
    %3902 = vmatprep.subr.mxu0 0.0
    %3903 = vmatpush1.msra.mxu0 0.0
    %3904 = vmatprep.subr.mxu0 0.0
    %3905 = vmatpush1.msra.mxu0 0.0
    %3906 = vmatprep.subr.mxu0 0.0
    %3907 = vmatpush1.msra.mxu0 0.0
    %3908 = vmatprep.subr.mxu0 0.0
    %3909 = vmatpush1.msra.mxu0 0.0
    %3910 = vmatprep.subr.mxu0 0.0
    %3911 = vmatpush1.msra.mxu0 0.0
    %3912 = vmatprep.subr.mxu0 0.0
    %3913 = vmatpush1.msra.mxu0 0.0
    %3914 = vmatprep.subr.mxu0 0.0
    %3915 = vmatpush1.msra.mxu0 0.0
    %3916 = vmatprep.subr.mxu0 0.0
    %3917 = vmatpush1.msra.mxu0 0.0
    %3918 = vmatprep.subr.mxu0 0.0
    %3919 = vmatpush1.msra.mxu0 0.0
    %3920 = vmatprep.subr.mxu0 0.0
    %3921 = vmatpush1.msra.mxu0 0.0
    %3922 = vmatprep.subr.mxu0 0.0
    %3923 = vmatpush1.msra.mxu0 0.0
    %3924 = vmatprep.subr.mxu0 0.0
    %3925 = vmatpush1.msra.mxu0 0.0
    %3926 = vmatprep.subr.mxu0 0.0
    %3927 = vmatpush1.msra.mxu0 0.0
    %3928 = vmatprep.subr.mxu0 0.0
    %3929 = vmatpush1.msra.mxu0 0.0
    %3930 = vmatprep.mubr.f32.mxu0 0.0
    %3931 = vmatmul.mubr.f32.gmra.mrb[0].mxu0 %v3861
    %v3932 = vpop.f32.mrb[0].mxu0
    %v3933 = vadd.f32 0.0, %v3932
    %v3934 = vpop.f32.mrb[0].mxu0
    %3935 = vdwg.mxu0
    %v3937 = vsel %vm2946, %v1109, 0
    %v3940 = vsel %vm2950, %v1995, 0
    %3942 = vmatprep.subr.mxu0 0.0
    %3943 = vmatpush1.msra.mxu0 %v3940
    %3944 = vmatprep.subr.mxu0 0.0
    %3945 = vmatpush1.msra.mxu0 0.0
    %3946 = vmatprep.subr.mxu0 0.0
    %3947 = vmatpush1.msra.mxu0 0.0
    %3948 = vmatprep.subr.mxu0 0.0
    %3949 = vmatpush1.msra.mxu0 0.0
    %3950 = vmatprep.subr.mxu0 0.0
    %3951 = vmatpush1.msra.mxu0 0.0
    %3952 = vmatprep.subr.mxu0 0.0
    %3953 = vmatpush1.msra.mxu0 0.0
    %3954 = vmatprep.subr.mxu0 0.0
    %3955 = vmatpush1.msra.mxu0 0.0
    %3956 = vmatprep.subr.mxu0 0.0
    %3957 = vmatpush1.msra.mxu0 0.0
    %3958 = vmatprep.subr.mxu0 0.0
    %3959 = vmatpush1.msra.mxu0 0.0
    %3960 = vmatprep.subr.mxu0 0.0
    %3961 = vmatpush1.msra.mxu0 0.0
    %3962 = vmatprep.subr.mxu0 0.0
    %3963 = vmatpush1.msra.mxu0 0.0
    %3964 = vmatprep.subr.mxu0 0.0
    %3965 = vmatpush1.msra.mxu0 0.0
    %3966 = vmatprep.subr.mxu0 0.0
    %3967 = vmatpush1.msra.mxu0 0.0
    %3968 = vmatprep.subr.mxu0 0.0
    %3969 = vmatpush1.msra.mxu0 0.0
    %3970 = vmatprep.subr.mxu0 0.0
    %3971 = vmatpush1.msra.mxu0 0.0
    %3972 = vmatprep.subr.mxu0 0.0
    %3973 = vmatpush1.msra.mxu0 0.0
    %3974 = vmatprep.subr.mxu0 0.0
    %3975 = vmatpush1.msra.mxu0 0.0
    %3976 = vmatprep.subr.mxu0 0.0
    %3977 = vmatpush1.msra.mxu0 0.0
    %3978 = vmatprep.subr.mxu0 0.0
    %3979 = vmatpush1.msra.mxu0 0.0
    %3980 = vmatprep.subr.mxu0 0.0
    %3981 = vmatpush1.msra.mxu0 0.0
    %3982 = vmatprep.subr.mxu0 0.0
    %3983 = vmatpush1.msra.mxu0 0.0
    %3984 = vmatprep.subr.mxu0 0.0
    %3985 = vmatpush1.msra.mxu0 0.0
    %3986 = vmatprep.subr.mxu0 0.0
    %3987 = vmatpush1.msra.mxu0 0.0
    %3988 = vmatprep.subr.mxu0 0.0
    %3989 = vmatpush1.msra.mxu0 0.0
    %3990 = vmatprep.subr.mxu0 0.0
    %3991 = vmatpush1.msra.mxu0 0.0
    %3992 = vmatprep.subr.mxu0 0.0
    %3993 = vmatpush1.msra.mxu0 0.0
    %3994 = vmatprep.subr.mxu0 0.0
    %3995 = vmatpush1.msra.mxu0 0.0
    %3996 = vmatprep.subr.mxu0 0.0
    %3997 = vmatpush1.msra.mxu0 0.0
    %3998 = vmatprep.subr.mxu0 0.0
    %3999 = vmatpush1.msra.mxu0 0.0
    %4000 = vmatprep.subr.mxu0 0.0
    %4001 = vmatpush1.msra.mxu0 0.0
    %4002 = vmatprep.subr.mxu0 0.0
    %4003 = vmatpush1.msra.mxu0 0.0
    %4004 = vmatprep.subr.mxu0 0.0
    %4005 = vmatpush1.msra.mxu0 0.0
    %4006 = vmatprep.mubr.f32.mxu0 0.0
    %4007 = vmatmul.mubr.f32.gmra.mrb[0].mxu0 %v3937
    %v4008 = vpop.f32.mrb[0].mxu0
    %v4009 = vadd.f32 0.0, %v4008
    %v4010 = vpop.f32.mrb[0].mxu0
    %4011 = vdwg.mxu0
    %v4013 = vsel %vm2946, %v1110, 0
    %v4016 = vsel %vm2950, %v1996, 0
    %4018 = vmatprep.subr.mxu0 0.0
    %4019 = vmatpush1.msra.mxu0 %v4016
    %4020 = vmatprep.subr.mxu0 0.0
    %4021 = vmatpush1.msra.mxu0 0.0
    %4022 = vmatprep.subr.mxu0 0.0
    %4023 = vmatpush1.msra.mxu0 0.0
    %4024 = vmatprep.subr.mxu0 0.0
    %4025 = vmatpush1.msra.mxu0 0.0
    %4026 = vmatprep.subr.mxu0 0.0
    %4027 = vmatpush1.msra.mxu0 0.0
    %4028 = vmatprep.subr.mxu0 0.0
    %4029 = vmatpush1.msra.mxu0 0.0
    %4030 = vmatprep.subr.mxu0 0.0
    %4031 = vmatpush1.msra.mxu0 0.0
    %4032 = vmatprep.subr.mxu0 0.0
    %4033 = vmatpush1.msra.mxu0 0.0
    %4034 = vmatprep.subr.mxu0 0.0
    %4035 = vmatpush1.msra.mxu0 0.0
    %4036 = vmatprep.subr.mxu0 0.0
    %4037 = vmatpush1.msra.mxu0 0.0
    %4038 = vmatprep.subr.mxu0 0.0
    %4039 = vmatpush1.msra.mxu0 0.0
    %4040 = vmatprep.subr.mxu0 0.0
    %4041 = vmatpush1.msra.mxu0 0.0
    %4042 = vmatprep.subr.mxu0 0.0
    %4043 = vmatpush1.msra.mxu0 0.0
    %4044 = vmatprep.subr.mxu0 0.0
    %4045 = vmatpush1.msra.mxu0 0.0
    %4046 = vmatprep.subr.mxu0 0.0
    %4047 = vmatpush1.msra.mxu0 0.0
    %4048 = vmatprep.subr.mxu0 0.0
    %4049 = vmatpush1.msra.mxu0 0.0
    %4050 = vmatprep.subr.mxu0 0.0
    %4051 = vmatpush1.msra.mxu0 0.0
    %4052 = vmatprep.subr.mxu0 0.0
    %4053 = vmatpush1.msra.mxu0 0.0
    %4054 = vmatprep.subr.mxu0 0.0
    %4055 = vmatpush1.msra.mxu0 0.0
    %4056 = vmatprep.subr.mxu0 0.0
    %4057 = vmatpush1.msra.mxu0 0.0
    %4058 = vmatprep.subr.mxu0 0.0
    %4059 = vmatpush1.msra.mxu0 0.0
    %4060 = vmatprep.subr.mxu0 0.0
    %4061 = vmatpush1.msra.mxu0 0.0
    %4062 = vmatprep.subr.mxu0 0.0
    %4063 = vmatpush1.msra.mxu0 0.0
    %4064 = vmatprep.subr.mxu0 0.0
    %4065 = vmatpush1.msra.mxu0 0.0
    %4066 = vmatprep.subr.mxu0 0.0
    %4067 = vmatpush1.msra.mxu0 0.0
    %4068 = vmatprep.subr.mxu0 0.0
    %4069 = vmatpush1.msra.mxu0 0.0
    %4070 = vmatprep.subr.mxu0 0.0
    %4071 = vmatpush1.msra.mxu0 0.0
    %4072 = vmatprep.subr.mxu0 0.0
    %4073 = vmatpush1.msra.mxu0 0.0
    %4074 = vmatprep.subr.mxu0 0.0
    %4075 = vmatpush1.msra.mxu0 0.0
    %4076 = vmatprep.subr.mxu0 0.0
    %4077 = vmatpush1.msra.mxu0 0.0
    %4078 = vmatprep.subr.mxu0 0.0
    %4079 = vmatpush1.msra.mxu0 0.0
    %4080 = vmatprep.subr.mxu0 0.0
    %4081 = vmatpush1.msra.mxu0 0.0
    %4082 = vmatprep.mubr.f32.mxu0 0.0
    %4083 = vmatmul.mubr.f32.gmra.mrb[0].mxu0 %v4013
    %v4084 = vpop.f32.mrb[0].mxu0
    %v4085 = vadd.f32 0.0, %v4084
    %v4086 = vpop.f32.mrb[0].mxu0
    %4087 = vdwg.mxu0
    %v4089 = vsel %vm2946, %v1111, 0
    %v4092 = vsel %vm2950, %v1997, 0
    %4094 = vmatprep.subr.mxu0 0.0
    %4095 = vmatpush1.msra.mxu0 %v4092
    %4096 = vmatprep.subr.mxu0 0.0
    %4097 = vmatpush1.msra.mxu0 0.0
    %4098 = vmatprep.subr.mxu0 0.0
    %4099 = vmatpush1.msra.mxu0 0.0
    %4100 = vmatprep.subr.mxu0 0.0
    %4101 = vmatpush1.msra.mxu0 0.0
    %4102 = vmatprep.subr.mxu0 0.0
    %4103 = vmatpush1.msra.mxu0 0.0
    %4104 = vmatprep.subr.mxu0 0.0
    %4105 = vmatpush1.msra.mxu0 0.0
    %4106 = vmatprep.subr.mxu0 0.0
    %4107 = vmatpush1.msra.mxu0 0.0
    %4108 = vmatprep.subr.mxu0 0.0
    %4109 = vmatpush1.msra.mxu0 0.0
    %4110 = vmatprep.subr.mxu0 0.0
    %4111 = vmatpush1.msra.mxu0 0.0
    %4112 = vmatprep.subr.mxu0 0.0
    %4113 = vmatpush1.msra.mxu0 0.0
    %4114 = vmatprep.subr.mxu0 0.0
    %4115 = vmatpush1.msra.mxu0 0.0
    %4116 = vmatprep.subr.mxu0 0.0
    %4117 = vmatpush1.msra.mxu0 0.0
    %4118 = vmatprep.subr.mxu0 0.0
    %4119 = vmatpush1.msra.mxu0 0.0
    %4120 = vmatprep.subr.mxu0 0.0
    %4121 = vmatpush1.msra.mxu0 0.0
    %4122 = vmatprep.subr.mxu0 0.0
    %4123 = vmatpush1.msra.mxu0 0.0
    %4124 = vmatprep.subr.mxu0 0.0
    %4125 = vmatpush1.msra.mxu0 0.0
    %4126 = vmatprep.subr.mxu0 0.0
    %4127 = vmatpush1.msra.mxu0 0.0
    %4128 = vmatprep.subr.mxu0 0.0
    %4129 = vmatpush1.msra.mxu0 0.0
    %4130 = vmatprep.subr.mxu0 0.0
    %4131 = vmatpush1.msra.mxu0 0.0
    %4132 = vmatprep.subr.mxu0 0.0
    %4133 = vmatpush1.msra.mxu0 0.0
    %4134 = vmatprep.subr.mxu0 0.0
    %4135 = vmatpush1.msra.mxu0 0.0
    %4136 = vmatprep.subr.mxu0 0.0
    %4137 = vmatpush1.msra.mxu0 0.0
    %4138 = vmatprep.subr.mxu0 0.0
    %4139 = vmatpush1.msra.mxu0 0.0
    %4140 = vmatprep.subr.mxu0 0.0
    %4141 = vmatpush1.msra.mxu0 0.0
    %4142 = vmatprep.subr.mxu0 0.0
    %4143 = vmatpush1.msra.mxu0 0.0
    %4144 = vmatprep.subr.mxu0 0.0
    %4145 = vmatpush1.msra.mxu0 0.0
    %4146 = vmatprep.subr.mxu0 0.0
    %4147 = vmatpush1.msra.mxu0 0.0
    %4148 = vmatprep.subr.mxu0 0.0
    %4149 = vmatpush1.msra.mxu0 0.0
    %4150 = vmatprep.subr.mxu0 0.0
    %4151 = vmatpush1.msra.mxu0 0.0
    %4152 = vmatprep.subr.mxu0 0.0
    %4153 = vmatpush1.msra.mxu0 0.0
    %4154 = vmatprep.subr.mxu0 0.0
    %4155 = vmatpush1.msra.mxu0 0.0
    %4156 = vmatprep.subr.mxu0 0.0
    %4157 = vmatpush1.msra.mxu0 0.0
    %4158 = vmatprep.mubr.f32.mxu0 0.0
    %4159 = vmatmul.mubr.f32.gmra.mrb[0].mxu0 %v4089
    %v4160 = vpop.f32.mrb[0].mxu0
    %v4161 = vadd.f32 0.0, %v4160
    %v4162 = vpop.f32.mrb[0].mxu0
    %4163 = vdwg.mxu0
    %v4165 = vsel %vm2946, %v1112, 0
    %v4168 = vsel %vm2950, %v1998, 0
    %4170 = vmatprep.subr.mxu0 0.0
    %4171 = vmatpush1.msra.mxu0 %v4168
    %4172 = vmatprep.subr.mxu0 0.0
    %4173 = vmatpush1.msra.mxu0 0.0
    %4174 = vmatprep.subr.mxu0 0.0
    %4175 = vmatpush1.msra.mxu0 0.0
    %4176 = vmatprep.subr.mxu0 0.0
    %4177 = vmatpush1.msra.mxu0 0.0
    %4178 = vmatprep.subr.mxu0 0.0
    %4179 = vmatpush1.msra.mxu0 0.0
    %4180 = vmatprep.subr.mxu0 0.0
    %4181 = vmatpush1.msra.mxu0 0.0
    %4182 = vmatprep.subr.mxu0 0.0
    %4183 = vmatpush1.msra.mxu0 0.0
    %4184 = vmatprep.subr.mxu0 0.0
    %4185 = vmatpush1.msra.mxu0 0.0
    %4186 = vmatprep.subr.mxu0 0.0
    %4187 = vmatpush1.msra.mxu0 0.0
    %4188 = vmatprep.subr.mxu0 0.0
    %4189 = vmatpush1.msra.mxu0 0.0
    %4190 = vmatprep.subr.mxu0 0.0
    %4191 = vmatpush1.msra.mxu0 0.0
    %4192 = vmatprep.subr.mxu0 0.0
    %4193 = vmatpush1.msra.mxu0 0.0
    %4194 = vmatprep.subr.mxu0 0.0
    %4195 = vmatpush1.msra.mxu0 0.0
    %4196 = vmatprep.subr.mxu0 0.0
    %4197 = vmatpush1.msra.mxu0 0.0
    %4198 = vmatprep.subr.mxu0 0.0
    %4199 = vmatpush1.msra.mxu0 0.0
    %4200 = vmatprep.subr.mxu0 0.0
    %4201 = vmatpush1.msra.mxu0 0.0
    %4202 = vmatprep.subr.mxu0 0.0
    %4203 = vmatpush1.msra.mxu0 0.0
    %4204 = vmatprep.subr.mxu0 0.0
    %4205 = vmatpush1.msra.mxu0 0.0
    %4206 = vmatprep.subr.mxu0 0.0
    %4207 = vmatpush1.msra.mxu0 0.0
    %4208 = vmatprep.subr.mxu0 0.0
    %4209 = vmatpush1.msra.mxu0 0.0
    %4210 = vmatprep.subr.mxu0 0.0
    %4211 = vmatpush1.msra.mxu0 0.0
    %4212 = vmatprep.subr.mxu0 0.0
    %4213 = vmatpush1.msra.mxu0 0.0
    %4214 = vmatprep.subr.mxu0 0.0
    %4215 = vmatpush1.msra.mxu0 0.0
    %4216 = vmatprep.subr.mxu0 0.0
    %4217 = vmatpush1.msra.mxu0 0.0
    %4218 = vmatprep.subr.mxu0 0.0
    %4219 = vmatpush1.msra.mxu0 0.0
    %4220 = vmatprep.subr.mxu0 0.0
    %4221 = vmatpush1.msra.mxu0 0.0
    %4222 = vmatprep.subr.mxu0 0.0
    %4223 = vmatpush1.msra.mxu0 0.0
    %4224 = vmatprep.subr.mxu0 0.0
    %4225 = vmatpush1.msra.mxu0 0.0
    %4226 = vmatprep.subr.mxu0 0.0
    %4227 = vmatpush1.msra.mxu0 0.0
    %4228 = vmatprep.subr.mxu0 0.0
    %4229 = vmatpush1.msra.mxu0 0.0
    %4230 = vmatprep.subr.mxu0 0.0
    %4231 = vmatpush1.msra.mxu0 0.0
    %4232 = vmatprep.subr.mxu0 0.0
    %4233 = vmatpush1.msra.mxu0 0.0
    %4234 = vmatprep.mubr.f32.mxu0 0.0
    %4235 = vmatmul.mubr.f32.gmra.mrb[0].mxu0 %v4165
    %v4236 = vpop.f32.mrb[0].mxu0
    %v4237 = vadd.f32 0.0, %v4236
    %v4238 = vpop.f32.mrb[0].mxu0
    %4239 = vdwg.mxu0
    %v4241 = vsel %vm2946, %v1113, 0
    %v4244 = vsel %vm2950, %v1999, 0
    %4246 = vmatprep.subr.mxu0 0.0
    %4247 = vmatpush1.msra.mxu0 %v4244
    %4248 = vmatprep.subr.mxu0 0.0
    %4249 = vmatpush1.msra.mxu0 0.0
    %4250 = vmatprep.subr.mxu0 0.0
    %4251 = vmatpush1.msra.mxu0 0.0
    %4252 = vmatprep.subr.mxu0 0.0
    %4253 = vmatpush1.msra.mxu0 0.0
    %4254 = vmatprep.subr.mxu0 0.0
    %4255 = vmatpush1.msra.mxu0 0.0
    %4256 = vmatprep.subr.mxu0 0.0
    %4257 = vmatpush1.msra.mxu0 0.0
    %4258 = vmatprep.subr.mxu0 0.0
    %4259 = vmatpush1.msra.mxu0 0.0
    %4260 = vmatprep.subr.mxu0 0.0
    %4261 = vmatpush1.msra.mxu0 0.0
    %4262 = vmatprep.subr.mxu0 0.0
    %4263 = vmatpush1.msra.mxu0 0.0
    %4264 = vmatprep.subr.mxu0 0.0
    %4265 = vmatpush1.msra.mxu0 0.0
    %4266 = vmatprep.subr.mxu0 0.0
    %4267 = vmatpush1.msra.mxu0 0.0
    %4268 = vmatprep.subr.mxu0 0.0
    %4269 = vmatpush1.msra.mxu0 0.0
    %4270 = vmatprep.subr.mxu0 0.0
    %4271 = vmatpush1.msra.mxu0 0.0
    %4272 = vmatprep.subr.mxu0 0.0
    %4273 = vmatpush1.msra.mxu0 0.0
    %4274 = vmatprep.subr.mxu0 0.0
    %4275 = vmatpush1.msra.mxu0 0.0
    %4276 = vmatprep.subr.mxu0 0.0
    %4277 = vmatpush1.msra.mxu0 0.0
    %4278 = vmatprep.subr.mxu0 0.0
    %4279 = vmatpush1.msra.mxu0 0.0
    %4280 = vmatprep.subr.mxu0 0.0
    %4281 = vmatpush1.msra.mxu0 0.0
    %4282 = vmatprep.subr.mxu0 0.0
    %4283 = vmatpush1.msra.mxu0 0.0
    %4284 = vmatprep.subr.mxu0 0.0
    %4285 = vmatpush1.msra.mxu0 0.0
    %4286 = vmatprep.subr.mxu0 0.0
    %4287 = vmatpush1.msra.mxu0 0.0
    %4288 = vmatprep.subr.mxu0 0.0
    %4289 = vmatpush1.msra.mxu0 0.0
    %4290 = vmatprep.subr.mxu0 0.0
    %4291 = vmatpush1.msra.mxu0 0.0
    %4292 = vmatprep.subr.mxu0 0.0
    %4293 = vmatpush1.msra.mxu0 0.0
    %4294 = vmatprep.subr.mxu0 0.0
    %4295 = vmatpush1.msra.mxu0 0.0
    %4296 = vmatprep.subr.mxu0 0.0
    %4297 = vmatpush1.msra.mxu0 0.0
    %4298 = vmatprep.subr.mxu0 0.0
    %4299 = vmatpush1.msra.mxu0 0.0
    %4300 = vmatprep.subr.mxu0 0.0
    %4301 = vmatpush1.msra.mxu0 0.0
    %4302 = vmatprep.subr.mxu0 0.0
    %4303 = vmatpush1.msra.mxu0 0.0
    %4304 = vmatprep.subr.mxu0 0.0
    %4305 = vmatpush1.msra.mxu0 0.0
    %4306 = vmatprep.subr.mxu0 0.0
    %4307 = vmatpush1.msra.mxu0 0.0
    %4308 = vmatprep.subr.mxu0 0.0
    %4309 = vmatpush1.msra.mxu0 0.0
    %4310 = vmatprep.mubr.f32.mxu0 0.0
    %4311 = vmatmul.mubr.f32.gmra.mrb[0].mxu0 %v4241
    %v4312 = vpop.f32.mrb[0].mxu0
    %v4313 = vadd.f32 0.0, %v4312
    %v4314 = vpop.f32.mrb[0].mxu0
    %4315 = vdwg.mxu0
    %v4317 = vsel %vm2946, %v1114, 0
    %v4320 = vsel %vm2950, %v2000, 0
    %4322 = vmatprep.subr.mxu0 0.0
    %4323 = vmatpush1.msra.mxu0 %v4320
    %4324 = vmatprep.subr.mxu0 0.0
    %4325 = vmatpush1.msra.mxu0 0.0
    %4326 = vmatprep.subr.mxu0 0.0
    %4327 = vmatpush1.msra.mxu0 0.0
    %4328 = vmatprep.subr.mxu0 0.0
    %4329 = vmatpush1.msra.mxu0 0.0
    %4330 = vmatprep.subr.mxu0 0.0
    %4331 = vmatpush1.msra.mxu0 0.0
    %4332 = vmatprep.subr.mxu0 0.0
    %4333 = vmatpush1.msra.mxu0 0.0
    %4334 = vmatprep.subr.mxu0 0.0
    %4335 = vmatpush1.msra.mxu0 0.0
    %4336 = vmatprep.subr.mxu0 0.0
    %4337 = vmatpush1.msra.mxu0 0.0
    %4338 = vmatprep.subr.mxu0 0.0
    %4339 = vmatpush1.msra.mxu0 0.0
    %4340 = vmatprep.subr.mxu0 0.0
    %4341 = vmatpush1.msra.mxu0 0.0
    %4342 = vmatprep.subr.mxu0 0.0
    %4343 = vmatpush1.msra.mxu0 0.0
    %4344 = vmatprep.subr.mxu0 0.0
    %4345 = vmatpush1.msra.mxu0 0.0
    %4346 = vmatprep.subr.mxu0 0.0
    %4347 = vmatpush1.msra.mxu0 0.0
    %4348 = vmatprep.subr.mxu0 0.0
    %4349 = vmatpush1.msra.mxu0 0.0
    %4350 = vmatprep.subr.mxu0 0.0
    %4351 = vmatpush1.msra.mxu0 0.0
    %4352 = vmatprep.subr.mxu0 0.0
    %4353 = vmatpush1.msra.mxu0 0.0
    %4354 = vmatprep.subr.mxu0 0.0
    %4355 = vmatpush1.msra.mxu0 0.0
    %4356 = vmatprep.subr.mxu0 0.0
    %4357 = vmatpush1.msra.mxu0 0.0
    %4358 = vmatprep.subr.mxu0 0.0
    %4359 = vmatpush1.msra.mxu0 0.0
    %4360 = vmatprep.subr.mxu0 0.0
    %4361 = vmatpush1.msra.mxu0 0.0
    %4362 = vmatprep.subr.mxu0 0.0
    %4363 = vmatpush1.msra.mxu0 0.0
    %4364 = vmatprep.subr.mxu0 0.0
    %4365 = vmatpush1.msra.mxu0 0.0
    %4366 = vmatprep.subr.mxu0 0.0
    %4367 = vmatpush1.msra.mxu0 0.0
    %4368 = vmatprep.subr.mxu0 0.0
    %4369 = vmatpush1.msra.mxu0 0.0
    %4370 = vmatprep.subr.mxu0 0.0
    %4371 = vmatpush1.msra.mxu0 0.0
    %4372 = vmatprep.subr.mxu0 0.0
    %4373 = vmatpush1.msra.mxu0 0.0
    %4374 = vmatprep.subr.mxu0 0.0
    %4375 = vmatpush1.msra.mxu0 0.0
    %4376 = vmatprep.subr.mxu0 0.0
    %4377 = vmatpush1.msra.mxu0 0.0
    %4378 = vmatprep.subr.mxu0 0.0
    %4379 = vmatpush1.msra.mxu0 0.0
    %4380 = vmatprep.subr.mxu0 0.0
    %4381 = vmatpush1.msra.mxu0 0.0
    %4382 = vmatprep.subr.mxu0 0.0
    %4383 = vmatpush1.msra.mxu0 0.0
    %4384 = vmatprep.subr.mxu0 0.0
    %4385 = vmatpush1.msra.mxu0 0.0
    %4386 = vmatprep.mubr.f32.mxu0 0.0
    %4387 = vmatmul.mubr.f32.gmra.mrb[0].mxu0 %v4317
    %v4388 = vpop.f32.mrb[0].mxu0
    %v4389 = vadd.f32 0.0, %v4388
    %v4390 = vpop.f32.mrb[0].mxu0
    %4391 = vdwg.mxu0
    %v4393 = vsel %vm2946, %v1115, 0
    %v4396 = vsel %vm2950, %v2001, 0
    %4398 = vmatprep.subr.mxu0 0.0
    %4399 = vmatpush1.msra.mxu0 %v4396
    %4400 = vmatprep.subr.mxu0 0.0
    %4401 = vmatpush1.msra.mxu0 0.0
    %4402 = vmatprep.subr.mxu0 0.0
    %4403 = vmatpush1.msra.mxu0 0.0
    %4404 = vmatprep.subr.mxu0 0.0
    %4405 = vmatpush1.msra.mxu0 0.0
    %4406 = vmatprep.subr.mxu0 0.0
    %4407 = vmatpush1.msra.mxu0 0.0
    %4408 = vmatprep.subr.mxu0 0.0
    %4409 = vmatpush1.msra.mxu0 0.0
    %4410 = vmatprep.subr.mxu0 0.0
    %4411 = vmatpush1.msra.mxu0 0.0
    %4412 = vmatprep.subr.mxu0 0.0
    %4413 = vmatpush1.msra.mxu0 0.0
    %4414 = vmatprep.subr.mxu0 0.0
    %4415 = vmatpush1.msra.mxu0 0.0
    %4416 = vmatprep.subr.mxu0 0.0
    %4417 = vmatpush1.msra.mxu0 0.0
    %4418 = vmatprep.subr.mxu0 0.0
    %4419 = vmatpush1.msra.mxu0 0.0
    %4420 = vmatprep.subr.mxu0 0.0
    %4421 = vmatpush1.msra.mxu0 0.0
    %4422 = vmatprep.subr.mxu0 0.0
    %4423 = vmatpush1.msra.mxu0 0.0
    %4424 = vmatprep.subr.mxu0 0.0
    %4425 = vmatpush1.msra.mxu0 0.0
    %4426 = vmatprep.subr.mxu0 0.0
    %4427 = vmatpush1.msra.mxu0 0.0
    %4428 = vmatprep.subr.mxu0 0.0
    %4429 = vmatpush1.msra.mxu0 0.0
    %4430 = vmatprep.subr.mxu0 0.0
    %4431 = vmatpush1.msra.mxu0 0.0
    %4432 = vmatprep.subr.mxu0 0.0
    %4433 = vmatpush1.msra.mxu0 0.0
    %4434 = vmatprep.subr.mxu0 0.0
    %4435 = vmatpush1.msra.mxu0 0.0
    %4436 = vmatprep.subr.mxu0 0.0
    %4437 = vmatpush1.msra.mxu0 0.0
    %4438 = vmatprep.subr.mxu0 0.0
    %4439 = vmatpush1.msra.mxu0 0.0
    %4440 = vmatprep.subr.mxu0 0.0
    %4441 = vmatpush1.msra.mxu0 0.0
    %4442 = vmatprep.subr.mxu0 0.0
    %4443 = vmatpush1.msra.mxu0 0.0
    %4444 = vmatprep.subr.mxu0 0.0
    %4445 = vmatpush1.msra.mxu0 0.0
    %4446 = vmatprep.subr.mxu0 0.0
    %4447 = vmatpush1.msra.mxu0 0.0
    %4448 = vmatprep.subr.mxu0 0.0
    %4449 = vmatpush1.msra.mxu0 0.0
    %4450 = vmatprep.subr.mxu0 0.0
    %4451 = vmatpush1.msra.mxu0 0.0
    %4452 = vmatprep.subr.mxu0 0.0
    %4453 = vmatpush1.msra.mxu0 0.0
    %4454 = vmatprep.subr.mxu0 0.0
    %4455 = vmatpush1.msra.mxu0 0.0
    %4456 = vmatprep.subr.mxu0 0.0
    %4457 = vmatpush1.msra.mxu0 0.0
    %4458 = vmatprep.subr.mxu0 0.0
    %4459 = vmatpush1.msra.mxu0 0.0
    %4460 = vmatprep.subr.mxu0 0.0
    %4461 = vmatpush1.msra.mxu0 0.0
    %4462 = vmatprep.mubr.f32.mxu0 0.0
    %4463 = vmatmul.mubr.f32.gmra.mrb[0].mxu0 %v4393
    %v4464 = vpop.f32.mrb[0].mxu0
    %v4465 = vadd.f32 0.0, %v4464
    %v4466 = vpop.f32.mrb[0].mxu0
    %4467 = vdwg.mxu0
    %v4469 = vsel %vm2946, %v1179, 0
    %v4472 = vsel %vm2950, %v2065, 0
    %4474 = vmatprep.subr.mxu0 0.0
    %4475 = vmatpush1.msra.mxu0 %v4472
    %4476 = vmatprep.subr.mxu0 0.0
    %4477 = vmatpush1.msra.mxu0 0.0
    %4478 = vmatprep.subr.mxu0 0.0
    %4479 = vmatpush1.msra.mxu0 0.0
    %4480 = vmatprep.subr.mxu0 0.0
    %4481 = vmatpush1.msra.mxu0 0.0
    %4482 = vmatprep.subr.mxu0 0.0
    %4483 = vmatpush1.msra.mxu0 0.0
    %4484 = vmatprep.subr.mxu0 0.0
    %4485 = vmatpush1.msra.mxu0 0.0
    %4486 = vmatprep.subr.mxu0 0.0
    %4487 = vmatpush1.msra.mxu0 0.0
    %4488 = vmatprep.subr.mxu0 0.0
    %4489 = vmatpush1.msra.mxu0 0.0
    %4490 = vmatprep.subr.mxu0 0.0
    %4491 = vmatpush1.msra.mxu0 0.0
    %4492 = vmatprep.subr.mxu0 0.0
    %4493 = vmatpush1.msra.mxu0 0.0
    %4494 = vmatprep.subr.mxu0 0.0
    %4495 = vmatpush1.msra.mxu0 0.0
    %4496 = vmatprep.subr.mxu0 0.0
    %4497 = vmatpush1.msra.mxu0 0.0
    %4498 = vmatprep.subr.mxu0 0.0
    %4499 = vmatpush1.msra.mxu0 0.0
    %4500 = vmatprep.subr.mxu0 0.0
    %4501 = vmatpush1.msra.mxu0 0.0
    %4502 = vmatprep.subr.mxu0 0.0
    %4503 = vmatpush1.msra.mxu0 0.0
    %4504 = vmatprep.subr.mxu0 0.0
    %4505 = vmatpush1.msra.mxu0 0.0
    %4506 = vmatprep.subr.mxu0 0.0
    %4507 = vmatpush1.msra.mxu0 0.0
    %4508 = vmatprep.subr.mxu0 0.0
    %4509 = vmatpush1.msra.mxu0 0.0
    %4510 = vmatprep.subr.mxu0 0.0
    %4511 = vmatpush1.msra.mxu0 0.0
    %4512 = vmatprep.subr.mxu0 0.0
    %4513 = vmatpush1.msra.mxu0 0.0
    %4514 = vmatprep.subr.mxu0 0.0
    %4515 = vmatpush1.msra.mxu0 0.0
    %4516 = vmatprep.subr.mxu0 0.0
    %4517 = vmatpush1.msra.mxu0 0.0
    %4518 = vmatprep.subr.mxu0 0.0
    %4519 = vmatpush1.msra.mxu0 0.0
    %4520 = vmatprep.subr.mxu0 0.0
    %4521 = vmatpush1.msra.mxu0 0.0
    %4522 = vmatprep.subr.mxu0 0.0
    %4523 = vmatpush1.msra.mxu0 0.0
    %4524 = vmatprep.subr.mxu0 0.0
    %4525 = vmatpush1.msra.mxu0 0.0
    %4526 = vmatprep.subr.mxu0 0.0
    %4527 = vmatpush1.msra.mxu0 0.0
    %4528 = vmatprep.subr.mxu0 0.0
    %4529 = vmatpush1.msra.mxu0 0.0
    %4530 = vmatprep.subr.mxu0 0.0
    %4531 = vmatpush1.msra.mxu0 0.0
    %4532 = vmatprep.subr.mxu0 0.0
    %4533 = vmatpush1.msra.mxu0 0.0
    %4534 = vmatprep.subr.mxu0 0.0
    %4535 = vmatpush1.msra.mxu0 0.0
    %4536 = vmatprep.subr.mxu0 0.0
    %4537 = vmatpush1.msra.mxu0 0.0
    %4538 = vmatprep.mubr.f32.mxu0 0.0
    %4539 = vmatmul.mubr.f32.gmra.mrb[0].mxu0 %v4469
    %v4540 = vpop.f32.mrb[0].mxu0
    %v4541 = vadd.f32 0.0, %v4540
    %v4542 = vpop.f32.mrb[0].mxu0
    %4543 = vdwg.mxu0
    %v4545 = vsel %vm2946, %v1180, 0
    %v4548 = vsel %vm2950, %v2066, 0
    %4550 = vmatprep.subr.mxu0 0.0
    %4551 = vmatpush1.msra.mxu0 %v4548
    %4552 = vmatprep.subr.mxu0 0.0
    %4553 = vmatpush1.msra.mxu0 0.0
    %4554 = vmatprep.subr.mxu0 0.0
    %4555 = vmatpush1.msra.mxu0 0.0
    %4556 = vmatprep.subr.mxu0 0.0
    %4557 = vmatpush1.msra.mxu0 0.0
    %4558 = vmatprep.subr.mxu0 0.0
    %4559 = vmatpush1.msra.mxu0 0.0
    %4560 = vmatprep.subr.mxu0 0.0
    %4561 = vmatpush1.msra.mxu0 0.0
    %4562 = vmatprep.subr.mxu0 0.0
    %4563 = vmatpush1.msra.mxu0 0.0
    %4564 = vmatprep.subr.mxu0 0.0
    %4565 = vmatpush1.msra.mxu0 0.0
    %4566 = vmatprep.subr.mxu0 0.0
    %4567 = vmatpush1.msra.mxu0 0.0
    %4568 = vmatprep.subr.mxu0 0.0
    %4569 = vmatpush1.msra.mxu0 0.0
    %4570 = vmatprep.subr.mxu0 0.0
    %4571 = vmatpush1.msra.mxu0 0.0
    %4572 = vmatprep.subr.mxu0 0.0
    %4573 = vmatpush1.msra.mxu0 0.0
    %4574 = vmatprep.subr.mxu0 0.0
    %4575 = vmatpush1.msra.mxu0 0.0
    %4576 = vmatprep.subr.mxu0 0.0
    %4577 = vmatpush1.msra.mxu0 0.0
    %4578 = vmatprep.subr.mxu0 0.0
    %4579 = vmatpush1.msra.mxu0 0.0
    %4580 = vmatprep.subr.mxu0 0.0
    %4581 = vmatpush1.msra.mxu0 0.0
    %4582 = vmatprep.subr.mxu0 0.0
    %4583 = vmatpush1.msra.mxu0 0.0
    %4584 = vmatprep.subr.mxu0 0.0
    %4585 = vmatpush1.msra.mxu0 0.0
    %4586 = vmatprep.subr.mxu0 0.0
    %4587 = vmatpush1.msra.mxu0 0.0
    %4588 = vmatprep.subr.mxu0 0.0
    %4589 = vmatpush1.msra.mxu0 0.0
    %4590 = vmatprep.subr.mxu0 0.0
    %4591 = vmatpush1.msra.mxu0 0.0
    %4592 = vmatprep.subr.mxu0 0.0
    %4593 = vmatpush1.msra.mxu0 0.0
    %4594 = vmatprep.subr.mxu0 0.0
    %4595 = vmatpush1.msra.mxu0 0.0
    %4596 = vmatprep.subr.mxu0 0.0
    %4597 = vmatpush1.msra.mxu0 0.0
    %4598 = vmatprep.subr.mxu0 0.0
    %4599 = vmatpush1.msra.mxu0 0.0
    %4600 = vmatprep.subr.mxu0 0.0
    %4601 = vmatpush1.msra.mxu0 0.0
    %4602 = vmatprep.subr.mxu0 0.0
    %4603 = vmatpush1.msra.mxu0 0.0
    %4604 = vmatprep.subr.mxu0 0.0
    %4605 = vmatpush1.msra.mxu0 0.0
    %4606 = vmatprep.subr.mxu0 0.0
    %4607 = vmatpush1.msra.mxu0 0.0
    %4608 = vmatprep.subr.mxu0 0.0
    %4609 = vmatpush1.msra.mxu0 0.0
    %4610 = vmatprep.subr.mxu0 0.0
    %4611 = vmatpush1.msra.mxu0 0.0
    %4612 = vmatprep.subr.mxu0 0.0
    %4613 = vmatpush1.msra.mxu0 0.0
    %4614 = vmatprep.mubr.f32.mxu0 0.0
    %4615 = vmatmul.mubr.f32.gmra.mrb[0].mxu0 %v4545
    %v4616 = vpop.f32.mrb[0].mxu0
    %v4617 = vadd.f32 0.0, %v4616
    %v4618 = vpop.f32.mrb[0].mxu0
    %4619 = vdwg.mxu0
    %v4621 = vsel %vm2946, %v1181, 0
    %v4624 = vsel %vm2950, %v2067, 0
    %4626 = vmatprep.subr.mxu0 0.0
    %4627 = vmatpush1.msra.mxu0 %v4624
    %4628 = vmatprep.subr.mxu0 0.0
    %4629 = vmatpush1.msra.mxu0 0.0
    %4630 = vmatprep.subr.mxu0 0.0
    %4631 = vmatpush1.msra.mxu0 0.0
    %4632 = vmatprep.subr.mxu0 0.0
    %4633 = vmatpush1.msra.mxu0 0.0
    %4634 = vmatprep.subr.mxu0 0.0
    %4635 = vmatpush1.msra.mxu0 0.0
    %4636 = vmatprep.subr.mxu0 0.0
    %4637 = vmatpush1.msra.mxu0 0.0
    %4638 = vmatprep.subr.mxu0 0.0
    %4639 = vmatpush1.msra.mxu0 0.0
    %4640 = vmatprep.subr.mxu0 0.0
    %4641 = vmatpush1.msra.mxu0 0.0
    %4642 = vmatprep.subr.mxu0 0.0
    %4643 = vmatpush1.msra.mxu0 0.0
    %4644 = vmatprep.subr.mxu0 0.0
    %4645 = vmatpush1.msra.mxu0 0.0
    %4646 = vmatprep.subr.mxu0 0.0
    %4647 = vmatpush1.msra.mxu0 0.0
    %4648 = vmatprep.subr.mxu0 0.0
    %4649 = vmatpush1.msra.mxu0 0.0
    %4650 = vmatprep.subr.mxu0 0.0
    %4651 = vmatpush1.msra.mxu0 0.0
    %4652 = vmatprep.subr.mxu0 0.0
    %4653 = vmatpush1.msra.mxu0 0.0
    %4654 = vmatprep.subr.mxu0 0.0
    %4655 = vmatpush1.msra.mxu0 0.0
    %4656 = vmatprep.subr.mxu0 0.0
    %4657 = vmatpush1.msra.mxu0 0.0
    %4658 = vmatprep.subr.mxu0 0.0
    %4659 = vmatpush1.msra.mxu0 0.0
    %4660 = vmatprep.subr.mxu0 0.0
    %4661 = vmatpush1.msra.mxu0 0.0
    %4662 = vmatprep.subr.mxu0 0.0
    %4663 = vmatpush1.msra.mxu0 0.0
    %4664 = vmatprep.subr.mxu0 0.0
    %4665 = vmatpush1.msra.mxu0 0.0
    %4666 = vmatprep.subr.mxu0 0.0
    %4667 = vmatpush1.msra.mxu0 0.0
    %4668 = vmatprep.subr.mxu0 0.0
    %4669 = vmatpush1.msra.mxu0 0.0
    %4670 = vmatprep.subr.mxu0 0.0
    %4671 = vmatpush1.msra.mxu0 0.0
    %4672 = vmatprep.subr.mxu0 0.0
    %4673 = vmatpush1.msra.mxu0 0.0
    %4674 = vmatprep.subr.mxu0 0.0
    %4675 = vmatpush1.msra.mxu0 0.0
    %4676 = vmatprep.subr.mxu0 0.0
    %4677 = vmatpush1.msra.mxu0 0.0
    %4678 = vmatprep.subr.mxu0 0.0
    %4679 = vmatpush1.msra.mxu0 0.0
    %4680 = vmatprep.subr.mxu0 0.0
    %4681 = vmatpush1.msra.mxu0 0.0
    %4682 = vmatprep.subr.mxu0 0.0
    %4683 = vmatpush1.msra.mxu0 0.0
    %4684 = vmatprep.subr.mxu0 0.0
    %4685 = vmatpush1.msra.mxu0 0.0
    %4686 = vmatprep.subr.mxu0 0.0
    %4687 = vmatpush1.msra.mxu0 0.0
    %4688 = vmatprep.subr.mxu0 0.0
    %4689 = vmatpush1.msra.mxu0 0.0
    %4690 = vmatprep.mubr.f32.mxu0 0.0
    %4691 = vmatmul.mubr.f32.gmra.mrb[0].mxu0 %v4621
    %v4692 = vpop.f32.mrb[0].mxu0
    %v4693 = vadd.f32 0.0, %v4692
    %v4694 = vpop.f32.mrb[0].mxu0
    %4695 = vdwg.mxu0
    %v4697 = vsel %vm2946, %v1182, 0
    %v4700 = vsel %vm2950, %v2068, 0
    %4702 = vmatprep.subr.mxu0 0.0
    %4703 = vmatpush1.msra.mxu0 %v4700
    %4704 = vmatprep.subr.mxu0 0.0
    %4705 = vmatpush1.msra.mxu0 0.0
    %4706 = vmatprep.subr.mxu0 0.0
    %4707 = vmatpush1.msra.mxu0 0.0
    %4708 = vmatprep.subr.mxu0 0.0
    %4709 = vmatpush1.msra.mxu0 0.0
    %4710 = vmatprep.subr.mxu0 0.0
    %4711 = vmatpush1.msra.mxu0 0.0
    %4712 = vmatprep.subr.mxu0 0.0
    %4713 = vmatpush1.msra.mxu0 0.0
    %4714 = vmatprep.subr.mxu0 0.0
    %4715 = vmatpush1.msra.mxu0 0.0
    %4716 = vmatprep.subr.mxu0 0.0
    %4717 = vmatpush1.msra.mxu0 0.0
    %4718 = vmatprep.subr.mxu0 0.0
    %4719 = vmatpush1.msra.mxu0 0.0
    %4720 = vmatprep.subr.mxu0 0.0
    %4721 = vmatpush1.msra.mxu0 0.0
    %4722 = vmatprep.subr.mxu0 0.0
    %4723 = vmatpush1.msra.mxu0 0.0
    %4724 = vmatprep.subr.mxu0 0.0
    %4725 = vmatpush1.msra.mxu0 0.0
    %4726 = vmatprep.subr.mxu0 0.0
    %4727 = vmatpush1.msra.mxu0 0.0
    %4728 = vmatprep.subr.mxu0 0.0
    %4729 = vmatpush1.msra.mxu0 0.0
    %4730 = vmatprep.subr.mxu0 0.0
    %4731 = vmatpush1.msra.mxu0 0.0
    %4732 = vmatprep.subr.mxu0 0.0
    %4733 = vmatpush1.msra.mxu0 0.0
    %4734 = vmatprep.subr.mxu0 0.0
    %4735 = vmatpush1.msra.mxu0 0.0
    %4736 = vmatprep.subr.mxu0 0.0
    %4737 = vmatpush1.msra.mxu0 0.0
    %4738 = vmatprep.subr.mxu0 0.0
    %4739 = vmatpush1.msra.mxu0 0.0
    %4740 = vmatprep.subr.mxu0 0.0
    %4741 = vmatpush1.msra.mxu0 0.0
    %4742 = vmatprep.subr.mxu0 0.0
    %4743 = vmatpush1.msra.mxu0 0.0
    %4744 = vmatprep.subr.mxu0 0.0
    %4745 = vmatpush1.msra.mxu0 0.0
    %4746 = vmatprep.subr.mxu0 0.0
    %4747 = vmatpush1.msra.mxu0 0.0
    %4748 = vmatprep.subr.mxu0 0.0
    %4749 = vmatpush1.msra.mxu0 0.0
    %4750 = vmatprep.subr.mxu0 0.0
    %4751 = vmatpush1.msra.mxu0 0.0
    %4752 = vmatprep.subr.mxu0 0.0
    %4753 = vmatpush1.msra.mxu0 0.0
    %4754 = vmatprep.subr.mxu0 0.0
    %4755 = vmatpush1.msra.mxu0 0.0
    %4756 = vmatprep.subr.mxu0 0.0
    %4757 = vmatpush1.msra.mxu0 0.0
    %4758 = vmatprep.subr.mxu0 0.0
    %4759 = vmatpush1.msra.mxu0 0.0
    %4760 = vmatprep.subr.mxu0 0.0
    %4761 = vmatpush1.msra.mxu0 0.0
    %4762 = vmatprep.subr.mxu0 0.0
    %4763 = vmatpush1.msra.mxu0 0.0
    %4764 = vmatprep.subr.mxu0 0.0
    %4765 = vmatpush1.msra.mxu0 0.0
    %4766 = vmatprep.mubr.f32.mxu0 0.0
    %4767 = vmatmul.mubr.f32.gmra.mrb[0].mxu0 %v4697
    %v4768 = vpop.f32.mrb[0].mxu0
    %v4769 = vadd.f32 0.0, %v4768
    %v4770 = vpop.f32.mrb[0].mxu0
    %4771 = vdwg.mxu0
    %vm4772 = vcmask 55296
    %v4773 = vsel %vm4772, %v3021, -inf
    %4774 = vmax.xlane.f32.xlu0 %v4773
    %v4775 = vpop.xlane.xlu0 %4774
    %v4776 = vsel %vm4772, %v3097, -inf
    %4777 = vmax.xlane.f32.xlu0 %v4776
    %v4778 = vpop.xlane.xlu0 %4777
    %v4779 = vsel %vm4772, %v3173, -inf
    %4780 = vmax.xlane.f32.xlu0 %v4779
    %v4781 = vpop.xlane.xlu0 %4780
    %v4782 = vsel %vm4772, %v3249, -inf
    %4783 = vmax.xlane.f32.xlu0 %v4782
    %v4784 = vpop.xlane.xlu0 %4783
    %v4785 = vsel %vm4772, %v3325, -inf
    %4786 = vmax.xlane.f32.xlu0 %v4785
    %v4787 = vpop.xlane.xlu0 %4786
    %v4788 = vsel %vm4772, %v3401, -inf
    %4789 = vmax.xlane.f32.xlu0 %v4788
    %v4790 = vpop.xlane.xlu0 %4789
    %v4791 = vsel %vm4772, %v3477, -inf
    %4792 = vmax.xlane.f32.xlu0 %v4791
    %v4793 = vpop.xlane.xlu0 %4792
    %v4794 = vsel %vm4772, %v3553, -inf
    %4795 = vmax.xlane.f32.xlu0 %v4794
    %v4796 = vpop.xlane.xlu0 %4795
    %v4797 = vsel %vm4772, %v3629, -inf
    %4798 = vmax.xlane.f32.xlu0 %v4797
    %v4799 = vpop.xlane.xlu0 %4798
    %v4800 = vsel %vm4772, %v3705, -inf
    %4801 = vmax.xlane.f32.xlu0 %v4800
    %v4802 = vpop.xlane.xlu0 %4801
    %v4803 = vsel %vm4772, %v3781, -inf
    %4804 = vmax.xlane.f32.xlu0 %v4803
    %v4805 = vpop.xlane.xlu0 %4804
    %v4806 = vsel %vm4772, %v3857, -inf
    %4807 = vmax.xlane.f32.xlu0 %v4806
    %v4808 = vpop.xlane.xlu0 %4807
    %v4809 = vsel %vm4772, %v3933, -inf
    %4810 = vmax.xlane.f32.xlu0 %v4809
    %v4811 = vpop.xlane.xlu0 %4810
    %v4812 = vsel %vm4772, %v4009, -inf
    %4813 = vmax.xlane.f32.xlu0 %v4812
    %v4814 = vpop.xlane.xlu0 %4813
    %v4815 = vsel %vm4772, %v4085, -inf
    %4816 = vmax.xlane.f32.xlu0 %v4815
    %v4817 = vpop.xlane.xlu0 %4816
    %v4818 = vsel %vm4772, %v4161, -inf
    %4819 = vmax.xlane.f32.xlu0 %v4818
    %v4820 = vpop.xlane.xlu0 %4819
    %v4821 = vsel %vm4772, %v4237, -inf
    %4822 = vmax.xlane.f32.xlu0 %v4821
    %v4823 = vpop.xlane.xlu0 %4822
    %v4824 = vsel %vm4772, %v4313, -inf
    %4825 = vmax.xlane.f32.xlu0 %v4824
    %v4826 = vpop.xlane.xlu0 %4825
    %v4827 = vsel %vm4772, %v4389, -inf
    %4828 = vmax.xlane.f32.xlu0 %v4827
    %v4829 = vpop.xlane.xlu0 %4828
    %v4830 = vsel %vm4772, %v4465, -inf
    %4831 = vmax.xlane.f32.xlu0 %v4830
    %v4832 = vpop.xlane.xlu0 %4831
    %v4833 = vsel %vm4772, %v4541, -inf
    %4834 = vmax.xlane.f32.xlu0 %v4833
    %v4835 = vpop.xlane.xlu0 %4834
    %v4836 = vsel %vm4772, %v4617, -inf
    %4837 = vmax.xlane.f32.xlu0 %v4836
    %v4838 = vpop.xlane.xlu0 %4837
    %v4839 = vsel %vm4772, %v4693, -inf
    %4840 = vmax.xlane.f32.xlu0 %v4839
    %v4841 = vpop.xlane.xlu0 %4840
    %v4842 = vsel %vm4772, %v4769, -inf
    %4843 = vmax.xlane.f32.xlu0 %v4842
    %v4844 = vpop.xlane.xlu0 %4843
    %v4845 = vsub.f32 %v3021, %v4775
    %v4846 = vsub.f32 %v3097, %v4778
    %v4847 = vsub.f32 %v3173, %v4781
    %v4848 = vsub.f32 %v3249, %v4784
    %v4849 = vsub.f32 %v3325, %v4787
    %v4850 = vsub.f32 %v3401, %v4790
    %v4851 = vsub.f32 %v3477, %v4793
    %v4852 = vsub.f32 %v3553, %v4796
    %v4853 = vsub.f32 %v3629, %v4799
    %v4854 = vsub.f32 %v3705, %v4802
    %v4855 = vsub.f32 %v3781, %v4805
    %v4856 = vsub.f32 %v3857, %v4808
    %v4857 = vsub.f32 %v3933, %v4811
    %v4858 = vsub.f32 %v4009, %v4814
    %v4859 = vsub.f32 %v4085, %v4817
    %v4860 = vsub.f32 %v4161, %v4820
    %v4861 = vsub.f32 %v4237, %v4823
    %v4862 = vsub.f32 %v4313, %v4826
    %v4863 = vsub.f32 %v4389, %v4829
    %v4864 = vsub.f32 %v4465, %v4832
    %v4865 = vsub.f32 %v4541, %v4835
    %v4866 = vsub.f32 %v4617, %v4838
    %v4867 = vsub.f32 %v4693, %v4841
    %v4868 = vsub.f32 %v4769, %v4844
    %v4869 = vmul.f32 %v4845, 1.442695
    %v4870 = vpow.pop %v4869
    %v4871 = vmul.f32 %v4846, 1.442695
    %v4872 = vpow.pop %v4871
    %v4873 = vmul.f32 %v4847, 1.442695
    %v4874 = vpow.pop %v4873
    %v4875 = vmul.f32 %v4848, 1.442695
    %v4876 = vpow.pop %v4875
    %v4877 = vmul.f32 %v4849, 1.442695
    %v4878 = vpow.pop %v4877
    %v4879 = vmul.f32 %v4850, 1.442695
    %v4880 = vpow.pop %v4879
    %v4881 = vmul.f32 %v4851, 1.442695
    %v4882 = vpow.pop %v4881
    %v4883 = vmul.f32 %v4852, 1.442695
    %v4884 = vpow.pop %v4883
    %v4885 = vmul.f32 %v4853, 1.442695
    %v4886 = vpow.pop %v4885
    %v4887 = vmul.f32 %v4854, 1.442695
    %v4888 = vpow.pop %v4887
    %v4889 = vmul.f32 %v4855, 1.442695
    %v4890 = vpow.pop %v4889
    %v4891 = vmul.f32 %v4856, 1.442695
    %v4892 = vpow.pop %v4891
    %v4893 = vmul.f32 %v4857, 1.442695
    %v4894 = vpow.pop %v4893
    %v4895 = vmul.f32 %v4858, 1.442695
    %v4896 = vpow.pop %v4895
    %v4897 = vmul.f32 %v4859, 1.442695
    %v4898 = vpow.pop %v4897
    %v4899 = vmul.f32 %v4860, 1.442695
    %v4900 = vpow.pop %v4899
    %v4901 = vmul.f32 %v4861, 1.442695
    %v4902 = vpow.pop %v4901
    %v4903 = vmul.f32 %v4862, 1.442695
    %v4904 = vpow.pop %v4903
    %v4905 = vmul.f32 %v4863, 1.442695
    %v4906 = vpow.pop %v4905
    %v4907 = vmul.f32 %v4864, 1.442695
    %v4908 = vpow.pop %v4907
    %v4909 = vmul.f32 %v4865, 1.442695
    %v4910 = vpow.pop %v4909
    %v4911 = vmul.f32 %v4866, 1.442695
    %v4912 = vpow.pop %v4911
    %v4913 = vmul.f32 %v4867, 1.442695
    %v4914 = vpow.pop %v4913
    %v4915 = vmul.f32 %v4868, 1.442695
    %v4916 = vpow.pop %v4915
    %v4917 = vsel %vm4772, %v4870, 0.0
    %4918 = vadd.xlane.f32.xlu0 %v4917
    %v4919 = vpop.xlane.xlu0 %4918
    %v4920 = vsel %vm4772, %v4872, 0.0
    %4921 = vadd.xlane.f32.xlu0 %v4920
    %v4922 = vpop.xlane.xlu0 %4921
    %v4923 = vsel %vm4772, %v4874, 0.0
    %4924 = vadd.xlane.f32.xlu0 %v4923
    %v4925 = vpop.xlane.xlu0 %4924
    %v4926 = vsel %vm4772, %v4876, 0.0
    %4927 = vadd.xlane.f32.xlu0 %v4926
    %v4928 = vpop.xlane.xlu0 %4927
    %v4929 = vsel %vm4772, %v4878, 0.0
    %4930 = vadd.xlane.f32.xlu0 %v4929
    %v4931 = vpop.xlane.xlu0 %4930
    %v4932 = vsel %vm4772, %v4880, 0.0
    %4933 = vadd.xlane.f32.xlu0 %v4932
    %v4934 = vpop.xlane.xlu0 %4933
    %v4935 = vsel %vm4772, %v4882, 0.0
    %4936 = vadd.xlane.f32.xlu0 %v4935
    %v4937 = vpop.xlane.xlu0 %4936
    %v4938 = vsel %vm4772, %v4884, 0.0
    %4939 = vadd.xlane.f32.xlu0 %v4938
    %v4940 = vpop.xlane.xlu0 %4939
    %v4941 = vsel %vm4772, %v4886, 0.0
    %4942 = vadd.xlane.f32.xlu0 %v4941
    %v4943 = vpop.xlane.xlu0 %4942
    %v4944 = vsel %vm4772, %v4888, 0.0
    %4945 = vadd.xlane.f32.xlu0 %v4944
    %v4946 = vpop.xlane.xlu0 %4945
    %v4947 = vsel %vm4772, %v4890, 0.0
    %4948 = vadd.xlane.f32.xlu0 %v4947
    %v4949 = vpop.xlane.xlu0 %4948
    %v4950 = vsel %vm4772, %v4892, 0.0
    %4951 = vadd.xlane.f32.xlu0 %v4950
    %v4952 = vpop.xlane.xlu0 %4951
    %v4953 = vsel %vm4772, %v4894, 0.0
    %4954 = vadd.xlane.f32.xlu0 %v4953
    %v4955 = vpop.xlane.xlu0 %4954
    %v4956 = vsel %vm4772, %v4896, 0.0
    %4957 = vadd.xlane.f32.xlu0 %v4956
    %v4958 = vpop.xlane.xlu0 %4957
    %v4959 = vsel %vm4772, %v4898, 0.0
    %4960 = vadd.xlane.f32.xlu0 %v4959
    %v4961 = vpop.xlane.xlu0 %4960
    %v4962 = vsel %vm4772, %v4900, 0.0
    %4963 = vadd.xlane.f32.xlu0 %v4962
    %v4964 = vpop.xlane.xlu0 %4963
    %v4965 = vsel %vm4772, %v4902, 0.0
    %4966 = vadd.xlane.f32.xlu0 %v4965
    %v4967 = vpop.xlane.xlu0 %4966
    %v4968 = vsel %vm4772, %v4904, 0.0
    %4969 = vadd.xlane.f32.xlu0 %v4968
    %v4970 = vpop.xlane.xlu0 %4969
    %v4971 = vsel %vm4772, %v4906, 0.0
    %4972 = vadd.xlane.f32.xlu0 %v4971
    %v4973 = vpop.xlane.xlu0 %4972
    %v4974 = vsel %vm4772, %v4908, 0.0
    %4975 = vadd.xlane.f32.xlu0 %v4974
    %v4976 = vpop.xlane.xlu0 %4975
    %v4977 = vsel %vm4772, %v4910, 0.0
    %4978 = vadd.xlane.f32.xlu0 %v4977
    %v4979 = vpop.xlane.xlu0 %4978
    %v4980 = vsel %vm4772, %v4912, 0.0
    %4981 = vadd.xlane.f32.xlu0 %v4980
    %v4982 = vpop.xlane.xlu0 %4981
    %v4983 = vsel %vm4772, %v4914, 0.0
    %4984 = vadd.xlane.f32.xlu0 %v4983
    %v4985 = vpop.xlane.xlu0 %4984
    %v4986 = vsel %vm4772, %v4916, 0.0
    %4987 = vadd.xlane.f32.xlu0 %v4986
    %v4988 = vpop.xlane.xlu0 %4987
    %v4989 = vrcp.pop %v4919
    %v4990 = vmul.f32 %v4870, %v4989
    %v4991 = vrcp.pop %v4922
    %v4992 = vmul.f32 %v4872, %v4991
    %v4993 = vrcp.pop %v4925
    %v4994 = vmul.f32 %v4874, %v4993
    %v4995 = vrcp.pop %v4928
    %v4996 = vmul.f32 %v4876, %v4995
    %v4997 = vrcp.pop %v4931
    %v4998 = vmul.f32 %v4878, %v4997
    %v4999 = vrcp.pop %v4934
    %v5000 = vmul.f32 %v4880, %v4999
    %v5001 = vrcp.pop %v4937
    %v5002 = vmul.f32 %v4882, %v5001
    %v5003 = vrcp.pop %v4940
    %v5004 = vmul.f32 %v4884, %v5003
    %v5005 = vrcp.pop %v4943
    %v5006 = vmul.f32 %v4886, %v5005
    %v5007 = vrcp.pop %v4946
    %v5008 = vmul.f32 %v4888, %v5007
    %v5009 = vrcp.pop %v4949
    %v5010 = vmul.f32 %v4890, %v5009
    %v5011 = vrcp.pop %v4952
    %v5012 = vmul.f32 %v4892, %v5011
    %v5013 = vrcp.pop %v4955
    %v5014 = vmul.f32 %v4894, %v5013
    %v5015 = vrcp.pop %v4958
    %v5016 = vmul.f32 %v4896, %v5015
    %v5017 = vrcp.pop %v4961
    %v5018 = vmul.f32 %v4898, %v5017
    %v5019 = vrcp.pop %v4964
    %v5020 = vmul.f32 %v4900, %v5019
    %v5021 = vrcp.pop %v4967
    %v5022 = vmul.f32 %v4902, %v5021
    %v5023 = vrcp.pop %v4970
    %v5024 = vmul.f32 %v4904, %v5023
    %v5025 = vrcp.pop %v4973
    %v5026 = vmul.f32 %v4906, %v5025
    %v5027 = vrcp.pop %v4976
    %v5028 = vmul.f32 %v4908, %v5027
    %v5029 = vrcp.pop %v4979
    %v5030 = vmul.f32 %v4910, %v5029
    %v5031 = vrcp.pop %v4982
    %v5032 = vmul.f32 %v4912, %v5031
    %v5033 = vrcp.pop %v4985
    %v5034 = vmul.f32 %v4914, %v5033
    %v5035 = vrcp.pop %v4988
    %v5036 = vmul.f32 %v4916, %v5035
    %v5038 = vsel %vm2946, %v4990, 0
    %v5041 = vsel %vm2950, %v2668, 0
    %5043 = vmatprep.subr.mxu0 0.0
    %5044 = vmatpush1.msra.mxu0 %v5041
    %5045 = vmatprep.subr.mxu0 0.0
    %5046 = vmatpush1.msra.mxu0 0.0
    %5047 = vmatprep.subr.mxu0 0.0
    %5048 = vmatpush1.msra.mxu0 0.0
    %5049 = vmatprep.subr.mxu0 0.0
    %5050 = vmatpush1.msra.mxu0 0.0
    %5051 = vmatprep.subr.mxu0 0.0
    %5052 = vmatpush1.msra.mxu0 0.0
    %5053 = vmatprep.subr.mxu0 0.0
    %5054 = vmatpush1.msra.mxu0 0.0
    %5055 = vmatprep.subr.mxu0 0.0
    %5056 = vmatpush1.msra.mxu0 0.0
    %5057 = vmatprep.subr.mxu0 0.0
    %5058 = vmatpush1.msra.mxu0 0.0
    %5059 = vmatprep.subr.mxu0 0.0
    %5060 = vmatpush1.msra.mxu0 0.0
    %5061 = vmatprep.subr.mxu0 0.0
    %5062 = vmatpush1.msra.mxu0 0.0
    %5063 = vmatprep.subr.mxu0 0.0
    %5064 = vmatpush1.msra.mxu0 0.0
    %5065 = vmatprep.subr.mxu0 0.0
    %5066 = vmatpush1.msra.mxu0 0.0
    %5067 = vmatprep.subr.mxu0 0.0
    %5068 = vmatpush1.msra.mxu0 0.0
    %5069 = vmatprep.subr.mxu0 0.0
    %5070 = vmatpush1.msra.mxu0 0.0
    %5071 = vmatprep.subr.mxu0 0.0
    %5072 = vmatpush1.msra.mxu0 0.0
    %5073 = vmatprep.subr.mxu0 0.0
    %5074 = vmatpush1.msra.mxu0 0.0
    %5075 = vmatprep.subr.mxu0 0.0
    %5076 = vmatpush1.msra.mxu0 0.0
    %5077 = vmatprep.subr.mxu0 0.0
    %5078 = vmatpush1.msra.mxu0 0.0
    %5079 = vmatprep.subr.mxu0 0.0
    %5080 = vmatpush1.msra.mxu0 0.0
    %5081 = vmatprep.subr.mxu0 0.0
    %5082 = vmatpush1.msra.mxu0 0.0
    %5083 = vmatprep.subr.mxu0 0.0
    %5084 = vmatpush1.msra.mxu0 0.0
    %5085 = vmatprep.subr.mxu0 0.0
    %5086 = vmatpush1.msra.mxu0 0.0
    %5087 = vmatprep.subr.mxu0 0.0
    %5088 = vmatpush1.msra.mxu0 0.0
    %5089 = vmatprep.subr.mxu0 0.0
    %5090 = vmatpush1.msra.mxu0 0.0
    %5091 = vmatprep.subr.mxu0 0.0
    %5092 = vmatpush1.msra.mxu0 0.0
    %5093 = vmatprep.subr.mxu0 0.0
    %5094 = vmatpush1.msra.mxu0 0.0
    %5095 = vmatprep.subr.mxu0 0.0
    %5096 = vmatpush1.msra.mxu0 0.0
    %5097 = vmatprep.subr.mxu0 0.0
    %5098 = vmatpush1.msra.mxu0 0.0
    %5099 = vmatprep.subr.mxu0 0.0
    %5100 = vmatpush1.msra.mxu0 0.0
    %5101 = vmatprep.subr.mxu0 0.0
    %5102 = vmatpush1.msra.mxu0 0.0
    %5103 = vmatprep.subr.mxu0 0.0
    %5104 = vmatpush1.msra.mxu0 0.0
    %5105 = vmatprep.subr.mxu0 0.0
    %5106 = vmatpush1.msra.mxu0 0.0
    %5107 = vmatprep.mubr.f32.mxu0 0.0
    %5108 = vmatmul.mubr.f32.gmra.mrb[0].mxu0 %v5038
    %v5109 = vpop.f32.mrb[0].mxu0
    %v5110 = vadd.f32 0.0, %v5109
    %v5111 = vpop.f32.mrb[0].mxu0
    %5112 = vdwg.mxu0
    %v5114 = vsel %vm2946, %v4992, 0
    %v5117 = vsel %vm2950, %v2669, 0
    %5119 = vmatprep.subr.mxu0 0.0
    %5120 = vmatpush1.msra.mxu0 %v5117
    %5121 = vmatprep.subr.mxu0 0.0
    %5122 = vmatpush1.msra.mxu0 0.0
    %5123 = vmatprep.subr.mxu0 0.0
    %5124 = vmatpush1.msra.mxu0 0.0
    %5125 = vmatprep.subr.mxu0 0.0
    %5126 = vmatpush1.msra.mxu0 0.0
    %5127 = vmatprep.subr.mxu0 0.0
    %5128 = vmatpush1.msra.mxu0 0.0
    %5129 = vmatprep.subr.mxu0 0.0
    %5130 = vmatpush1.msra.mxu0 0.0
    %5131 = vmatprep.subr.mxu0 0.0
    %5132 = vmatpush1.msra.mxu0 0.0
    %5133 = vmatprep.subr.mxu0 0.0
    %5134 = vmatpush1.msra.mxu0 0.0
    %5135 = vmatprep.subr.mxu0 0.0
    %5136 = vmatpush1.msra.mxu0 0.0
    %5137 = vmatprep.subr.mxu0 0.0
    %5138 = vmatpush1.msra.mxu0 0.0
    %5139 = vmatprep.subr.mxu0 0.0
    %5140 = vmatpush1.msra.mxu0 0.0
    %5141 = vmatprep.subr.mxu0 0.0
    %5142 = vmatpush1.msra.mxu0 0.0
    %5143 = vmatprep.subr.mxu0 0.0
    %5144 = vmatpush1.msra.mxu0 0.0
    %5145 = vmatprep.subr.mxu0 0.0
    %5146 = vmatpush1.msra.mxu0 0.0
    %5147 = vmatprep.subr.mxu0 0.0
    %5148 = vmatpush1.msra.mxu0 0.0
    %5149 = vmatprep.subr.mxu0 0.0
    %5150 = vmatpush1.msra.mxu0 0.0
    %5151 = vmatprep.subr.mxu0 0.0
    %5152 = vmatpush1.msra.mxu0 0.0
    %5153 = vmatprep.subr.mxu0 0.0
    %5154 = vmatpush1.msra.mxu0 0.0
    %5155 = vmatprep.subr.mxu0 0.0
    %5156 = vmatpush1.msra.mxu0 0.0
    %5157 = vmatprep.subr.mxu0 0.0
    %5158 = vmatpush1.msra.mxu0 0.0
    %5159 = vmatprep.subr.mxu0 0.0
    %5160 = vmatpush1.msra.mxu0 0.0
    %5161 = vmatprep.subr.mxu0 0.0
    %5162 = vmatpush1.msra.mxu0 0.0
    %5163 = vmatprep.subr.mxu0 0.0
    %5164 = vmatpush1.msra.mxu0 0.0
    %5165 = vmatprep.subr.mxu0 0.0
    %5166 = vmatpush1.msra.mxu0 0.0
    %5167 = vmatprep.subr.mxu0 0.0
    %5168 = vmatpush1.msra.mxu0 0.0
    %5169 = vmatprep.subr.mxu0 0.0
    %5170 = vmatpush1.msra.mxu0 0.0
    %5171 = vmatprep.subr.mxu0 0.0
    %5172 = vmatpush1.msra.mxu0 0.0
    %5173 = vmatprep.subr.mxu0 0.0
    %5174 = vmatpush1.msra.mxu0 0.0
    %5175 = vmatprep.subr.mxu0 0.0
    %5176 = vmatpush1.msra.mxu0 0.0
    %5177 = vmatprep.subr.mxu0 0.0
    %5178 = vmatpush1.msra.mxu0 0.0
    %5179 = vmatprep.subr.mxu0 0.0
    %5180 = vmatpush1.msra.mxu0 0.0
    %5181 = vmatprep.subr.mxu0 0.0
    %5182 = vmatpush1.msra.mxu0 0.0
    %5183 = vmatprep.mubr.f32.mxu0 0.0
    %5184 = vmatmul.mubr.f32.gmra.mrb[0].mxu0 %v5114
    %v5185 = vpop.f32.mrb[0].mxu0
    %v5186 = vadd.f32 0.0, %v5185
    %v5187 = vpop.f32.mrb[0].mxu0
    %5188 = vdwg.mxu0
    %v5190 = vsel %vm2946, %v4994, 0
    %v5193 = vsel %vm2950, %v2670, 0
    %5195 = vmatprep.subr.mxu0 0.0
    %5196 = vmatpush1.msra.mxu0 %v5193
    %5197 = vmatprep.subr.mxu0 0.0
    %5198 = vmatpush1.msra.mxu0 0.0
    %5199 = vmatprep.subr.mxu0 0.0
    %5200 = vmatpush1.msra.mxu0 0.0
    %5201 = vmatprep.subr.mxu0 0.0
    %5202 = vmatpush1.msra.mxu0 0.0
    %5203 = vmatprep.subr.mxu0 0.0
    %5204 = vmatpush1.msra.mxu0 0.0
    %5205 = vmatprep.subr.mxu0 0.0
    %5206 = vmatpush1.msra.mxu0 0.0
    %5207 = vmatprep.subr.mxu0 0.0
    %5208 = vmatpush1.msra.mxu0 0.0
    %5209 = vmatprep.subr.mxu0 0.0
    %5210 = vmatpush1.msra.mxu0 0.0
    %5211 = vmatprep.subr.mxu0 0.0
    %5212 = vmatpush1.msra.mxu0 0.0
    %5213 = vmatprep.subr.mxu0 0.0
    %5214 = vmatpush1.msra.mxu0 0.0
    %5215 = vmatprep.subr.mxu0 0.0
    %5216 = vmatpush1.msra.mxu0 0.0
    %5217 = vmatprep.subr.mxu0 0.0
    %5218 = vmatpush1.msra.mxu0 0.0
    %5219 = vmatprep.subr.mxu0 0.0
    %5220 = vmatpush1.msra.mxu0 0.0
    %5221 = vmatprep.subr.mxu0 0.0
    %5222 = vmatpush1.msra.mxu0 0.0
    %5223 = vmatprep.subr.mxu0 0.0
    %5224 = vmatpush1.msra.mxu0 0.0
    %5225 = vmatprep.subr.mxu0 0.0
    %5226 = vmatpush1.msra.mxu0 0.0
    %5227 = vmatprep.subr.mxu0 0.0
    %5228 = vmatpush1.msra.mxu0 0.0
    %5229 = vmatprep.subr.mxu0 0.0
    %5230 = vmatpush1.msra.mxu0 0.0
    %5231 = vmatprep.subr.mxu0 0.0
    %5232 = vmatpush1.msra.mxu0 0.0
    %5233 = vmatprep.subr.mxu0 0.0
    %5234 = vmatpush1.msra.mxu0 0.0
    %5235 = vmatprep.subr.mxu0 0.0
    %5236 = vmatpush1.msra.mxu0 0.0
    %5237 = vmatprep.subr.mxu0 0.0
    %5238 = vmatpush1.msra.mxu0 0.0
    %5239 = vmatprep.subr.mxu0 0.0
    %5240 = vmatpush1.msra.mxu0 0.0
    %5241 = vmatprep.subr.mxu0 0.0
    %5242 = vmatpush1.msra.mxu0 0.0
    %5243 = vmatprep.subr.mxu0 0.0
    %5244 = vmatpush1.msra.mxu0 0.0
    %5245 = vmatprep.subr.mxu0 0.0
    %5246 = vmatpush1.msra.mxu0 0.0
    %5247 = vmatprep.subr.mxu0 0.0
    %5248 = vmatpush1.msra.mxu0 0.0
    %5249 = vmatprep.subr.mxu0 0.0
    %5250 = vmatpush1.msra.mxu0 0.0
    %5251 = vmatprep.subr.mxu0 0.0
    %5252 = vmatpush1.msra.mxu0 0.0
    %5253 = vmatprep.subr.mxu0 0.0
    %5254 = vmatpush1.msra.mxu0 0.0
    %5255 = vmatprep.subr.mxu0 0.0
    %5256 = vmatpush1.msra.mxu0 0.0
    %5257 = vmatprep.subr.mxu0 0.0
    %5258 = vmatpush1.msra.mxu0 0.0
    %5259 = vmatprep.mubr.f32.mxu0 0.0
    %5260 = vmatmul.mubr.f32.gmra.mrb[0].mxu0 %v5190
    %v5261 = vpop.f32.mrb[0].mxu0
    %v5262 = vadd.f32 0.0, %v5261
    %v5263 = vpop.f32.mrb[0].mxu0
    %5264 = vdwg.mxu0
    %v5266 = vsel %vm2946, %v4996, 0
    %v5269 = vsel %vm2950, %v2671, 0
    %5271 = vmatprep.subr.mxu0 0.0
    %5272 = vmatpush1.msra.mxu0 %v5269
    %5273 = vmatprep.subr.mxu0 0.0
    %5274 = vmatpush1.msra.mxu0 0.0
    %5275 = vmatprep.subr.mxu0 0.0
    %5276 = vmatpush1.msra.mxu0 0.0
    %5277 = vmatprep.subr.mxu0 0.0
    %5278 = vmatpush1.msra.mxu0 0.0
    %5279 = vmatprep.subr.mxu0 0.0
    %5280 = vmatpush1.msra.mxu0 0.0
    %5281 = vmatprep.subr.mxu0 0.0
    %5282 = vmatpush1.msra.mxu0 0.0
    %5283 = vmatprep.subr.mxu0 0.0
    %5284 = vmatpush1.msra.mxu0 0.0
    %5285 = vmatprep.subr.mxu0 0.0
    %5286 = vmatpush1.msra.mxu0 0.0
    %5287 = vmatprep.subr.mxu0 0.0
    %5288 = vmatpush1.msra.mxu0 0.0
    %5289 = vmatprep.subr.mxu0 0.0
    %5290 = vmatpush1.msra.mxu0 0.0
    %5291 = vmatprep.subr.mxu0 0.0
    %5292 = vmatpush1.msra.mxu0 0.0
    %5293 = vmatprep.subr.mxu0 0.0
    %5294 = vmatpush1.msra.mxu0 0.0
    %5295 = vmatprep.subr.mxu0 0.0
    %5296 = vmatpush1.msra.mxu0 0.0
    %5297 = vmatprep.subr.mxu0 0.0
    %5298 = vmatpush1.msra.mxu0 0.0
    %5299 = vmatprep.subr.mxu0 0.0
    %5300 = vmatpush1.msra.mxu0 0.0
    %5301 = vmatprep.subr.mxu0 0.0
    %5302 = vmatpush1.msra.mxu0 0.0
    %5303 = vmatprep.subr.mxu0 0.0
    %5304 = vmatpush1.msra.mxu0 0.0
    %5305 = vmatprep.subr.mxu0 0.0
    %5306 = vmatpush1.msra.mxu0 0.0
    %5307 = vmatprep.subr.mxu0 0.0
    %5308 = vmatpush1.msra.mxu0 0.0
    %5309 = vmatprep.subr.mxu0 0.0
    %5310 = vmatpush1.msra.mxu0 0.0
    %5311 = vmatprep.subr.mxu0 0.0
    %5312 = vmatpush1.msra.mxu0 0.0
    %5313 = vmatprep.subr.mxu0 0.0
    %5314 = vmatpush1.msra.mxu0 0.0
    %5315 = vmatprep.subr.mxu0 0.0
    %5316 = vmatpush1.msra.mxu0 0.0
    %5317 = vmatprep.subr.mxu0 0.0
    %5318 = vmatpush1.msra.mxu0 0.0
    %5319 = vmatprep.subr.mxu0 0.0
    %5320 = vmatpush1.msra.mxu0 0.0
    %5321 = vmatprep.subr.mxu0 0.0
    %5322 = vmatpush1.msra.mxu0 0.0
    %5323 = vmatprep.subr.mxu0 0.0
    %5324 = vmatpush1.msra.mxu0 0.0
    %5325 = vmatprep.subr.mxu0 0.0
    %5326 = vmatpush1.msra.mxu0 0.0
    %5327 = vmatprep.subr.mxu0 0.0
    %5328 = vmatpush1.msra.mxu0 0.0
    %5329 = vmatprep.subr.mxu0 0.0
    %5330 = vmatpush1.msra.mxu0 0.0
    %5331 = vmatprep.subr.mxu0 0.0
    %5332 = vmatpush1.msra.mxu0 0.0
    %5333 = vmatprep.subr.mxu0 0.0
    %5334 = vmatpush1.msra.mxu0 0.0
    %5335 = vmatprep.mubr.f32.mxu0 0.0
    %5336 = vmatmul.mubr.f32.gmra.mrb[0].mxu0 %v5266
    %v5337 = vpop.f32.mrb[0].mxu0
    %v5338 = vadd.f32 0.0, %v5337
    %v5339 = vpop.f32.mrb[0].mxu0
    %5340 = vdwg.mxu0
    %v5342 = vsel %vm2946, %v4998, 0
    %v5345 = vsel %vm2950, %v2672, 0
    %5347 = vmatprep.subr.mxu0 0.0
    %5348 = vmatpush1.msra.mxu0 %v5345
    %5349 = vmatprep.subr.mxu0 0.0
    %5350 = vmatpush1.msra.mxu0 0.0
    %5351 = vmatprep.subr.mxu0 0.0
    %5352 = vmatpush1.msra.mxu0 0.0
    %5353 = vmatprep.subr.mxu0 0.0
    %5354 = vmatpush1.msra.mxu0 0.0
    %5355 = vmatprep.subr.mxu0 0.0
    %5356 = vmatpush1.msra.mxu0 0.0
    %5357 = vmatprep.subr.mxu0 0.0
    %5358 = vmatpush1.msra.mxu0 0.0
    %5359 = vmatprep.subr.mxu0 0.0
    %5360 = vmatpush1.msra.mxu0 0.0
    %5361 = vmatprep.subr.mxu0 0.0
    %5362 = vmatpush1.msra.mxu0 0.0
    %5363 = vmatprep.subr.mxu0 0.0
    %5364 = vmatpush1.msra.mxu0 0.0
    %5365 = vmatprep.subr.mxu0 0.0
    %5366 = vmatpush1.msra.mxu0 0.0
    %5367 = vmatprep.subr.mxu0 0.0
    %5368 = vmatpush1.msra.mxu0 0.0
    %5369 = vmatprep.subr.mxu0 0.0
    %5370 = vmatpush1.msra.mxu0 0.0
    %5371 = vmatprep.subr.mxu0 0.0
    %5372 = vmatpush1.msra.mxu0 0.0
    %5373 = vmatprep.subr.mxu0 0.0
    %5374 = vmatpush1.msra.mxu0 0.0
    %5375 = vmatprep.subr.mxu0 0.0
    %5376 = vmatpush1.msra.mxu0 0.0
    %5377 = vmatprep.subr.mxu0 0.0
    %5378 = vmatpush1.msra.mxu0 0.0
    %5379 = vmatprep.subr.mxu0 0.0
    %5380 = vmatpush1.msra.mxu0 0.0
    %5381 = vmatprep.subr.mxu0 0.0
    %5382 = vmatpush1.msra.mxu0 0.0
    %5383 = vmatprep.subr.mxu0 0.0
    %5384 = vmatpush1.msra.mxu0 0.0
    %5385 = vmatprep.subr.mxu0 0.0
    %5386 = vmatpush1.msra.mxu0 0.0
    %5387 = vmatprep.subr.mxu0 0.0
    %5388 = vmatpush1.msra.mxu0 0.0
    %5389 = vmatprep.subr.mxu0 0.0
    %5390 = vmatpush1.msra.mxu0 0.0
    %5391 = vmatprep.subr.mxu0 0.0
    %5392 = vmatpush1.msra.mxu0 0.0
    %5393 = vmatprep.subr.mxu0 0.0
    %5394 = vmatpush1.msra.mxu0 0.0
    %5395 = vmatprep.subr.mxu0 0.0
    %5396 = vmatpush1.msra.mxu0 0.0
    %5397 = vmatprep.subr.mxu0 0.0
    %5398 = vmatpush1.msra.mxu0 0.0
    %5399 = vmatprep.subr.mxu0 0.0
    %5400 = vmatpush1.msra.mxu0 0.0
    %5401 = vmatprep.subr.mxu0 0.0
    %5402 = vmatpush1.msra.mxu0 0.0
    %5403 = vmatprep.subr.mxu0 0.0
    %5404 = vmatpush1.msra.mxu0 0.0
    %5405 = vmatprep.subr.mxu0 0.0
    %5406 = vmatpush1.msra.mxu0 0.0
    %5407 = vmatprep.subr.mxu0 0.0
    %5408 = vmatpush1.msra.mxu0 0.0
    %5409 = vmatprep.subr.mxu0 0.0
    %5410 = vmatpush1.msra.mxu0 0.0
    %5411 = vmatprep.mubr.f32.mxu0 0.0
    %5412 = vmatmul.mubr.f32.gmra.mrb[0].mxu0 %v5342
    %v5413 = vpop.f32.mrb[0].mxu0
    %v5414 = vadd.f32 0.0, %v5413
    %v5415 = vpop.f32.mrb[0].mxu0
    %5416 = vdwg.mxu0
    %v5418 = vsel %vm2946, %v5000, 0
    %v5421 = vsel %vm2950, %v2673, 0
    %5423 = vmatprep.subr.mxu0 0.0
    %5424 = vmatpush1.msra.mxu0 %v5421
    %5425 = vmatprep.subr.mxu0 0.0
    %5426 = vmatpush1.msra.mxu0 0.0
    %5427 = vmatprep.subr.mxu0 0.0
    %5428 = vmatpush1.msra.mxu0 0.0
    %5429 = vmatprep.subr.mxu0 0.0
    %5430 = vmatpush1.msra.mxu0 0.0
    %5431 = vmatprep.subr.mxu0 0.0
    %5432 = vmatpush1.msra.mxu0 0.0
    %5433 = vmatprep.subr.mxu0 0.0
    %5434 = vmatpush1.msra.mxu0 0.0
    %5435 = vmatprep.subr.mxu0 0.0
    %5436 = vmatpush1.msra.mxu0 0.0
    %5437 = vmatprep.subr.mxu0 0.0
    %5438 = vmatpush1.msra.mxu0 0.0
    %5439 = vmatprep.subr.mxu0 0.0
    %5440 = vmatpush1.msra.mxu0 0.0
    %5441 = vmatprep.subr.mxu0 0.0
    %5442 = vmatpush1.msra.mxu0 0.0
    %5443 = vmatprep.subr.mxu0 0.0
    %5444 = vmatpush1.msra.mxu0 0.0
    %5445 = vmatprep.subr.mxu0 0.0
    %5446 = vmatpush1.msra.mxu0 0.0
    %5447 = vmatprep.subr.mxu0 0.0
    %5448 = vmatpush1.msra.mxu0 0.0
    %5449 = vmatprep.subr.mxu0 0.0
    %5450 = vmatpush1.msra.mxu0 0.0
    %5451 = vmatprep.subr.mxu0 0.0
    %5452 = vmatpush1.msra.mxu0 0.0
    %5453 = vmatprep.subr.mxu0 0.0
    %5454 = vmatpush1.msra.mxu0 0.0
    %5455 = vmatprep.subr.mxu0 0.0
    %5456 = vmatpush1.msra.mxu0 0.0
    %5457 = vmatprep.subr.mxu0 0.0
    %5458 = vmatpush1.msra.mxu0 0.0
    %5459 = vmatprep.subr.mxu0 0.0
    %5460 = vmatpush1.msra.mxu0 0.0
    %5461 = vmatprep.subr.mxu0 0.0
    %5462 = vmatpush1.msra.mxu0 0.0
    %5463 = vmatprep.subr.mxu0 0.0
    %5464 = vmatpush1.msra.mxu0 0.0
    %5465 = vmatprep.subr.mxu0 0.0
    %5466 = vmatpush1.msra.mxu0 0.0
    %5467 = vmatprep.subr.mxu0 0.0
    %5468 = vmatpush1.msra.mxu0 0.0
    %5469 = vmatprep.subr.mxu0 0.0
    %5470 = vmatpush1.msra.mxu0 0.0
    %5471 = vmatprep.subr.mxu0 0.0
    %5472 = vmatpush1.msra.mxu0 0.0
    %5473 = vmatprep.subr.mxu0 0.0
    %5474 = vmatpush1.msra.mxu0 0.0
    %5475 = vmatprep.subr.mxu0 0.0
    %5476 = vmatpush1.msra.mxu0 0.0
    %5477 = vmatprep.subr.mxu0 0.0
    %5478 = vmatpush1.msra.mxu0 0.0
    %5479 = vmatprep.subr.mxu0 0.0
    %5480 = vmatpush1.msra.mxu0 0.0
    %5481 = vmatprep.subr.mxu0 0.0
    %5482 = vmatpush1.msra.mxu0 0.0
    %5483 = vmatprep.subr.mxu0 0.0
    %5484 = vmatpush1.msra.mxu0 0.0
    %5485 = vmatprep.subr.mxu0 0.0
    %5486 = vmatpush1.msra.mxu0 0.0
    %5487 = vmatprep.mubr.f32.mxu0 0.0
    %5488 = vmatmul.mubr.f32.gmra.mrb[0].mxu0 %v5418
    %v5489 = vpop.f32.mrb[0].mxu0
    %v5490 = vadd.f32 0.0, %v5489
    %v5491 = vpop.f32.mrb[0].mxu0
    %5492 = vdwg.mxu0
    %v5494 = vsel %vm2946, %v5002, 0
    %v5497 = vsel %vm2950, %v2674, 0
    %5499 = vmatprep.subr.mxu0 0.0
    %5500 = vmatpush1.msra.mxu0 %v5497
    %5501 = vmatprep.subr.mxu0 0.0
    %5502 = vmatpush1.msra.mxu0 0.0
    %5503 = vmatprep.subr.mxu0 0.0
    %5504 = vmatpush1.msra.mxu0 0.0
    %5505 = vmatprep.subr.mxu0 0.0
    %5506 = vmatpush1.msra.mxu0 0.0
    %5507 = vmatprep.subr.mxu0 0.0
    %5508 = vmatpush1.msra.mxu0 0.0
    %5509 = vmatprep.subr.mxu0 0.0
    %5510 = vmatpush1.msra.mxu0 0.0
    %5511 = vmatprep.subr.mxu0 0.0
    %5512 = vmatpush1.msra.mxu0 0.0
    %5513 = vmatprep.subr.mxu0 0.0
    %5514 = vmatpush1.msra.mxu0 0.0
    %5515 = vmatprep.subr.mxu0 0.0
    %5516 = vmatpush1.msra.mxu0 0.0
    %5517 = vmatprep.subr.mxu0 0.0
    %5518 = vmatpush1.msra.mxu0 0.0
    %5519 = vmatprep.subr.mxu0 0.0
    %5520 = vmatpush1.msra.mxu0 0.0
    %5521 = vmatprep.subr.mxu0 0.0
    %5522 = vmatpush1.msra.mxu0 0.0
    %5523 = vmatprep.subr.mxu0 0.0
    %5524 = vmatpush1.msra.mxu0 0.0
    %5525 = vmatprep.subr.mxu0 0.0
    %5526 = vmatpush1.msra.mxu0 0.0
    %5527 = vmatprep.subr.mxu0 0.0
    %5528 = vmatpush1.msra.mxu0 0.0
    %5529 = vmatprep.subr.mxu0 0.0
    %5530 = vmatpush1.msra.mxu0 0.0
    %5531 = vmatprep.subr.mxu0 0.0
    %5532 = vmatpush1.msra.mxu0 0.0
    %5533 = vmatprep.subr.mxu0 0.0
    %5534 = vmatpush1.msra.mxu0 0.0
    %5535 = vmatprep.subr.mxu0 0.0
    %5536 = vmatpush1.msra.mxu0 0.0
    %5537 = vmatprep.subr.mxu0 0.0
    %5538 = vmatpush1.msra.mxu0 0.0
    %5539 = vmatprep.subr.mxu0 0.0
    %5540 = vmatpush1.msra.mxu0 0.0
    %5541 = vmatprep.subr.mxu0 0.0
    %5542 = vmatpush1.msra.mxu0 0.0
    %5543 = vmatprep.subr.mxu0 0.0
    %5544 = vmatpush1.msra.mxu0 0.0
    %5545 = vmatprep.subr.mxu0 0.0
    %5546 = vmatpush1.msra.mxu0 0.0
    %5547 = vmatprep.subr.mxu0 0.0
    %5548 = vmatpush1.msra.mxu0 0.0
    %5549 = vmatprep.subr.mxu0 0.0
    %5550 = vmatpush1.msra.mxu0 0.0
    %5551 = vmatprep.subr.mxu0 0.0
    %5552 = vmatpush1.msra.mxu0 0.0
    %5553 = vmatprep.subr.mxu0 0.0
    %5554 = vmatpush1.msra.mxu0 0.0
    %5555 = vmatprep.subr.mxu0 0.0
    %5556 = vmatpush1.msra.mxu0 0.0
    %5557 = vmatprep.subr.mxu0 0.0
    %5558 = vmatpush1.msra.mxu0 0.0
    %5559 = vmatprep.subr.mxu0 0.0
    %5560 = vmatpush1.msra.mxu0 0.0
    %5561 = vmatprep.subr.mxu0 0.0
    %5562 = vmatpush1.msra.mxu0 0.0
    %5563 = vmatprep.mubr.f32.mxu0 0.0
    %5564 = vmatmul.mubr.f32.gmra.mrb[0].mxu0 %v5494
    %v5565 = vpop.f32.mrb[0].mxu0
    %v5566 = vadd.f32 0.0, %v5565
    %v5567 = vpop.f32.mrb[0].mxu0
    %5568 = vdwg.mxu0
    %v5570 = vsel %vm2946, %v5004, 0
    %v5573 = vsel %vm2950, %v2675, 0
    %5575 = vmatprep.subr.mxu0 0.0
    %5576 = vmatpush1.msra.mxu0 %v5573
    %5577 = vmatprep.subr.mxu0 0.0
    %5578 = vmatpush1.msra.mxu0 0.0
    %5579 = vmatprep.subr.mxu0 0.0
    %5580 = vmatpush1.msra.mxu0 0.0
    %5581 = vmatprep.subr.mxu0 0.0
    %5582 = vmatpush1.msra.mxu0 0.0
    %5583 = vmatprep.subr.mxu0 0.0
    %5584 = vmatpush1.msra.mxu0 0.0
    %5585 = vmatprep.subr.mxu0 0.0
    %5586 = vmatpush1.msra.mxu0 0.0
    %5587 = vmatprep.subr.mxu0 0.0
    %5588 = vmatpush1.msra.mxu0 0.0
    %5589 = vmatprep.subr.mxu0 0.0
    %5590 = vmatpush1.msra.mxu0 0.0
    %5591 = vmatprep.subr.mxu0 0.0
    %5592 = vmatpush1.msra.mxu0 0.0
    %5593 = vmatprep.subr.mxu0 0.0
    %5594 = vmatpush1.msra.mxu0 0.0
    %5595 = vmatprep.subr.mxu0 0.0
    %5596 = vmatpush1.msra.mxu0 0.0
    %5597 = vmatprep.subr.mxu0 0.0
    %5598 = vmatpush1.msra.mxu0 0.0
    %5599 = vmatprep.subr.mxu0 0.0
    %5600 = vmatpush1.msra.mxu0 0.0
    %5601 = vmatprep.subr.mxu0 0.0
    %5602 = vmatpush1.msra.mxu0 0.0
    %5603 = vmatprep.subr.mxu0 0.0
    %5604 = vmatpush1.msra.mxu0 0.0
    %5605 = vmatprep.subr.mxu0 0.0
    %5606 = vmatpush1.msra.mxu0 0.0
    %5607 = vmatprep.subr.mxu0 0.0
    %5608 = vmatpush1.msra.mxu0 0.0
    %5609 = vmatprep.subr.mxu0 0.0
    %5610 = vmatpush1.msra.mxu0 0.0
    %5611 = vmatprep.subr.mxu0 0.0
    %5612 = vmatpush1.msra.mxu0 0.0
    %5613 = vmatprep.subr.mxu0 0.0
    %5614 = vmatpush1.msra.mxu0 0.0
    %5615 = vmatprep.subr.mxu0 0.0
    %5616 = vmatpush1.msra.mxu0 0.0
    %5617 = vmatprep.subr.mxu0 0.0
    %5618 = vmatpush1.msra.mxu0 0.0
    %5619 = vmatprep.subr.mxu0 0.0
    %5620 = vmatpush1.msra.mxu0 0.0
    %5621 = vmatprep.subr.mxu0 0.0
    %5622 = vmatpush1.msra.mxu0 0.0
    %5623 = vmatprep.subr.mxu0 0.0
    %5624 = vmatpush1.msra.mxu0 0.0
    %5625 = vmatprep.subr.mxu0 0.0
    %5626 = vmatpush1.msra.mxu0 0.0
    %5627 = vmatprep.subr.mxu0 0.0
    %5628 = vmatpush1.msra.mxu0 0.0
    %5629 = vmatprep.subr.mxu0 0.0
    %5630 = vmatpush1.msra.mxu0 0.0
    %5631 = vmatprep.subr.mxu0 0.0
    %5632 = vmatpush1.msra.mxu0 0.0
    %5633 = vmatprep.subr.mxu0 0.0
    %5634 = vmatpush1.msra.mxu0 0.0
    %5635 = vmatprep.subr.mxu0 0.0
    %5636 = vmatpush1.msra.mxu0 0.0
    %5637 = vmatprep.subr.mxu0 0.0
    %5638 = vmatpush1.msra.mxu0 0.0
    %5639 = vmatprep.mubr.f32.mxu0 0.0
    %5640 = vmatmul.mubr.f32.gmra.mrb[0].mxu0 %v5570
    %v5641 = vpop.f32.mrb[0].mxu0
    %v5642 = vadd.f32 0.0, %v5641
    %v5643 = vpop.f32.mrb[0].mxu0
    %5644 = vdwg.mxu0
    %v5646 = vsel %vm2946, %v5006, 0
    %v5649 = vsel %vm2950, %v2740, 0
    %5651 = vmatprep.subr.mxu0 0.0
    %5652 = vmatpush1.msra.mxu0 %v5649
    %5653 = vmatprep.subr.mxu0 0.0
    %5654 = vmatpush1.msra.mxu0 0.0
    %5655 = vmatprep.subr.mxu0 0.0
    %5656 = vmatpush1.msra.mxu0 0.0
    %5657 = vmatprep.subr.mxu0 0.0
    %5658 = vmatpush1.msra.mxu0 0.0
    %5659 = vmatprep.subr.mxu0 0.0
    %5660 = vmatpush1.msra.mxu0 0.0
    %5661 = vmatprep.subr.mxu0 0.0
    %5662 = vmatpush1.msra.mxu0 0.0
    %5663 = vmatprep.subr.mxu0 0.0
    %5664 = vmatpush1.msra.mxu0 0.0
    %5665 = vmatprep.subr.mxu0 0.0
    %5666 = vmatpush1.msra.mxu0 0.0
    %5667 = vmatprep.subr.mxu0 0.0
    %5668 = vmatpush1.msra.mxu0 0.0
    %5669 = vmatprep.subr.mxu0 0.0
    %5670 = vmatpush1.msra.mxu0 0.0
    %5671 = vmatprep.subr.mxu0 0.0
    %5672 = vmatpush1.msra.mxu0 0.0
    %5673 = vmatprep.subr.mxu0 0.0
    %5674 = vmatpush1.msra.mxu0 0.0
    %5675 = vmatprep.subr.mxu0 0.0
    %5676 = vmatpush1.msra.mxu0 0.0
    %5677 = vmatprep.subr.mxu0 0.0
    %5678 = vmatpush1.msra.mxu0 0.0
    %5679 = vmatprep.subr.mxu0 0.0
    %5680 = vmatpush1.msra.mxu0 0.0
    %5681 = vmatprep.subr.mxu0 0.0
    %5682 = vmatpush1.msra.mxu0 0.0
    %5683 = vmatprep.subr.mxu0 0.0
    %5684 = vmatpush1.msra.mxu0 0.0
    %5685 = vmatprep.subr.mxu0 0.0
    %5686 = vmatpush1.msra.mxu0 0.0
    %5687 = vmatprep.subr.mxu0 0.0
    %5688 = vmatpush1.msra.mxu0 0.0
    %5689 = vmatprep.subr.mxu0 0.0
    %5690 = vmatpush1.msra.mxu0 0.0
    %5691 = vmatprep.subr.mxu0 0.0
    %5692 = vmatpush1.msra.mxu0 0.0
    %5693 = vmatprep.subr.mxu0 0.0
    %5694 = vmatpush1.msra.mxu0 0.0
    %5695 = vmatprep.subr.mxu0 0.0
    %5696 = vmatpush1.msra.mxu0 0.0
    %5697 = vmatprep.subr.mxu0 0.0
    %5698 = vmatpush1.msra.mxu0 0.0
    %5699 = vmatprep.subr.mxu0 0.0
    %5700 = vmatpush1.msra.mxu0 0.0
    %5701 = vmatprep.subr.mxu0 0.0
    %5702 = vmatpush1.msra.mxu0 0.0
    %5703 = vmatprep.subr.mxu0 0.0
    %5704 = vmatpush1.msra.mxu0 0.0
    %5705 = vmatprep.subr.mxu0 0.0
    %5706 = vmatpush1.msra.mxu0 0.0
    %5707 = vmatprep.subr.mxu0 0.0
    %5708 = vmatpush1.msra.mxu0 0.0
    %5709 = vmatprep.subr.mxu0 0.0
    %5710 = vmatpush1.msra.mxu0 0.0
    %5711 = vmatprep.subr.mxu0 0.0
    %5712 = vmatpush1.msra.mxu0 0.0
    %5713 = vmatprep.subr.mxu0 0.0
    %5714 = vmatpush1.msra.mxu0 0.0
    %5715 = vmatprep.mubr.f32.mxu0 0.0
    %5716 = vmatmul.mubr.f32.gmra.mrb[0].mxu0 %v5646
    %v5717 = vpop.f32.mrb[0].mxu0
    %v5718 = vadd.f32 0.0, %v5717
    %v5719 = vpop.f32.mrb[0].mxu0
    %5720 = vdwg.mxu0
    %v5722 = vsel %vm2946, %v5008, 0
    %v5725 = vsel %vm2950, %v2741, 0
    %5727 = vmatprep.subr.mxu0 0.0
    %5728 = vmatpush1.msra.mxu0 %v5725
    %5729 = vmatprep.subr.mxu0 0.0
    %5730 = vmatpush1.msra.mxu0 0.0
    %5731 = vmatprep.subr.mxu0 0.0
    %5732 = vmatpush1.msra.mxu0 0.0
    %5733 = vmatprep.subr.mxu0 0.0
    %5734 = vmatpush1.msra.mxu0 0.0
    %5735 = vmatprep.subr.mxu0 0.0
    %5736 = vmatpush1.msra.mxu0 0.0
    %5737 = vmatprep.subr.mxu0 0.0
    %5738 = vmatpush1.msra.mxu0 0.0
    %5739 = vmatprep.subr.mxu0 0.0
    %5740 = vmatpush1.msra.mxu0 0.0
    %5741 = vmatprep.subr.mxu0 0.0
    %5742 = vmatpush1.msra.mxu0 0.0
    %5743 = vmatprep.subr.mxu0 0.0
    %5744 = vmatpush1.msra.mxu0 0.0
    %5745 = vmatprep.subr.mxu0 0.0
    %5746 = vmatpush1.msra.mxu0 0.0
    %5747 = vmatprep.subr.mxu0 0.0
    %5748 = vmatpush1.msra.mxu0 0.0
    %5749 = vmatprep.subr.mxu0 0.0
    %5750 = vmatpush1.msra.mxu0 0.0
    %5751 = vmatprep.subr.mxu0 0.0
    %5752 = vmatpush1.msra.mxu0 0.0
    %5753 = vmatprep.subr.mxu0 0.0
    %5754 = vmatpush1.msra.mxu0 0.0
    %5755 = vmatprep.subr.mxu0 0.0
    %5756 = vmatpush1.msra.mxu0 0.0
    %5757 = vmatprep.subr.mxu0 0.0
    %5758 = vmatpush1.msra.mxu0 0.0
    %5759 = vmatprep.subr.mxu0 0.0
    %5760 = vmatpush1.msra.mxu0 0.0
    %5761 = vmatprep.subr.mxu0 0.0
    %5762 = vmatpush1.msra.mxu0 0.0
    %5763 = vmatprep.subr.mxu0 0.0
    %5764 = vmatpush1.msra.mxu0 0.0
    %5765 = vmatprep.subr.mxu0 0.0
    %5766 = vmatpush1.msra.mxu0 0.0
    %5767 = vmatprep.subr.mxu0 0.0
    %5768 = vmatpush1.msra.mxu0 0.0
    %5769 = vmatprep.subr.mxu0 0.0
    %5770 = vmatpush1.msra.mxu0 0.0
    %5771 = vmatprep.subr.mxu0 0.0
    %5772 = vmatpush1.msra.mxu0 0.0
    %5773 = vmatprep.subr.mxu0 0.0
    %5774 = vmatpush1.msra.mxu0 0.0
    %5775 = vmatprep.subr.mxu0 0.0
    %5776 = vmatpush1.msra.mxu0 0.0
    %5777 = vmatprep.subr.mxu0 0.0
    %5778 = vmatpush1.msra.mxu0 0.0
    %5779 = vmatprep.subr.mxu0 0.0
    %5780 = vmatpush1.msra.mxu0 0.0
    %5781 = vmatprep.subr.mxu0 0.0
    %5782 = vmatpush1.msra.mxu0 0.0
    %5783 = vmatprep.subr.mxu0 0.0
    %5784 = vmatpush1.msra.mxu0 0.0
    %5785 = vmatprep.subr.mxu0 0.0
    %5786 = vmatpush1.msra.mxu0 0.0
    %5787 = vmatprep.subr.mxu0 0.0
    %5788 = vmatpush1.msra.mxu0 0.0
    %5789 = vmatprep.subr.mxu0 0.0
    %5790 = vmatpush1.msra.mxu0 0.0
    %5791 = vmatprep.mubr.f32.mxu0 0.0
    %5792 = vmatmul.mubr.f32.gmra.mrb[0].mxu0 %v5722
    %v5793 = vpop.f32.mrb[0].mxu0
    %v5794 = vadd.f32 0.0, %v5793
    %v5795 = vpop.f32.mrb[0].mxu0
    %5796 = vdwg.mxu0
    %v5798 = vsel %vm2946, %v5010, 0
    %v5801 = vsel %vm2950, %v2742, 0
    %5803 = vmatprep.subr.mxu0 0.0
    %5804 = vmatpush1.msra.mxu0 %v5801
    %5805 = vmatprep.subr.mxu0 0.0
    %5806 = vmatpush1.msra.mxu0 0.0
    %5807 = vmatprep.subr.mxu0 0.0
    %5808 = vmatpush1.msra.mxu0 0.0
    %5809 = vmatprep.subr.mxu0 0.0
    %5810 = vmatpush1.msra.mxu0 0.0
    %5811 = vmatprep.subr.mxu0 0.0
    %5812 = vmatpush1.msra.mxu0 0.0
    %5813 = vmatprep.subr.mxu0 0.0
    %5814 = vmatpush1.msra.mxu0 0.0
    %5815 = vmatprep.subr.mxu0 0.0
    %5816 = vmatpush1.msra.mxu0 0.0
    %5817 = vmatprep.subr.mxu0 0.0
    %5818 = vmatpush1.msra.mxu0 0.0
    %5819 = vmatprep.subr.mxu0 0.0
    %5820 = vmatpush1.msra.mxu0 0.0
    %5821 = vmatprep.subr.mxu0 0.0
    %5822 = vmatpush1.msra.mxu0 0.0
    %5823 = vmatprep.subr.mxu0 0.0
    %5824 = vmatpush1.msra.mxu0 0.0
    %5825 = vmatprep.subr.mxu0 0.0
    %5826 = vmatpush1.msra.mxu0 0.0
    %5827 = vmatprep.subr.mxu0 0.0
    %5828 = vmatpush1.msra.mxu0 0.0
    %5829 = vmatprep.subr.mxu0 0.0
    %5830 = vmatpush1.msra.mxu0 0.0
    %5831 = vmatprep.subr.mxu0 0.0
    %5832 = vmatpush1.msra.mxu0 0.0
    %5833 = vmatprep.subr.mxu0 0.0
    %5834 = vmatpush1.msra.mxu0 0.0
    %5835 = vmatprep.subr.mxu0 0.0
    %5836 = vmatpush1.msra.mxu0 0.0
    %5837 = vmatprep.subr.mxu0 0.0
    %5838 = vmatpush1.msra.mxu0 0.0
    %5839 = vmatprep.subr.mxu0 0.0
    %5840 = vmatpush1.msra.mxu0 0.0
    %5841 = vmatprep.subr.mxu0 0.0
    %5842 = vmatpush1.msra.mxu0 0.0
    %5843 = vmatprep.subr.mxu0 0.0
    %5844 = vmatpush1.msra.mxu0 0.0
    %5845 = vmatprep.subr.mxu0 0.0
    %5846 = vmatpush1.msra.mxu0 0.0
    %5847 = vmatprep.subr.mxu0 0.0
    %5848 = vmatpush1.msra.mxu0 0.0
    %5849 = vmatprep.subr.mxu0 0.0
    %5850 = vmatpush1.msra.mxu0 0.0
    %5851 = vmatprep.subr.mxu0 0.0
    %5852 = vmatpush1.msra.mxu0 0.0
    %5853 = vmatprep.subr.mxu0 0.0
    %5854 = vmatpush1.msra.mxu0 0.0
    %5855 = vmatprep.subr.mxu0 0.0
    %5856 = vmatpush1.msra.mxu0 0.0
    %5857 = vmatprep.subr.mxu0 0.0
    %5858 = vmatpush1.msra.mxu0 0.0
    %5859 = vmatprep.subr.mxu0 0.0
    %5860 = vmatpush1.msra.mxu0 0.0
    %5861 = vmatprep.subr.mxu0 0.0
    %5862 = vmatpush1.msra.mxu0 0.0
    %5863 = vmatprep.subr.mxu0 0.0
    %5864 = vmatpush1.msra.mxu0 0.0
    %5865 = vmatprep.subr.mxu0 0.0
    %5866 = vmatpush1.msra.mxu0 0.0
    %5867 = vmatprep.mubr.f32.mxu0 0.0
    %5868 = vmatmul.mubr.f32.gmra.mrb[0].mxu0 %v5798
    %v5869 = vpop.f32.mrb[0].mxu0
    %v5870 = vadd.f32 0.0, %v5869
    %v5871 = vpop.f32.mrb[0].mxu0
    %5872 = vdwg.mxu0
    %v5874 = vsel %vm2946, %v5012, 0
    %v5877 = vsel %vm2950, %v2743, 0
    %5879 = vmatprep.subr.mxu0 0.0
    %5880 = vmatpush1.msra.mxu0 %v5877
    %5881 = vmatprep.subr.mxu0 0.0
    %5882 = vmatpush1.msra.mxu0 0.0
    %5883 = vmatprep.subr.mxu0 0.0
    %5884 = vmatpush1.msra.mxu0 0.0
    %5885 = vmatprep.subr.mxu0 0.0
    %5886 = vmatpush1.msra.mxu0 0.0
    %5887 = vmatprep.subr.mxu0 0.0
    %5888 = vmatpush1.msra.mxu0 0.0
    %5889 = vmatprep.subr.mxu0 0.0
    %5890 = vmatpush1.msra.mxu0 0.0
    %5891 = vmatprep.subr.mxu0 0.0
    %5892 = vmatpush1.msra.mxu0 0.0
    %5893 = vmatprep.subr.mxu0 0.0
    %5894 = vmatpush1.msra.mxu0 0.0
    %5895 = vmatprep.subr.mxu0 0.0
    %5896 = vmatpush1.msra.mxu0 0.0
    %5897 = vmatprep.subr.mxu0 0.0
    %5898 = vmatpush1.msra.mxu0 0.0
    %5899 = vmatprep.subr.mxu0 0.0
    %5900 = vmatpush1.msra.mxu0 0.0
    %5901 = vmatprep.subr.mxu0 0.0
    %5902 = vmatpush1.msra.mxu0 0.0
    %5903 = vmatprep.subr.mxu0 0.0
    %5904 = vmatpush1.msra.mxu0 0.0
    %5905 = vmatprep.subr.mxu0 0.0
    %5906 = vmatpush1.msra.mxu0 0.0
    %5907 = vmatprep.subr.mxu0 0.0
    %5908 = vmatpush1.msra.mxu0 0.0
    %5909 = vmatprep.subr.mxu0 0.0
    %5910 = vmatpush1.msra.mxu0 0.0
    %5911 = vmatprep.subr.mxu0 0.0
    %5912 = vmatpush1.msra.mxu0 0.0
    %5913 = vmatprep.subr.mxu0 0.0
    %5914 = vmatpush1.msra.mxu0 0.0
    %5915 = vmatprep.subr.mxu0 0.0
    %5916 = vmatpush1.msra.mxu0 0.0
    %5917 = vmatprep.subr.mxu0 0.0
    %5918 = vmatpush1.msra.mxu0 0.0
    %5919 = vmatprep.subr.mxu0 0.0
    %5920 = vmatpush1.msra.mxu0 0.0
    %5921 = vmatprep.subr.mxu0 0.0
    %5922 = vmatpush1.msra.mxu0 0.0
    %5923 = vmatprep.subr.mxu0 0.0
    %5924 = vmatpush1.msra.mxu0 0.0
    %5925 = vmatprep.subr.mxu0 0.0
    %5926 = vmatpush1.msra.mxu0 0.0
    %5927 = vmatprep.subr.mxu0 0.0
    %5928 = vmatpush1.msra.mxu0 0.0
    %5929 = vmatprep.subr.mxu0 0.0
    %5930 = vmatpush1.msra.mxu0 0.0
    %5931 = vmatprep.subr.mxu0 0.0
    %5932 = vmatpush1.msra.mxu0 0.0
    %5933 = vmatprep.subr.mxu0 0.0
    %5934 = vmatpush1.msra.mxu0 0.0
    %5935 = vmatprep.subr.mxu0 0.0
    %5936 = vmatpush1.msra.mxu0 0.0
    %5937 = vmatprep.subr.mxu0 0.0
    %5938 = vmatpush1.msra.mxu0 0.0
    %5939 = vmatprep.subr.mxu0 0.0
    %5940 = vmatpush1.msra.mxu0 0.0
    %5941 = vmatprep.subr.mxu0 0.0
    %5942 = vmatpush1.msra.mxu0 0.0
    %5943 = vmatprep.mubr.f32.mxu0 0.0
    %5944 = vmatmul.mubr.f32.gmra.mrb[0].mxu0 %v5874
    %v5945 = vpop.f32.mrb[0].mxu0
    %v5946 = vadd.f32 0.0, %v5945
    %v5947 = vpop.f32.mrb[0].mxu0
    %5948 = vdwg.mxu0
    %v5950 = vsel %vm2946, %v5014, 0
    %v5953 = vsel %vm2950, %v2871, 0
    %5955 = vmatprep.subr.mxu0 0.0
    %5956 = vmatpush1.msra.mxu0 %v5953
    %5957 = vmatprep.subr.mxu0 0.0
    %5958 = vmatpush1.msra.mxu0 0.0
    %5959 = vmatprep.subr.mxu0 0.0
    %5960 = vmatpush1.msra.mxu0 0.0
    %5961 = vmatprep.subr.mxu0 0.0
    %5962 = vmatpush1.msra.mxu0 0.0
    %5963 = vmatprep.subr.mxu0 0.0
    %5964 = vmatpush1.msra.mxu0 0.0
    %5965 = vmatprep.subr.mxu0 0.0
    %5966 = vmatpush1.msra.mxu0 0.0
    %5967 = vmatprep.subr.mxu0 0.0
    %5968 = vmatpush1.msra.mxu0 0.0
    %5969 = vmatprep.subr.mxu0 0.0
    %5970 = vmatpush1.msra.mxu0 0.0
    %5971 = vmatprep.subr.mxu0 0.0
    %5972 = vmatpush1.msra.mxu0 0.0
    %5973 = vmatprep.subr.mxu0 0.0
    %5974 = vmatpush1.msra.mxu0 0.0
    %5975 = vmatprep.subr.mxu0 0.0
    %5976 = vmatpush1.msra.mxu0 0.0
    %5977 = vmatprep.subr.mxu0 0.0
    %5978 = vmatpush1.msra.mxu0 0.0
    %5979 = vmatprep.subr.mxu0 0.0
    %5980 = vmatpush1.msra.mxu0 0.0
    %5981 = vmatprep.subr.mxu0 0.0
    %5982 = vmatpush1.msra.mxu0 0.0
    %5983 = vmatprep.subr.mxu0 0.0
    %5984 = vmatpush1.msra.mxu0 0.0
    %5985 = vmatprep.subr.mxu0 0.0
    %5986 = vmatpush1.msra.mxu0 0.0
    %5987 = vmatprep.subr.mxu0 0.0
    %5988 = vmatpush1.msra.mxu0 0.0
    %5989 = vmatprep.subr.mxu0 0.0
    %5990 = vmatpush1.msra.mxu0 0.0
    %5991 = vmatprep.subr.mxu0 0.0
    %5992 = vmatpush1.msra.mxu0 0.0
    %5993 = vmatprep.subr.mxu0 0.0
    %5994 = vmatpush1.msra.mxu0 0.0
    %5995 = vmatprep.subr.mxu0 0.0
    %5996 = vmatpush1.msra.mxu0 0.0
    %5997 = vmatprep.subr.mxu0 0.0
    %5998 = vmatpush1.msra.mxu0 0.0
    %5999 = vmatprep.subr.mxu0 0.0
    %6000 = vmatpush1.msra.mxu0 0.0
    %6001 = vmatprep.subr.mxu0 0.0
    %6002 = vmatpush1.msra.mxu0 0.0
    %6003 = vmatprep.subr.mxu0 0.0
    %6004 = vmatpush1.msra.mxu0 0.0
    %6005 = vmatprep.subr.mxu0 0.0
    %6006 = vmatpush1.msra.mxu0 0.0
    %6007 = vmatprep.subr.mxu0 0.0
    %6008 = vmatpush1.msra.mxu0 0.0
    %6009 = vmatprep.subr.mxu0 0.0
    %6010 = vmatpush1.msra.mxu0 0.0
    %6011 = vmatprep.subr.mxu0 0.0
    %6012 = vmatpush1.msra.mxu0 0.0
    %6013 = vmatprep.subr.mxu0 0.0
    %6014 = vmatpush1.msra.mxu0 0.0
    %6015 = vmatprep.subr.mxu0 0.0
    %6016 = vmatpush1.msra.mxu0 0.0
    %6017 = vmatprep.subr.mxu0 0.0
    %6018 = vmatpush1.msra.mxu0 0.0
    %6019 = vmatprep.mubr.f32.mxu0 0.0
    %6020 = vmatmul.mubr.f32.gmra.mrb[0].mxu0 %v5950
    %v6021 = vpop.f32.mrb[0].mxu0
    %v6022 = vadd.f32 0.0, %v6021
    %v6023 = vpop.f32.mrb[0].mxu0
    %6024 = vdwg.mxu0
    %v6026 = vsel %vm2946, %v5016, 0
    %v6029 = vsel %vm2950, %v2872, 0
    %6031 = vmatprep.subr.mxu0 0.0
    %6032 = vmatpush1.msra.mxu0 %v6029
    %6033 = vmatprep.subr.mxu0 0.0
    %6034 = vmatpush1.msra.mxu0 0.0
    %6035 = vmatprep.subr.mxu0 0.0
    %6036 = vmatpush1.msra.mxu0 0.0
    %6037 = vmatprep.subr.mxu0 0.0
    %6038 = vmatpush1.msra.mxu0 0.0
    %6039 = vmatprep.subr.mxu0 0.0
    %6040 = vmatpush1.msra.mxu0 0.0
    %6041 = vmatprep.subr.mxu0 0.0
    %6042 = vmatpush1.msra.mxu0 0.0
    %6043 = vmatprep.subr.mxu0 0.0
    %6044 = vmatpush1.msra.mxu0 0.0
    %6045 = vmatprep.subr.mxu0 0.0
    %6046 = vmatpush1.msra.mxu0 0.0
    %6047 = vmatprep.subr.mxu0 0.0
    %6048 = vmatpush1.msra.mxu0 0.0
    %6049 = vmatprep.subr.mxu0 0.0
    %6050 = vmatpush1.msra.mxu0 0.0
    %6051 = vmatprep.subr.mxu0 0.0
    %6052 = vmatpush1.msra.mxu0 0.0
    %6053 = vmatprep.subr.mxu0 0.0
    %6054 = vmatpush1.msra.mxu0 0.0
    %6055 = vmatprep.subr.mxu0 0.0
    %6056 = vmatpush1.msra.mxu0 0.0
    %6057 = vmatprep.subr.mxu0 0.0
    %6058 = vmatpush1.msra.mxu0 0.0
    %6059 = vmatprep.subr.mxu0 0.0
    %6060 = vmatpush1.msra.mxu0 0.0
    %6061 = vmatprep.subr.mxu0 0.0
    %6062 = vmatpush1.msra.mxu0 0.0
    %6063 = vmatprep.subr.mxu0 0.0
    %6064 = vmatpush1.msra.mxu0 0.0
    %6065 = vmatprep.subr.mxu0 0.0
    %6066 = vmatpush1.msra.mxu0 0.0
    %6067 = vmatprep.subr.mxu0 0.0
    %6068 = vmatpush1.msra.mxu0 0.0
    %6069 = vmatprep.subr.mxu0 0.0
    %6070 = vmatpush1.msra.mxu0 0.0
    %6071 = vmatprep.subr.mxu0 0.0
    %6072 = vmatpush1.msra.mxu0 0.0
    %6073 = vmatprep.subr.mxu0 0.0
    %6074 = vmatpush1.msra.mxu0 0.0
    %6075 = vmatprep.subr.mxu0 0.0
    %6076 = vmatpush1.msra.mxu0 0.0
    %6077 = vmatprep.subr.mxu0 0.0
    %6078 = vmatpush1.msra.mxu0 0.0
    %6079 = vmatprep.subr.mxu0 0.0
    %6080 = vmatpush1.msra.mxu0 0.0
    %6081 = vmatprep.subr.mxu0 0.0
    %6082 = vmatpush1.msra.mxu0 0.0
    %6083 = vmatprep.subr.mxu0 0.0
    %6084 = vmatpush1.msra.mxu0 0.0
    %6085 = vmatprep.subr.mxu0 0.0
    %6086 = vmatpush1.msra.mxu0 0.0
    %6087 = vmatprep.subr.mxu0 0.0
    %6088 = vmatpush1.msra.mxu0 0.0
    %6089 = vmatprep.subr.mxu0 0.0
    %6090 = vmatpush1.msra.mxu0 0.0
    %6091 = vmatprep.subr.mxu0 0.0
    %6092 = vmatpush1.msra.mxu0 0.0
    %6093 = vmatprep.subr.mxu0 0.0
    %6094 = vmatpush1.msra.mxu0 0.0
    %6095 = vmatprep.mubr.f32.mxu0 0.0
    %6096 = vmatmul.mubr.f32.gmra.mrb[0].mxu0 %v6026
    %v6097 = vpop.f32.mrb[0].mxu0
    %v6098 = vadd.f32 0.0, %v6097
    %v6099 = vpop.f32.mrb[0].mxu0
    %6100 = vdwg.mxu0
    %v6102 = vsel %vm2946, %v5018, 0
    %v6105 = vsel %vm2950, %v2873, 0
    %6107 = vmatprep.subr.mxu0 0.0
    %6108 = vmatpush1.msra.mxu0 %v6105
    %6109 = vmatprep.subr.mxu0 0.0
    %6110 = vmatpush1.msra.mxu0 0.0
    %6111 = vmatprep.subr.mxu0 0.0
    %6112 = vmatpush1.msra.mxu0 0.0
    %6113 = vmatprep.subr.mxu0 0.0
    %6114 = vmatpush1.msra.mxu0 0.0
    %6115 = vmatprep.subr.mxu0 0.0
    %6116 = vmatpush1.msra.mxu0 0.0
    %6117 = vmatprep.subr.mxu0 0.0
    %6118 = vmatpush1.msra.mxu0 0.0
    %6119 = vmatprep.subr.mxu0 0.0
    %6120 = vmatpush1.msra.mxu0 0.0
    %6121 = vmatprep.subr.mxu0 0.0
    %6122 = vmatpush1.msra.mxu0 0.0
    %6123 = vmatprep.subr.mxu0 0.0
    %6124 = vmatpush1.msra.mxu0 0.0
    %6125 = vmatprep.subr.mxu0 0.0
    %6126 = vmatpush1.msra.mxu0 0.0
    %6127 = vmatprep.subr.mxu0 0.0
    %6128 = vmatpush1.msra.mxu0 0.0
    %6129 = vmatprep.subr.mxu0 0.0
    %6130 = vmatpush1.msra.mxu0 0.0
    %6131 = vmatprep.subr.mxu0 0.0
    %6132 = vmatpush1.msra.mxu0 0.0
    %6133 = vmatprep.subr.mxu0 0.0
    %6134 = vmatpush1.msra.mxu0 0.0
    %6135 = vmatprep.subr.mxu0 0.0
    %6136 = vmatpush1.msra.mxu0 0.0
    %6137 = vmatprep.subr.mxu0 0.0
    %6138 = vmatpush1.msra.mxu0 0.0
    %6139 = vmatprep.subr.mxu0 0.0
    %6140 = vmatpush1.msra.mxu0 0.0
    %6141 = vmatprep.subr.mxu0 0.0
    %6142 = vmatpush1.msra.mxu0 0.0
    %6143 = vmatprep.subr.mxu0 0.0
    %6144 = vmatpush1.msra.mxu0 0.0
    %6145 = vmatprep.subr.mxu0 0.0
    %6146 = vmatpush1.msra.mxu0 0.0
    %6147 = vmatprep.subr.mxu0 0.0
    %6148 = vmatpush1.msra.mxu0 0.0
    %6149 = vmatprep.subr.mxu0 0.0
    %6150 = vmatpush1.msra.mxu0 0.0
    %6151 = vmatprep.subr.mxu0 0.0
    %6152 = vmatpush1.msra.mxu0 0.0
    %6153 = vmatprep.subr.mxu0 0.0
    %6154 = vmatpush1.msra.mxu0 0.0
    %6155 = vmatprep.subr.mxu0 0.0
    %6156 = vmatpush1.msra.mxu0 0.0
    %6157 = vmatprep.subr.mxu0 0.0
    %6158 = vmatpush1.msra.mxu0 0.0
    %6159 = vmatprep.subr.mxu0 0.0
    %6160 = vmatpush1.msra.mxu0 0.0
    %6161 = vmatprep.subr.mxu0 0.0
    %6162 = vmatpush1.msra.mxu0 0.0
    %6163 = vmatprep.subr.mxu0 0.0
    %6164 = vmatpush1.msra.mxu0 0.0
    %6165 = vmatprep.subr.mxu0 0.0
    %6166 = vmatpush1.msra.mxu0 0.0
    %6167 = vmatprep.subr.mxu0 0.0
    %6168 = vmatpush1.msra.mxu0 0.0
    %6169 = vmatprep.subr.mxu0 0.0
    %6170 = vmatpush1.msra.mxu0 0.0
    %6171 = vmatprep.mubr.f32.mxu0 0.0
    %6172 = vmatmul.mubr.f32.gmra.mrb[0].mxu0 %v6102
    %v6173 = vpop.f32.mrb[0].mxu0
    %v6174 = vadd.f32 0.0, %v6173
    %v6175 = vpop.f32.mrb[0].mxu0
    %6176 = vdwg.mxu0
    %v6178 = vsel %vm2946, %v5020, 0
    %v6181 = vsel %vm2950, %v2874, 0
    %6183 = vmatprep.subr.mxu0 0.0
    %6184 = vmatpush1.msra.mxu0 %v6181
    %6185 = vmatprep.subr.mxu0 0.0
    %6186 = vmatpush1.msra.mxu0 0.0
    %6187 = vmatprep.subr.mxu0 0.0
    %6188 = vmatpush1.msra.mxu0 0.0
    %6189 = vmatprep.subr.mxu0 0.0
    %6190 = vmatpush1.msra.mxu0 0.0
    %6191 = vmatprep.subr.mxu0 0.0
    %6192 = vmatpush1.msra.mxu0 0.0
    %6193 = vmatprep.subr.mxu0 0.0
    %6194 = vmatpush1.msra.mxu0 0.0
    %6195 = vmatprep.subr.mxu0 0.0
    %6196 = vmatpush1.msra.mxu0 0.0
    %6197 = vmatprep.subr.mxu0 0.0
    %6198 = vmatpush1.msra.mxu0 0.0
    %6199 = vmatprep.subr.mxu0 0.0
    %6200 = vmatpush1.msra.mxu0 0.0
    %6201 = vmatprep.subr.mxu0 0.0
    %6202 = vmatpush1.msra.mxu0 0.0
    %6203 = vmatprep.subr.mxu0 0.0
    %6204 = vmatpush1.msra.mxu0 0.0
    %6205 = vmatprep.subr.mxu0 0.0
    %6206 = vmatpush1.msra.mxu0 0.0
    %6207 = vmatprep.subr.mxu0 0.0
    %6208 = vmatpush1.msra.mxu0 0.0
    %6209 = vmatprep.subr.mxu0 0.0
    %6210 = vmatpush1.msra.mxu0 0.0
    %6211 = vmatprep.subr.mxu0 0.0
    %6212 = vmatpush1.msra.mxu0 0.0
    %6213 = vmatprep.subr.mxu0 0.0
    %6214 = vmatpush1.msra.mxu0 0.0
    %6215 = vmatprep.subr.mxu0 0.0
    %6216 = vmatpush1.msra.mxu0 0.0
    %6217 = vmatprep.subr.mxu0 0.0
    %6218 = vmatpush1.msra.mxu0 0.0
    %6219 = vmatprep.subr.mxu0 0.0
    %6220 = vmatpush1.msra.mxu0 0.0
    %6221 = vmatprep.subr.mxu0 0.0
    %6222 = vmatpush1.msra.mxu0 0.0
    %6223 = vmatprep.subr.mxu0 0.0
    %6224 = vmatpush1.msra.mxu0 0.0
    %6225 = vmatprep.subr.mxu0 0.0
    %6226 = vmatpush1.msra.mxu0 0.0
    %6227 = vmatprep.subr.mxu0 0.0
    %6228 = vmatpush1.msra.mxu0 0.0
    %6229 = vmatprep.subr.mxu0 0.0
    %6230 = vmatpush1.msra.mxu0 0.0
    %6231 = vmatprep.subr.mxu0 0.0
    %6232 = vmatpush1.msra.mxu0 0.0
    %6233 = vmatprep.subr.mxu0 0.0
    %6234 = vmatpush1.msra.mxu0 0.0
    %6235 = vmatprep.subr.mxu0 0.0
    %6236 = vmatpush1.msra.mxu0 0.0
    %6237 = vmatprep.subr.mxu0 0.0
    %6238 = vmatpush1.msra.mxu0 0.0
    %6239 = vmatprep.subr.mxu0 0.0
    %6240 = vmatpush1.msra.mxu0 0.0
    %6241 = vmatprep.subr.mxu0 0.0
    %6242 = vmatpush1.msra.mxu0 0.0
    %6243 = vmatprep.subr.mxu0 0.0
    %6244 = vmatpush1.msra.mxu0 0.0
    %6245 = vmatprep.subr.mxu0 0.0
    %6246 = vmatpush1.msra.mxu0 0.0
    %6247 = vmatprep.mubr.f32.mxu0 0.0
    %6248 = vmatmul.mubr.f32.gmra.mrb[0].mxu0 %v6178
    %v6249 = vpop.f32.mrb[0].mxu0
    %v6250 = vadd.f32 0.0, %v6249
    %v6251 = vpop.f32.mrb[0].mxu0
    %6252 = vdwg.mxu0
    %v6254 = vsel %vm2946, %v5022, 0
    %v6257 = vsel %vm2950, %v2875, 0
    %6259 = vmatprep.subr.mxu0 0.0
    %6260 = vmatpush1.msra.mxu0 %v6257
    %6261 = vmatprep.subr.mxu0 0.0
    %6262 = vmatpush1.msra.mxu0 0.0
    %6263 = vmatprep.subr.mxu0 0.0
    %6264 = vmatpush1.msra.mxu0 0.0
    %6265 = vmatprep.subr.mxu0 0.0
    %6266 = vmatpush1.msra.mxu0 0.0
    %6267 = vmatprep.subr.mxu0 0.0
    %6268 = vmatpush1.msra.mxu0 0.0
    %6269 = vmatprep.subr.mxu0 0.0
    %6270 = vmatpush1.msra.mxu0 0.0
    %6271 = vmatprep.subr.mxu0 0.0
    %6272 = vmatpush1.msra.mxu0 0.0
    %6273 = vmatprep.subr.mxu0 0.0
    %6274 = vmatpush1.msra.mxu0 0.0
    %6275 = vmatprep.subr.mxu0 0.0
    %6276 = vmatpush1.msra.mxu0 0.0
    %6277 = vmatprep.subr.mxu0 0.0
    %6278 = vmatpush1.msra.mxu0 0.0
    %6279 = vmatprep.subr.mxu0 0.0
    %6280 = vmatpush1.msra.mxu0 0.0
    %6281 = vmatprep.subr.mxu0 0.0
    %6282 = vmatpush1.msra.mxu0 0.0
    %6283 = vmatprep.subr.mxu0 0.0
    %6284 = vmatpush1.msra.mxu0 0.0
    %6285 = vmatprep.subr.mxu0 0.0
    %6286 = vmatpush1.msra.mxu0 0.0
    %6287 = vmatprep.subr.mxu0 0.0
    %6288 = vmatpush1.msra.mxu0 0.0
    %6289 = vmatprep.subr.mxu0 0.0
    %6290 = vmatpush1.msra.mxu0 0.0
    %6291 = vmatprep.subr.mxu0 0.0
    %6292 = vmatpush1.msra.mxu0 0.0
    %6293 = vmatprep.subr.mxu0 0.0
    %6294 = vmatpush1.msra.mxu0 0.0
    %6295 = vmatprep.subr.mxu0 0.0
    %6296 = vmatpush1.msra.mxu0 0.0
    %6297 = vmatprep.subr.mxu0 0.0
    %6298 = vmatpush1.msra.mxu0 0.0
    %6299 = vmatprep.subr.mxu0 0.0
    %6300 = vmatpush1.msra.mxu0 0.0
    %6301 = vmatprep.subr.mxu0 0.0
    %6302 = vmatpush1.msra.mxu0 0.0
    %6303 = vmatprep.subr.mxu0 0.0
    %6304 = vmatpush1.msra.mxu0 0.0
    %6305 = vmatprep.subr.mxu0 0.0
    %6306 = vmatpush1.msra.mxu0 0.0
    %6307 = vmatprep.subr.mxu0 0.0
    %6308 = vmatpush1.msra.mxu0 0.0
    %6309 = vmatprep.subr.mxu0 0.0
    %6310 = vmatpush1.msra.mxu0 0.0
    %6311 = vmatprep.subr.mxu0 0.0
    %6312 = vmatpush1.msra.mxu0 0.0
    %6313 = vmatprep.subr.mxu0 0.0
    %6314 = vmatpush1.msra.mxu0 0.0
    %6315 = vmatprep.subr.mxu0 0.0
    %6316 = vmatpush1.msra.mxu0 0.0
    %6317 = vmatprep.subr.mxu0 0.0
    %6318 = vmatpush1.msra.mxu0 0.0
    %6319 = vmatprep.subr.mxu0 0.0
    %6320 = vmatpush1.msra.mxu0 0.0
    %6321 = vmatprep.subr.mxu0 0.0
    %6322 = vmatpush1.msra.mxu0 0.0
    %6323 = vmatprep.mubr.f32.mxu0 0.0
    %6324 = vmatmul.mubr.f32.gmra.mrb[0].mxu0 %v6254
    %v6325 = vpop.f32.mrb[0].mxu0
    %v6326 = vadd.f32 0.0, %v6325
    %v6327 = vpop.f32.mrb[0].mxu0
    %6328 = vdwg.mxu0
    %v6330 = vsel %vm2946, %v5024, 0
    %v6333 = vsel %vm2950, %v2876, 0
    %6335 = vmatprep.subr.mxu0 0.0
    %6336 = vmatpush1.msra.mxu0 %v6333
    %6337 = vmatprep.subr.mxu0 0.0
    %6338 = vmatpush1.msra.mxu0 0.0
    %6339 = vmatprep.subr.mxu0 0.0
    %6340 = vmatpush1.msra.mxu0 0.0
    %6341 = vmatprep.subr.mxu0 0.0
    %6342 = vmatpush1.msra.mxu0 0.0
    %6343 = vmatprep.subr.mxu0 0.0
    %6344 = vmatpush1.msra.mxu0 0.0
    %6345 = vmatprep.subr.mxu0 0.0
    %6346 = vmatpush1.msra.mxu0 0.0
    %6347 = vmatprep.subr.mxu0 0.0
    %6348 = vmatpush1.msra.mxu0 0.0
    %6349 = vmatprep.subr.mxu0 0.0
    %6350 = vmatpush1.msra.mxu0 0.0
    %6351 = vmatprep.subr.mxu0 0.0
    %6352 = vmatpush1.msra.mxu0 0.0
    %6353 = vmatprep.subr.mxu0 0.0
    %6354 = vmatpush1.msra.mxu0 0.0
    %6355 = vmatprep.subr.mxu0 0.0
    %6356 = vmatpush1.msra.mxu0 0.0
    %6357 = vmatprep.subr.mxu0 0.0
    %6358 = vmatpush1.msra.mxu0 0.0
    %6359 = vmatprep.subr.mxu0 0.0
    %6360 = vmatpush1.msra.mxu0 0.0
    %6361 = vmatprep.subr.mxu0 0.0
    %6362 = vmatpush1.msra.mxu0 0.0
    %6363 = vmatprep.subr.mxu0 0.0
    %6364 = vmatpush1.msra.mxu0 0.0
    %6365 = vmatprep.subr.mxu0 0.0
    %6366 = vmatpush1.msra.mxu0 0.0
    %6367 = vmatprep.subr.mxu0 0.0
    %6368 = vmatpush1.msra.mxu0 0.0
    %6369 = vmatprep.subr.mxu0 0.0
    %6370 = vmatpush1.msra.mxu0 0.0
    %6371 = vmatprep.subr.mxu0 0.0
    %6372 = vmatpush1.msra.mxu0 0.0
    %6373 = vmatprep.subr.mxu0 0.0
    %6374 = vmatpush1.msra.mxu0 0.0
    %6375 = vmatprep.subr.mxu0 0.0
    %6376 = vmatpush1.msra.mxu0 0.0
    %6377 = vmatprep.subr.mxu0 0.0
    %6378 = vmatpush1.msra.mxu0 0.0
    %6379 = vmatprep.subr.mxu0 0.0
    %6380 = vmatpush1.msra.mxu0 0.0
    %6381 = vmatprep.subr.mxu0 0.0
    %6382 = vmatpush1.msra.mxu0 0.0
    %6383 = vmatprep.subr.mxu0 0.0
    %6384 = vmatpush1.msra.mxu0 0.0
    %6385 = vmatprep.subr.mxu0 0.0
    %6386 = vmatpush1.msra.mxu0 0.0
    %6387 = vmatprep.subr.mxu0 0.0
    %6388 = vmatpush1.msra.mxu0 0.0
    %6389 = vmatprep.subr.mxu0 0.0
    %6390 = vmatpush1.msra.mxu0 0.0
    %6391 = vmatprep.subr.mxu0 0.0
    %6392 = vmatpush1.msra.mxu0 0.0
    %6393 = vmatprep.subr.mxu0 0.0
    %6394 = vmatpush1.msra.mxu0 0.0
    %6395 = vmatprep.subr.mxu0 0.0
    %6396 = vmatpush1.msra.mxu0 0.0
    %6397 = vmatprep.subr.mxu0 0.0
    %6398 = vmatpush1.msra.mxu0 0.0
    %6399 = vmatprep.mubr.f32.mxu0 0.0
    %6400 = vmatmul.mubr.f32.gmra.mrb[0].mxu0 %v6330
    %v6401 = vpop.f32.mrb[0].mxu0
    %v6402 = vadd.f32 0.0, %v6401
    %v6403 = vpop.f32.mrb[0].mxu0
    %6404 = vdwg.mxu0
    %v6406 = vsel %vm2946, %v5026, 0
    %v6409 = vsel %vm2950, %v2877, 0
    %6411 = vmatprep.subr.mxu0 0.0
    %6412 = vmatpush1.msra.mxu0 %v6409
    %6413 = vmatprep.subr.mxu0 0.0
    %6414 = vmatpush1.msra.mxu0 0.0
    %6415 = vmatprep.subr.mxu0 0.0
    %6416 = vmatpush1.msra.mxu0 0.0
    %6417 = vmatprep.subr.mxu0 0.0
    %6418 = vmatpush1.msra.mxu0 0.0
    %6419 = vmatprep.subr.mxu0 0.0
    %6420 = vmatpush1.msra.mxu0 0.0
    %6421 = vmatprep.subr.mxu0 0.0
    %6422 = vmatpush1.msra.mxu0 0.0
    %6423 = vmatprep.subr.mxu0 0.0
    %6424 = vmatpush1.msra.mxu0 0.0
    %6425 = vmatprep.subr.mxu0 0.0
    %6426 = vmatpush1.msra.mxu0 0.0
    %6427 = vmatprep.subr.mxu0 0.0
    %6428 = vmatpush1.msra.mxu0 0.0
    %6429 = vmatprep.subr.mxu0 0.0
    %6430 = vmatpush1.msra.mxu0 0.0
    %6431 = vmatprep.subr.mxu0 0.0
    %6432 = vmatpush1.msra.mxu0 0.0
    %6433 = vmatprep.subr.mxu0 0.0
    %6434 = vmatpush1.msra.mxu0 0.0
    %6435 = vmatprep.subr.mxu0 0.0
    %6436 = vmatpush1.msra.mxu0 0.0
    %6437 = vmatprep.subr.mxu0 0.0
    %6438 = vmatpush1.msra.mxu0 0.0
    %6439 = vmatprep.subr.mxu0 0.0
    %6440 = vmatpush1.msra.mxu0 0.0
    %6441 = vmatprep.subr.mxu0 0.0
    %6442 = vmatpush1.msra.mxu0 0.0
    %6443 = vmatprep.subr.mxu0 0.0
    %6444 = vmatpush1.msra.mxu0 0.0
    %6445 = vmatprep.subr.mxu0 0.0
    %6446 = vmatpush1.msra.mxu0 0.0
    %6447 = vmatprep.subr.mxu0 0.0
    %6448 = vmatpush1.msra.mxu0 0.0
    %6449 = vmatprep.subr.mxu0 0.0
    %6450 = vmatpush1.msra.mxu0 0.0
    %6451 = vmatprep.subr.mxu0 0.0
    %6452 = vmatpush1.msra.mxu0 0.0
    %6453 = vmatprep.subr.mxu0 0.0
    %6454 = vmatpush1.msra.mxu0 0.0
    %6455 = vmatprep.subr.mxu0 0.0
    %6456 = vmatpush1.msra.mxu0 0.0
    %6457 = vmatprep.subr.mxu0 0.0
    %6458 = vmatpush1.msra.mxu0 0.0
    %6459 = vmatprep.subr.mxu0 0.0
    %6460 = vmatpush1.msra.mxu0 0.0
    %6461 = vmatprep.subr.mxu0 0.0
    %6462 = vmatpush1.msra.mxu0 0.0
    %6463 = vmatprep.subr.mxu0 0.0
    %6464 = vmatpush1.msra.mxu0 0.0
    %6465 = vmatprep.subr.mxu0 0.0
    %6466 = vmatpush1.msra.mxu0 0.0
    %6467 = vmatprep.subr.mxu0 0.0
    %6468 = vmatpush1.msra.mxu0 0.0
    %6469 = vmatprep.subr.mxu0 0.0
    %6470 = vmatpush1.msra.mxu0 0.0
    %6471 = vmatprep.subr.mxu0 0.0
    %6472 = vmatpush1.msra.mxu0 0.0
    %6473 = vmatprep.subr.mxu0 0.0
    %6474 = vmatpush1.msra.mxu0 0.0
    %6475 = vmatprep.mubr.f32.mxu0 0.0
    %6476 = vmatmul.mubr.f32.gmra.mrb[0].mxu0 %v6406
    %v6477 = vpop.f32.mrb[0].mxu0
    %v6478 = vadd.f32 0.0, %v6477
    %v6479 = vpop.f32.mrb[0].mxu0
    %6480 = vdwg.mxu0
    %v6482 = vsel %vm2946, %v5028, 0
    %v6485 = vsel %vm2950, %v2878, 0
    %6487 = vmatprep.subr.mxu0 0.0
    %6488 = vmatpush1.msra.mxu0 %v6485
    %6489 = vmatprep.subr.mxu0 0.0
    %6490 = vmatpush1.msra.mxu0 0.0
    %6491 = vmatprep.subr.mxu0 0.0
    %6492 = vmatpush1.msra.mxu0 0.0
    %6493 = vmatprep.subr.mxu0 0.0
    %6494 = vmatpush1.msra.mxu0 0.0
    %6495 = vmatprep.subr.mxu0 0.0
    %6496 = vmatpush1.msra.mxu0 0.0
    %6497 = vmatprep.subr.mxu0 0.0
    %6498 = vmatpush1.msra.mxu0 0.0
    %6499 = vmatprep.subr.mxu0 0.0
    %6500 = vmatpush1.msra.mxu0 0.0
    %6501 = vmatprep.subr.mxu0 0.0
    %6502 = vmatpush1.msra.mxu0 0.0
    %6503 = vmatprep.subr.mxu0 0.0
    %6504 = vmatpush1.msra.mxu0 0.0
    %6505 = vmatprep.subr.mxu0 0.0
    %6506 = vmatpush1.msra.mxu0 0.0
    %6507 = vmatprep.subr.mxu0 0.0
    %6508 = vmatpush1.msra.mxu0 0.0
    %6509 = vmatprep.subr.mxu0 0.0
    %6510 = vmatpush1.msra.mxu0 0.0
    %6511 = vmatprep.subr.mxu0 0.0
    %6512 = vmatpush1.msra.mxu0 0.0
    %6513 = vmatprep.subr.mxu0 0.0
    %6514 = vmatpush1.msra.mxu0 0.0
    %6515 = vmatprep.subr.mxu0 0.0
    %6516 = vmatpush1.msra.mxu0 0.0
    %6517 = vmatprep.subr.mxu0 0.0
    %6518 = vmatpush1.msra.mxu0 0.0
    %6519 = vmatprep.subr.mxu0 0.0
    %6520 = vmatpush1.msra.mxu0 0.0
    %6521 = vmatprep.subr.mxu0 0.0
    %6522 = vmatpush1.msra.mxu0 0.0
    %6523 = vmatprep.subr.mxu0 0.0
    %6524 = vmatpush1.msra.mxu0 0.0
    %6525 = vmatprep.subr.mxu0 0.0
    %6526 = vmatpush1.msra.mxu0 0.0
    %6527 = vmatprep.subr.mxu0 0.0
    %6528 = vmatpush1.msra.mxu0 0.0
    %6529 = vmatprep.subr.mxu0 0.0
    %6530 = vmatpush1.msra.mxu0 0.0
    %6531 = vmatprep.subr.mxu0 0.0
    %6532 = vmatpush1.msra.mxu0 0.0
    %6533 = vmatprep.subr.mxu0 0.0
    %6534 = vmatpush1.msra.mxu0 0.0
    %6535 = vmatprep.subr.mxu0 0.0
    %6536 = vmatpush1.msra.mxu0 0.0
    %6537 = vmatprep.subr.mxu0 0.0
    %6538 = vmatpush1.msra.mxu0 0.0
    %6539 = vmatprep.subr.mxu0 0.0
    %6540 = vmatpush1.msra.mxu0 0.0
    %6541 = vmatprep.subr.mxu0 0.0
    %6542 = vmatpush1.msra.mxu0 0.0
    %6543 = vmatprep.subr.mxu0 0.0
    %6544 = vmatpush1.msra.mxu0 0.0
    %6545 = vmatprep.subr.mxu0 0.0
    %6546 = vmatpush1.msra.mxu0 0.0
    %6547 = vmatprep.subr.mxu0 0.0
    %6548 = vmatpush1.msra.mxu0 0.0
    %6549 = vmatprep.subr.mxu0 0.0
    %6550 = vmatpush1.msra.mxu0 0.0
    %6551 = vmatprep.mubr.f32.mxu0 0.0
    %6552 = vmatmul.mubr.f32.gmra.mrb[0].mxu0 %v6482
    %v6553 = vpop.f32.mrb[0].mxu0
    %v6554 = vadd.f32 0.0, %v6553
    %v6555 = vpop.f32.mrb[0].mxu0
    %6556 = vdwg.mxu0
    %v6558 = vsel %vm2946, %v5030, 0
    %v6561 = vsel %vm2950, %v2942, 0
    %6563 = vmatprep.subr.mxu0 0.0
    %6564 = vmatpush1.msra.mxu0 %v6561
    %6565 = vmatprep.subr.mxu0 0.0
    %6566 = vmatpush1.msra.mxu0 0.0
    %6567 = vmatprep.subr.mxu0 0.0
    %6568 = vmatpush1.msra.mxu0 0.0
    %6569 = vmatprep.subr.mxu0 0.0
    %6570 = vmatpush1.msra.mxu0 0.0
    %6571 = vmatprep.subr.mxu0 0.0
    %6572 = vmatpush1.msra.mxu0 0.0
    %6573 = vmatprep.subr.mxu0 0.0
    %6574 = vmatpush1.msra.mxu0 0.0
    %6575 = vmatprep.subr.mxu0 0.0
    %6576 = vmatpush1.msra.mxu0 0.0
    %6577 = vmatprep.subr.mxu0 0.0
    %6578 = vmatpush1.msra.mxu0 0.0
    %6579 = vmatprep.subr.mxu0 0.0
    %6580 = vmatpush1.msra.mxu0 0.0
    %6581 = vmatprep.subr.mxu0 0.0
    %6582 = vmatpush1.msra.mxu0 0.0
    %6583 = vmatprep.subr.mxu0 0.0
    %6584 = vmatpush1.msra.mxu0 0.0
    %6585 = vmatprep.subr.mxu0 0.0
    %6586 = vmatpush1.msra.mxu0 0.0
    %6587 = vmatprep.subr.mxu0 0.0
    %6588 = vmatpush1.msra.mxu0 0.0
    %6589 = vmatprep.subr.mxu0 0.0
    %6590 = vmatpush1.msra.mxu0 0.0
    %6591 = vmatprep.subr.mxu0 0.0
    %6592 = vmatpush1.msra.mxu0 0.0
    %6593 = vmatprep.subr.mxu0 0.0
    %6594 = vmatpush1.msra.mxu0 0.0
    %6595 = vmatprep.subr.mxu0 0.0
    %6596 = vmatpush1.msra.mxu0 0.0
    %6597 = vmatprep.subr.mxu0 0.0
    %6598 = vmatpush1.msra.mxu0 0.0
    %6599 = vmatprep.subr.mxu0 0.0
    %6600 = vmatpush1.msra.mxu0 0.0
    %6601 = vmatprep.subr.mxu0 0.0
    %6602 = vmatpush1.msra.mxu0 0.0
    %6603 = vmatprep.subr.mxu0 0.0
    %6604 = vmatpush1.msra.mxu0 0.0
    %6605 = vmatprep.subr.mxu0 0.0
    %6606 = vmatpush1.msra.mxu0 0.0
    %6607 = vmatprep.subr.mxu0 0.0
    %6608 = vmatpush1.msra.mxu0 0.0
    %6609 = vmatprep.subr.mxu0 0.0
    %6610 = vmatpush1.msra.mxu0 0.0
    %6611 = vmatprep.subr.mxu0 0.0
    %6612 = vmatpush1.msra.mxu0 0.0
    %6613 = vmatprep.subr.mxu0 0.0
    %6614 = vmatpush1.msra.mxu0 0.0
    %6615 = vmatprep.subr.mxu0 0.0
    %6616 = vmatpush1.msra.mxu0 0.0
    %6617 = vmatprep.subr.mxu0 0.0
    %6618 = vmatpush1.msra.mxu0 0.0
    %6619 = vmatprep.subr.mxu0 0.0
    %6620 = vmatpush1.msra.mxu0 0.0
    %6621 = vmatprep.subr.mxu0 0.0
    %6622 = vmatpush1.msra.mxu0 0.0
    %6623 = vmatprep.subr.mxu0 0.0
    %6624 = vmatpush1.msra.mxu0 0.0
    %6625 = vmatprep.subr.mxu0 0.0
    %6626 = vmatpush1.msra.mxu0 0.0
    %6627 = vmatprep.mubr.f32.mxu0 0.0
    %6628 = vmatmul.mubr.f32.gmra.mrb[0].mxu0 %v6558
    %v6629 = vpop.f32.mrb[0].mxu0
    %v6630 = vadd.f32 0.0, %v6629
    %v6631 = vpop.f32.mrb[0].mxu0
    %6632 = vdwg.mxu0
    %v6634 = vsel %vm2946, %v5032, 0
    %v6637 = vsel %vm2950, %v2943, 0
    %6639 = vmatprep.subr.mxu0 0.0
    %6640 = vmatpush1.msra.mxu0 %v6637
    %6641 = vmatprep.subr.mxu0 0.0
    %6642 = vmatpush1.msra.mxu0 0.0
    %6643 = vmatprep.subr.mxu0 0.0
    %6644 = vmatpush1.msra.mxu0 0.0
    %6645 = vmatprep.subr.mxu0 0.0
    %6646 = vmatpush1.msra.mxu0 0.0
    %6647 = vmatprep.subr.mxu0 0.0
    %6648 = vmatpush1.msra.mxu0 0.0
    %6649 = vmatprep.subr.mxu0 0.0
    %6650 = vmatpush1.msra.mxu0 0.0
    %6651 = vmatprep.subr.mxu0 0.0
    %6652 = vmatpush1.msra.mxu0 0.0
    %6653 = vmatprep.subr.mxu0 0.0
    %6654 = vmatpush1.msra.mxu0 0.0
    %6655 = vmatprep.subr.mxu0 0.0
    %6656 = vmatpush1.msra.mxu0 0.0
    %6657 = vmatprep.subr.mxu0 0.0
    %6658 = vmatpush1.msra.mxu0 0.0
    %6659 = vmatprep.subr.mxu0 0.0
    %6660 = vmatpush1.msra.mxu0 0.0
    %6661 = vmatprep.subr.mxu0 0.0
    %6662 = vmatpush1.msra.mxu0 0.0
    %6663 = vmatprep.subr.mxu0 0.0
    %6664 = vmatpush1.msra.mxu0 0.0
    %6665 = vmatprep.subr.mxu0 0.0
    %6666 = vmatpush1.msra.mxu0 0.0
    %6667 = vmatprep.subr.mxu0 0.0
    %6668 = vmatpush1.msra.mxu0 0.0
    %6669 = vmatprep.subr.mxu0 0.0
    %6670 = vmatpush1.msra.mxu0 0.0
    %6671 = vmatprep.subr.mxu0 0.0
    %6672 = vmatpush1.msra.mxu0 0.0
    %6673 = vmatprep.subr.mxu0 0.0
    %6674 = vmatpush1.msra.mxu0 0.0
    %6675 = vmatprep.subr.mxu0 0.0
    %6676 = vmatpush1.msra.mxu0 0.0
    %6677 = vmatprep.subr.mxu0 0.0
    %6678 = vmatpush1.msra.mxu0 0.0
    %6679 = vmatprep.subr.mxu0 0.0
    %6680 = vmatpush1.msra.mxu0 0.0
    %6681 = vmatprep.subr.mxu0 0.0
    %6682 = vmatpush1.msra.mxu0 0.0
    %6683 = vmatprep.subr.mxu0 0.0
    %6684 = vmatpush1.msra.mxu0 0.0
    %6685 = vmatprep.subr.mxu0 0.0
    %6686 = vmatpush1.msra.mxu0 0.0
    %6687 = vmatprep.subr.mxu0 0.0
    %6688 = vmatpush1.msra.mxu0 0.0
    %6689 = vmatprep.subr.mxu0 0.0
    %6690 = vmatpush1.msra.mxu0 0.0
    %6691 = vmatprep.subr.mxu0 0.0
    %6692 = vmatpush1.msra.mxu0 0.0
    %6693 = vmatprep.subr.mxu0 0.0
    %6694 = vmatpush1.msra.mxu0 0.0
    %6695 = vmatprep.subr.mxu0 0.0
    %6696 = vmatpush1.msra.mxu0 0.0
    %6697 = vmatprep.subr.mxu0 0.0
    %6698 = vmatpush1.msra.mxu0 0.0
    %6699 = vmatprep.subr.mxu0 0.0
    %6700 = vmatpush1.msra.mxu0 0.0
    %6701 = vmatprep.subr.mxu0 0.0
    %6702 = vmatpush1.msra.mxu0 0.0
    %6703 = vmatprep.mubr.f32.mxu0 0.0
    %6704 = vmatmul.mubr.f32.gmra.mrb[0].mxu0 %v6634
    %v6705 = vpop.f32.mrb[0].mxu0
    %v6706 = vadd.f32 0.0, %v6705
    %v6707 = vpop.f32.mrb[0].mxu0
    %6708 = vdwg.mxu0
    %v6710 = vsel %vm2946, %v5034, 0
    %v6713 = vsel %vm2950, %v2944, 0
    %6715 = vmatprep.subr.mxu0 0.0
    %6716 = vmatpush1.msra.mxu0 %v6713
    %6717 = vmatprep.subr.mxu0 0.0
    %6718 = vmatpush1.msra.mxu0 0.0
    %6719 = vmatprep.subr.mxu0 0.0
    %6720 = vmatpush1.msra.mxu0 0.0
    %6721 = vmatprep.subr.mxu0 0.0
    %6722 = vmatpush1.msra.mxu0 0.0
    %6723 = vmatprep.subr.mxu0 0.0
    %6724 = vmatpush1.msra.mxu0 0.0
    %6725 = vmatprep.subr.mxu0 0.0
    %6726 = vmatpush1.msra.mxu0 0.0
    %6727 = vmatprep.subr.mxu0 0.0
    %6728 = vmatpush1.msra.mxu0 0.0
    %6729 = vmatprep.subr.mxu0 0.0
    %6730 = vmatpush1.msra.mxu0 0.0
    %6731 = vmatprep.subr.mxu0 0.0
    %6732 = vmatpush1.msra.mxu0 0.0
    %6733 = vmatprep.subr.mxu0 0.0
    %6734 = vmatpush1.msra.mxu0 0.0
    %6735 = vmatprep.subr.mxu0 0.0
    %6736 = vmatpush1.msra.mxu0 0.0
    %6737 = vmatprep.subr.mxu0 0.0
    %6738 = vmatpush1.msra.mxu0 0.0
    %6739 = vmatprep.subr.mxu0 0.0
    %6740 = vmatpush1.msra.mxu0 0.0
    %6741 = vmatprep.subr.mxu0 0.0
    %6742 = vmatpush1.msra.mxu0 0.0
    %6743 = vmatprep.subr.mxu0 0.0
    %6744 = vmatpush1.msra.mxu0 0.0
    %6745 = vmatprep.subr.mxu0 0.0
    %6746 = vmatpush1.msra.mxu0 0.0
    %6747 = vmatprep.subr.mxu0 0.0
    %6748 = vmatpush1.msra.mxu0 0.0
    %6749 = vmatprep.subr.mxu0 0.0
    %6750 = vmatpush1.msra.mxu0 0.0
    %6751 = vmatprep.subr.mxu0 0.0
    %6752 = vmatpush1.msra.mxu0 0.0
    %6753 = vmatprep.subr.mxu0 0.0
    %6754 = vmatpush1.msra.mxu0 0.0
    %6755 = vmatprep.subr.mxu0 0.0
    %6756 = vmatpush1.msra.mxu0 0.0
    %6757 = vmatprep.subr.mxu0 0.0
    %6758 = vmatpush1.msra.mxu0 0.0
    %6759 = vmatprep.subr.mxu0 0.0
    %6760 = vmatpush1.msra.mxu0 0.0
    %6761 = vmatprep.subr.mxu0 0.0
    %6762 = vmatpush1.msra.mxu0 0.0
    %6763 = vmatprep.subr.mxu0 0.0
    %6764 = vmatpush1.msra.mxu0 0.0
    %6765 = vmatprep.subr.mxu0 0.0
    %6766 = vmatpush1.msra.mxu0 0.0
    %6767 = vmatprep.subr.mxu0 0.0
    %6768 = vmatpush1.msra.mxu0 0.0
    %6769 = vmatprep.subr.mxu0 0.0
    %6770 = vmatpush1.msra.mxu0 0.0
    %6771 = vmatprep.subr.mxu0 0.0
    %6772 = vmatpush1.msra.mxu0 0.0
    %6773 = vmatprep.subr.mxu0 0.0
    %6774 = vmatpush1.msra.mxu0 0.0
    %6775 = vmatprep.subr.mxu0 0.0
    %6776 = vmatpush1.msra.mxu0 0.0
    %6777 = vmatprep.subr.mxu0 0.0
    %6778 = vmatpush1.msra.mxu0 0.0
    %6779 = vmatprep.mubr.f32.mxu0 0.0
    %6780 = vmatmul.mubr.f32.gmra.mrb[0].mxu0 %v6710
    %v6781 = vpop.f32.mrb[0].mxu0
    %v6782 = vadd.f32 0.0, %v6781
    %v6783 = vpop.f32.mrb[0].mxu0
    %6784 = vdwg.mxu0
    %v6786 = vsel %vm2946, %v5036, 0
    %v6789 = vsel %vm2950, %v2945, 0
    %6791 = vmatprep.subr.mxu0 0.0
    %6792 = vmatpush1.msra.mxu0 %v6789
    %6793 = vmatprep.subr.mxu0 0.0
    %6794 = vmatpush1.msra.mxu0 0.0
    %6795 = vmatprep.subr.mxu0 0.0
    %6796 = vmatpush1.msra.mxu0 0.0
    %6797 = vmatprep.subr.mxu0 0.0
    %6798 = vmatpush1.msra.mxu0 0.0
    %6799 = vmatprep.subr.mxu0 0.0
    %6800 = vmatpush1.msra.mxu0 0.0
    %6801 = vmatprep.subr.mxu0 0.0
    %6802 = vmatpush1.msra.mxu0 0.0
    %6803 = vmatprep.subr.mxu0 0.0
    %6804 = vmatpush1.msra.mxu0 0.0
    %6805 = vmatprep.subr.mxu0 0.0
    %6806 = vmatpush1.msra.mxu0 0.0
    %6807 = vmatprep.subr.mxu0 0.0
    %6808 = vmatpush1.msra.mxu0 0.0
    %6809 = vmatprep.subr.mxu0 0.0
    %6810 = vmatpush1.msra.mxu0 0.0
    %6811 = vmatprep.subr.mxu0 0.0
    %6812 = vmatpush1.msra.mxu0 0.0
    %6813 = vmatprep.subr.mxu0 0.0
    %6814 = vmatpush1.msra.mxu0 0.0
    %6815 = vmatprep.subr.mxu0 0.0
    %6816 = vmatpush1.msra.mxu0 0.0
    %6817 = vmatprep.subr.mxu0 0.0
    %6818 = vmatpush1.msra.mxu0 0.0
    %6819 = vmatprep.subr.mxu0 0.0
    %6820 = vmatpush1.msra.mxu0 0.0
    %6821 = vmatprep.subr.mxu0 0.0
    %6822 = vmatpush1.msra.mxu0 0.0
    %6823 = vmatprep.subr.mxu0 0.0
    %6824 = vmatpush1.msra.mxu0 0.0
    %6825 = vmatprep.subr.mxu0 0.0
    %6826 = vmatpush1.msra.mxu0 0.0
    %6827 = vmatprep.subr.mxu0 0.0
    %6828 = vmatpush1.msra.mxu0 0.0
    %6829 = vmatprep.subr.mxu0 0.0
    %6830 = vmatpush1.msra.mxu0 0.0
    %6831 = vmatprep.subr.mxu0 0.0
    %6832 = vmatpush1.msra.mxu0 0.0
    %6833 = vmatprep.subr.mxu0 0.0
    %6834 = vmatpush1.msra.mxu0 0.0
    %6835 = vmatprep.subr.mxu0 0.0
    %6836 = vmatpush1.msra.mxu0 0.0
    %6837 = vmatprep.subr.mxu0 0.0
    %6838 = vmatpush1.msra.mxu0 0.0
    %6839 = vmatprep.subr.mxu0 0.0
    %6840 = vmatpush1.msra.mxu0 0.0
    %6841 = vmatprep.subr.mxu0 0.0
    %6842 = vmatpush1.msra.mxu0 0.0
    %6843 = vmatprep.subr.mxu0 0.0
    %6844 = vmatpush1.msra.mxu0 0.0
    %6845 = vmatprep.subr.mxu0 0.0
    %6846 = vmatpush1.msra.mxu0 0.0
    %6847 = vmatprep.subr.mxu0 0.0
    %6848 = vmatpush1.msra.mxu0 0.0
    %6849 = vmatprep.subr.mxu0 0.0
    %6850 = vmatpush1.msra.mxu0 0.0
    %6851 = vmatprep.subr.mxu0 0.0
    %6852 = vmatpush1.msra.mxu0 0.0
    %6853 = vmatprep.subr.mxu0 0.0
    %6854 = vmatpush1.msra.mxu0 0.0
    %6855 = vmatprep.mubr.f32.mxu0 0.0
    %6856 = vmatmul.mubr.f32.gmra.mrb[0].mxu0 %v6786
    %v6857 = vpop.f32.mrb[0].mxu0
    %v6858 = vadd.f32 0.0, %v6857
    %v6859 = vpop.f32.mrb[0].mxu0
    %6860 = vdwg.mxu0
    %v6861 = vcombine.low %v5110, %v5262
    %v6862 = vcombine.high %v5110, %v5262
    %v6864 = vunpack.c.l.s4 1983009808
    %v6865 = vunpack.c.0.s8 %v6864
    %v6866 = vlaneseq
    %v6867 = vshrl.u32 %v6866, 7
    %v6868 = vsub.s32 %v6865, %v6867
    %v6869 = vrot.slane %v6861, %v6868
    %v6871 = vunpack.c.l.s4 1983009808
    %v6872 = vunpack.c.0.s8 %v6871
    %v6873 = vlaneseq
    %v6874 = vshrl.u32 %v6873, 7
    %v6875 = vsub.s32 %v6872, %v6874
    %v6876 = vrot.slane %v6862, %v6875
    %v6877 = vcombine.low %v5186, %v5338
    %v6878 = vcombine.high %v5186, %v5338
    %v6880 = vunpack.c.l.s4 1983009808
    %v6881 = vunpack.c.0.s8 %v6880
    %v6882 = vlaneseq
    %v6883 = vshrl.u32 %v6882, 7
    %v6884 = vsub.s32 %v6881, %v6883
    %v6885 = vrot.slane %v6877, %v6884
    %v6887 = vunpack.c.l.s4 1983009808
    %v6888 = vunpack.c.0.s8 %v6887
    %v6889 = vlaneseq
    %v6890 = vshrl.u32 %v6889, 7
    %v6891 = vsub.s32 %v6888, %v6890
    %v6892 = vrot.slane %v6878, %v6891
    %v6893 = vcombine.low %v5414, %v5566
    %v6894 = vcombine.high %v5414, %v5566
    %v6896 = vunpack.c.l.s4 1983009808
    %v6897 = vunpack.c.0.s8 %v6896
    %v6898 = vlaneseq
    %v6899 = vshrl.u32 %v6898, 7
    %v6900 = vsub.s32 %v6897, %v6899
    %v6901 = vrot.slane %v6893, %v6900
    %v6903 = vunpack.c.l.s4 1983009808
    %v6904 = vunpack.c.0.s8 %v6903
    %v6905 = vlaneseq
    %v6906 = vshrl.u32 %v6905, 7
    %v6907 = vsub.s32 %v6904, %v6906
    %v6908 = vrot.slane %v6894, %v6907
    %v6909 = vcombine.low %v5490, %v5642
    %v6910 = vcombine.high %v5490, %v5642
    %v6912 = vunpack.c.l.s4 1983009808
    %v6913 = vunpack.c.0.s8 %v6912
    %v6914 = vlaneseq
    %v6915 = vshrl.u32 %v6914, 7
    %v6916 = vsub.s32 %v6913, %v6915
    %v6917 = vrot.slane %v6909, %v6916
    %v6919 = vunpack.c.l.s4 1983009808
    %v6920 = vunpack.c.0.s8 %v6919
    %v6921 = vlaneseq
    %v6922 = vshrl.u32 %v6921, 7
    %v6923 = vsub.s32 %v6920, %v6922
    %v6924 = vrot.slane %v6910, %v6923
    %v6925 = vcombine.low %v6869, %v6885
    %v6926 = vcombine.high %v6869, %v6885
    %v6928 = vunpack.c.l.s4 1934713408
    %v6929 = vunpack.c.0.s8 %v6928
    %v6930 = vlaneseq
    %v6931 = vshrl.u32 %v6930, 7
    %v6932 = vsub.s32 %v6929, %v6931
    %v6933 = vrot.slane %v6925, %v6932
    %v6935 = vunpack.c.l.s4 1934713408
    %v6936 = vunpack.c.0.s8 %v6935
    %v6937 = vlaneseq
    %v6938 = vshrl.u32 %v6937, 7
    %v6939 = vsub.s32 %v6936, %v6938
    %v6940 = vrot.slane %v6926, %v6939
    %v6941 = vcombine.low %v6876, %v6892
    %v6942 = vcombine.high %v6876, %v6892
    %v6944 = vunpack.c.l.s4 1934713408
    %v6945 = vunpack.c.0.s8 %v6944
    %v6946 = vlaneseq
    %v6947 = vshrl.u32 %v6946, 7
    %v6948 = vsub.s32 %v6945, %v6947
    %v6949 = vrot.slane %v6941, %v6948
    %v6951 = vunpack.c.l.s4 1934713408
    %v6952 = vunpack.c.0.s8 %v6951
    %v6953 = vlaneseq
    %v6954 = vshrl.u32 %v6953, 7
    %v6955 = vsub.s32 %v6952, %v6954
    %v6956 = vrot.slane %v6942, %v6955
    %v6957 = vcombine.low %v6901, %v6917
    %v6958 = vcombine.high %v6901, %v6917
    %v6960 = vunpack.c.l.s4 1934713408
    %v6961 = vunpack.c.0.s8 %v6960
    %v6962 = vlaneseq
    %v6963 = vshrl.u32 %v6962, 7
    %v6964 = vsub.s32 %v6961, %v6963
    %v6965 = vrot.slane %v6957, %v6964
    %v6967 = vunpack.c.l.s4 1934713408
    %v6968 = vunpack.c.0.s8 %v6967
    %v6969 = vlaneseq
    %v6970 = vshrl.u32 %v6969, 7
    %v6971 = vsub.s32 %v6968, %v6970
    %v6972 = vrot.slane %v6958, %v6971
    %v6973 = vcombine.low %v6908, %v6924
    %v6974 = vcombine.high %v6908, %v6924
    %v6976 = vunpack.c.l.s4 1934713408
    %v6977 = vunpack.c.0.s8 %v6976
    %v6978 = vlaneseq
    %v6979 = vshrl.u32 %v6978, 7
    %v6980 = vsub.s32 %v6977, %v6979
    %v6981 = vrot.slane %v6973, %v6980
    %v6983 = vunpack.c.l.s4 1934713408
    %v6984 = vunpack.c.0.s8 %v6983
    %v6985 = vlaneseq
    %v6986 = vshrl.u32 %v6985, 7
    %v6987 = vsub.s32 %v6984, %v6986
    %v6988 = vrot.slane %v6974, %v6987
    %v6989 = vcombine.low %v6933, %v6965
    %v6990 = vcombine.high %v6933, %v6965
    %v6991 = vcombine.low %v6940, %v6972
    %v6992 = vcombine.high %v6940, %v6972
    %v6993 = vcombine.low %v6949, %v6981
    %v6994 = vcombine.high %v6949, %v6981
    %v6995 = vcombine.low %v6956, %v6988
    %v6996 = vcombine.low %v5718, %v5870
    %v6997 = vcombine.high %v5718, %v5870
    %v6999 = vunpack.c.l.s4 1983009808
    %v7000 = vunpack.c.0.s8 %v6999
    %v7001 = vlaneseq
    %v7002 = vshrl.u32 %v7001, 7
    %v7003 = vsub.s32 %v7000, %v7002
    %v7004 = vrot.slane %v6996, %v7003
    %v7006 = vunpack.c.l.s4 1983009808
    %v7007 = vunpack.c.0.s8 %v7006
    %v7008 = vlaneseq
    %v7009 = vshrl.u32 %v7008, 7
    %v7010 = vsub.s32 %v7007, %v7009
    %v7011 = vrot.slane %v6997, %v7010
    %v7012 = vcombine.low %v5794, %v5946
    %v7013 = vcombine.high %v5794, %v5946
    %v7015 = vunpack.c.l.s4 1983009808
    %v7016 = vunpack.c.0.s8 %v7015
    %v7017 = vlaneseq
    %v7018 = vshrl.u32 %v7017, 7
    %v7019 = vsub.s32 %v7016, %v7018
    %v7020 = vrot.slane %v7012, %v7019
    %v7022 = vunpack.c.l.s4 1983009808
    %v7023 = vunpack.c.0.s8 %v7022
    %v7024 = vlaneseq
    %v7025 = vshrl.u32 %v7024, 7
    %v7026 = vsub.s32 %v7023, %v7025
    %v7027 = vrot.slane %v7013, %v7026
    %v7028 = vcombine.low %v7004, %v7020
    %v7029 = vcombine.high %v7004, %v7020
    %v7031 = vunpack.c.l.s4 1934713408
    %v7032 = vunpack.c.0.s8 %v7031
    %v7033 = vlaneseq
    %v7034 = vshrl.u32 %v7033, 7
    %v7035 = vsub.s32 %v7032, %v7034
    %v7036 = vrot.slane %v7028, %v7035
    %v7038 = vunpack.c.l.s4 1934713408
    %v7039 = vunpack.c.0.s8 %v7038
    %v7040 = vlaneseq
    %v7041 = vshrl.u32 %v7040, 7
    %v7042 = vsub.s32 %v7039, %v7041
    %v7043 = vrot.slane %v7029, %v7042
    %v7044 = vcombine.low %v7011, %v7027
    %v7045 = vcombine.high %v7011, %v7027
    %v7047 = vunpack.c.l.s4 1934713408
    %v7048 = vunpack.c.0.s8 %v7047
    %v7049 = vlaneseq
    %v7050 = vshrl.u32 %v7049, 7
    %v7051 = vsub.s32 %v7048, %v7050
    %v7052 = vrot.slane %v7044, %v7051
    %v7053 = vcombine.high %v7036, 0.0
    %v7054 = vcombine.high %v7043, 0.0
    %v7055 = vcombine.high %v7052, 0.0
    %v7057 = vunpack.c.l.s4 1934713408
    %v7058 = vunpack.c.0.s8 %v7057
    %v7059 = vlaneseq
    %v7060 = vshrl.u32 %v7059, 7
    %v7061 = vsub.s32 %v7058, %v7060
    %v7062 = vrot.slane %v7045, %v7061
    %v7063 = vcombine.low %v6022, %v6174
    %v7064 = vcombine.high %v6022, %v6174
    %v7066 = vunpack.c.l.s4 1983009808
    %v7067 = vunpack.c.0.s8 %v7066
    %v7068 = vlaneseq
    %v7069 = vshrl.u32 %v7068, 7
    %v7070 = vsub.s32 %v7067, %v7069
    %v7071 = vrot.slane %v7063, %v7070
    %v7073 = vunpack.c.l.s4 1983009808
    %v7074 = vunpack.c.0.s8 %v7073
    %v7075 = vlaneseq
    %v7076 = vshrl.u32 %v7075, 7
    %v7077 = vsub.s32 %v7074, %v7076
    %v7078 = vrot.slane %v7064, %v7077
    %v7079 = vcombine.low %v6098, %v6250
    %v7080 = vcombine.high %v6098, %v6250
    %v7082 = vunpack.c.l.s4 1983009808
    %v7083 = vunpack.c.0.s8 %v7082
    %v7084 = vlaneseq
    %v7085 = vshrl.u32 %v7084, 7
    %v7086 = vsub.s32 %v7083, %v7085
    %v7087 = vrot.slane %v7079, %v7086
    %v7089 = vunpack.c.l.s4 1983009808
    %v7090 = vunpack.c.0.s8 %v7089
    %v7091 = vlaneseq
    %v7092 = vshrl.u32 %v7091, 7
    %v7093 = vsub.s32 %v7090, %v7092
    %v7094 = vrot.slane %v7080, %v7093
    %v7095 = vcombine.low %v6326, %v6478
    %v7096 = vcombine.high %v6326, %v6478
    %v7098 = vunpack.c.l.s4 1983009808
    %v7099 = vunpack.c.0.s8 %v7098
    %v7100 = vlaneseq
    %v7101 = vshrl.u32 %v7100, 7
    %v7102 = vsub.s32 %v7099, %v7101
    %v7103 = vrot.slane %v7095, %v7102
    %v7105 = vunpack.c.l.s4 1983009808
    %v7106 = vunpack.c.0.s8 %v7105
    %v7107 = vlaneseq
    %v7108 = vshrl.u32 %v7107, 7
    %v7109 = vsub.s32 %v7106, %v7108
    %v7110 = vrot.slane %v7096, %v7109
    %v7111 = vcombine.low %v6402, %v6554
    %v7112 = vcombine.high %v6402, %v6554
    %v7114 = vunpack.c.l.s4 1983009808
    %v7115 = vunpack.c.0.s8 %v7114
    %v7116 = vlaneseq
    %v7117 = vshrl.u32 %v7116, 7
    %v7118 = vsub.s32 %v7115, %v7117
    %v7119 = vrot.slane %v7111, %v7118
    %v7121 = vunpack.c.l.s4 1983009808
    %v7122 = vunpack.c.0.s8 %v7121
    %v7123 = vlaneseq
    %v7124 = vshrl.u32 %v7123, 7
    %v7125 = vsub.s32 %v7122, %v7124
    %v7126 = vrot.slane %v7112, %v7125
    %v7127 = vcombine.low %v7071, %v7087
    %v7128 = vcombine.high %v7071, %v7087
    %v7130 = vunpack.c.l.s4 1934713408
    %v7131 = vunpack.c.0.s8 %v7130
    %v7132 = vlaneseq
    %v7133 = vshrl.u32 %v7132, 7
    %v7134 = vsub.s32 %v7131, %v7133
    %v7135 = vrot.slane %v7127, %v7134
    %v7137 = vunpack.c.l.s4 1934713408
    %v7138 = vunpack.c.0.s8 %v7137
    %v7139 = vlaneseq
    %v7140 = vshrl.u32 %v7139, 7
    %v7141 = vsub.s32 %v7138, %v7140
    %v7142 = vrot.slane %v7128, %v7141
    %v7143 = vcombine.low %v7078, %v7094
    %v7144 = vcombine.high %v7078, %v7094
    %v7146 = vunpack.c.l.s4 1934713408
    %v7147 = vunpack.c.0.s8 %v7146
    %v7148 = vlaneseq
    %v7149 = vshrl.u32 %v7148, 7
    %v7150 = vsub.s32 %v7147, %v7149
    %v7151 = vrot.slane %v7143, %v7150
    %v7153 = vunpack.c.l.s4 1934713408
    %v7154 = vunpack.c.0.s8 %v7153
    %v7155 = vlaneseq
    %v7156 = vshrl.u32 %v7155, 7
    %v7157 = vsub.s32 %v7154, %v7156
    %v7158 = vrot.slane %v7144, %v7157
    %v7159 = vcombine.low %v7103, %v7119
    %v7160 = vcombine.high %v7103, %v7119
    %v7162 = vunpack.c.l.s4 1934713408
    %v7163 = vunpack.c.0.s8 %v7162
    %v7164 = vlaneseq
    %v7165 = vshrl.u32 %v7164, 7
    %v7166 = vsub.s32 %v7163, %v7165
    %v7167 = vrot.slane %v7159, %v7166
    %v7169 = vunpack.c.l.s4 1934713408
    %v7170 = vunpack.c.0.s8 %v7169
    %v7171 = vlaneseq
    %v7172 = vshrl.u32 %v7171, 7
    %v7173 = vsub.s32 %v7170, %v7172
    %v7174 = vrot.slane %v7160, %v7173
    %v7175 = vcombine.low %v7110, %v7126
    %v7176 = vcombine.high %v7110, %v7126
    %v7178 = vunpack.c.l.s4 1934713408
    %v7179 = vunpack.c.0.s8 %v7178
    %v7180 = vlaneseq
    %v7181 = vshrl.u32 %v7180, 7
    %v7182 = vsub.s32 %v7179, %v7181
    %v7183 = vrot.slane %v7175, %v7182
    %v7185 = vunpack.c.l.s4 1934713408
    %v7186 = vunpack.c.0.s8 %v7185
    %v7187 = vlaneseq
    %v7188 = vshrl.u32 %v7187, 7
    %v7189 = vsub.s32 %v7186, %v7188
    %v7190 = vrot.slane %v7176, %v7189
    %v7191 = vcombine.low %v7135, %v7167
    %v7192 = vcombine.high %v7135, %v7167
    %v7193 = vcombine.low %v7142, %v7174
    %v7194 = vcombine.high %v7142, %v7174
    %v7195 = vcombine.low %v7151, %v7183
    %v7196 = vcombine.high %v7151, %v7183
    %v7197 = vcombine.low %v7158, %v7190
    %v7198 = vcombine.low %v6630, %v6782
    %v7199 = vcombine.high %v6630, %v6782
    %v7201 = vunpack.c.l.s4 1983009808
    %v7202 = vunpack.c.0.s8 %v7201
    %v7203 = vlaneseq
    %v7204 = vshrl.u32 %v7203, 7
    %v7205 = vsub.s32 %v7202, %v7204
    %v7206 = vrot.slane %v7198, %v7205
    %v7208 = vunpack.c.l.s4 1983009808
    %v7209 = vunpack.c.0.s8 %v7208
    %v7210 = vlaneseq
    %v7211 = vshrl.u32 %v7210, 7
    %v7212 = vsub.s32 %v7209, %v7211
    %v7213 = vrot.slane %v7199, %v7212
    %v7214 = vcombine.low %v6706, %v6858
    %v7215 = vcombine.high %v6706, %v6858
    %v7217 = vunpack.c.l.s4 1983009808
    %v7218 = vunpack.c.0.s8 %v7217
    %v7219 = vlaneseq
    %v7220 = vshrl.u32 %v7219, 7
    %v7221 = vsub.s32 %v7218, %v7220
    %v7222 = vrot.slane %v7214, %v7221
    %v7224 = vunpack.c.l.s4 1983009808
    %v7225 = vunpack.c.0.s8 %v7224
    %v7226 = vlaneseq
    %v7227 = vshrl.u32 %v7226, 7
    %v7228 = vsub.s32 %v7225, %v7227
    %v7229 = vrot.slane %v7215, %v7228
    %v7230 = vcombine.low %v7206, %v7222
    %v7231 = vcombine.high %v7206, %v7222
    %v7233 = vunpack.c.l.s4 1934713408
    %v7234 = vunpack.c.0.s8 %v7233
    %v7235 = vlaneseq
    %v7236 = vshrl.u32 %v7235, 7
    %v7237 = vsub.s32 %v7234, %v7236
    %v7238 = vrot.slane %v7230, %v7237
    %v7240 = vunpack.c.l.s4 1934713408
    %v7241 = vunpack.c.0.s8 %v7240
    %v7242 = vlaneseq
    %v7243 = vshrl.u32 %v7242, 7
    %v7244 = vsub.s32 %v7241, %v7243
    %v7245 = vrot.slane %v7231, %v7244
    %v7246 = vcombine.low %v7213, %v7229
    %v7247 = vcombine.high %v7213, %v7229
    %v7249 = vunpack.c.l.s4 1934713408
    %v7250 = vunpack.c.0.s8 %v7249
    %v7251 = vlaneseq
    %v7252 = vshrl.u32 %v7251, 7
    %v7253 = vsub.s32 %v7250, %v7252
    %v7254 = vrot.slane %v7246, %v7253
    %v7255 = vcombine.high %v7238, 0.0
    %v7256 = vcombine.high %v7245, 0.0
    %v7257 = vcombine.low %v6989, %v6991
    %v7258 = vcombine.high %v6989, %v6991
    %v7260 = vunpack.c.l.s4 1983009808
    %v7261 = vunpack.c.0.s8 %v7260
    %v7262 = vlaneseq
    %v7263 = vshrl.u32 %v7262, 7
    %v7264 = vsub.s32 %v7261, %v7263
    %v7265 = vrot.slane %v7257, %v7264
    %v7267 = vunpack.c.l.s4 1983009808
    %v7268 = vunpack.c.0.s8 %v7267
    %v7269 = vlaneseq
    %v7270 = vshrl.u32 %v7269, 7
    %v7271 = vsub.s32 %v7268, %v7270
    %v7272 = vrot.slane %v7258, %v7271
    %v7273 = vcombine.low %v6990, %v6992
    %v7274 = vcombine.high %v6990, %v6992
    %v7276 = vunpack.c.l.s4 1983009808
    %v7277 = vunpack.c.0.s8 %v7276
    %v7278 = vlaneseq
    %v7279 = vshrl.u32 %v7278, 7
    %v7280 = vsub.s32 %v7277, %v7279
    %v7281 = vrot.slane %v7273, %v7280
    %v7283 = vunpack.c.l.s4 1983009808
    %v7284 = vunpack.c.0.s8 %v7283
    %v7285 = vlaneseq
    %v7286 = vshrl.u32 %v7285, 7
    %v7287 = vsub.s32 %v7284, %v7286
    %v7288 = vrot.slane %v7274, %v7287
    %v7289 = vcombine.low %v6993, %v6995
    %v7290 = vcombine.high %v6993, %v6995
    %v7292 = vunpack.c.l.s4 1983009808
    %v7293 = vunpack.c.0.s8 %v7292
    %v7294 = vlaneseq
    %v7295 = vshrl.u32 %v7294, 7
    %v7296 = vsub.s32 %v7293, %v7295
    %v7297 = vrot.slane %v7289, %v7296
    %v7299 = vunpack.c.l.s4 1983009808
    %v7300 = vunpack.c.0.s8 %v7299
    %v7301 = vlaneseq
    %v7302 = vshrl.u32 %v7301, 7
    %v7303 = vsub.s32 %v7300, %v7302
    %v7304 = vrot.slane %v7290, %v7303
    %v7305 = vcombine.low %v6994, %v7191
    %v7306 = vcombine.high %v6994, %v7191
    %v7308 = vunpack.c.l.s4 1983009808
    %v7309 = vunpack.c.0.s8 %v7308
    %v7310 = vlaneseq
    %v7311 = vshrl.u32 %v7310, 7
    %v7312 = vsub.s32 %v7309, %v7311
    %v7313 = vrot.slane %v7305, %v7312
    %v7315 = vunpack.c.l.s4 1983009808
    %v7316 = vunpack.c.0.s8 %v7315
    %v7317 = vlaneseq
    %v7318 = vshrl.u32 %v7317, 7
    %v7319 = vsub.s32 %v7316, %v7318
    %v7320 = vrot.slane %v7306, %v7319
    %v7321 = vcombine.low %v7265, %v7281
    %v7322 = vcombine.high %v7265, %v7281
    %v7324 = vunpack.c.l.s4 1934713408
    %v7325 = vunpack.c.0.s8 %v7324
    %v7326 = vlaneseq
    %v7327 = vshrl.u32 %v7326, 7
    %v7328 = vsub.s32 %v7325, %v7327
    %v7329 = vrot.slane %v7321, %v7328
    %v7331 = vunpack.c.l.s4 1934713408
    %v7332 = vunpack.c.0.s8 %v7331
    %v7333 = vlaneseq
    %v7334 = vshrl.u32 %v7333, 7
    %v7335 = vsub.s32 %v7332, %v7334
    %v7336 = vrot.slane %v7322, %v7335
    %v7337 = vcombine.low %v7272, %v7288
    %v7338 = vcombine.high %v7272, %v7288
    %v7340 = vunpack.c.l.s4 1934713408
    %v7341 = vunpack.c.0.s8 %v7340
    %v7342 = vlaneseq
    %v7343 = vshrl.u32 %v7342, 7
    %v7344 = vsub.s32 %v7341, %v7343
    %v7345 = vrot.slane %v7337, %v7344
    %v7347 = vunpack.c.l.s4 1934713408
    %v7348 = vunpack.c.0.s8 %v7347
    %v7349 = vlaneseq
    %v7350 = vshrl.u32 %v7349, 7
    %v7351 = vsub.s32 %v7348, %v7350
    %v7352 = vrot.slane %v7338, %v7351
    %v7353 = vcombine.low %v7297, %v7313
    %v7354 = vcombine.high %v7297, %v7313
    %v7356 = vunpack.c.l.s4 1934713408
    %v7357 = vunpack.c.0.s8 %v7356
    %v7358 = vlaneseq
    %v7359 = vshrl.u32 %v7358, 7
    %v7360 = vsub.s32 %v7357, %v7359
    %v7361 = vrot.slane %v7353, %v7360
    %v7363 = vunpack.c.l.s4 1934713408
    %v7364 = vunpack.c.0.s8 %v7363
    %v7365 = vlaneseq
    %v7366 = vshrl.u32 %v7365, 7
    %v7367 = vsub.s32 %v7364, %v7366
    %v7368 = vrot.slane %v7354, %v7367
    %v7369 = vcombine.low %v7304, %v7320
    %v7370 = vcombine.high %v7304, %v7320
    %v7372 = vunpack.c.l.s4 1934713408
    %v7373 = vunpack.c.0.s8 %v7372
    %v7374 = vlaneseq
    %v7375 = vshrl.u32 %v7374, 7
    %v7376 = vsub.s32 %v7373, %v7375
    %v7377 = vrot.slane %v7369, %v7376
    %v7379 = vunpack.c.l.s4 1934713408
    %v7380 = vunpack.c.0.s8 %v7379
    %v7381 = vlaneseq
    %v7382 = vshrl.u32 %v7381, 7
    %v7383 = vsub.s32 %v7380, %v7382
    %v7384 = vrot.slane %v7370, %v7383
    %v7385 = vcombine.low %v7329, %v7361
    %v7386 = vcombine.high %v7329, %v7361
    %v7387 = vcombine.low %v7336, %v7368
    %v7388 = vcombine.high %v7336, %v7368
    %v7389 = vcombine.low %v7345, %v7377
    %v7390 = vcombine.high %v7345, %v7377
    %v7391 = vcombine.low %v7352, %v7384
    %v7392 = vcombine.high %v7352, %v7384
    %v7393 = vcombine.low %v7192, %v7194
    %v7394 = vcombine.high %v7192, %v7194
    %v7396 = vunpack.c.l.s4 1983009808
    %v7397 = vunpack.c.0.s8 %v7396
    %v7398 = vlaneseq
    %v7399 = vshrl.u32 %v7398, 7
    %v7400 = vsub.s32 %v7397, %v7399
    %v7401 = vrot.slane %v7393, %v7400
    %v7403 = vunpack.c.l.s4 1983009808
    %v7404 = vunpack.c.0.s8 %v7403
    %v7405 = vlaneseq
    %v7406 = vshrl.u32 %v7405, 7
    %v7407 = vsub.s32 %v7404, %v7406
    %v7408 = vrot.slane %v7394, %v7407
    %v7409 = vcombine.low %v7193, %v7195
    %v7410 = vcombine.high %v7193, %v7195
    %v7412 = vunpack.c.l.s4 1983009808
    %v7413 = vunpack.c.0.s8 %v7412
    %v7414 = vlaneseq
    %v7415 = vshrl.u32 %v7414, 7
    %v7416 = vsub.s32 %v7413, %v7415
    %v7417 = vrot.slane %v7409, %v7416
    %v7419 = vunpack.c.l.s4 1983009808
    %v7420 = vunpack.c.0.s8 %v7419
    %v7421 = vlaneseq
    %v7422 = vshrl.u32 %v7421, 7
    %v7423 = vsub.s32 %v7420, %v7422
    %v7424 = vrot.slane %v7410, %v7423
    %v7425 = vcombine.high %v7196, 0.0
    %v7427 = vunpack.c.l.s4 1983009808
    %v7428 = vunpack.c.0.s8 %v7427
    %v7429 = vlaneseq
    %v7430 = vshrl.u32 %v7429, 7
    %v7431 = vsub.s32 %v7428, %v7430
    %v7432 = vrot.slane %v7196, %v7431
    %v7434 = vunpack.c.l.s4 1983009808
    %v7435 = vunpack.c.0.s8 %v7434
    %v7436 = vlaneseq
    %v7437 = vshrl.u32 %v7436, 7
    %v7438 = vsub.s32 %v7435, %v7437
    %v7439 = vrot.slane %v7425, %v7438
    %v7440 = vcombine.high %v7197, 0.0
    %v7442 = vunpack.c.l.s4 1983009808
    %v7443 = vunpack.c.0.s8 %v7442
    %v7444 = vlaneseq
    %v7445 = vshrl.u32 %v7444, 7
    %v7446 = vsub.s32 %v7443, %v7445
    %v7447 = vrot.slane %v7197, %v7446
    %v7449 = vunpack.c.l.s4 1983009808
    %v7450 = vunpack.c.0.s8 %v7449
    %v7451 = vlaneseq
    %v7452 = vshrl.u32 %v7451, 7
    %v7453 = vsub.s32 %v7450, %v7452
    %v7454 = vrot.slane %v7440, %v7453
    %v7455 = vcombine.low %v7401, %v7417
    %v7456 = vcombine.high %v7401, %v7417
    %v7458 = vunpack.c.l.s4 1934713408
    %v7459 = vunpack.c.0.s8 %v7458
    %v7460 = vlaneseq
    %v7461 = vshrl.u32 %v7460, 7
    %v7462 = vsub.s32 %v7459, %v7461
    %v7463 = vrot.slane %v7455, %v7462
    %v7465 = vunpack.c.l.s4 1934713408
    %v7466 = vunpack.c.0.s8 %v7465
    %v7467 = vlaneseq
    %v7468 = vshrl.u32 %v7467, 7
    %v7469 = vsub.s32 %v7466, %v7468
    %v7470 = vrot.slane %v7456, %v7469
    %v7471 = vcombine.low %v7408, %v7424
    %v7472 = vcombine.high %v7408, %v7424
    %v7474 = vunpack.c.l.s4 1934713408
    %v7475 = vunpack.c.0.s8 %v7474
    %v7476 = vlaneseq
    %v7477 = vshrl.u32 %v7476, 7
    %v7478 = vsub.s32 %v7475, %v7477
    %v7479 = vrot.slane %v7471, %v7478
    %v7481 = vunpack.c.l.s4 1934713408
    %v7482 = vunpack.c.0.s8 %v7481
    %v7483 = vlaneseq
    %v7484 = vshrl.u32 %v7483, 7
    %v7485 = vsub.s32 %v7482, %v7484
    %v7486 = vrot.slane %v7472, %v7485
    %v7487 = vcombine.low %v7432, %v7447
    %v7488 = vcombine.high %v7432, %v7447
    %v7490 = vunpack.c.l.s4 1934713408
    %v7491 = vunpack.c.0.s8 %v7490
    %v7492 = vlaneseq
    %v7493 = vshrl.u32 %v7492, 7
    %v7494 = vsub.s32 %v7491, %v7493
    %v7495 = vrot.slane %v7487, %v7494
    %v7497 = vunpack.c.l.s4 1934713408
    %v7498 = vunpack.c.0.s8 %v7497
    %v7499 = vlaneseq
    %v7500 = vshrl.u32 %v7499, 7
    %v7501 = vsub.s32 %v7498, %v7500
    %v7502 = vrot.slane %v7488, %v7501
    %v7503 = vcombine.low %v7439, %v7454
    %v7504 = vcombine.high %v7439, %v7454
    %v7506 = vunpack.c.l.s4 1934713408
    %v7507 = vunpack.c.0.s8 %v7506
    %v7508 = vlaneseq
    %v7509 = vshrl.u32 %v7508, 7
    %v7510 = vsub.s32 %v7507, %v7509
    %v7511 = vrot.slane %v7503, %v7510
    %v7513 = vunpack.c.l.s4 1934713408
    %v7514 = vunpack.c.0.s8 %v7513
    %v7515 = vlaneseq
    %v7516 = vshrl.u32 %v7515, 7
    %v7517 = vsub.s32 %v7514, %v7516
    %v7518 = vrot.slane %v7504, %v7517
    %v7519 = vcombine.low %v7463, %v7495
    %v7520 = vcombine.high %v7463, %v7495
    %v7521 = vcombine.low %v7470, %v7502
    %v7522 = vcombine.high %v7470, %v7502
    %v7523 = vcombine.low %v7479, %v7511
    %v7524 = vcombine.high %v7479, %v7511
    %v7525 = vcombine.low %v7486, %v7518
    %v7526 = vcombine.high %v7486, %v7518
    %v7527 = vcombine.low %v7036, %v7043
    %v7529 = vunpack.c.l.s4 1983009808
    %v7530 = vunpack.c.0.s8 %v7529
    %v7531 = vlaneseq
    %v7532 = vshrl.u32 %v7531, 7
    %v7533 = vsub.s32 %v7530, %v7532
    %v7534 = vrot.slane %v7527, %v7533
    %v7535 = vcombine.low %v7053, %v7054
    %v7537 = vunpack.c.l.s4 1983009808
    %v7538 = vunpack.c.0.s8 %v7537
    %v7539 = vlaneseq
    %v7540 = vshrl.u32 %v7539, 7
    %v7541 = vsub.s32 %v7538, %v7540
    %v7542 = vrot.slane %v7535, %v7541
    %v7543 = vcombine.low %v7052, %v7062
    %v7545 = vunpack.c.l.s4 1983009808
    %v7546 = vunpack.c.0.s8 %v7545
    %v7547 = vlaneseq
    %v7548 = vshrl.u32 %v7547, 7
    %v7549 = vsub.s32 %v7546, %v7548
    %v7550 = vrot.slane %v7543, %v7549
    %v7551 = vcombine.low %v7055, %v7238
    %v7553 = vunpack.c.l.s4 1983009808
    %v7554 = vunpack.c.0.s8 %v7553
    %v7555 = vlaneseq
    %v7556 = vshrl.u32 %v7555, 7
    %v7557 = vsub.s32 %v7554, %v7556
    %v7558 = vrot.slane %v7551, %v7557
    %v7559 = vcombine.low %v7534, %v7542
    %v7560 = vcombine.high %v7534, %v7542
    %v7562 = vunpack.c.l.s4 1934713408
    %v7563 = vunpack.c.0.s8 %v7562
    %v7564 = vlaneseq
    %v7565 = vshrl.u32 %v7564, 7
    %v7566 = vsub.s32 %v7563, %v7565
    %v7567 = vrot.slane %v7559, %v7566
    %v7569 = vunpack.c.l.s4 1934713408
    %v7570 = vunpack.c.0.s8 %v7569
    %v7571 = vlaneseq
    %v7572 = vshrl.u32 %v7571, 7
    %v7573 = vsub.s32 %v7570, %v7572
    %v7574 = vrot.slane %v7560, %v7573
    %v7575 = vcombine.low %v7550, %v7558
    %v7576 = vcombine.high %v7550, %v7558
    %v7578 = vunpack.c.l.s4 1934713408
    %v7579 = vunpack.c.0.s8 %v7578
    %v7580 = vlaneseq
    %v7581 = vshrl.u32 %v7580, 7
    %v7582 = vsub.s32 %v7579, %v7581
    %v7583 = vrot.slane %v7575, %v7582
    %v7585 = vunpack.c.l.s4 1934713408
    %v7586 = vunpack.c.0.s8 %v7585
    %v7587 = vlaneseq
    %v7588 = vshrl.u32 %v7587, 7
    %v7589 = vsub.s32 %v7586, %v7588
    %v7590 = vrot.slane %v7576, %v7589
    %v7591 = vcombine.low %v7567, %v7583
    %v7592 = vcombine.high %v7567, %v7583
    %v7593 = vcombine.low %v7574, %v7590
    %v7594 = vcombine.high %v7574, %v7590
    %v7595 = vcombine.low %v7255, %v7256
    %v7597 = vunpack.c.l.s4 1983009808
    %v7598 = vunpack.c.0.s8 %v7597
    %v7599 = vlaneseq
    %v7600 = vshrl.u32 %v7599, 7
    %v7601 = vsub.s32 %v7598, %v7600
    %v7602 = vrot.slane %v7595, %v7601
    %v7603 = vcombine.low %v7245, %v7254
    %v7605 = vunpack.c.l.s4 1983009808
    %v7606 = vunpack.c.0.s8 %v7605
    %v7607 = vlaneseq
    %v7608 = vshrl.u32 %v7607, 7
    %v7609 = vsub.s32 %v7606, %v7608
    %v7610 = vrot.slane %v7603, %v7609
    %v7611 = vcombine.high %v7254, 0.0
    %v7613 = vunpack.c.l.s4 1983009808
    %v7614 = vunpack.c.0.s8 %v7613
    %v7615 = vlaneseq
    %v7616 = vshrl.u32 %v7615, 7
    %v7617 = vsub.s32 %v7614, %v7616
    %v7618 = vrot.slane %v7611, %v7617
    %v7620 = vunpack.c.l.s4 1934713408
    %v7621 = vunpack.c.0.s8 %v7620
    %v7622 = vlaneseq
    %v7623 = vshrl.u32 %v7622, 7
    %v7624 = vsub.s32 %v7621, %v7623
    %v7625 = vrot.slane %v7247, %v7624
    %v7627 = vunpack.c.l.s4 1983009808
    %v7628 = vunpack.c.0.s8 %v7627
    %v7629 = vlaneseq
    %v7630 = vshrl.u32 %v7629, 7
    %v7631 = vsub.s32 %v7628, %v7630
    %v7632 = vrot.slane %v7625, %v7631
    %v7633 = vcombine.low %v7602, %v7610
    %v7634 = vcombine.high %v7602, %v7610
    %v7636 = vunpack.c.l.s4 1934713408
    %v7637 = vunpack.c.0.s8 %v7636
    %v7638 = vlaneseq
    %v7639 = vshrl.u32 %v7638, 7
    %v7640 = vsub.s32 %v7637, %v7639
    %v7641 = vrot.slane %v7633, %v7640
    %v7643 = vunpack.c.l.s4 1934713408
    %v7644 = vunpack.c.0.s8 %v7643
    %v7645 = vlaneseq
    %v7646 = vshrl.u32 %v7645, 7
    %v7647 = vsub.s32 %v7644, %v7646
    %v7648 = vrot.slane %v7634, %v7647
    %v7649 = vcombine.low %v7618, %v7632
    %v7650 = vcombine.high %v7618, %v7632
    %v7652 = vunpack.c.l.s4 1934713408
    %v7653 = vunpack.c.0.s8 %v7652
    %v7654 = vlaneseq
    %v7655 = vshrl.u32 %v7654, 7
    %v7656 = vsub.s32 %v7653, %v7655
    %v7657 = vrot.slane %v7649, %v7656
    %v7659 = vunpack.c.l.s4 1934713408
    %v7660 = vunpack.c.0.s8 %v7659
    %v7661 = vlaneseq
    %v7662 = vshrl.u32 %v7661, 7
    %v7663 = vsub.s32 %v7660, %v7662
    %v7664 = vrot.slane %v7650, %v7663
    %v7665 = vcombine.low %v7641, %v7657
    %v7666 = vcombine.high %v7641, %v7657
    %v7667 = vcombine.low %v7648, %v7664
    %v7668 = vcombine.high %v7648, %v7664
    %7671 = vrot.lane.b32.xlu0 %v7386, 7
    %v7672 = vpop.permute.xlu0 %7671
    %7673 = vrot.lane.b32.xlu0 %v7520, 7
    %v7674 = vpop.permute.xlu0 %7673
    %7679 = vrot.lane.b32.xlu0 %v7387, 14
    %v7680 = vpop.permute.xlu0 %7679
    %7681 = vrot.lane.b32.xlu0 %v7521, 14
    %v7682 = vpop.permute.xlu0 %7681
    %7687 = vrot.lane.b32.xlu0 %v7388, 21
    %v7688 = vpop.permute.xlu0 %7687
    %7689 = vrot.lane.b32.xlu0 %v7522, 21
    %v7690 = vpop.permute.xlu0 %7689
    %7695 = vrot.lane.b32.xlu0 %v7389, 28
    %v7696 = vpop.permute.xlu0 %7695
    %7697 = vrot.lane.b32.xlu0 %v7523, 28
    %v7698 = vpop.permute.xlu0 %7697
    %7703 = vrot.lane.b32.xlu0 %v7390, 35
    %v7704 = vpop.permute.xlu0 %7703
    %7705 = vrot.lane.b32.xlu0 %v7524, 35
    %v7706 = vpop.permute.xlu0 %7705
    %7711 = vrot.lane.b32.xlu0 %v7391, 42
    %v7712 = vpop.permute.xlu0 %7711
    %7713 = vrot.lane.b32.xlu0 %v7525, 42
    %v7714 = vpop.permute.xlu0 %7713
    %7719 = vrot.lane.b32.xlu0 %v7392, 49
    %v7720 = vpop.permute.xlu0 %7719
    %7721 = vrot.lane.b32.xlu0 %v7526, 49
    %v7722 = vpop.permute.xlu0 %7721
    %7727 = vrot.lane.b32.xlu0 %v7591, 56
    %v7728 = vpop.permute.xlu0 %7727
    %7729 = vrot.lane.b32.xlu0 %v7665, 56
    %v7730 = vpop.permute.xlu0 %7729
    %7735 = vrot.lane.b32.xlu0 %v7592, 63
    %v7736 = vpop.permute.xlu0 %7735
    %7737 = vrot.lane.b32.xlu0 %v7666, 63
    %v7738 = vpop.permute.xlu0 %7737
    %7743 = vrot.lane.b32.xlu0 %v7593, 70
    %v7744 = vpop.permute.xlu0 %7743
    %7745 = vrot.lane.b32.xlu0 %v7667, 70
    %v7746 = vpop.permute.xlu0 %7745
    %7751 = vrot.lane.b32.xlu0 %v7594, 77
    %v7752 = vpop.permute.xlu0 %7751
    %7753 = vrot.lane.b32.xlu0 %v7668, 77
    %v7754 = vpop.permute.xlu0 %7753
    %v7757 = vsel %vm2946, %v7385, %v7672
    %v7758 = vsel %vm2946, %v7519, %v7674
    %vm7759 = vcmask 113664
    %v7760 = vsel %vm7759, %v7757, %v7680
    %v7761 = vsel %vm7759, %v7758, %v7682
    %vm7762 = vcmask 171008
    %v7763 = vsel %vm7762, %v7760, %v7688
    %v7764 = vsel %vm7762, %v7761, %v7690
    %vm7765 = vcmask 228352
    %v7766 = vsel %vm7765, %v7763, %v7696
    %v7767 = vsel %vm7765, %v7764, %v7698
    %vm7768 = vcmask 285696
    %v7769 = vsel %vm7768, %v7766, %v7704
    %v7770 = vsel %vm7768, %v7767, %v7706
    %vm7771 = vcmask 343040
    %v7772 = vsel %vm7771, %v7769, %v7712
    %v7773 = vsel %vm7771, %v7770, %v7714
    %vm7774 = vcmask 400384
    %v7775 = vsel %vm7774, %v7772, %v7720
    %v7776 = vsel %vm7774, %v7773, %v7722
    %vm7777 = vcmask 457728
    %v7778 = vsel %vm7777, %v7775, %v7728
    %v7779 = vsel %vm7777, %v7776, %v7730
    %vm7780 = vcmask 515072
    %v7781 = vsel %vm7780, %v7778, %v7736
    %v7782 = vsel %vm7780, %v7779, %v7738
    %vm7783 = vcmask 572416
    %v7784 = vsel %vm7783, %v7781, %v7744
    %v7785 = vsel %vm7783, %v7782, %v7746
    %vm7786 = vcmask 629760
    %v7787 = vsel %vm7786, %v7784, %v7752
    %v7788 = vsel %vm7786, %v7785, %v7754
    %vm7789 = vcmask 687104
    %v7790 = vsel %vm7789, %v7787, 0.0
    %v7791 = vsel %vm7789, %v7788, 0.0
    %7792 = vst [vmem:[%s3] sm:$0xff] %v7790
    %7793 = vst [vmem:[%s3 + $0x8] sm:$0x3f] %v7791
    // Predicated region
    $region18: #{self_attention_forward.1} parent=1 // pred_check
      _
    $region19: #{self_attention_forward.1} parent=1 // pred_check_branch
      %7795 = sbr.rel (0) target = $region21
    $region20: #{self_attention_forward.1} parent=1 // pred_region
      _
    $region21: #{self_attention_forward.1} parent=1 // pred_fallthru
      _
    // Predicated region
    $region22: #{self_attention_forward.1} parent=1 // pred_check
      _
    $region23: #{self_attention_forward.1} parent=1 // pred_check_branch
      %7797 = sbr.rel (0) target = $region25
    $region24: #{self_attention_forward.1} parent=1 // pred_region
      _
    $region25: #{self_attention_forward.1} parent=1 // pred_fallthru
      _
    %7798 = vsyncpa [#allocation3], 1

</llo_original>
